<compile_context>
chip_gen: v7x
topology: tpu7x:2x2x1
jax: 0.10.0
libtpu: 0.0.40
codegen_flags: <defaults>
</compile_context>

<pallas_src>
import functools

import jax
import jax.numpy as jnp
import numpy as np
from jax.experimental import pallas as pl
from jax.experimental.pallas import tpu as pltpu

BN_EPS = 1e-5


def _fold_bn(gamma, beta, mean, var):
    """Fold inference-mode BatchNorm into a per-channel (scale, bias)."""
    scale = gamma / jnp.sqrt(var + BN_EPS)
    bias = beta - mean * scale
    return (scale.reshape(1, -1).astype(jnp.float32),
            bias.reshape(1, -1).astype(jnp.float32))


# ----------------------------------------------------------------------------
# Pallas kernel: one block of `nb` images per grid step, flat padded layout,
# two row-strip phases through the pad2 VMEM scratch.
# ----------------------------------------------------------------------------
def _resnext_kernel(x_ref, w0_ref, b0_ref, wl_ref, b1_ref,
                    w2_ref, b2_ref, w3_ref, b3_ref, wsc_ref, bsc_ref,
                    out_ref, pad2_ref, *,
                    nb, H, W, Hpp, Wp, Mb, SM, num_strips, n_gt, TGW):
    Fb, GW = pad2_ref.shape
    tail = Fb - (Wp + 1) - Mb

    # Re-zero only the two small pad2 border strips (the interior span is fully
    # rewritten each step, junk positions masked to zero).  Done every step:
    # scratch is per-core, so gating on program_id(0)==0 would leave the second
    # TensorCore's borders uninitialized under "parallel" sharding.
    pad2_ref[pl.ds(0, Wp + 1), :] = jnp.zeros((Wp + 1, GW), pad2_ref.dtype)
    pad2_ref[pl.ds(Wp + 1 + Mb, tail), :] = jnp.zeros((tail, GW),
                                                      pad2_ref.dtype)

    def conv3x3(src_ref, base, w_ref, w_base=0, col=None):
        # 3x3 conv as 9 shifted contiguous-slice MXU matmuls (f32 accumulate);
        # accumulator initialized from the first tap's dot.
        def src(off):
            if col is None:
                return src_ref[pl.ds(base + off, SM), :]
            return src_ref[pl.ds(base + off, SM), pl.ds(col, TGW)]
        acc = jnp.dot(src(0), w_ref[w_base], preferred_element_type=jnp.float32)
        for k in range(1, 9):
            off = (k // 3) * Wp + (k % 3)
            acc = acc + jnp.dot(src(off), w_ref[w_base + k],
                                preferred_element_type=jnp.float32)
        return acc

    def strip_mask(start):
        # Validity of each flat output position in the strip: zero on padded
        # columns (and on junk rows between images when nb > 1).
        i = jax.lax.broadcasted_iota(jnp.int32, (SM, 1), 0)
        ok = (i % Wp) < W
        if nb > 1:
            r = start // Wp + i // Wp
            ok = jnp.logical_and(ok, (r % Hpp) < H)
        return ok

    def phase1(s):
        start = s * SM
        if not isinstance(start, int):
            start = pl.multiple_of(start, 8)
        t = conv3x3(x_ref, start, w0_ref)                       # (SM, C0) f32
        t = jnp.maximum(t + b0_ref[...], 0.0)
        t = jnp.dot(t.astype(jnp.bfloat16), wl_ref[...],
                    preferred_element_type=jnp.float32)         # (SM, GW)
        t = jnp.maximum(t + b1_ref[...], 0.0)
        t = jnp.where(strip_mask(start), t, 0.0)
        pad2_ref[pl.ds(Wp + 1 + start, SM), :] = t.astype(pad2_ref.dtype)

    def phase2(s):
        start = s * SM
        if not isinstance(start, int):
            start = pl.multiple_of(start, 8)
        acc3 = None
        for gt in range(n_gt):                    # group tiles of conv2/conv3
            a = conv3x3(pad2_ref, start, w2_ref, w_base=gt * 9, col=gt * TGW)
            a = jnp.maximum(a + b2_ref[gt], 0.0)                # (SM, TGW)
            d3 = jnp.dot(a.astype(jnp.bfloat16), w3_ref[gt],
                         preferred_element_type=jnp.float32)    # (SM, Cout)
            acc3 = d3 if acc3 is None else acc3 + d3
        sc = jnp.dot(x_ref[pl.ds(Wp + 1 + start, SM), :], wsc_ref[...],
                     preferred_element_type=jnp.float32)
        out = jnp.maximum(acc3 + b3_ref[...] + sc + bsc_ref[...], 0.0)
        out_ref[pl.ds(start, SM), :] = out.astype(out_ref.dtype)

    def run_strips(body):
        if num_strips == 1:
            body(0)
        else:
            jax.lax.fori_loop(0, num_strips, lambda s, c: (body(s), c)[1], 0)

    run_strips(phase1)   # conv0 -> bn0/relu -> linear -> bn1/relu -> pad2
    run_strips(phase2)   # conv2 -> bn2/relu -> conv3 -> bn3 -> +sc -> relu


# ----------------------------------------------------------------------------
# Wrapper: NCHW in / NCHW out, host-side weight folding + layout prep.
# ----------------------------------------------------------------------------
def resnext_block_pallas(x_nchw, P, cardinality, bottleneck_width,
                         images_per_step=1, strip_rows_target=512,
                         out_dtype=jnp.float32):
    x = jnp.transpose(x_nchw, (0, 2, 3, 1)).astype(jnp.float32)  # NCHW -> NHWC
    N, H, W, Cin = x.shape
    nb = images_per_step
    assert N % nb == 0

    bw = bottleneck_width
    GW = cardinality * bw
    Cout = 2 * GW                                                # expansion = 2

    # Group-tiling for conv2: tiles of GT groups, TGW = GT*bw <= 128 channels.
    GT = 1
    for d in range(1, cardinality + 1):
        if cardinality % d == 0 and bw * d <= 128:
            GT = d
    TGW = bw * GT
    n_gt = cardinality // GT

    # Lane/sublane-friendly padded geometry.
    Wp = ((W + 2 + 7) // 8) * 8            # >= W+2, multiple of 8
    pad_bot = 2                            # >= 2 rows of tap-slice slack
    while ((H + 1 + pad_bot) * Wp) % 16 != 0:
        pad_bot += 1                       # bf16 sublane packing
    Hpp = H + 1 + pad_bot                  # 1 top + H data + pad_bot bottom
    Rb = nb * Hpp
    Fb = Rb * Wp
    prows = Rb - 1 - pad_bot               # padded rows actually computed
    Mb = prows * Wp                        # flat positions actually computed

    # Row-strip tiling of the computed span (bounds live f32 intermediates).
    strip_prows = 1
    for d in range(1, prows + 1):
        if prows % d == 0 and d * Wp <= strip_rows_target:
            strip_prows = d
    SM = strip_prows * Wp
    num_strips = prows // strip_prows

    # Fold BN scales into conv weights (host side), cast operands to bf16.
    s0, b0 = _fold_bn(*P["bn0"])
    s1, b1 = _fold_bn(*P["bn1"])
    s2, b2 = _fold_bn(*P["bn2"])
    s3, b3 = _fold_bn(*P["bn3"])
    ssc, bsc = _fold_bn(*P["bnsc"])

    w0 = (P["w0_k"] * s0).astype(jnp.bfloat16)      # (9, Cin, C0)
    wl = (P["wl"] * s1).astype(jnp.bfloat16)        # (C0, GW)
    w3 = (P["w3"] * s3).astype(jnp.bfloat16)        # (GW, Cout)
    wsc = (P["wsc"] * ssc).astype(jnp.bfloat16)     # (Cin, Cout)
    C0 = w0.shape[-1]

    # Group-tiled block-diagonal conv2 weights: (n_gt*9, TGW, TGW).
    w2_grp = np.asarray(P["w2_grp"], np.float32)    # (GW, bw, 3, 3) torch layout
    w2_grp = w2_grp * np.asarray(s2, np.float32).reshape(GW)[:, None, None, None]
    w2t_np = np.zeros((n_gt, 9, TGW, TGW), np.float32)
    for g in range(cardinality):
        gt, j = divmod(g, GT)
        blk = np.transpose(w2_grp[g * bw:(g + 1) * bw],
                           (2, 3, 1, 0)).reshape(9, bw, bw)   # (tap, in, out)
        w2t_np[gt, :, j * bw:(j + 1) * bw, j * bw:(j + 1) * bw] = blk
    w2t = jnp.asarray(w2t_np.reshape(n_gt * 9, TGW, TGW), jnp.bfloat16)
    b2t = b2.reshape(n_gt, 1, TGW)                  # per-tile bias
    w3t = w3.reshape(n_gt, TGW, Cout)               # per-tile row block of conv3

    # Flat, per-image zero-padded input (contiguous HBM block per grid step).
    xp = jnp.pad(x, ((0, 0), (1, pad_bot), (1, Wp - (W + 1)), (0, 0)))
    x_flat = xp.reshape(N * Hpp * Wp, Cin).astype(jnp.bfloat16)

    def const_spec(a):
        nd = a.ndim
        return pl.BlockSpec(a.shape, lambda n, _nd=nd: (0,) * _nd)

    # Per-step VMEM budget -> explicit limit (capped at v7x's 64 MiB).
    def _nb_(shape, dt):
        return int(np.prod(shape)) * np.dtype(dt).itemsize
    wbytes = sum(int(np.prod(a.shape)) * a.dtype.itemsize
                 for a in (w0, b0, wl, b1, w2t, b2t, w3t, b3, wsc, bsc))
    est = (2 * _nb_((Fb, Cin), jnp.bfloat16)        # x block (double-buffered)
           + _nb_((Fb, GW), jnp.bfloat16)           # pad2 scratch
           + 2 * _nb_((Mb, Cout), out_dtype)        # out block (double-buffered)
           + 2 * wbytes                             # constant blocks
           + 8 * _nb_((SM, max(C0, GW, Cout)), jnp.float32))  # live f32 temps
    vmem_limit = int(min(max(2 * est, 32 << 20), 64 << 20))

    n_blocks = N // nb
    kern = functools.partial(_resnext_kernel, nb=nb, H=H, W=W, Hpp=Hpp, Wp=Wp,
                             Mb=Mb, SM=SM, num_strips=num_strips,
                             n_gt=n_gt, TGW=TGW)

    out_flat = pl.pallas_call(
        kern,
        out_shape=jax.ShapeDtypeStruct((n_blocks * Mb, Cout), out_dtype),
        grid_spec=pltpu.PrefetchScalarGridSpec(
            num_scalar_prefetch=0,
            grid=(n_blocks,),
            in_specs=[
                pl.BlockSpec((Fb, Cin), lambda n: (n, 0)),
                const_spec(w0), const_spec(b0),
                const_spec(wl), const_spec(b1),
                const_spec(w2t), const_spec(b2t),
                const_spec(w3t), const_spec(b3),
                const_spec(wsc), const_spec(bsc),
            ],
            out_specs=pl.BlockSpec((Mb, Cout), lambda n: (n, 0)),
            scratch_shapes=[pltpu.VMEM((Fb, GW), jnp.bfloat16)],
        ),
        compiler_params=pltpu.CompilerParams(
            dimension_semantics=("parallel",),
            vmem_limit_bytes=vmem_limit),
    )(x_flat, w0, b0, wl, b1, w2t, b2t, w3t, b3, wsc, bsc)

    # Unflatten in the wrapper (cheap XLA ops, no in-kernel cross-lane reshape).
    out_flat = out_flat.reshape(n_blocks, Mb, Cout).astype(jnp.float32)
    out_full = jnp.pad(out_flat, ((0, 0), (Wp + 1, Fb - Mb - (Wp + 1)), (0, 0)))
    out = out_full.reshape(N, Hpp, Wp, Cout)[:, 1:H + 1, 1:W + 1, :]
    return jnp.transpose(out, (0, 3, 1, 2))                      # NHWC -> NCHW


# ----------------------------------------------------------------------------
# Deterministic synthetic parameters (shapes implied by the module's __init__).
# ----------------------------------------------------------------------------
def make_params(key, input_channels, cardinality, bottleneck_width, lmbda=2):
    GW = cardinality * bottleneck_width
    bw = bottleneck_width
    C0 = lmbda * input_channels             # conv0.filter_bank.size(0)
    Cout = 2 * GW
    keys = jax.random.split(key, 10)

    def w(k, shape, scale=0.2):
        return jax.random.normal(k, shape, jnp.float32) * scale

    def bn(k, C):
        k1, k2, k3, k4 = jax.random.split(k, 4)
        gamma = 1.0 + 0.1 * jax.random.normal(k1, (C,), jnp.float32)
        beta = 0.1 * jax.random.normal(k2, (C,), jnp.float32)
        mean = 0.1 * jax.random.normal(k3, (C,), jnp.float32)
        var = 0.5 + jax.random.uniform(k4, (C,), jnp.float32)
        return gamma, beta, mean, var

    w0_hwio = w(keys[0], (3, 3, input_channels, C0))     # conv0 filter bank
    wl = w(keys[1], (C0, GW))                            # 1x1 "linear"
    w2_grp = w(keys[2], (GW, bw, 3, 3))                  # torch grouped (O,I/g,kH,kW)
    w3 = w(keys[3], (GW, Cout))                          # 1x1 conv3
    wsc = w(keys[4], (input_channels, Cout))             # shortcut 1x1

    return dict(
        w0_hwio=w0_hwio,
        w0_k=w0_hwio.reshape(9, input_channels, C0),
        wl=wl, w2_grp=w2_grp,
        w2_hwio_grouped=jnp.transpose(w2_grp, (2, 3, 1, 0)),     # (3,3,bw,GW)
        w3=w3, wsc=wsc,
        bn0=bn(keys[5], C0), bn1=bn(keys[6], GW), bn2=bn(keys[7], GW),
        bn3=bn(keys[8], Cout), bnsc=bn(keys[9], Cout),
    )


# ----------------------------------------------------------------------------
# Pure-JAX f32 reference (matches the PyTorch forward in eval mode).
# ----------------------------------------------------------------------------
def reference_forward(x_nchw, P, cardinality):
    x = jnp.transpose(x_nchw, (0, 2, 3, 1)).astype(jnp.float32)

    def conv3x3(x, w_hwio, groups=1):
        return jax.lax.conv_general_dilated(
            x, w_hwio, (1, 1), "SAME",
            dimension_numbers=("NHWC", "HWIO", "NHWC"),
            feature_group_count=groups)

    def bn(x, g, b, m, v):
        return (x - m) / jnp.sqrt(v + BN_EPS) * g + b

    out = conv3x3(x, P["w0_hwio"])
    out = jax.nn.relu(bn(out, *P["bn0"]))
    out = jnp.einsum("nhwc,cd->nhwd", out, P["wl"])
    out = jax.nn.relu(bn(out, *P["bn1"]))
    out = conv3x3(out, P["w2_hwio_grouped"], groups=cardinality)
    out = jax.nn.relu(bn(out, *P["bn2"]))
    out = jnp.einsum("nhwc,cd->nhwd", out, P["w3"])
    out = bn(out, *P["bn3"])
    sc = jnp.einsum("nhwc,cd->nhwd", x, P["wsc"])
    sc = bn(sc, *P["bnsc"])
    out = jax.nn.relu(out + sc)
    return jnp.transpose(out, (0, 3, 1, 2))


if __name__ == "__main__":
    key = jax.random.PRNGKey(0)
    kx, kp = jax.random.split(key)

    # Small shapes consistent with the module.
    N, input_channels, H, W = 2, 8, 16, 16
    cardinality, bottleneck_width = 2, 4      # group_width = 8, out channels = 16

    x = jax.random.normal(kx, (N, input_channels, H, W), jnp.float32)
    P = make_params(kp, input_channels, cardinality, bottleneck_width, lmbda=2)

    out = resnext_block_pallas(x, P, cardinality, bottleneck_width)
    out = jax.block_until_ready(out)

    ref = reference_forward(x, P, cardinality)
    # bf16 MXU operands with f32 accumulation: ~1e-2 relative error expected.
    np.testing.assert_allclose(np.asarray(out), np.asarray(ref),
                               atol=5e-2, rtol=5e-2)

    print("KERNEL_OK")
</pallas_src>

<mosaic_0001>
module attributes {stable_mosaic.version = 11 : i64} {
  func.func @_resnext_kernel(%arg0: i32, %arg1: memref<480x8xbf16, #tpu.memory_space<vmem>>, %arg2: memref<9x8x16xbf16, #tpu.memory_space<vmem>>, %arg3: memref<1x16xf32, #tpu.memory_space<vmem>>, %arg4: memref<16x8xbf16, #tpu.memory_space<vmem>>, %arg5: memref<1x8xf32, #tpu.memory_space<vmem>>, %arg6: memref<9x8x8xbf16, #tpu.memory_space<vmem>>, %arg7: memref<1x1x8xf32, #tpu.memory_space<vmem>>, %arg8: memref<1x8x16xbf16, #tpu.memory_space<vmem>>, %arg9: memref<1x16xf32, #tpu.memory_space<vmem>>, %arg10: memref<8x16xbf16, #tpu.memory_space<vmem>>, %arg11: memref<1x16xf32, #tpu.memory_space<vmem>>, %arg12: memref<384x16xf32, #tpu.memory_space<vmem>>, %arg13: memref<480x8xbf16, #tpu.memory_space<vmem>>) attributes {dimension_semantics = [#tpu.dimension_semantics<parallel>], iteration_bounds = array<i64: 2>, scalar_prefetch = 0 : i64, scratch_operands = 1 : i64, tpu.core_type = #tpu.core_type<tc>, window_params = [{transform_indices = @transform_0, window_bounds = array<i64: 480, 8>}, {pipeline_mode = #tpu.pipeline_mode<synchronous>, transform_indices = @transform_1, window_bounds = array<i64: 9, 8, 16>}, {pipeline_mode = #tpu.pipeline_mode<synchronous>, transform_indices = @transform_2, window_bounds = array<i64: 1, 16>}, {pipeline_mode = #tpu.pipeline_mode<synchronous>, transform_indices = @transform_3, window_bounds = array<i64: 16, 8>}, {pipeline_mode = #tpu.pipeline_mode<synchronous>, transform_indices = @transform_4, window_bounds = array<i64: 1, 8>}, {pipeline_mode = #tpu.pipeline_mode<synchronous>, transform_indices = @transform_5, window_bounds = array<i64: 9, 8, 8>}, {pipeline_mode = #tpu.pipeline_mode<synchronous>, transform_indices = @transform_6, window_bounds = array<i64: 1, 1, 8>}, {pipeline_mode = #tpu.pipeline_mode<synchronous>, transform_indices = @transform_7, window_bounds = array<i64: 1, 8, 16>}, {pipeline_mode = #tpu.pipeline_mode<synchronous>, transform_indices = @transform_8, window_bounds = array<i64: 1, 16>}, {pipeline_mode = #tpu.pipeline_mode<synchronous>, transform_indices = @transform_9, window_bounds = array<i64: 8, 16>}, {pipeline_mode = #tpu.pipeline_mode<synchronous>, transform_indices = @transform_10, window_bounds = array<i64: 1, 16>}, {transform_indices = @transform_11, window_bounds = array<i64: 384, 16>}]} {
    %cst = arith.constant 0.000000e+00 : bf16
    %0 = vector.broadcast %cst : bf16 to vector<25x8xbf16>
    %c0 = arith.constant 0 : index
    %c0_0 = arith.constant 0 : index
    %1 = vector.load %arg13[%c0, %c0_0] : memref<480x8xbf16, #tpu.memory_space<vmem>>, vector<25x8xbf16>
    tpu.vector_store %arg13[%c0, %c0_0], %0 {strides = array<i32>} : memref<480x8xbf16, #tpu.memory_space<vmem>>, vector<25x8xbf16>,
    %cst_1 = arith.constant 0.000000e+00 : bf16
    %2 = vector.broadcast %cst_1 : bf16 to vector<71x8xbf16>
    %c409 = arith.constant 409 : index
    %c0_2 = arith.constant 0 : index
    %3 = vector.load %arg13[%c409, %c0_2] : memref<480x8xbf16, #tpu.memory_space<vmem>>, vector<71x8xbf16>
    tpu.vector_store %arg13[%c409, %c0_2], %2 {strides = array<i32>} : memref<480x8xbf16, #tpu.memory_space<vmem>>, vector<71x8xbf16>,
    %c0_3 = arith.constant 0 : index
    %c0_4 = arith.constant 0 : index
    %4 = vector.load %arg1[%c0_3, %c0_4] : memref<480x8xbf16, #tpu.memory_space<vmem>>, vector<384x8xbf16>
    %c0_5 = arith.constant 0 : index
    %c0_6 = arith.constant 0 : index
    %c0_7 = arith.constant 0 : index
    %5 = vector.load %arg2[%c0_5, %c0_6, %c0_7] : memref<9x8x16xbf16, #tpu.memory_space<vmem>>, vector<1x8x16xbf16>
    %6 = vector.shape_cast %5 : vector<1x8x16xbf16> to vector<8x16xbf16>
    %cst_8 = arith.constant dense<0.000000e+00> : vector<384x16xf32>
    %7 = tpu.matmul %4, %6, %cst_8 {dimension_numbers = #tpu.dot_dimension_numbers<[1], [0], [0], [1], [0, 0, 1, 1], [], []>} : vector<384x8xbf16>, vector<8x16xbf16>, vector<384x16xf32> -> vector<384x16xf32>
    %c1 = arith.constant 1 : index
    %c0_9 = arith.constant 0 : index
    %8 = vector.load %arg1[%c1, %c0_9] : memref<480x8xbf16, #tpu.memory_space<vmem>>, vector<384x8xbf16>
    %c1_10 = arith.constant 1 : index
    %c0_11 = arith.constant 0 : index
    %c0_12 = arith.constant 0 : index
    %9 = vector.load %arg2[%c1_10, %c0_11, %c0_12] : memref<9x8x16xbf16, #tpu.memory_space<vmem>>, vector<1x8x16xbf16>
    %10 = vector.shape_cast %9 : vector<1x8x16xbf16> to vector<8x16xbf16>
    %cst_13 = arith.constant dense<0.000000e+00> : vector<384x16xf32>
    %11 = tpu.matmul %8, %10, %cst_13 {dimension_numbers = #tpu.dot_dimension_numbers<[1], [0], [0], [1], [0, 0, 1, 1], [], []>} : vector<384x8xbf16>, vector<8x16xbf16>, vector<384x16xf32> -> vector<384x16xf32>
    %12 = arith.addf %7, %11 : vector<384x16xf32>
    %c2 = arith.constant 2 : index
    %c0_14 = arith.constant 0 : index
    %13 = vector.load %arg1[%c2, %c0_14] : memref<480x8xbf16, #tpu.memory_space<vmem>>, vector<384x8xbf16>
    %c2_15 = arith.constant 2 : index
    %c0_16 = arith.constant 0 : index
    %c0_17 = arith.constant 0 : index
    %14 = vector.load %arg2[%c2_15, %c0_16, %c0_17] : memref<9x8x16xbf16, #tpu.memory_space<vmem>>, vector<1x8x16xbf16>
    %15 = vector.shape_cast %14 : vector<1x8x16xbf16> to vector<8x16xbf16>
    %cst_18 = arith.constant dense<0.000000e+00> : vector<384x16xf32>
    %16 = tpu.matmul %13, %15, %cst_18 {dimension_numbers = #tpu.dot_dimension_numbers<[1], [0], [0], [1], [0, 0, 1, 1], [], []>} : vector<384x8xbf16>, vector<8x16xbf16>, vector<384x16xf32> -> vector<384x16xf32>
    %17 = arith.addf %12, %16 : vector<384x16xf32>
    %c24 = arith.constant 24 : index
    %c0_19 = arith.constant 0 : index
    %18 = vector.load %arg1[%c24, %c0_19] : memref<480x8xbf16, #tpu.memory_space<vmem>>, vector<384x8xbf16>
    %c3 = arith.constant 3 : index
    %c0_20 = arith.constant 0 : index
    %c0_21 = arith.constant 0 : index
    %19 = vector.load %arg2[%c3, %c0_20, %c0_21] : memref<9x8x16xbf16, #tpu.memory_space<vmem>>, vector<1x8x16xbf16>
    %20 = vector.shape_cast %19 : vector<1x8x16xbf16> to vector<8x16xbf16>
    %cst_22 = arith.constant dense<0.000000e+00> : vector<384x16xf32>
    %21 = tpu.matmul %18, %20, %cst_22 {dimension_numbers = #tpu.dot_dimension_numbers<[1], [0], [0], [1], [0, 0, 1, 1], [], []>} : vector<384x8xbf16>, vector<8x16xbf16>, vector<384x16xf32> -> vector<384x16xf32>
    %22 = arith.addf %17, %21 : vector<384x16xf32>
    %c25 = arith.constant 25 : index
    %c0_23 = arith.constant 0 : index
    %23 = vector.load %arg1[%c25, %c0_23] : memref<480x8xbf16, #tpu.memory_space<vmem>>, vector<384x8xbf16>
    %c4 = arith.constant 4 : index
    %c0_24 = arith.constant 0 : index
    %c0_25 = arith.constant 0 : index
    %24 = vector.load %arg2[%c4, %c0_24, %c0_25] : memref<9x8x16xbf16, #tpu.memory_space<vmem>>, vector<1x8x16xbf16>
    %25 = vector.shape_cast %24 : vector<1x8x16xbf16> to vector<8x16xbf16>
    %cst_26 = arith.constant dense<0.000000e+00> : vector<384x16xf32>
    %26 = tpu.matmul %23, %25, %cst_26 {dimension_numbers = #tpu.dot_dimension_numbers<[1], [0], [0], [1], [0, 0, 1, 1], [], []>} : vector<384x8xbf16>, vector<8x16xbf16>, vector<384x16xf32> -> vector<384x16xf32>
    %27 = arith.addf %22, %26 : vector<384x16xf32>
    %c26 = arith.constant 26 : index
    %c0_27 = arith.constant 0 : index
    %28 = vector.load %arg1[%c26, %c0_27] : memref<480x8xbf16, #tpu.memory_space<vmem>>, vector<384x8xbf16>
    %c5 = arith.constant 5 : index
    %c0_28 = arith.constant 0 : index
    %c0_29 = arith.constant 0 : index
    %29 = vector.load %arg2[%c5, %c0_28, %c0_29] : memref<9x8x16xbf16, #tpu.memory_space<vmem>>, vector<1x8x16xbf16>
    %30 = vector.shape_cast %29 : vector<1x8x16xbf16> to vector<8x16xbf16>
    %cst_30 = arith.constant dense<0.000000e+00> : vector<384x16xf32>
    %31 = tpu.matmul %28, %30, %cst_30 {dimension_numbers = #tpu.dot_dimension_numbers<[1], [0], [0], [1], [0, 0, 1, 1], [], []>} : vector<384x8xbf16>, vector<8x16xbf16>, vector<384x16xf32> -> vector<384x16xf32>
    %32 = arith.addf %27, %31 : vector<384x16xf32>
    %c48 = arith.constant 48 : index
    %c0_31 = arith.constant 0 : index
    %33 = vector.load %arg1[%c48, %c0_31] : memref<480x8xbf16, #tpu.memory_space<vmem>>, vector<384x8xbf16>
    %c6 = arith.constant 6 : index
    %c0_32 = arith.constant 0 : index
    %c0_33 = arith.constant 0 : index
    %34 = vector.load %arg2[%c6, %c0_32, %c0_33] : memref<9x8x16xbf16, #tpu.memory_space<vmem>>, vector<1x8x16xbf16>
    %35 = vector.shape_cast %34 : vector<1x8x16xbf16> to vector<8x16xbf16>
    %cst_34 = arith.constant dense<0.000000e+00> : vector<384x16xf32>
    %36 = tpu.matmul %33, %35, %cst_34 {dimension_numbers = #tpu.dot_dimension_numbers<[1], [0], [0], [1], [0, 0, 1, 1], [], []>} : vector<384x8xbf16>, vector<8x16xbf16>, vector<384x16xf32> -> vector<384x16xf32>
    %37 = arith.addf %32, %36 : vector<384x16xf32>
    %c49 = arith.constant 49 : index
    %c0_35 = arith.constant 0 : index
    %38 = vector.load %arg1[%c49, %c0_35] : memref<480x8xbf16, #tpu.memory_space<vmem>>, vector<384x8xbf16>
    %c7 = arith.constant 7 : index
    %c0_36 = arith.constant 0 : index
    %c0_37 = arith.constant 0 : index
    %39 = vector.load %arg2[%c7, %c0_36, %c0_37] : memref<9x8x16xbf16, #tpu.memory_space<vmem>>, vector<1x8x16xbf16>
    %40 = vector.shape_cast %39 : vector<1x8x16xbf16> to vector<8x16xbf16>
    %cst_38 = arith.constant dense<0.000000e+00> : vector<384x16xf32>
    %41 = tpu.matmul %38, %40, %cst_38 {dimension_numbers = #tpu.dot_dimension_numbers<[1], [0], [0], [1], [0, 0, 1, 1], [], []>} : vector<384x8xbf16>, vector<8x16xbf16>, vector<384x16xf32> -> vector<384x16xf32>
    %42 = arith.addf %37, %41 : vector<384x16xf32>
    %c50 = arith.constant 50 : index
    %c0_39 = arith.constant 0 : index
    %43 = vector.load %arg1[%c50, %c0_39] : memref<480x8xbf16, #tpu.memory_space<vmem>>, vector<384x8xbf16>
    %c8 = arith.constant 8 : index
    %c0_40 = arith.constant 0 : index
    %c0_41 = arith.constant 0 : index
    %44 = vector.load %arg2[%c8, %c0_40, %c0_41] : memref<9x8x16xbf16, #tpu.memory_space<vmem>>, vector<1x8x16xbf16>
    %45 = vector.shape_cast %44 : vector<1x8x16xbf16> to vector<8x16xbf16>
    %cst_42 = arith.constant dense<0.000000e+00> : vector<384x16xf32>
    %46 = tpu.matmul %43, %45, %cst_42 {dimension_numbers = #tpu.dot_dimension_numbers<[1], [0], [0], [1], [0, 0, 1, 1], [], []>} : vector<384x8xbf16>, vector<8x16xbf16>, vector<384x16xf32> -> vector<384x16xf32>
    %47 = arith.addf %42, %46 : vector<384x16xf32>
    %c0_43 = arith.constant 0 : index
    %c0_44 = arith.constant 0 : index
    %48 = vector.load %arg3[%c0_43, %c0_44] : memref<1x16xf32, #tpu.memory_space<vmem>>, vector<1x16xf32>
    %49 = vector.broadcast %48 : vector<1x16xf32> to vector<384x16xf32>
    %50 = arith.addf %47, %49 : vector<384x16xf32>
    %cst_45 = arith.constant 0.000000e+00 : f32
    %51 = vector.broadcast %cst_45 : f32 to vector<384x16xf32>
    %52 = arith.maximumf %50, %51 : vector<384x16xf32>
    %53 = arith.truncf %52 : vector<384x16xf32> to vector<384x16xbf16>
    %c0_46 = arith.constant 0 : index
    %c0_47 = arith.constant 0 : index
    %54 = vector.load %arg4[%c0_46, %c0_47] : memref<16x8xbf16, #tpu.memory_space<vmem>>, vector<16x8xbf16>
    %cst_48 = arith.constant dense<0.000000e+00> : vector<384x8xf32>
    %55 = tpu.matmul %53, %54, %cst_48 {dimension_numbers = #tpu.dot_dimension_numbers<[1], [0], [0], [1], [0, 0, 1, 1], [], []>} : vector<384x16xbf16>, vector<16x8xbf16>, vector<384x8xf32> -> vector<384x8xf32>
    %c0_49 = arith.constant 0 : index
    %c0_50 = arith.constant 0 : index
    %56 = vector.load %arg5[%c0_49, %c0_50] : memref<1x8xf32, #tpu.memory_space<vmem>>, vector<1x8xf32>
    %57 = vector.broadcast %56 : vector<1x8xf32> to vector<384x8xf32>
    %58 = arith.addf %55, %57 : vector<384x8xf32>
    %cst_51 = arith.constant 0.000000e+00 : f32
    %59 = vector.broadcast %cst_51 : f32 to vector<384x8xf32>
    %60 = arith.maximumf %58, %59 : vector<384x8xf32>
    %61 = tpu.iota {dimensions = array<i32: 0>} : vector<384x1xi32>
    %c24_i32 = arith.constant 24 : i32
    %c0_i32 = arith.constant 0 : i32
    %62 = arith.cmpi eq, %c24_i32, %c0_i32 : i32
    %c1_i32 = arith.constant 1 : i32
    %63 = arith.select %62, %c1_i32, %c24_i32 : i32
    %64 = vector.broadcast %63 : i32 to vector<384x1xi32>
    %65 = arith.remsi %61, %64 : vector<384x1xi32>
    %c0_i32_52 = arith.constant 0 : i32
    %66 = vector.broadcast %c0_i32_52 : i32 to vector<384x1xi32>
    %67 = arith.cmpi ne, %65, %66 : vector<384x1xi32>
    %c0_i32_53 = arith.constant 0 : i32
    %68 = vector.broadcast %c0_i32_53 : i32 to vector<384x1xi32>
    %69 = arith.cmpi slt, %65, %68 : vector<384x1xi32>
    %c0_i32_54 = arith.constant 0 : i32
    %70 = arith.cmpi slt, %63, %c0_i32_54 : i32
    %71 = vector.broadcast %70 : i1 to vector<384x1xi1>
    %72 = vector.broadcast %71 : vector<384x1xi1> to vector<384x1xi1>
    %73 = arith.xori %69, %72 : vector<384x1xi1>
    %74 = arith.andi %73, %67 : vector<384x1xi1>
    %75 = vector.broadcast %63 : i32 to vector<384x1xi32>
    %76 = arith.addi %65, %75 : vector<384x1xi32>
    %77 = arith.select %74, %76, %65 : vector<384x1xi1>, vector<384x1xi32>
    %c16_i32 = arith.constant 16 : i32
    %78 = vector.broadcast %c16_i32 : i32 to vector<384x1xi32>
    %79 = arith.cmpi slt, %77, %78 : vector<384x1xi32>
    %cst_55 = arith.constant 0.000000e+00 : f32
    %80 = vector.shape_cast %79 : vector<384x1xi1> to vector<384x1xi1>
    %81 = vector.broadcast %80 : vector<384x1xi1> to vector<384x8xi1>
    %82 = vector.broadcast %cst_55 : f32 to vector<384x8xf32>
    %83 = arith.select %81, %60, %82 : vector<384x8xi1>, vector<384x8xf32>
    %84 = arith.truncf %83 : vector<384x8xf32> to vector<384x8xbf16>
    %c25_56 = arith.constant 25 : index
    %c0_57 = arith.constant 0 : index
    %85 = vector.load %arg13[%c25_56, %c0_57] : memref<480x8xbf16, #tpu.memory_space<vmem>>, vector<384x8xbf16>
    tpu.vector_store %arg13[%c25_56, %c0_57], %84 {strides = array<i32>} : memref<480x8xbf16, #tpu.memory_space<vmem>>, vector<384x8xbf16>,
    %c0_58 = arith.constant 0 : index
    %c0_59 = arith.constant 0 : index
    %86 = vector.load %arg13[%c0_58, %c0_59] : memref<480x8xbf16, #tpu.memory_space<vmem>>, vector<384x8xbf16>
    %c0_60 = arith.constant 0 : index
    %c0_61 = arith.constant 0 : index
    %c0_62 = arith.constant 0 : index
    %87 = vector.load %arg6[%c0_60, %c0_61, %c0_62] : memref<9x8x8xbf16, #tpu.memory_space<vmem>>, vector<1x8x8xbf16>
    %88 = vector.shape_cast %87 : vector<1x8x8xbf16> to vector<8x8xbf16>
    %cst_63 = arith.constant dense<0.000000e+00> : vector<384x8xf32>
    %89 = tpu.matmul %86, %88, %cst_63 {dimension_numbers = #tpu.dot_dimension_numbers<[1], [0], [0], [1], [0, 0, 1, 1], [], []>} : vector<384x8xbf16>, vector<8x8xbf16>, vector<384x8xf32> -> vector<384x8xf32>
    %c1_64 = arith.constant 1 : index
    %c0_65 = arith.constant 0 : index
    %90 = vector.load %arg13[%c1_64, %c0_65] : memref<480x8xbf16, #tpu.memory_space<vmem>>, vector<384x8xbf16>
    %c1_66 = arith.constant 1 : index
    %c0_67 = arith.constant 0 : index
    %c0_68 = arith.constant 0 : index
    %91 = vector.load %arg6[%c1_66, %c0_67, %c0_68] : memref<9x8x8xbf16, #tpu.memory_space<vmem>>, vector<1x8x8xbf16>
    %92 = vector.shape_cast %91 : vector<1x8x8xbf16> to vector<8x8xbf16>
    %cst_69 = arith.constant dense<0.000000e+00> : vector<384x8xf32>
    %93 = tpu.matmul %90, %92, %cst_69 {dimension_numbers = #tpu.dot_dimension_numbers<[1], [0], [0], [1], [0, 0, 1, 1], [], []>} : vector<384x8xbf16>, vector<8x8xbf16>, vector<384x8xf32> -> vector<384x8xf32>
    %94 = arith.addf %89, %93 : vector<384x8xf32>
    %c2_70 = arith.constant 2 : index
    %c0_71 = arith.constant 0 : index
    %95 = vector.load %arg13[%c2_70, %c0_71] : memref<480x8xbf16, #tpu.memory_space<vmem>>, vector<384x8xbf16>
    %c2_72 = arith.constant 2 : index
    %c0_73 = arith.constant 0 : index
    %c0_74 = arith.constant 0 : index
    %96 = vector.load %arg6[%c2_72, %c0_73, %c0_74] : memref<9x8x8xbf16, #tpu.memory_space<vmem>>, vector<1x8x8xbf16>
    %97 = vector.shape_cast %96 : vector<1x8x8xbf16> to vector<8x8xbf16>
    %cst_75 = arith.constant dense<0.000000e+00> : vector<384x8xf32>
    %98 = tpu.matmul %95, %97, %cst_75 {dimension_numbers = #tpu.dot_dimension_numbers<[1], [0], [0], [1], [0, 0, 1, 1], [], []>} : vector<384x8xbf16>, vector<8x8xbf16>, vector<384x8xf32> -> vector<384x8xf32>
    %99 = arith.addf %94, %98 : vector<384x8xf32>
    %c24_76 = arith.constant 24 : index
    %c0_77 = arith.constant 0 : index
    %100 = vector.load %arg13[%c24_76, %c0_77] : memref<480x8xbf16, #tpu.memory_space<vmem>>, vector<384x8xbf16>
    %c3_78 = arith.constant 3 : index
    %c0_79 = arith.constant 0 : index
    %c0_80 = arith.constant 0 : index
    %101 = vector.load %arg6[%c3_78, %c0_79, %c0_80] : memref<9x8x8xbf16, #tpu.memory_space<vmem>>, vector<1x8x8xbf16>
    %102 = vector.shape_cast %101 : vector<1x8x8xbf16> to vector<8x8xbf16>
    %cst_81 = arith.constant dense<0.000000e+00> : vector<384x8xf32>
    %103 = tpu.matmul %100, %102, %cst_81 {dimension_numbers = #tpu.dot_dimension_numbers<[1], [0], [0], [1], [0, 0, 1, 1], [], []>} : vector<384x8xbf16>, vector<8x8xbf16>, vector<384x8xf32> -> vector<384x8xf32>
    %104 = arith.addf %99, %103 : vector<384x8xf32>
    %c25_82 = arith.constant 25 : index
    %c0_83 = arith.constant 0 : index
    %105 = vector.load %arg13[%c25_82, %c0_83] : memref<480x8xbf16, #tpu.memory_space<vmem>>, vector<384x8xbf16>
    %c4_84 = arith.constant 4 : index
    %c0_85 = arith.constant 0 : index
    %c0_86 = arith.constant 0 : index
    %106 = vector.load %arg6[%c4_84, %c0_85, %c0_86] : memref<9x8x8xbf16, #tpu.memory_space<vmem>>, vector<1x8x8xbf16>
    %107 = vector.shape_cast %106 : vector<1x8x8xbf16> to vector<8x8xbf16>
    %cst_87 = arith.constant dense<0.000000e+00> : vector<384x8xf32>
    %108 = tpu.matmul %105, %107, %cst_87 {dimension_numbers = #tpu.dot_dimension_numbers<[1], [0], [0], [1], [0, 0, 1, 1], [], []>} : vector<384x8xbf16>, vector<8x8xbf16>, vector<384x8xf32> -> vector<384x8xf32>
    %109 = arith.addf %104, %108 : vector<384x8xf32>
    %c26_88 = arith.constant 26 : index
    %c0_89 = arith.constant 0 : index
    %110 = vector.load %arg13[%c26_88, %c0_89] : memref<480x8xbf16, #tpu.memory_space<vmem>>, vector<384x8xbf16>
    %c5_90 = arith.constant 5 : index
    %c0_91 = arith.constant 0 : index
    %c0_92 = arith.constant 0 : index
    %111 = vector.load %arg6[%c5_90, %c0_91, %c0_92] : memref<9x8x8xbf16, #tpu.memory_space<vmem>>, vector<1x8x8xbf16>
    %112 = vector.shape_cast %111 : vector<1x8x8xbf16> to vector<8x8xbf16>
    %cst_93 = arith.constant dense<0.000000e+00> : vector<384x8xf32>
    %113 = tpu.matmul %110, %112, %cst_93 {dimension_numbers = #tpu.dot_dimension_numbers<[1], [0], [0], [1], [0, 0, 1, 1], [], []>} : vector<384x8xbf16>, vector<8x8xbf16>, vector<384x8xf32> -> vector<384x8xf32>
    %114 = arith.addf %109, %113 : vector<384x8xf32>
    %c48_94 = arith.constant 48 : index
    %c0_95 = arith.constant 0 : index
    %115 = vector.load %arg13[%c48_94, %c0_95] : memref<480x8xbf16, #tpu.memory_space<vmem>>, vector<384x8xbf16>
    %c6_96 = arith.constant 6 : index
    %c0_97 = arith.constant 0 : index
    %c0_98 = arith.constant 0 : index
    %116 = vector.load %arg6[%c6_96, %c0_97, %c0_98] : memref<9x8x8xbf16, #tpu.memory_space<vmem>>, vector<1x8x8xbf16>
    %117 = vector.shape_cast %116 : vector<1x8x8xbf16> to vector<8x8xbf16>
    %cst_99 = arith.constant dense<0.000000e+00> : vector<384x8xf32>
    %118 = tpu.matmul %115, %117, %cst_99 {dimension_numbers = #tpu.dot_dimension_numbers<[1], [0], [0], [1], [0, 0, 1, 1], [], []>} : vector<384x8xbf16>, vector<8x8xbf16>, vector<384x8xf32> -> vector<384x8xf32>
    %119 = arith.addf %114, %118 : vector<384x8xf32>
    %c49_100 = arith.constant 49 : index
    %c0_101 = arith.constant 0 : index
    %120 = vector.load %arg13[%c49_100, %c0_101] : memref<480x8xbf16, #tpu.memory_space<vmem>>, vector<384x8xbf16>
    %c7_102 = arith.constant 7 : index
    %c0_103 = arith.constant 0 : index
    %c0_104 = arith.constant 0 : index
    %121 = vector.load %arg6[%c7_102, %c0_103, %c0_104] : memref<9x8x8xbf16, #tpu.memory_space<vmem>>, vector<1x8x8xbf16>
    %122 = vector.shape_cast %121 : vector<1x8x8xbf16> to vector<8x8xbf16>
    %cst_105 = arith.constant dense<0.000000e+00> : vector<384x8xf32>
    %123 = tpu.matmul %120, %122, %cst_105 {dimension_numbers = #tpu.dot_dimension_numbers<[1], [0], [0], [1], [0, 0, 1, 1], [], []>} : vector<384x8xbf16>, vector<8x8xbf16>, vector<384x8xf32> -> vector<384x8xf32>
    %124 = arith.addf %119, %123 : vector<384x8xf32>
    %c50_106 = arith.constant 50 : index
    %c0_107 = arith.constant 0 : index
    %125 = vector.load %arg13[%c50_106, %c0_107] : memref<480x8xbf16, #tpu.memory_space<vmem>>, vector<384x8xbf16>
    %c8_108 = arith.constant 8 : index
    %c0_109 = arith.constant 0 : index
    %c0_110 = arith.constant 0 : index
    %126 = vector.load %arg6[%c8_108, %c0_109, %c0_110] : memref<9x8x8xbf16, #tpu.memory_space<vmem>>, vector<1x8x8xbf16>
    %127 = vector.shape_cast %126 : vector<1x8x8xbf16> to vector<8x8xbf16>
    %cst_111 = arith.constant dense<0.000000e+00> : vector<384x8xf32>
    %128 = tpu.matmul %125, %127, %cst_111 {dimension_numbers = #tpu.dot_dimension_numbers<[1], [0], [0], [1], [0, 0, 1, 1], [], []>} : vector<384x8xbf16>, vector<8x8xbf16>, vector<384x8xf32> -> vector<384x8xf32>
    %129 = arith.addf %124, %128 : vector<384x8xf32>
    %c0_112 = arith.constant 0 : index
    %c0_113 = arith.constant 0 : index
    %c0_114 = arith.constant 0 : index
    %130 = vector.load %arg7[%c0_112, %c0_113, %c0_114] : memref<1x1x8xf32, #tpu.memory_space<vmem>>, vector<1x1x8xf32>
    %131 = vector.shape_cast %130 : vector<1x1x8xf32> to vector<1x8xf32>
    %132 = vector.broadcast %131 : vector<1x8xf32> to vector<384x8xf32>
    %133 = arith.addf %129, %132 : vector<384x8xf32>
    %cst_115 = arith.constant 0.000000e+00 : f32
    %134 = vector.broadcast %cst_115 : f32 to vector<384x8xf32>
    %135 = arith.maximumf %133, %134 : vector<384x8xf32>
    %136 = arith.truncf %135 : vector<384x8xf32> to vector<384x8xbf16>
    %c0_116 = arith.constant 0 : index
    %c0_117 = arith.constant 0 : index
    %c0_118 = arith.constant 0 : index
    %137 = vector.load %arg8[%c0_116, %c0_117, %c0_118] : memref<1x8x16xbf16, #tpu.memory_space<vmem>>, vector<1x8x16xbf16>
    %138 = vector.shape_cast %137 : vector<1x8x16xbf16> to vector<8x16xbf16>
    %cst_119 = arith.constant dense<0.000000e+00> : vector<384x16xf32>
    %139 = tpu.matmul %136, %138, %cst_119 {dimension_numbers = #tpu.dot_dimension_numbers<[1], [0], [0], [1], [0, 0, 1, 1], [], []>} : vector<384x8xbf16>, vector<8x16xbf16>, vector<384x16xf32> -> vector<384x16xf32>
    %c25_120 = arith.constant 25 : index
    %c0_121 = arith.constant 0 : index
    %140 = vector.load %arg1[%c25_120, %c0_121] : memref<480x8xbf16, #tpu.memory_space<vmem>>, vector<384x8xbf16>
    %c0_122 = arith.constant 0 : index
    %c0_123 = arith.constant 0 : index
    %141 = vector.load %arg10[%c0_122, %c0_123] : memref<8x16xbf16, #tpu.memory_space<vmem>>, vector<8x16xbf16>
    %cst_124 = arith.constant dense<0.000000e+00> : vector<384x16xf32>
    %142 = tpu.matmul %140, %141, %cst_124 {dimension_numbers = #tpu.dot_dimension_numbers<[1], [0], [0], [1], [0, 0, 1, 1], [], []>} : vector<384x8xbf16>, vector<8x16xbf16>, vector<384x16xf32> -> vector<384x16xf32>
    %c0_125 = arith.constant 0 : index
    %c0_126 = arith.constant 0 : index
    %143 = vector.load %arg9[%c0_125, %c0_126] : memref<1x16xf32, #tpu.memory_space<vmem>>, vector<1x16xf32>
    %144 = vector.broadcast %143 : vector<1x16xf32> to vector<384x16xf32>
    %145 = arith.addf %139, %144 : vector<384x16xf32>
    %146 = arith.addf %145, %142 : vector<384x16xf32>
    %c0_127 = arith.constant 0 : index
    %c0_128 = arith.constant 0 : index
    %147 = vector.load %arg11[%c0_127, %c0_128] : memref<1x16xf32, #tpu.memory_space<vmem>>, vector<1x16xf32>
    %148 = vector.broadcast %147 : vector<1x16xf32> to vector<384x16xf32>
    %149 = arith.addf %146, %148 : vector<384x16xf32>
    %cst_129 = arith.constant 0.000000e+00 : f32
    %150 = vector.broadcast %cst_129 : f32 to vector<384x16xf32>
    %151 = arith.maximumf %149, %150 : vector<384x16xf32>
    %c0_130 = arith.constant 0 : index
    %c0_131 = arith.constant 0 : index
    %152 = vector.load %arg12[%c0_130, %c0_131] : memref<384x16xf32, #tpu.memory_space<vmem>>, vector<384x16xf32>
    tpu.vector_store %arg12[%c0_130, %c0_131], %151 {strides = array<i32>} : memref<384x16xf32, #tpu.memory_space<vmem>>, vector<384x16xf32>,
    return
  }
  func.func @transform_0(%arg0: i32) -> (i32, i32) {
    %c0_i32 = arith.constant 0 : i32
    %c0_i32_0 = arith.constant 0 : i32
    return %arg0, %c0_i32 : i32, i32
  }
  func.func @transform_1(%arg0: i32) -> (i32, i32, i32) {
    %c0_i32 = arith.constant 0 : i32
    %c0_i32_0 = arith.constant 0 : i32
    %c0_i32_1 = arith.constant 0 : i32
    %c0_i32_2 = arith.constant 0 : i32
    return %c0_i32, %c0_i32_0, %c0_i32_1 : i32, i32, i32
  }
  func.func @transform_2(%arg0: i32) -> (i32, i32) {
    %c0_i32 = arith.constant 0 : i32
    %c0_i32_0 = arith.constant 0 : i32
    %c0_i32_1 = arith.constant 0 : i32
    return %c0_i32, %c0_i32_0 : i32, i32
  }
  func.func @transform_3(%arg0: i32) -> (i32, i32) {
    %c0_i32 = arith.constant 0 : i32
    %c0_i32_0 = arith.constant 0 : i32
    %c0_i32_1 = arith.constant 0 : i32
    return %c0_i32, %c0_i32_0 : i32, i32
  }
  func.func @transform_4(%arg0: i32) -> (i32, i32) {
    %c0_i32 = arith.constant 0 : i32
    %c0_i32_0 = arith.constant 0 : i32
    %c0_i32_1 = arith.constant 0 : i32
    return %c0_i32, %c0_i32_0 : i32, i32
  }
  func.func @transform_5(%arg0: i32) -> (i32, i32, i32) {
    %c0_i32 = arith.constant 0 : i32
    %c0_i32_0 = arith.constant 0 : i32
    %c0_i32_1 = arith.constant 0 : i32
    %c0_i32_2 = arith.constant 0 : i32
    return %c0_i32, %c0_i32_0, %c0_i32_1 : i32, i32, i32
  }
  func.func @transform_6(%arg0: i32) -> (i32, i32, i32) {
    %c0_i32 = arith.constant 0 : i32
    %c0_i32_0 = arith.constant 0 : i32
    %c0_i32_1 = arith.constant 0 : i32
    %c0_i32_2 = arith.constant 0 : i32
    return %c0_i32, %c0_i32_0, %c0_i32_1 : i32, i32, i32
  }
  func.func @transform_7(%arg0: i32) -> (i32, i32, i32) {
    %c0_i32 = arith.constant 0 : i32
    %c0_i32_0 = arith.constant 0 : i32
    %c0_i32_1 = arith.constant 0 : i32
    %c0_i32_2 = arith.constant 0 : i32
    return %c0_i32, %c0_i32_0, %c0_i32_1 : i32, i32, i32
  }
  func.func @transform_8(%arg0: i32) -> (i32, i32) {
    %c0_i32 = arith.constant 0 : i32
    %c0_i32_0 = arith.constant 0 : i32
    %c0_i32_1 = arith.constant 0 : i32
    return %c0_i32, %c0_i32_0 : i32, i32
  }
  func.func @transform_9(%arg0: i32) -> (i32, i32) {
    %c0_i32 = arith.constant 0 : i32
    %c0_i32_0 = arith.constant 0 : i32
    %c0_i32_1 = arith.constant 0 : i32
    return %c0_i32, %c0_i32_0 : i32, i32
  }
  func.func @transform_10(%arg0: i32) -> (i32, i32) {
    %c0_i32 = arith.constant 0 : i32
    %c0_i32_0 = arith.constant 0 : i32
    %c0_i32_1 = arith.constant 0 : i32
    return %c0_i32, %c0_i32_0 : i32, i32
  }
  func.func @transform_11(%arg0: i32) -> (i32, i32) {
    %c0_i32 = arith.constant 0 : i32
    %c0_i32_0 = arith.constant 0 : i32
    return %arg0, %c0_i32 : i32, i32
  }
}

</mosaic_0001>

<llo_original>
// kernel: tpu_custom_call.1
$region0: #{tpu_custom_call.1}
  #allocation0 [shape = 'u32[]', space=smem, size = 0x4, offset = 0x4, fixed_abs, tag = 'smem constant byte address 0x4 - core index']
  #allocation1 [shape = 'u32[144,128]{1,0:T(1,128)}', space=vmem, size = 0x12000, scoped, tag = 'internal scratch']
  #allocation2 [shape = 'bf16[480,8]{1,0:T(16,128)(2,1)}', space=vmem, size = 0x1e000, scoped, tag = 'scratch operand']
  %s0 = inlined_call_operand.vmem [shape: bf16[960,8], index: 0, kind: input, shape index: {}]
  %s1 = inlined_call_operand.vmem [shape: bf16[9,8,16], index: 1, kind: input, shape index: {}]
  %s2 = inlined_call_operand.vmem [shape: f32[1,16], index: 2, kind: input, shape index: {}]
  %s3 = inlined_call_operand.vmem [shape: bf16[16,8], index: 3, kind: input, shape index: {}]
  %s4 = inlined_call_operand.vmem [shape: f32[1,8], index: 4, kind: input, shape index: {}]
  %s5 = inlined_call_operand.vmem [shape: bf16[9,8,8], index: 5, kind: input, shape index: {}]
  %s6 = inlined_call_operand.vmem [shape: f32[1,1,8], index: 6, kind: input, shape index: {}]
  %s7 = inlined_call_operand.vmem [shape: bf16[1,8,16], index: 7, kind: input, shape index: {}]
  %s8 = inlined_call_operand.vmem [shape: f32[1,16], index: 8, kind: input, shape index: {}]
  %s9 = inlined_call_operand.vmem [shape: bf16[8,16], index: 9, kind: input, shape index: {}]
  %s10 = inlined_call_operand.vmem [shape: f32[1,16], index: 10, kind: input, shape index: {}]
  %s11 = inlined_call_operand.vmem [shape: f32[768,16], index: 11, kind: output, shape index: {}]
  %s12 = sld [smem:[#allocation0]]
  $region77: #{tpu_custom_call.1} parent=0
    _
  %s14 = ssub.s32 1, %s12
  %s15 = scalar_select 0, %s14, %s12
  loop: start=0, step=1, limit=4
  $region2: #{tpu_custom_call.1} parent=0 // loop_pre_header
    _
  $region3: #{tpu_custom_call.1} parent=0 // loop_header
    %s17 = sphi 0, %s21
    %p18 = scmp.ge.s32.totalorder %s17, 4
    %s27 = sphi 0, %s29
    %s30 = sphi 0, %s27
    %s31 = sphi 0, %s30
    %s47 = sphi 0, %s31
    %s51 = sphi 0, %s51
    %s53 = sphi 0, %s51
    %s54 = sphi 0, %s53
    %s68 = sphi 0, %s54
    %s72 = sphi 0, %s72
    %s74 = sphi 0, %s72
    %s75 = sphi 0, %s74
    %s89 = sphi 0, %s75
    %s93 = sphi 0, %s93
    %s95 = sphi 0, %s93
    %s96 = sphi 0, %s95
    %s110 = sphi 0, %s96
    %s114 = sphi 0, %s114
    %s116 = sphi 0, %s114
    %s117 = sphi 0, %s116
    %s131 = sphi 0, %s117
    %s135 = sphi 0, %s135
    %s137 = sphi 0, %s135
    %s138 = sphi 0, %s137
    %s152 = sphi 0, %s138
    %s156 = sphi 0, %s156
    %s158 = sphi 0, %s156
    %s159 = sphi 0, %s158
    %s173 = sphi 0, %s159
    %s177 = sphi 0, %s177
    %s179 = sphi 0, %s177
    %s180 = sphi 0, %s179
    %s194 = sphi 0, %s180
    %s198 = sphi 0, %s198
    %s200 = sphi 0, %s198
    %s201 = sphi 0, %s200
    %s215 = sphi 0, %s201
    %s219 = sphi 0, %s219
    %s221 = sphi 0, %s219
    %s222 = sphi 0, %s221
    %s236 = sphi 0, %s222
    %s240 = sphi 0, %s240
    %s242 = sphi 0, %s240
    %s243 = sphi 0, %s242
    %s257 = sphi 0, %s243
    %s263 = sphi 0, %s265
    %s266 = sphi 0, %s263
    %s267 = sphi 0, %s266
    %s283 = sphi 0, %s267
  $region4: #{tpu_custom_call.1} parent=0 // loop_header_branch
    %20 = sbr.rel (%p18) target = $region8
  $region5: #{tpu_custom_call.1} parent=0 // loop_body
    %s22 = ssub.s32 %s17, 1
    %s23 = ssub.s32 %s17, 2
    %s24 = sadd.s32 %s17, 1
    %s25 = ssub.s32 %s17, %s24
    %p26 = scmp.eq.s32.totalorder %s25, 0
    %s28 = sadd.s32 %s27, 1
    %s29 = scalar_select %p26, %s27, %s28
    %p32 = pneg %p26
    %p33 = scmp.eq.s32.totalorder %s17, 1
    %p34 = por %p32, %p33
    %p35 = scmp.ne.s32.totalorder %s27, %s30
    %p36 = scmp.eq.s32.totalorder %s17, 0
    %p37 = por %p35, %p36
    %p38 = scmp.ne.s32.totalorder %s27, %s30
    %p39 = scmp.eq.s32.totalorder %s22, 1
    %p40 = por %p38, %p39
    %p41 = scmp.ne.s32.totalorder %s30, %s31
    %p42 = scmp.eq.s32.totalorder %s22, 0
    %p43 = por %p41, %p42
    %p44 = scmp.ne.s32.totalorder %s30, %s31
    %p45 = scmp.eq.s32.totalorder %s23, 1
    %p46 = por %p44, %p45
    %p48 = scmp.ne.s32.totalorder %s31, %s47
    %p49 = scmp.eq.s32.totalorder %s23, 0
    %p50 = por %p48, %p49
    %s52 = sadd.s32 %s51, 1
    %p55 = scmp.eq.s32.totalorder %s17, 1
    %p56 = scmp.ne.s32.totalorder %s51, %s53
    %p57 = scmp.eq.s32.totalorder %s17, 0
    %p58 = por %p56, %p57
    %p59 = scmp.ne.s32.totalorder %s51, %s53
    %p60 = scmp.eq.s32.totalorder %s22, 1
    %p61 = por %p59, %p60
    %p62 = scmp.ne.s32.totalorder %s53, %s54
    %p63 = scmp.eq.s32.totalorder %s22, 0
    %p64 = por %p62, %p63
    %p65 = scmp.ne.s32.totalorder %s53, %s54
    %p66 = scmp.eq.s32.totalorder %s23, 1
    %p67 = por %p65, %p66
    %p69 = scmp.ne.s32.totalorder %s54, %s68
    %p70 = scmp.eq.s32.totalorder %s23, 0
    %p71 = por %p69, %p70
    %s73 = sadd.s32 %s72, 1
    %p76 = scmp.eq.s32.totalorder %s17, 1
    %p77 = scmp.ne.s32.totalorder %s72, %s74
    %p78 = scmp.eq.s32.totalorder %s17, 0
    %p79 = por %p77, %p78
    %p80 = scmp.ne.s32.totalorder %s72, %s74
    %p81 = scmp.eq.s32.totalorder %s22, 1
    %p82 = por %p80, %p81
    %p83 = scmp.ne.s32.totalorder %s74, %s75
    %p84 = scmp.eq.s32.totalorder %s22, 0
    %p85 = por %p83, %p84
    %p86 = scmp.ne.s32.totalorder %s74, %s75
    %p87 = scmp.eq.s32.totalorder %s23, 1
    %p88 = por %p86, %p87
    %p90 = scmp.ne.s32.totalorder %s75, %s89
    %p91 = scmp.eq.s32.totalorder %s23, 0
    %p92 = por %p90, %p91
    %s94 = sadd.s32 %s93, 1
    %p97 = scmp.eq.s32.totalorder %s17, 1
    %p98 = scmp.ne.s32.totalorder %s93, %s95
    %p99 = scmp.eq.s32.totalorder %s17, 0
    %p100 = por %p98, %p99
    %p101 = scmp.ne.s32.totalorder %s93, %s95
    %p102 = scmp.eq.s32.totalorder %s22, 1
    %p103 = por %p101, %p102
    %p104 = scmp.ne.s32.totalorder %s95, %s96
    %p105 = scmp.eq.s32.totalorder %s22, 0
    %p106 = por %p104, %p105
    %p107 = scmp.ne.s32.totalorder %s95, %s96
    %p108 = scmp.eq.s32.totalorder %s23, 1
    %p109 = por %p107, %p108
    %p111 = scmp.ne.s32.totalorder %s96, %s110
    %p112 = scmp.eq.s32.totalorder %s23, 0
    %p113 = por %p111, %p112
    %s115 = sadd.s32 %s114, 1
    %p118 = scmp.eq.s32.totalorder %s17, 1
    %p119 = scmp.ne.s32.totalorder %s114, %s116
    %p120 = scmp.eq.s32.totalorder %s17, 0
    %p121 = por %p119, %p120
    %p122 = scmp.ne.s32.totalorder %s114, %s116
    %p123 = scmp.eq.s32.totalorder %s22, 1
    %p124 = por %p122, %p123
    %p125 = scmp.ne.s32.totalorder %s116, %s117
    %p126 = scmp.eq.s32.totalorder %s22, 0
    %p127 = por %p125, %p126
    %p128 = scmp.ne.s32.totalorder %s116, %s117
    %p129 = scmp.eq.s32.totalorder %s23, 1
    %p130 = por %p128, %p129
    %p132 = scmp.ne.s32.totalorder %s117, %s131
    %p133 = scmp.eq.s32.totalorder %s23, 0
    %p134 = por %p132, %p133
    %s136 = sadd.s32 %s135, 1
    %p139 = scmp.eq.s32.totalorder %s17, 1
    %p140 = scmp.ne.s32.totalorder %s135, %s137
    %p141 = scmp.eq.s32.totalorder %s17, 0
    %p142 = por %p140, %p141
    %p143 = scmp.ne.s32.totalorder %s135, %s137
    %p144 = scmp.eq.s32.totalorder %s22, 1
    %p145 = por %p143, %p144
    %p146 = scmp.ne.s32.totalorder %s137, %s138
    %p147 = scmp.eq.s32.totalorder %s22, 0
    %p148 = por %p146, %p147
    %p149 = scmp.ne.s32.totalorder %s137, %s138
    %p150 = scmp.eq.s32.totalorder %s23, 1
    %p151 = por %p149, %p150
    %p153 = scmp.ne.s32.totalorder %s138, %s152
    %p154 = scmp.eq.s32.totalorder %s23, 0
    %p155 = por %p153, %p154
    %s157 = sadd.s32 %s156, 1
    %p160 = scmp.eq.s32.totalorder %s17, 1
    %p161 = scmp.ne.s32.totalorder %s156, %s158
    %p162 = scmp.eq.s32.totalorder %s17, 0
    %p163 = por %p161, %p162
    %p164 = scmp.ne.s32.totalorder %s156, %s158
    %p165 = scmp.eq.s32.totalorder %s22, 1
    %p166 = por %p164, %p165
    %p167 = scmp.ne.s32.totalorder %s158, %s159
    %p168 = scmp.eq.s32.totalorder %s22, 0
    %p169 = por %p167, %p168
    %p170 = scmp.ne.s32.totalorder %s158, %s159
    %p171 = scmp.eq.s32.totalorder %s23, 1
    %p172 = por %p170, %p171
    %p174 = scmp.ne.s32.totalorder %s159, %s173
    %p175 = scmp.eq.s32.totalorder %s23, 0
    %p176 = por %p174, %p175
    %s178 = sadd.s32 %s177, 1
    %p181 = scmp.eq.s32.totalorder %s17, 1
    %p182 = scmp.ne.s32.totalorder %s177, %s179
    %p183 = scmp.eq.s32.totalorder %s17, 0
    %p184 = por %p182, %p183
    %p185 = scmp.ne.s32.totalorder %s177, %s179
    %p186 = scmp.eq.s32.totalorder %s22, 1
    %p187 = por %p185, %p186
    %p188 = scmp.ne.s32.totalorder %s179, %s180
    %p189 = scmp.eq.s32.totalorder %s22, 0
    %p190 = por %p188, %p189
    %p191 = scmp.ne.s32.totalorder %s179, %s180
    %p192 = scmp.eq.s32.totalorder %s23, 1
    %p193 = por %p191, %p192
    %p195 = scmp.ne.s32.totalorder %s180, %s194
    %p196 = scmp.eq.s32.totalorder %s23, 0
    %p197 = por %p195, %p196
    %s199 = sadd.s32 %s198, 1
    %p202 = scmp.eq.s32.totalorder %s17, 1
    %p203 = scmp.ne.s32.totalorder %s198, %s200
    %p204 = scmp.eq.s32.totalorder %s17, 0
    %p205 = por %p203, %p204
    %p206 = scmp.ne.s32.totalorder %s198, %s200
    %p207 = scmp.eq.s32.totalorder %s22, 1
    %p208 = por %p206, %p207
    %p209 = scmp.ne.s32.totalorder %s200, %s201
    %p210 = scmp.eq.s32.totalorder %s22, 0
    %p211 = por %p209, %p210
    %p212 = scmp.ne.s32.totalorder %s200, %s201
    %p213 = scmp.eq.s32.totalorder %s23, 1
    %p214 = por %p212, %p213
    %p216 = scmp.ne.s32.totalorder %s201, %s215
    %p217 = scmp.eq.s32.totalorder %s23, 0
    %p218 = por %p216, %p217
    %s220 = sadd.s32 %s219, 1
    %p223 = scmp.eq.s32.totalorder %s17, 1
    %p224 = scmp.ne.s32.totalorder %s219, %s221
    %p225 = scmp.eq.s32.totalorder %s17, 0
    %p226 = por %p224, %p225
    %p227 = scmp.ne.s32.totalorder %s219, %s221
    %p228 = scmp.eq.s32.totalorder %s22, 1
    %p229 = por %p227, %p228
    %p230 = scmp.ne.s32.totalorder %s221, %s222
    %p231 = scmp.eq.s32.totalorder %s22, 0
    %p232 = por %p230, %p231
    %p233 = scmp.ne.s32.totalorder %s221, %s222
    %p234 = scmp.eq.s32.totalorder %s23, 1
    %p235 = por %p233, %p234
    %p237 = scmp.ne.s32.totalorder %s222, %s236
    %p238 = scmp.eq.s32.totalorder %s23, 0
    %p239 = por %p237, %p238
    %s241 = sadd.s32 %s240, 1
    %p244 = scmp.eq.s32.totalorder %s17, 1
    %p245 = scmp.ne.s32.totalorder %s240, %s242
    %p246 = scmp.eq.s32.totalorder %s17, 0
    %p247 = por %p245, %p246
    %p248 = scmp.ne.s32.totalorder %s240, %s242
    %p249 = scmp.eq.s32.totalorder %s22, 1
    %p250 = por %p248, %p249
    %p251 = scmp.ne.s32.totalorder %s242, %s243
    %p252 = scmp.eq.s32.totalorder %s22, 0
    %p253 = por %p251, %p252
    %p254 = scmp.ne.s32.totalorder %s242, %s243
    %p255 = scmp.eq.s32.totalorder %s23, 1
    %p256 = por %p254, %p255
    %p258 = scmp.ne.s32.totalorder %s243, %s257
    %p259 = scmp.eq.s32.totalorder %s23, 0
    %p260 = por %p258, %p259
    %s261 = ssub.s32 %s17, %s24
    %p262 = scmp.eq.s32.totalorder %s261, 0
    %s264 = sadd.s32 %s263, 1
    %s265 = scalar_select %p262, %s263, %s264
    %p268 = pneg %p262
    %p269 = scmp.eq.s32.totalorder %s17, 1
    %p270 = por %p268, %p269
    %p271 = scmp.ne.s32.totalorder %s263, %s266
    %p272 = scmp.eq.s32.totalorder %s17, 0
    %p273 = por %p271, %p272
    %p274 = scmp.ne.s32.totalorder %s263, %s266
    %p275 = scmp.eq.s32.totalorder %s22, 1
    %p276 = por %p274, %p275
    %p277 = scmp.ne.s32.totalorder %s266, %s267
    %p278 = scmp.eq.s32.totalorder %s22, 0
    %p279 = por %p277, %p278
    %p280 = scmp.ne.s32.totalorder %s266, %s267
    %p281 = scmp.eq.s32.totalorder %s23, 1
    %p282 = por %p280, %p281
    %p284 = scmp.ne.s32.totalorder %s267, %s283
    %p285 = scmp.eq.s32.totalorder %s23, 0
    %p286 = por %p284, %p285
    %p287 = scmp.le.s32.totalorder 1, %s17
    %p288 = scmp.lt.s32.totalorder %s17, 3
    %p289 = pnand %p287, %p288
    %p290 = pneg %p289
    // Predicated region
    $region9: #{tpu_custom_call.1} parent=5 // pred_check
      _
    $region10: #{tpu_custom_call.1} parent=5 // pred_check_branch
      %292 = sbr.rel (%p289) target = $region12
    $region11: #{tpu_custom_call.1} parent=5 // pred_region
      %s293 = ssub.s32 %s17, 1
      // Predicated region
      $region13: #{tpu_custom_call.1} parent=11 // pred_check
        %p294 = pneg %p64
      $region14: #{tpu_custom_call.1} parent=11 // pred_check_branch
        %296 = sbr.rel (%p294) target = $region16
      $region15: #{tpu_custom_call.1} parent=11 // pred_region
        _
      $region16: #{tpu_custom_call.1} parent=11 // pred_fallthru
        _
      // Predicated region
      $region17: #{tpu_custom_call.1} parent=11 // pred_check
        %p297 = pneg %p85
      $region18: #{tpu_custom_call.1} parent=11 // pred_check_branch
        %299 = sbr.rel (%p297) target = $region20
      $region19: #{tpu_custom_call.1} parent=11 // pred_region
        _
      $region20: #{tpu_custom_call.1} parent=11 // pred_fallthru
        _
      // Predicated region
      $region21: #{tpu_custom_call.1} parent=11 // pred_check
        %p300 = pneg %p106
      $region22: #{tpu_custom_call.1} parent=11 // pred_check_branch
        %302 = sbr.rel (%p300) target = $region24
      $region23: #{tpu_custom_call.1} parent=11 // pred_region
        _
      $region24: #{tpu_custom_call.1} parent=11 // pred_fallthru
        _
      // Predicated region
      $region25: #{tpu_custom_call.1} parent=11 // pred_check
        %p303 = pneg %p127
      $region26: #{tpu_custom_call.1} parent=11 // pred_check_branch
        %305 = sbr.rel (%p303) target = $region28
      $region27: #{tpu_custom_call.1} parent=11 // pred_region
        _
      $region28: #{tpu_custom_call.1} parent=11 // pred_fallthru
        _
      // Predicated region
      $region29: #{tpu_custom_call.1} parent=11 // pred_check
        %p306 = pneg %p148
      $region30: #{tpu_custom_call.1} parent=11 // pred_check_branch
        %308 = sbr.rel (%p306) target = $region32
      $region31: #{tpu_custom_call.1} parent=11 // pred_region
        _
      $region32: #{tpu_custom_call.1} parent=11 // pred_fallthru
        _
      // Predicated region
      $region33: #{tpu_custom_call.1} parent=11 // pred_check
        %p309 = pneg %p169
      $region34: #{tpu_custom_call.1} parent=11 // pred_check_branch
        %311 = sbr.rel (%p309) target = $region36
      $region35: #{tpu_custom_call.1} parent=11 // pred_region
        _
      $region36: #{tpu_custom_call.1} parent=11 // pred_fallthru
        _
      // Predicated region
      $region37: #{tpu_custom_call.1} parent=11 // pred_check
        %p312 = pneg %p190
      $region38: #{tpu_custom_call.1} parent=11 // pred_check_branch
        %314 = sbr.rel (%p312) target = $region40
      $region39: #{tpu_custom_call.1} parent=11 // pred_region
        _
      $region40: #{tpu_custom_call.1} parent=11 // pred_fallthru
        _
      // Predicated region
      $region41: #{tpu_custom_call.1} parent=11 // pred_check
        %p315 = pneg %p211
      $region42: #{tpu_custom_call.1} parent=11 // pred_check_branch
        %317 = sbr.rel (%p315) target = $region44
      $region43: #{tpu_custom_call.1} parent=11 // pred_region
        _
      $region44: #{tpu_custom_call.1} parent=11 // pred_fallthru
        _
      // Predicated region
      $region45: #{tpu_custom_call.1} parent=11 // pred_check
        %p318 = pneg %p232
      $region46: #{tpu_custom_call.1} parent=11 // pred_check_branch
        %320 = sbr.rel (%p318) target = $region48
      $region47: #{tpu_custom_call.1} parent=11 // pred_region
        _
      $region48: #{tpu_custom_call.1} parent=11 // pred_fallthru
        _
      // Predicated region
      $region49: #{tpu_custom_call.1} parent=11 // pred_check
        %p321 = pneg %p253
      $region50: #{tpu_custom_call.1} parent=11 // pred_check_branch
        %323 = sbr.rel (%p321) target = $region52
      $region51: #{tpu_custom_call.1} parent=11 // pred_region
        _
      $region52: #{tpu_custom_call.1} parent=11 // pred_fallthru
        _
    $region12: #{tpu_custom_call.1} parent=5 // pred_fallthru
      _
    %p324 = scmp.lt.s32.totalorder %s17, 2
    // Predicated region
    $region53: #{tpu_custom_call.1} parent=5 // pred_check
      %p325 = pneg %p324
    $region54: #{tpu_custom_call.1} parent=5 // pred_check_branch
      %327 = sbr.rel (%p325) target = $region56
    $region55: #{tpu_custom_call.1} parent=5 // pred_region
      // Predicated region
      $region57: #{tpu_custom_call.1} parent=55 // pred_check
        %p328 = pneg %p37
      $region58: #{tpu_custom_call.1} parent=55 // pred_check_branch
        %330 = sbr.rel (%p328) target = $region60
      $region59: #{tpu_custom_call.1} parent=55 // pred_region
        %s331 = smul.u32 60, %s17
        %p332 = scmp.lt.s32.totalorder %s331, 119
        %s333 = scalar_select %p332, %s331, 119
        %s334 = smul.addr %s333, 4
        %s335 = scalar_lea.vmem %s0, %s334
        %s336 = smul.u32 60, %s17
      $region60: #{tpu_custom_call.1} parent=55 // pred_fallthru
        _
    $region56: #{tpu_custom_call.1} parent=5 // pred_fallthru
      _
    %p337 = scmp.le.s32.totalorder 1, %s17
    %p338 = scmp.lt.s32.totalorder %s17, 3
    %p339 = pnand %p337, %p338
    %p340 = pneg %p339
    // Predicated region
    $region61: #{tpu_custom_call.1} parent=5 // pred_check
      _
    $region62: #{tpu_custom_call.1} parent=5 // pred_check_branch
      %342 = sbr.rel (%p339) target = $region64
    $region63: #{tpu_custom_call.1} parent=5 // pred_region
      %s343 = ssub.s32 %s17, 1
      %s344 = smul.u32 60, %s22
      %p345 = scmp.lt.s32.totalorder %s344, 119
      %s346 = scalar_select %p345, %s344, 119
      %s347 = smul.addr %s346, 4
      %s348 = scalar_lea.vmem %s0, %s347
      %p349 = pneg %p43
      %p350 = pneg %p40
      %p351 = pneg %p64
      %p352 = pneg %p61
      %p353 = pneg %p85
      %p354 = pneg %p82
      %p355 = pneg %p106
      %p356 = pneg %p103
      %p357 = pneg %p127
      %p358 = pneg %p124
      %p359 = pneg %p148
      %p360 = pneg %p145
      %p361 = pneg %p169
      %p362 = pneg %p166
      %p363 = pneg %p190
      %p364 = pneg %p187
      %p365 = pneg %p211
      %p366 = pneg %p208
      %p367 = pneg %p232
      %p368 = pneg %p229
      %p369 = pneg %p253
      %p370 = pneg %p250
      %p371 = pneg %p279
      %p372 = pneg %p276
      %s373 = smul.u32 48, %s22
      %p374 = scmp.lt.s32.totalorder %s373, 95
      %s375 = scalar_select %p374, %s373, 95
      %s376 = smul.addr %s375, 8
      %s377 = scalar_lea.vmem %s11, %s376
      %s378 = smul.u32 60, %s22
      %p379 = scmp.lt.s32.totalorder %s378, 119
      %s380 = scalar_select %p379, %s378, 119
      %s381 = smul.addr %s380, 4
      %s382 = scalar_lea.vmem %s0, %s381
      %s383 = smul.u32 60, %s22
      %s384 = smul.u32 48, %s22
      %p385 = scmp.lt.s32.totalorder %s384, 95
      %s386 = scalar_select %p385, %s384, 95
      %s387 = smul.addr %s386, 8
      %s388 = scalar_lea.vmem %s11, %s387
      %s389 = smul.u32 48, %s22
      %vm391 = vcmask 64512
      %392 = vst.msk [vmem:[#allocation2] sm:$0xff] %vm391, 0
      %vm393 = vcmask 61440
      %vm394 = vsmask.f32 4352
      %vm395 = vmand %vm393, %vm394
      %v396 = vld [vmem:[#allocation2 + $0x8] sm:$0x1f]
      %v397 = vsel %vm395, 0, %v396
      %398 = vst [vmem:[#allocation2 + $0x8] sm:$0x1f] %v397
      %vm399 = vcmask 64516
      %vm400 = vsmask.f32 7954
      %vm401 = vmand %vm399, %vm400
      %v402 = vld [vmem:[#allocation2 + $0xc8] sm:$0xf0]
      %v403 = vsel %vm401, 0, %v402
      %404 = vst [vmem:[#allocation2 + $0xc8] sm:$0xf0] %v403
      %405 = vst.msk [vmem:[#allocation2 + $0xd0] sm:$0xff] %vm391, 0
      %406 = vst.msk [vmem:[#allocation2 + $0xd8] sm:$0xff] %vm391, 0
      %407 = vst.msk [vmem:[#allocation2 + $0xe0] sm:$0xff] %vm391, 0
      %408 = vst.msk [vmem:[#allocation2 + $0xe8] sm:$0xff] %vm391, 0
      %v409 = vld [vmem:[%s382] sm:$0xf]
      %v410 = vld [vmem:[%s382 + $0x4] sm:$0xf]
      %v411 = vld [vmem:[%s382 + $0x8] sm:$0xf]
      %v412 = vld [vmem:[%s382 + $0xc] sm:$0xf]
      %v413 = vld [vmem:[%s382 + $0x10] sm:$0xf]
      %v414 = vld [vmem:[%s382 + $0x14] sm:$0xf]
      %v415 = vld [vmem:[%s382 + $0x18] sm:$0xf]
      %v416 = vld [vmem:[%s382 + $0x1c] sm:$0xf]
      %v417 = vld [vmem:[%s382 + $0x20] sm:$0xf]
      %v418 = vld [vmem:[%s382 + $0x24] sm:$0xf]
      %v419 = vld [vmem:[%s382 + $0x28] sm:$0xf]
      %v420 = vld [vmem:[%s382 + $0x2c] sm:$0xf]
      %v421 = vld [vmem:[%s382 + $0x30] sm:$0xf]
      %v422 = vld [vmem:[%s382 + $0x34] sm:$0xf]
      %v423 = vld [vmem:[%s382 + $0x38] sm:$0xf]
      %v424 = vld [vmem:[%s382 + $0x3c] sm:$0xf]
      %v425 = vld [vmem:[%s382 + $0x40] sm:$0xf]
      %v426 = vld [vmem:[%s382 + $0x44] sm:$0xf]
      %v427 = vld [vmem:[%s382 + $0x48] sm:$0xf]
      %v428 = vld [vmem:[%s382 + $0x4c] sm:$0xf]
      %v429 = vld [vmem:[%s382 + $0x50] sm:$0xf]
      %v430 = vld [vmem:[%s382 + $0x54] sm:$0xf]
      %v431 = vld [vmem:[%s382 + $0x58] sm:$0xf]
      %v432 = vld [vmem:[%s382 + $0x5c] sm:$0xf]
      %v433 = vld [vmem:[%s382 + $0x60] sm:$0xf]
      %v434 = vld [vmem:[%s382 + $0x64] sm:$0xf]
      %v435 = vld [vmem:[%s382 + $0x68] sm:$0xf]
      %v436 = vld [vmem:[%s382 + $0x6c] sm:$0xf]
      %v437 = vld [vmem:[%s382 + $0x70] sm:$0xf]
      %v438 = vld [vmem:[%s382 + $0x74] sm:$0xf]
      %v439 = vld [vmem:[%s382 + $0x78] sm:$0xf]
      %v440 = vld [vmem:[%s382 + $0x7c] sm:$0xf]
      %v441 = vld [vmem:[%s382 + $0x80] sm:$0xf]
      %v442 = vld [vmem:[%s382 + $0x84] sm:$0xf]
      %v443 = vld [vmem:[%s382 + $0x88] sm:$0xf]
      %v444 = vld [vmem:[%s382 + $0x8c] sm:$0xf]
      %v445 = vld [vmem:[%s382 + $0x90] sm:$0xf]
      %v446 = vld [vmem:[%s382 + $0x94] sm:$0xf]
      %v447 = vld [vmem:[%s382 + $0x98] sm:$0xf]
      %v448 = vld [vmem:[%s382 + $0x9c] sm:$0xf]
      %v449 = vld [vmem:[%s382 + $0xa0] sm:$0xf]
      %v450 = vld [vmem:[%s382 + $0xa4] sm:$0xf]
      %v451 = vld [vmem:[%s382 + $0xa8] sm:$0xf]
      %v452 = vld [vmem:[%s382 + $0xac] sm:$0xf]
      %v453 = vld [vmem:[%s382 + $0xb0] sm:$0xf]
      %v454 = vld [vmem:[%s382 + $0xb4] sm:$0xf]
      %v455 = vld [vmem:[%s382 + $0xb8] sm:$0xf]
      %v456 = vld [vmem:[%s382 + $0xbc] sm:$0xf]
      %v457 = vld [vmem:[%s1] sm:$0xf]
      %v458 = vld [vmem:[%s382 + $0xc0] sm:$0x1]
      %s459 = scalar_lea.vmem %s1, 4
      %v460 = vld [vmem:[%s459] sm:$0xf]
      %v510 = vunpack.c.l.b16 %v409
      %v511 = vunpack.c.l.b16 %v410
      %v512 = vunpack.c.l.b16 %v411
      %v513 = vunpack.c.l.b16 %v412
      %v514 = vunpack.c.l.b16 %v413
      %v515 = vunpack.c.l.b16 %v414
      %v516 = vunpack.c.l.b16 %v415
      %v517 = vunpack.c.l.b16 %v416
      %v518 = vunpack.c.l.b16 %v417
      %v519 = vunpack.c.l.b16 %v418
      %v520 = vunpack.c.l.b16 %v419
      %v521 = vunpack.c.l.b16 %v420
      %v522 = vunpack.c.l.b16 %v421
      %v523 = vunpack.c.l.b16 %v422
      %v524 = vunpack.c.l.b16 %v423
      %v525 = vunpack.c.l.b16 %v424
      %v526 = vunpack.c.l.b16 %v425
      %v527 = vunpack.c.l.b16 %v426
      %v528 = vunpack.c.l.b16 %v427
      %v529 = vunpack.c.l.b16 %v428
      %v530 = vunpack.c.l.b16 %v429
      %v531 = vunpack.c.l.b16 %v430
      %v532 = vunpack.c.l.b16 %v431
      %v533 = vunpack.c.l.b16 %v432
      %v534 = vunpack.c.l.b16 %v433
      %v535 = vunpack.c.l.b16 %v434
      %v536 = vunpack.c.l.b16 %v435
      %v537 = vunpack.c.l.b16 %v436
      %v538 = vunpack.c.l.b16 %v437
      %v539 = vunpack.c.l.b16 %v438
      %v540 = vunpack.c.l.b16 %v439
      %v541 = vunpack.c.l.b16 %v440
      %v542 = vunpack.c.l.b16 %v441
      %v543 = vunpack.c.l.b16 %v442
      %v544 = vunpack.c.l.b16 %v443
      %v545 = vunpack.c.l.b16 %v444
      %v546 = vunpack.c.l.b16 %v445
      %v547 = vunpack.c.l.b16 %v446
      %v548 = vunpack.c.l.b16 %v447
      %v549 = vunpack.c.l.b16 %v448
      %v550 = vunpack.c.l.b16 %v449
      %v551 = vunpack.c.l.b16 %v450
      %v552 = vunpack.c.l.b16 %v451
      %v553 = vunpack.c.l.b16 %v452
      %v554 = vunpack.c.l.b16 %v453
      %v555 = vunpack.c.l.b16 %v454
      %v556 = vunpack.c.l.b16 %v455
      %v557 = vunpack.c.l.b16 %v456
      %v558 = vunpack.c.l.b16 %v458
      %v559 = vpack.c.b16 %v511, %v510
      %v560 = vpack.c.b16 %v513, %v512
      %v561 = vpack.c.b16 %v515, %v514
      %v562 = vpack.c.b16 %v517, %v516
      %v563 = vpack.c.b16 %v519, %v518
      %v564 = vpack.c.b16 %v521, %v520
      %v565 = vpack.c.b16 %v523, %v522
      %v566 = vpack.c.b16 %v525, %v524
      %v567 = vpack.c.b16 %v527, %v526
      %v568 = vpack.c.b16 %v529, %v528
      %v569 = vpack.c.b16 %v531, %v530
      %v570 = vpack.c.b16 %v533, %v532
      %v571 = vpack.c.b16 %v535, %v534
      %v572 = vpack.c.b16 %v537, %v536
      %v573 = vpack.c.b16 %v539, %v538
      %v574 = vpack.c.b16 %v541, %v540
      %v575 = vpack.c.b16 %v543, %v542
      %v576 = vpack.c.b16 %v545, %v544
      %v577 = vpack.c.b16 %v547, %v546
      %v578 = vpack.c.b16 %v549, %v548
      %v579 = vpack.c.b16 %v551, %v550
      %v580 = vpack.c.b16 %v553, %v552
      %v581 = vpack.c.b16 %v555, %v554
      %v582 = vpack.c.b16 %v557, %v556
      %v583 = vpack.c.b16 %v558, %v558
      %vm584 = vsmask.f32 7424
      %v586 = vshrl.u32 %v559, 16
      %v588 = vshll.u32 %v559, 16
      %v590 = vrot.slane %v588, 1
      %v591 = vor.u32 %v586, %v590
      %v593 = vshll.u32 %v560, 16
      %v595 = vrot.slane %v593, 1
      %v596 = vsel %vm584, %v591, %v595
      %v597 = vshrl.u32 %v560, 16
      %v599 = vor.u32 %v597, %v595
      %v601 = vshll.u32 %v561, 16
      %v603 = vrot.slane %v601, 1
      %v604 = vsel %vm584, %v599, %v603
      %v605 = vshrl.u32 %v561, 16
      %v607 = vor.u32 %v605, %v603
      %v609 = vshll.u32 %v562, 16
      %v611 = vrot.slane %v609, 1
      %v612 = vsel %vm584, %v607, %v611
      %v613 = vshrl.u32 %v562, 16
      %v615 = vor.u32 %v613, %v611
      %v617 = vshll.u32 %v563, 16
      %v619 = vrot.slane %v617, 1
      %v620 = vsel %vm584, %v615, %v619
      %v621 = vshrl.u32 %v563, 16
      %v623 = vor.u32 %v621, %v619
      %v625 = vshll.u32 %v564, 16
      %v627 = vrot.slane %v625, 1
      %v628 = vsel %vm584, %v623, %v627
      %v629 = vshrl.u32 %v564, 16
      %v631 = vor.u32 %v629, %v627
      %v633 = vshll.u32 %v565, 16
      %v635 = vrot.slane %v633, 1
      %v636 = vsel %vm584, %v631, %v635
      %v637 = vshrl.u32 %v565, 16
      %v639 = vor.u32 %v637, %v635
      %v641 = vshll.u32 %v566, 16
      %v643 = vrot.slane %v641, 1
      %v644 = vsel %vm584, %v639, %v643
      %v645 = vshrl.u32 %v566, 16
      %v647 = vor.u32 %v645, %v643
      %v649 = vshll.u32 %v567, 16
      %v651 = vrot.slane %v649, 1
      %v652 = vsel %vm584, %v647, %v651
      %v653 = vshrl.u32 %v567, 16
      %v655 = vor.u32 %v653, %v651
      %v657 = vshll.u32 %v568, 16
      %v659 = vrot.slane %v657, 1
      %v660 = vsel %vm584, %v655, %v659
      %v661 = vshrl.u32 %v568, 16
      %v663 = vor.u32 %v661, %v659
      %v665 = vshll.u32 %v569, 16
      %v667 = vrot.slane %v665, 1
      %v668 = vsel %vm584, %v663, %v667
      %v669 = vshrl.u32 %v569, 16
      %v671 = vor.u32 %v669, %v667
      %v673 = vshll.u32 %v570, 16
      %v675 = vrot.slane %v673, 1
      %v676 = vsel %vm584, %v671, %v675
      %v677 = vshrl.u32 %v570, 16
      %v679 = vor.u32 %v677, %v675
      %v681 = vshll.u32 %v571, 16
      %v683 = vrot.slane %v681, 1
      %v684 = vsel %vm584, %v679, %v683
      %v685 = vshrl.u32 %v571, 16
      %v687 = vor.u32 %v685, %v683
      %v689 = vshll.u32 %v572, 16
      %v691 = vrot.slane %v689, 1
      %v692 = vsel %vm584, %v687, %v691
      %v693 = vshrl.u32 %v572, 16
      %v695 = vor.u32 %v693, %v691
      %v697 = vshll.u32 %v573, 16
      %v699 = vrot.slane %v697, 1
      %v700 = vsel %vm584, %v695, %v699
      %v701 = vshrl.u32 %v573, 16
      %v703 = vor.u32 %v701, %v699
      %v705 = vshll.u32 %v574, 16
      %v707 = vrot.slane %v705, 1
      %v708 = vsel %vm584, %v703, %v707
      %v709 = vshrl.u32 %v574, 16
      %v711 = vor.u32 %v709, %v707
      %v713 = vshll.u32 %v575, 16
      %v715 = vrot.slane %v713, 1
      %v716 = vsel %vm584, %v711, %v715
      %v717 = vshrl.u32 %v575, 16
      %v719 = vor.u32 %v717, %v715
      %v721 = vshll.u32 %v576, 16
      %v723 = vrot.slane %v721, 1
      %v724 = vsel %vm584, %v719, %v723
      %v725 = vshrl.u32 %v576, 16
      %v727 = vor.u32 %v725, %v723
      %v729 = vshll.u32 %v577, 16
      %v731 = vrot.slane %v729, 1
      %v732 = vsel %vm584, %v727, %v731
      %v733 = vshrl.u32 %v577, 16
      %v735 = vor.u32 %v733, %v731
      %v737 = vshll.u32 %v578, 16
      %v739 = vrot.slane %v737, 1
      %v740 = vsel %vm584, %v735, %v739
      %v741 = vshrl.u32 %v578, 16
      %v743 = vor.u32 %v741, %v739
      %v745 = vshll.u32 %v579, 16
      %v747 = vrot.slane %v745, 1
      %v748 = vsel %vm584, %v743, %v747
      %v749 = vshrl.u32 %v579, 16
      %v751 = vor.u32 %v749, %v747
      %v753 = vshll.u32 %v580, 16
      %v755 = vrot.slane %v753, 1
      %v756 = vsel %vm584, %v751, %v755
      %v757 = vshrl.u32 %v580, 16
      %v759 = vor.u32 %v757, %v755
      %v761 = vshll.u32 %v581, 16
      %v763 = vrot.slane %v761, 1
      %v764 = vsel %vm584, %v759, %v763
      %v765 = vshrl.u32 %v581, 16
      %v767 = vor.u32 %v765, %v763
      %v769 = vshll.u32 %v582, 16
      %v771 = vrot.slane %v769, 1
      %v772 = vsel %vm584, %v767, %v771
      %v773 = vshrl.u32 %v582, 16
      %v775 = vor.u32 %v773, %v771
      %v777 = vshll.u32 %v583, 16
      %v779 = vrot.slane %v777, 1
      %v780 = vsel %vm584, %v775, %v779
      %v782 = vsel %vm391, %v596, 0
      %v785 = vsel %vm391, %v604, 0
      %v788 = vsel %vm391, %v612, 0
      %v791 = vsel %vm391, %v620, 0
      %v794 = vsel %vm391, %v628, 0
      %v797 = vsel %vm391, %v636, 0
      %v800 = vsel %vm391, %v644, 0
      %v803 = vsel %vm391, %v652, 0
      %v806 = vsel %vm391, %v660, 0
      %v809 = vsel %vm391, %v668, 0
      %v812 = vsel %vm391, %v676, 0
      %v815 = vsel %vm391, %v684, 0
      %v818 = vsel %vm391, %v692, 0
      %v821 = vsel %vm391, %v700, 0
      %v824 = vsel %vm391, %v708, 0
      %v827 = vsel %vm391, %v716, 0
      %v830 = vsel %vm391, %v724, 0
      %v833 = vsel %vm391, %v732, 0
      %v836 = vsel %vm391, %v740, 0
      %v839 = vsel %vm391, %v748, 0
      %v842 = vsel %vm391, %v756, 0
      %v845 = vsel %vm391, %v764, 0
      %v848 = vsel %vm391, %v772, 0
      %v851 = vsel %vm391, %v780, 0
      %vm853 = vcmask 1043456
      %v855 = vsel %vm853, %v460, 0
      %857 = vmatprep.subr.bf16.mxu0 0
      %858 = vmatpush1.bf16.msra.mxu0 %v855
      %859 = vmatprep.subr.bf16.mxu0 0
      %860 = vmatpush1.bf16.msra.mxu0 0
      %861 = vmatprep.subr.bf16.mxu0 0
      %862 = vmatpush1.bf16.msra.mxu0 0
      %863 = vmatprep.subr.bf16.mxu0 0
      %864 = vmatpush1.bf16.msra.mxu0 0
      %865 = vmatprep.subr.bf16.mxu0 0
      %866 = vmatpush1.bf16.msra.mxu0 0
      %867 = vmatprep.subr.bf16.mxu0 0
      %868 = vmatpush1.bf16.msra.mxu0 0
      %869 = vmatprep.subr.bf16.mxu0 0
      %870 = vmatpush1.bf16.msra.mxu0 0
      %871 = vmatprep.subr.bf16.mxu0 0
      %872 = vmatpush1.bf16.msra.mxu0 0
      %873 = vmatprep.subr.bf16.mxu0 0
      %874 = vmatpush1.bf16.msra.mxu0 0
      %875 = vmatprep.subr.bf16.mxu0 0
      %876 = vmatpush1.bf16.msra.mxu0 0
      %877 = vmatprep.subr.bf16.mxu0 0
      %878 = vmatpush1.bf16.msra.mxu0 0
      %879 = vmatprep.subr.bf16.mxu0 0
      %880 = vmatpush1.bf16.msra.mxu0 0
      %881 = vmatprep.subr.bf16.mxu0 0
      %882 = vmatpush1.bf16.msra.mxu0 0
      %883 = vmatprep.subr.bf16.mxu0 0
      %884 = vmatpush1.bf16.msra.mxu0 0
      %885 = vmatprep.subr.bf16.mxu0 0
      %886 = vmatpush1.bf16.msra.mxu0 0
      %887 = vmatprep.subr.bf16.mxu0 0
      %888 = vmatpush1.bf16.msra.mxu0 0
      %889 = vmatprep.mubr.bf16.mxu0 0
      %890 = vmatmul.mubr.bf16.gmra.mrb[0].mxu0 %v782
      %v891 = vpop.f32.mrb[0].mxu0
      %v892 = vadd.f32 0.0, %v891
      %v893 = vpop.f32.mrb[0].mxu0
      %v894 = vpop.f32.mrb[0].mxu0
      %v895 = vadd.f32 0.0, %v894
      %v896 = vpop.f32.mrb[0].mxu0
      %897 = vmatprep.mubr.bf16.mxu0 0
      %898 = vmatmul.mubr.bf16.gmra.mrb[0].mxu0 %v785
      %v899 = vpop.f32.mrb[0].mxu0
      %v900 = vadd.f32 0.0, %v899
      %v901 = vpop.f32.mrb[0].mxu0
      %v902 = vpop.f32.mrb[0].mxu0
      %v903 = vadd.f32 0.0, %v902
      %v904 = vpop.f32.mrb[0].mxu0
      %905 = vmatprep.mubr.bf16.mxu0 0
      %906 = vmatmul.mubr.bf16.gmra.mrb[0].mxu0 %v788
      %v907 = vpop.f32.mrb[0].mxu0
      %v908 = vadd.f32 0.0, %v907
      %v909 = vpop.f32.mrb[0].mxu0
      %v910 = vpop.f32.mrb[0].mxu0
      %v911 = vadd.f32 0.0, %v910
      %v912 = vpop.f32.mrb[0].mxu0
      %913 = vmatprep.mubr.bf16.mxu0 0
      %914 = vmatmul.mubr.bf16.gmra.mrb[0].mxu0 %v791
      %v915 = vpop.f32.mrb[0].mxu0
      %v916 = vadd.f32 0.0, %v915
      %v917 = vpop.f32.mrb[0].mxu0
      %v918 = vpop.f32.mrb[0].mxu0
      %v919 = vadd.f32 0.0, %v918
      %v920 = vpop.f32.mrb[0].mxu0
      %921 = vmatprep.mubr.bf16.mxu0 0
      %922 = vmatmul.mubr.bf16.gmra.mrb[0].mxu0 %v794
      %v923 = vpop.f32.mrb[0].mxu0
      %v924 = vadd.f32 0.0, %v923
      %v925 = vpop.f32.mrb[0].mxu0
      %v926 = vpop.f32.mrb[0].mxu0
      %v927 = vadd.f32 0.0, %v926
      %v928 = vpop.f32.mrb[0].mxu0
      %929 = vmatprep.mubr.bf16.mxu0 0
      %930 = vmatmul.mubr.bf16.gmra.mrb[0].mxu0 %v797
      %v931 = vpop.f32.mrb[0].mxu0
      %v932 = vadd.f32 0.0, %v931
      %v933 = vpop.f32.mrb[0].mxu0
      %v934 = vpop.f32.mrb[0].mxu0
      %v935 = vadd.f32 0.0, %v934
      %v936 = vpop.f32.mrb[0].mxu0
      %937 = vmatprep.mubr.bf16.mxu0 0
      %938 = vmatmul.mubr.bf16.gmra.mrb[0].mxu0 %v800
      %v939 = vpop.f32.mrb[0].mxu0
      %v940 = vadd.f32 0.0, %v939
      %v941 = vpop.f32.mrb[0].mxu0
      %v942 = vpop.f32.mrb[0].mxu0
      %v943 = vadd.f32 0.0, %v942
      %v944 = vpop.f32.mrb[0].mxu0
      %945 = vmatprep.mubr.bf16.mxu0 0
      %946 = vmatmul.mubr.bf16.gmra.mrb[0].mxu0 %v803
      %v947 = vpop.f32.mrb[0].mxu0
      %v948 = vadd.f32 0.0, %v947
      %v949 = vpop.f32.mrb[0].mxu0
      %v950 = vpop.f32.mrb[0].mxu0
      %v951 = vadd.f32 0.0, %v950
      %v952 = vpop.f32.mrb[0].mxu0
      %953 = vmatprep.mubr.bf16.mxu0 0
      %954 = vmatmul.mubr.bf16.gmra.mrb[0].mxu0 %v806
      %v955 = vpop.f32.mrb[0].mxu0
      %v956 = vadd.f32 0.0, %v955
      %v957 = vpop.f32.mrb[0].mxu0
      %v958 = vpop.f32.mrb[0].mxu0
      %v959 = vadd.f32 0.0, %v958
      %v960 = vpop.f32.mrb[0].mxu0
      %961 = vmatprep.mubr.bf16.mxu0 0
      %962 = vmatmul.mubr.bf16.gmra.mrb[0].mxu0 %v809
      %v963 = vpop.f32.mrb[0].mxu0
      %v964 = vadd.f32 0.0, %v963
      %v965 = vpop.f32.mrb[0].mxu0
      %v966 = vpop.f32.mrb[0].mxu0
      %v967 = vadd.f32 0.0, %v966
      %v968 = vpop.f32.mrb[0].mxu0
      %969 = vmatprep.mubr.bf16.mxu0 0
      %970 = vmatmul.mubr.bf16.gmra.mrb[0].mxu0 %v812
      %v971 = vpop.f32.mrb[0].mxu0
      %v972 = vadd.f32 0.0, %v971
      %v973 = vpop.f32.mrb[0].mxu0
      %v974 = vpop.f32.mrb[0].mxu0
      %v975 = vadd.f32 0.0, %v974
      %v976 = vpop.f32.mrb[0].mxu0
      %977 = vmatprep.mubr.bf16.mxu0 0
      %978 = vmatmul.mubr.bf16.gmra.mrb[0].mxu0 %v815
      %v979 = vpop.f32.mrb[0].mxu0
      %v980 = vadd.f32 0.0, %v979
      %v981 = vpop.f32.mrb[0].mxu0
      %v982 = vpop.f32.mrb[0].mxu0
      %v983 = vadd.f32 0.0, %v982
      %v984 = vpop.f32.mrb[0].mxu0
      %985 = vmatprep.mubr.bf16.mxu0 0
      %986 = vmatmul.mubr.bf16.gmra.mrb[0].mxu0 %v818
      %v987 = vpop.f32.mrb[0].mxu0
      %v988 = vadd.f32 0.0, %v987
      %v989 = vpop.f32.mrb[0].mxu0
      %v990 = vpop.f32.mrb[0].mxu0
      %v991 = vadd.f32 0.0, %v990
      %v992 = vpop.f32.mrb[0].mxu0
      %993 = vmatprep.mubr.bf16.mxu0 0
      %994 = vmatmul.mubr.bf16.gmra.mrb[0].mxu0 %v821
      %v995 = vpop.f32.mrb[0].mxu0
      %v996 = vadd.f32 0.0, %v995
      %v997 = vpop.f32.mrb[0].mxu0
      %v998 = vpop.f32.mrb[0].mxu0
      %v999 = vadd.f32 0.0, %v998
      %v1000 = vpop.f32.mrb[0].mxu0
      %1001 = vmatprep.mubr.bf16.mxu0 0
      %1002 = vmatmul.mubr.bf16.gmra.mrb[0].mxu0 %v824
      %v1003 = vpop.f32.mrb[0].mxu0
      %v1004 = vadd.f32 0.0, %v1003
      %v1005 = vpop.f32.mrb[0].mxu0
      %v1006 = vpop.f32.mrb[0].mxu0
      %v1007 = vadd.f32 0.0, %v1006
      %v1008 = vpop.f32.mrb[0].mxu0
      %1009 = vmatprep.mubr.bf16.mxu0 0
      %1010 = vmatmul.mubr.bf16.gmra.mrb[0].mxu0 %v827
      %v1011 = vpop.f32.mrb[0].mxu0
      %v1012 = vadd.f32 0.0, %v1011
      %v1013 = vpop.f32.mrb[0].mxu0
      %v1014 = vpop.f32.mrb[0].mxu0
      %v1015 = vadd.f32 0.0, %v1014
      %v1016 = vpop.f32.mrb[0].mxu0
      %1017 = vmatprep.mubr.bf16.mxu0 0
      %1018 = vmatmul.mubr.bf16.gmra.mrb[0].mxu0 %v830
      %v1019 = vpop.f32.mrb[0].mxu0
      %v1020 = vadd.f32 0.0, %v1019
      %v1021 = vpop.f32.mrb[0].mxu0
      %v1022 = vpop.f32.mrb[0].mxu0
      %v1023 = vadd.f32 0.0, %v1022
      %v1024 = vpop.f32.mrb[0].mxu0
      %1025 = vmatprep.mubr.bf16.mxu0 0
      %1026 = vmatmul.mubr.bf16.gmra.mrb[0].mxu0 %v833
      %v1027 = vpop.f32.mrb[0].mxu0
      %v1028 = vadd.f32 0.0, %v1027
      %v1029 = vpop.f32.mrb[0].mxu0
      %v1030 = vpop.f32.mrb[0].mxu0
      %v1031 = vadd.f32 0.0, %v1030
      %v1032 = vpop.f32.mrb[0].mxu0
      %1033 = vmatprep.mubr.bf16.mxu0 0
      %1034 = vmatmul.mubr.bf16.gmra.mrb[0].mxu0 %v836
      %v1035 = vpop.f32.mrb[0].mxu0
      %v1036 = vadd.f32 0.0, %v1035
      %v1037 = vpop.f32.mrb[0].mxu0
      %v1038 = vpop.f32.mrb[0].mxu0
      %v1039 = vadd.f32 0.0, %v1038
      %v1040 = vpop.f32.mrb[0].mxu0
      %1041 = vmatprep.mubr.bf16.mxu0 0
      %1042 = vmatmul.mubr.bf16.gmra.mrb[0].mxu0 %v839
      %v1043 = vpop.f32.mrb[0].mxu0
      %v1044 = vadd.f32 0.0, %v1043
      %v1045 = vpop.f32.mrb[0].mxu0
      %v1046 = vpop.f32.mrb[0].mxu0
      %v1047 = vadd.f32 0.0, %v1046
      %v1048 = vpop.f32.mrb[0].mxu0
      %1049 = vmatprep.mubr.bf16.mxu0 0
      %1050 = vmatmul.mubr.bf16.gmra.mrb[0].mxu0 %v842
      %v1051 = vpop.f32.mrb[0].mxu0
      %v1052 = vadd.f32 0.0, %v1051
      %v1053 = vpop.f32.mrb[0].mxu0
      %v1054 = vpop.f32.mrb[0].mxu0
      %v1055 = vadd.f32 0.0, %v1054
      %v1056 = vpop.f32.mrb[0].mxu0
      %1057 = vmatprep.mubr.bf16.mxu0 0
      %1058 = vmatmul.mubr.bf16.gmra.mrb[0].mxu0 %v845
      %v1059 = vpop.f32.mrb[0].mxu0
      %v1060 = vadd.f32 0.0, %v1059
      %v1061 = vpop.f32.mrb[0].mxu0
      %v1062 = vpop.f32.mrb[0].mxu0
      %v1063 = vadd.f32 0.0, %v1062
      %v1064 = vpop.f32.mrb[0].mxu0
      %1065 = vmatprep.mubr.bf16.mxu0 0
      %1066 = vmatmul.mubr.bf16.gmra.mrb[0].mxu0 %v848
      %v1067 = vpop.f32.mrb[0].mxu0
      %v1068 = vadd.f32 0.0, %v1067
      %v1069 = vpop.f32.mrb[0].mxu0
      %v1070 = vpop.f32.mrb[0].mxu0
      %v1071 = vadd.f32 0.0, %v1070
      %v1072 = vpop.f32.mrb[0].mxu0
      %1073 = vmatprep.mubr.bf16.mxu0 0
      %1074 = vmatmul.mubr.bf16.gmra.mrb[0].mxu0 %v851
      %v1075 = vpop.f32.mrb[0].mxu0
      %v1076 = vadd.f32 0.0, %v1075
      %v1077 = vpop.f32.mrb[0].mxu0
      %v1078 = vpop.f32.mrb[0].mxu0
      %v1079 = vadd.f32 0.0, %v1078
      %v1080 = vpop.f32.mrb[0].mxu0
      %1081 = vdwg.mxu0
      %v1082 = vsel %vm391, %v559, 0
      %v1084 = vsel %vm391, %v560, 0
      %v1086 = vsel %vm391, %v561, 0
      %v1088 = vsel %vm391, %v562, 0
      %v1090 = vsel %vm391, %v563, 0
      %v1092 = vsel %vm391, %v564, 0
      %v1094 = vsel %vm391, %v565, 0
      %v1096 = vsel %vm391, %v566, 0
      %v1098 = vsel %vm391, %v567, 0
      %v1100 = vsel %vm391, %v568, 0
      %v1102 = vsel %vm391, %v569, 0
      %v1104 = vsel %vm391, %v570, 0
      %v1106 = vsel %vm391, %v571, 0
      %v1108 = vsel %vm391, %v572, 0
      %v1110 = vsel %vm391, %v573, 0
      %v1112 = vsel %vm391, %v574, 0
      %v1114 = vsel %vm391, %v575, 0
      %v1116 = vsel %vm391, %v576, 0
      %v1118 = vsel %vm391, %v577, 0
      %v1120 = vsel %vm391, %v578, 0
      %v1122 = vsel %vm391, %v579, 0
      %v1124 = vsel %vm391, %v580, 0
      %v1126 = vsel %vm391, %v581, 0
      %v1128 = vsel %vm391, %v582, 0
      %v1131 = vsel %vm853, %v457, 0
      %1133 = vmatprep.subr.bf16.mxu0 0
      %1134 = vmatpush1.bf16.msra.mxu0 %v1131
      %1135 = vmatprep.subr.bf16.mxu0 0
      %1136 = vmatpush1.bf16.msra.mxu0 0
      %1137 = vmatprep.subr.bf16.mxu0 0
      %1138 = vmatpush1.bf16.msra.mxu0 0
      %1139 = vmatprep.subr.bf16.mxu0 0
      %1140 = vmatpush1.bf16.msra.mxu0 0
      %1141 = vmatprep.subr.bf16.mxu0 0
      %1142 = vmatpush1.bf16.msra.mxu0 0
      %1143 = vmatprep.subr.bf16.mxu0 0
      %1144 = vmatpush1.bf16.msra.mxu0 0
      %1145 = vmatprep.subr.bf16.mxu0 0
      %1146 = vmatpush1.bf16.msra.mxu0 0
      %1147 = vmatprep.subr.bf16.mxu0 0
      %1148 = vmatpush1.bf16.msra.mxu0 0
      %1149 = vmatprep.subr.bf16.mxu0 0
      %1150 = vmatpush1.bf16.msra.mxu0 0
      %1151 = vmatprep.subr.bf16.mxu0 0
      %1152 = vmatpush1.bf16.msra.mxu0 0
      %1153 = vmatprep.subr.bf16.mxu0 0
      %1154 = vmatpush1.bf16.msra.mxu0 0
      %1155 = vmatprep.subr.bf16.mxu0 0
      %1156 = vmatpush1.bf16.msra.mxu0 0
      %1157 = vmatprep.subr.bf16.mxu0 0
      %1158 = vmatpush1.bf16.msra.mxu0 0
      %1159 = vmatprep.subr.bf16.mxu0 0
      %1160 = vmatpush1.bf16.msra.mxu0 0
      %1161 = vmatprep.subr.bf16.mxu0 0
      %1162 = vmatpush1.bf16.msra.mxu0 0
      %1163 = vmatprep.subr.bf16.mxu0 0
      %1164 = vmatpush1.bf16.msra.mxu0 0
      %1165 = vmatprep.mubr.bf16.mxu0 0
      %1166 = vmatmul.mubr.bf16.gmra.mrb[0].mxu0 %v1082
      %v1167 = vpop.f32.mrb[0].mxu0
      %v1168 = vadd.f32 %v892, %v1167
      %v1169 = vpop.f32.mrb[0].mxu0
      %v1170 = vpop.f32.mrb[0].mxu0
      %v1171 = vadd.f32 %v895, %v1170
      %v1172 = vpop.f32.mrb[0].mxu0
      %1173 = vmatprep.mubr.bf16.mxu0 0
      %1174 = vmatmul.mubr.bf16.gmra.mrb[0].mxu0 %v1084
      %v1175 = vpop.f32.mrb[0].mxu0
      %v1176 = vadd.f32 %v900, %v1175
      %v1177 = vpop.f32.mrb[0].mxu0
      %v1178 = vpop.f32.mrb[0].mxu0
      %v1179 = vadd.f32 %v903, %v1178
      %v1180 = vpop.f32.mrb[0].mxu0
      %1181 = vmatprep.mubr.bf16.mxu0 0
      %1182 = vmatmul.mubr.bf16.gmra.mrb[0].mxu0 %v1086
      %v1183 = vpop.f32.mrb[0].mxu0
      %v1184 = vadd.f32 %v908, %v1183
      %v1185 = vpop.f32.mrb[0].mxu0
      %v1186 = vpop.f32.mrb[0].mxu0
      %v1187 = vadd.f32 %v911, %v1186
      %v1188 = vpop.f32.mrb[0].mxu0
      %1189 = vmatprep.mubr.bf16.mxu0 0
      %1190 = vmatmul.mubr.bf16.gmra.mrb[0].mxu0 %v1088
      %v1191 = vpop.f32.mrb[0].mxu0
      %v1192 = vadd.f32 %v916, %v1191
      %v1193 = vpop.f32.mrb[0].mxu0
      %v1194 = vpop.f32.mrb[0].mxu0
      %v1195 = vadd.f32 %v919, %v1194
      %v1196 = vpop.f32.mrb[0].mxu0
      %1197 = vmatprep.mubr.bf16.mxu0 0
      %1198 = vmatmul.mubr.bf16.gmra.mrb[0].mxu0 %v1090
      %v1199 = vpop.f32.mrb[0].mxu0
      %v1200 = vadd.f32 %v924, %v1199
      %v1201 = vpop.f32.mrb[0].mxu0
      %v1202 = vpop.f32.mrb[0].mxu0
      %v1203 = vadd.f32 %v927, %v1202
      %v1204 = vpop.f32.mrb[0].mxu0
      %1205 = vmatprep.mubr.bf16.mxu0 0
      %1206 = vmatmul.mubr.bf16.gmra.mrb[0].mxu0 %v1092
      %v1207 = vpop.f32.mrb[0].mxu0
      %v1208 = vadd.f32 %v932, %v1207
      %v1209 = vpop.f32.mrb[0].mxu0
      %v1210 = vpop.f32.mrb[0].mxu0
      %v1211 = vadd.f32 %v935, %v1210
      %v1212 = vpop.f32.mrb[0].mxu0
      %1213 = vmatprep.mubr.bf16.mxu0 0
      %1214 = vmatmul.mubr.bf16.gmra.mrb[0].mxu0 %v1094
      %v1215 = vpop.f32.mrb[0].mxu0
      %v1216 = vadd.f32 %v940, %v1215
      %v1217 = vpop.f32.mrb[0].mxu0
      %v1218 = vpop.f32.mrb[0].mxu0
      %v1219 = vadd.f32 %v943, %v1218
      %v1220 = vpop.f32.mrb[0].mxu0
      %1221 = vmatprep.mubr.bf16.mxu0 0
      %1222 = vmatmul.mubr.bf16.gmra.mrb[0].mxu0 %v1096
      %v1223 = vpop.f32.mrb[0].mxu0
      %v1224 = vadd.f32 %v948, %v1223
      %v1225 = vpop.f32.mrb[0].mxu0
      %v1226 = vpop.f32.mrb[0].mxu0
      %v1227 = vadd.f32 %v951, %v1226
      %v1228 = vpop.f32.mrb[0].mxu0
      %1229 = vmatprep.mubr.bf16.mxu0 0
      %1230 = vmatmul.mubr.bf16.gmra.mrb[0].mxu0 %v1098
      %v1231 = vpop.f32.mrb[0].mxu0
      %v1232 = vadd.f32 %v956, %v1231
      %v1233 = vpop.f32.mrb[0].mxu0
      %v1234 = vpop.f32.mrb[0].mxu0
      %v1235 = vadd.f32 %v959, %v1234
      %v1236 = vpop.f32.mrb[0].mxu0
      %1237 = vmatprep.mubr.bf16.mxu0 0
      %1238 = vmatmul.mubr.bf16.gmra.mrb[0].mxu0 %v1100
      %v1239 = vpop.f32.mrb[0].mxu0
      %v1240 = vadd.f32 %v964, %v1239
      %v1241 = vpop.f32.mrb[0].mxu0
      %v1242 = vpop.f32.mrb[0].mxu0
      %v1243 = vadd.f32 %v967, %v1242
      %v1244 = vpop.f32.mrb[0].mxu0
      %1245 = vmatprep.mubr.bf16.mxu0 0
      %1246 = vmatmul.mubr.bf16.gmra.mrb[0].mxu0 %v1102
      %v1247 = vpop.f32.mrb[0].mxu0
      %v1248 = vadd.f32 %v972, %v1247
      %v1249 = vpop.f32.mrb[0].mxu0
      %v1250 = vpop.f32.mrb[0].mxu0
      %v1251 = vadd.f32 %v975, %v1250
      %v1252 = vpop.f32.mrb[0].mxu0
      %1253 = vmatprep.mubr.bf16.mxu0 0
      %1254 = vmatmul.mubr.bf16.gmra.mrb[0].mxu0 %v1104
      %v1255 = vpop.f32.mrb[0].mxu0
      %v1256 = vadd.f32 %v980, %v1255
      %v1257 = vpop.f32.mrb[0].mxu0
      %v1258 = vpop.f32.mrb[0].mxu0
      %v1259 = vadd.f32 %v983, %v1258
      %v1260 = vpop.f32.mrb[0].mxu0
      %1261 = vmatprep.mubr.bf16.mxu0 0
      %1262 = vmatmul.mubr.bf16.gmra.mrb[0].mxu0 %v1106
      %v1263 = vpop.f32.mrb[0].mxu0
      %v1264 = vadd.f32 %v988, %v1263
      %v1265 = vpop.f32.mrb[0].mxu0
      %v1266 = vpop.f32.mrb[0].mxu0
      %v1267 = vadd.f32 %v991, %v1266
      %v1268 = vpop.f32.mrb[0].mxu0
      %1269 = vmatprep.mubr.bf16.mxu0 0
      %1270 = vmatmul.mubr.bf16.gmra.mrb[0].mxu0 %v1108
      %v1271 = vpop.f32.mrb[0].mxu0
      %v1272 = vadd.f32 %v996, %v1271
      %v1273 = vpop.f32.mrb[0].mxu0
      %v1274 = vpop.f32.mrb[0].mxu0
      %v1275 = vadd.f32 %v999, %v1274
      %v1276 = vpop.f32.mrb[0].mxu0
      %1277 = vmatprep.mubr.bf16.mxu0 0
      %1278 = vmatmul.mubr.bf16.gmra.mrb[0].mxu0 %v1110
      %v1279 = vpop.f32.mrb[0].mxu0
      %v1280 = vadd.f32 %v1004, %v1279
      %v1281 = vpop.f32.mrb[0].mxu0
      %v1282 = vpop.f32.mrb[0].mxu0
      %v1283 = vadd.f32 %v1007, %v1282
      %v1284 = vpop.f32.mrb[0].mxu0
      %1285 = vmatprep.mubr.bf16.mxu0 0
      %1286 = vmatmul.mubr.bf16.gmra.mrb[0].mxu0 %v1112
      %v1287 = vpop.f32.mrb[0].mxu0
      %v1288 = vadd.f32 %v1012, %v1287
      %v1289 = vpop.f32.mrb[0].mxu0
      %v1290 = vpop.f32.mrb[0].mxu0
      %v1291 = vadd.f32 %v1015, %v1290
      %v1292 = vpop.f32.mrb[0].mxu0
      %1293 = vmatprep.mubr.bf16.mxu0 0
      %1294 = vmatmul.mubr.bf16.gmra.mrb[0].mxu0 %v1114
      %v1295 = vpop.f32.mrb[0].mxu0
      %v1296 = vadd.f32 %v1020, %v1295
      %v1297 = vpop.f32.mrb[0].mxu0
      %v1298 = vpop.f32.mrb[0].mxu0
      %v1299 = vadd.f32 %v1023, %v1298
      %v1300 = vpop.f32.mrb[0].mxu0
      %1301 = vmatprep.mubr.bf16.mxu0 0
      %1302 = vmatmul.mubr.bf16.gmra.mrb[0].mxu0 %v1116
      %v1303 = vpop.f32.mrb[0].mxu0
      %v1304 = vadd.f32 %v1028, %v1303
      %v1305 = vpop.f32.mrb[0].mxu0
      %v1306 = vpop.f32.mrb[0].mxu0
      %v1307 = vadd.f32 %v1031, %v1306
      %v1308 = vpop.f32.mrb[0].mxu0
      %1309 = vmatprep.mubr.bf16.mxu0 0
      %1310 = vmatmul.mubr.bf16.gmra.mrb[0].mxu0 %v1118
      %v1311 = vpop.f32.mrb[0].mxu0
      %v1312 = vadd.f32 %v1036, %v1311
      %v1313 = vpop.f32.mrb[0].mxu0
      %v1314 = vpop.f32.mrb[0].mxu0
      %v1315 = vadd.f32 %v1039, %v1314
      %v1316 = vpop.f32.mrb[0].mxu0
      %1317 = vmatprep.mubr.bf16.mxu0 0
      %1318 = vmatmul.mubr.bf16.gmra.mrb[0].mxu0 %v1120
      %v1319 = vpop.f32.mrb[0].mxu0
      %v1320 = vadd.f32 %v1044, %v1319
      %v1321 = vpop.f32.mrb[0].mxu0
      %v1322 = vpop.f32.mrb[0].mxu0
      %v1323 = vadd.f32 %v1047, %v1322
      %v1324 = vpop.f32.mrb[0].mxu0
      %1325 = vmatprep.mubr.bf16.mxu0 0
      %1326 = vmatmul.mubr.bf16.gmra.mrb[0].mxu0 %v1122
      %v1327 = vpop.f32.mrb[0].mxu0
      %v1328 = vadd.f32 %v1052, %v1327
      %v1329 = vpop.f32.mrb[0].mxu0
      %v1330 = vpop.f32.mrb[0].mxu0
      %v1331 = vadd.f32 %v1055, %v1330
      %v1332 = vpop.f32.mrb[0].mxu0
      %1333 = vmatprep.mubr.bf16.mxu0 0
      %1334 = vmatmul.mubr.bf16.gmra.mrb[0].mxu0 %v1124
      %v1335 = vpop.f32.mrb[0].mxu0
      %v1336 = vadd.f32 %v1060, %v1335
      %v1337 = vpop.f32.mrb[0].mxu0
      %v1338 = vpop.f32.mrb[0].mxu0
      %v1339 = vadd.f32 %v1063, %v1338
      %v1340 = vpop.f32.mrb[0].mxu0
      %1341 = vmatprep.mubr.bf16.mxu0 0
      %1342 = vmatmul.mubr.bf16.gmra.mrb[0].mxu0 %v1126
      %v1343 = vpop.f32.mrb[0].mxu0
      %v1344 = vadd.f32 %v1068, %v1343
      %v1345 = vpop.f32.mrb[0].mxu0
      %v1346 = vpop.f32.mrb[0].mxu0
      %v1347 = vadd.f32 %v1071, %v1346
      %v1348 = vpop.f32.mrb[0].mxu0
      %1349 = vmatprep.mubr.bf16.mxu0 0
      %1350 = vmatmul.mubr.bf16.gmra.mrb[0].mxu0 %v1128
      %v1351 = vpop.f32.mrb[0].mxu0
      %v1352 = vadd.f32 %v1076, %v1351
      %v1353 = vpop.f32.mrb[0].mxu0
      %v1354 = vpop.f32.mrb[0].mxu0
      %v1355 = vadd.f32 %v1079, %v1354
      %v1356 = vpop.f32.mrb[0].mxu0
      %1357 = vdwg.mxu0
      %v1358 = vld [vmem:[%s382] sm:$0xe]
      %s1359 = scalar_lea.vmem %s1, 8
      %v1360 = vld [vmem:[%s1359] sm:$0xf]
      %v1362 = vunpack.c.l.b16 %v1358
      %v1363 = vpack.c.b16 %v511, %v1362
      %vm1364 = vcmask 1046528
      %v1365 = vrot.slane %v1363, 1
      %v1366 = vrot.slane %v560, 1
      %v1367 = vsel %vm1364, %v1365, %v1366
      %v1368 = vrot.slane %v561, 1
      %v1369 = vsel %vm1364, %v1366, %v1368
      %v1370 = vrot.slane %v562, 1
      %v1371 = vsel %vm1364, %v1368, %v1370
      %v1372 = vrot.slane %v563, 1
      %v1373 = vsel %vm1364, %v1370, %v1372
      %v1374 = vrot.slane %v564, 1
      %v1375 = vsel %vm1364, %v1372, %v1374
      %v1376 = vrot.slane %v565, 1
      %v1377 = vsel %vm1364, %v1374, %v1376
      %v1378 = vrot.slane %v566, 1
      %v1379 = vsel %vm1364, %v1376, %v1378
      %v1380 = vrot.slane %v567, 1
      %v1381 = vsel %vm1364, %v1378, %v1380
      %v1382 = vrot.slane %v568, 1
      %v1383 = vsel %vm1364, %v1380, %v1382
      %v1384 = vrot.slane %v569, 1
      %v1385 = vsel %vm1364, %v1382, %v1384
      %v1386 = vrot.slane %v570, 1
      %v1387 = vsel %vm1364, %v1384, %v1386
      %v1388 = vrot.slane %v571, 1
      %v1389 = vsel %vm1364, %v1386, %v1388
      %v1390 = vrot.slane %v572, 1
      %v1391 = vsel %vm1364, %v1388, %v1390
      %v1392 = vrot.slane %v573, 1
      %v1393 = vsel %vm1364, %v1390, %v1392
      %v1394 = vrot.slane %v574, 1
      %v1395 = vsel %vm1364, %v1392, %v1394
      %v1396 = vrot.slane %v575, 1
      %v1397 = vsel %vm1364, %v1394, %v1396
      %v1398 = vrot.slane %v576, 1
      %v1399 = vsel %vm1364, %v1396, %v1398
      %v1400 = vrot.slane %v577, 1
      %v1401 = vsel %vm1364, %v1398, %v1400
      %v1402 = vrot.slane %v578, 1
      %v1403 = vsel %vm1364, %v1400, %v1402
      %v1404 = vrot.slane %v579, 1
      %v1405 = vsel %vm1364, %v1402, %v1404
      %v1406 = vrot.slane %v580, 1
      %v1407 = vsel %vm1364, %v1404, %v1406
      %v1408 = vrot.slane %v581, 1
      %v1409 = vsel %vm1364, %v1406, %v1408
      %v1410 = vrot.slane %v582, 1
      %v1411 = vsel %vm1364, %v1408, %v1410
      %v1412 = vrot.slane %v583, 1
      %v1413 = vsel %vm1364, %v1410, %v1412
      %v1415 = vsel %vm391, %v1367, 0
      %v1418 = vsel %vm391, %v1369, 0
      %v1421 = vsel %vm391, %v1371, 0
      %v1424 = vsel %vm391, %v1373, 0
      %v1427 = vsel %vm391, %v1375, 0
      %v1430 = vsel %vm391, %v1377, 0
      %v1433 = vsel %vm391, %v1379, 0
      %v1436 = vsel %vm391, %v1381, 0
      %v1439 = vsel %vm391, %v1383, 0
      %v1442 = vsel %vm391, %v1385, 0
      %v1445 = vsel %vm391, %v1387, 0
      %v1448 = vsel %vm391, %v1389, 0
      %v1451 = vsel %vm391, %v1391, 0
      %v1454 = vsel %vm391, %v1393, 0
      %v1457 = vsel %vm391, %v1395, 0
      %v1460 = vsel %vm391, %v1397, 0
      %v1463 = vsel %vm391, %v1399, 0
      %v1466 = vsel %vm391, %v1401, 0
      %v1469 = vsel %vm391, %v1403, 0
      %v1472 = vsel %vm391, %v1405, 0
      %v1475 = vsel %vm391, %v1407, 0
      %v1478 = vsel %vm391, %v1409, 0
      %v1481 = vsel %vm391, %v1411, 0
      %v1484 = vsel %vm391, %v1413, 0
      %v1487 = vsel %vm853, %v1360, 0
      %1489 = vmatprep.subr.bf16.mxu0 0
      %1490 = vmatpush1.bf16.msra.mxu0 %v1487
      %1491 = vmatprep.subr.bf16.mxu0 0
      %1492 = vmatpush1.bf16.msra.mxu0 0
      %1493 = vmatprep.subr.bf16.mxu0 0
      %1494 = vmatpush1.bf16.msra.mxu0 0
      %1495 = vmatprep.subr.bf16.mxu0 0
      %1496 = vmatpush1.bf16.msra.mxu0 0
      %1497 = vmatprep.subr.bf16.mxu0 0
      %1498 = vmatpush1.bf16.msra.mxu0 0
      %1499 = vmatprep.subr.bf16.mxu0 0
      %1500 = vmatpush1.bf16.msra.mxu0 0
      %1501 = vmatprep.subr.bf16.mxu0 0
      %1502 = vmatpush1.bf16.msra.mxu0 0
      %1503 = vmatprep.subr.bf16.mxu0 0
      %1504 = vmatpush1.bf16.msra.mxu0 0
      %1505 = vmatprep.subr.bf16.mxu0 0
      %1506 = vmatpush1.bf16.msra.mxu0 0
      %1507 = vmatprep.subr.bf16.mxu0 0
      %1508 = vmatpush1.bf16.msra.mxu0 0
      %1509 = vmatprep.subr.bf16.mxu0 0
      %1510 = vmatpush1.bf16.msra.mxu0 0
      %1511 = vmatprep.subr.bf16.mxu0 0
      %1512 = vmatpush1.bf16.msra.mxu0 0
      %1513 = vmatprep.subr.bf16.mxu0 0
      %1514 = vmatpush1.bf16.msra.mxu0 0
      %1515 = vmatprep.subr.bf16.mxu0 0
      %1516 = vmatpush1.bf16.msra.mxu0 0
      %1517 = vmatprep.subr.bf16.mxu0 0
      %1518 = vmatpush1.bf16.msra.mxu0 0
      %1519 = vmatprep.subr.bf16.mxu0 0
      %1520 = vmatpush1.bf16.msra.mxu0 0
      %1521 = vmatprep.mubr.bf16.mxu0 0
      %1522 = vmatmul.mubr.bf16.gmra.mrb[0].mxu0 %v1415
      %v1523 = vpop.f32.mrb[0].mxu0
      %v1524 = vadd.f32 0.0, %v1523
      %v1525 = vpop.f32.mrb[0].mxu0
      %v1526 = vpop.f32.mrb[0].mxu0
      %v1527 = vadd.f32 0.0, %v1526
      %v1528 = vpop.f32.mrb[0].mxu0
      %1529 = vmatprep.mubr.bf16.mxu0 0
      %1530 = vmatmul.mubr.bf16.gmra.mrb[0].mxu0 %v1418
      %v1531 = vpop.f32.mrb[0].mxu0
      %v1532 = vadd.f32 0.0, %v1531
      %v1533 = vpop.f32.mrb[0].mxu0
      %v1534 = vpop.f32.mrb[0].mxu0
      %v1535 = vadd.f32 0.0, %v1534
      %v1536 = vpop.f32.mrb[0].mxu0
      %1537 = vmatprep.mubr.bf16.mxu0 0
      %1538 = vmatmul.mubr.bf16.gmra.mrb[0].mxu0 %v1421
      %v1539 = vpop.f32.mrb[0].mxu0
      %v1540 = vadd.f32 0.0, %v1539
      %v1541 = vpop.f32.mrb[0].mxu0
      %v1542 = vpop.f32.mrb[0].mxu0
      %v1543 = vadd.f32 0.0, %v1542
      %v1544 = vpop.f32.mrb[0].mxu0
      %1545 = vmatprep.mubr.bf16.mxu0 0
      %1546 = vmatmul.mubr.bf16.gmra.mrb[0].mxu0 %v1424
      %v1547 = vpop.f32.mrb[0].mxu0
      %v1548 = vadd.f32 0.0, %v1547
      %v1549 = vpop.f32.mrb[0].mxu0
      %v1550 = vpop.f32.mrb[0].mxu0
      %v1551 = vadd.f32 0.0, %v1550
      %v1552 = vpop.f32.mrb[0].mxu0
      %1553 = vmatprep.mubr.bf16.mxu0 0
      %1554 = vmatmul.mubr.bf16.gmra.mrb[0].mxu0 %v1427
      %v1555 = vpop.f32.mrb[0].mxu0
      %v1556 = vadd.f32 0.0, %v1555
      %v1557 = vpop.f32.mrb[0].mxu0
      %v1558 = vpop.f32.mrb[0].mxu0
      %v1559 = vadd.f32 0.0, %v1558
      %v1560 = vpop.f32.mrb[0].mxu0
      %1561 = vmatprep.mubr.bf16.mxu0 0
      %1562 = vmatmul.mubr.bf16.gmra.mrb[0].mxu0 %v1430
      %v1563 = vpop.f32.mrb[0].mxu0
      %v1564 = vadd.f32 0.0, %v1563
      %v1565 = vpop.f32.mrb[0].mxu0
      %v1566 = vpop.f32.mrb[0].mxu0
      %v1567 = vadd.f32 0.0, %v1566
      %v1568 = vpop.f32.mrb[0].mxu0
      %1569 = vmatprep.mubr.bf16.mxu0 0
      %1570 = vmatmul.mubr.bf16.gmra.mrb[0].mxu0 %v1433
      %v1571 = vpop.f32.mrb[0].mxu0
      %v1572 = vadd.f32 0.0, %v1571
      %v1573 = vpop.f32.mrb[0].mxu0
      %v1574 = vpop.f32.mrb[0].mxu0
      %v1575 = vadd.f32 0.0, %v1574
      %v1576 = vpop.f32.mrb[0].mxu0
      %1577 = vmatprep.mubr.bf16.mxu0 0
      %1578 = vmatmul.mubr.bf16.gmra.mrb[0].mxu0 %v1436
      %v1579 = vpop.f32.mrb[0].mxu0
      %v1580 = vadd.f32 0.0, %v1579
      %v1581 = vpop.f32.mrb[0].mxu0
      %v1582 = vpop.f32.mrb[0].mxu0
      %v1583 = vadd.f32 0.0, %v1582
      %v1584 = vpop.f32.mrb[0].mxu0
      %1585 = vmatprep.mubr.bf16.mxu0 0
      %1586 = vmatmul.mubr.bf16.gmra.mrb[0].mxu0 %v1439
      %v1587 = vpop.f32.mrb[0].mxu0
      %v1588 = vadd.f32 0.0, %v1587
      %v1589 = vpop.f32.mrb[0].mxu0
      %v1590 = vpop.f32.mrb[0].mxu0
      %v1591 = vadd.f32 0.0, %v1590
      %v1592 = vpop.f32.mrb[0].mxu0
      %1593 = vmatprep.mubr.bf16.mxu0 0
      %1594 = vmatmul.mubr.bf16.gmra.mrb[0].mxu0 %v1442
      %v1595 = vpop.f32.mrb[0].mxu0
      %v1596 = vadd.f32 0.0, %v1595
      %v1597 = vpop.f32.mrb[0].mxu0
      %v1598 = vpop.f32.mrb[0].mxu0
      %v1599 = vadd.f32 0.0, %v1598
      %v1600 = vpop.f32.mrb[0].mxu0
      %1601 = vmatprep.mubr.bf16.mxu0 0
      %1602 = vmatmul.mubr.bf16.gmra.mrb[0].mxu0 %v1445
      %v1603 = vpop.f32.mrb[0].mxu0
      %v1604 = vadd.f32 0.0, %v1603
      %v1605 = vpop.f32.mrb[0].mxu0
      %v1606 = vpop.f32.mrb[0].mxu0
      %v1607 = vadd.f32 0.0, %v1606
      %v1608 = vpop.f32.mrb[0].mxu0
      %1609 = vmatprep.mubr.bf16.mxu0 0
      %1610 = vmatmul.mubr.bf16.gmra.mrb[0].mxu0 %v1448
      %v1611 = vpop.f32.mrb[0].mxu0
      %v1612 = vadd.f32 0.0, %v1611
      %v1613 = vpop.f32.mrb[0].mxu0
      %v1614 = vpop.f32.mrb[0].mxu0
      %v1615 = vadd.f32 0.0, %v1614
      %v1616 = vpop.f32.mrb[0].mxu0
      %1617 = vmatprep.mubr.bf16.mxu0 0
      %1618 = vmatmul.mubr.bf16.gmra.mrb[0].mxu0 %v1451
      %v1619 = vpop.f32.mrb[0].mxu0
      %v1620 = vadd.f32 0.0, %v1619
      %v1621 = vpop.f32.mrb[0].mxu0
      %v1622 = vpop.f32.mrb[0].mxu0
      %v1623 = vadd.f32 0.0, %v1622
      %v1624 = vpop.f32.mrb[0].mxu0
      %1625 = vmatprep.mubr.bf16.mxu0 0
      %1626 = vmatmul.mubr.bf16.gmra.mrb[0].mxu0 %v1454
      %v1627 = vpop.f32.mrb[0].mxu0
      %v1628 = vadd.f32 0.0, %v1627
      %v1629 = vpop.f32.mrb[0].mxu0
      %v1630 = vpop.f32.mrb[0].mxu0
      %v1631 = vadd.f32 0.0, %v1630
      %v1632 = vpop.f32.mrb[0].mxu0
      %1633 = vmatprep.mubr.bf16.mxu0 0
      %1634 = vmatmul.mubr.bf16.gmra.mrb[0].mxu0 %v1457
      %v1635 = vpop.f32.mrb[0].mxu0
      %v1636 = vadd.f32 0.0, %v1635
      %v1637 = vpop.f32.mrb[0].mxu0
      %v1638 = vpop.f32.mrb[0].mxu0
      %v1639 = vadd.f32 0.0, %v1638
      %v1640 = vpop.f32.mrb[0].mxu0
      %1641 = vmatprep.mubr.bf16.mxu0 0
      %1642 = vmatmul.mubr.bf16.gmra.mrb[0].mxu0 %v1460
      %v1643 = vpop.f32.mrb[0].mxu0
      %v1644 = vadd.f32 0.0, %v1643
      %v1645 = vpop.f32.mrb[0].mxu0
      %v1646 = vpop.f32.mrb[0].mxu0
      %v1647 = vadd.f32 0.0, %v1646
      %v1648 = vpop.f32.mrb[0].mxu0
      %1649 = vmatprep.mubr.bf16.mxu0 0
      %1650 = vmatmul.mubr.bf16.gmra.mrb[0].mxu0 %v1463
      %v1651 = vpop.f32.mrb[0].mxu0
      %v1652 = vadd.f32 0.0, %v1651
      %v1653 = vpop.f32.mrb[0].mxu0
      %v1654 = vpop.f32.mrb[0].mxu0
      %v1655 = vadd.f32 0.0, %v1654
      %v1656 = vpop.f32.mrb[0].mxu0
      %1657 = vmatprep.mubr.bf16.mxu0 0
      %1658 = vmatmul.mubr.bf16.gmra.mrb[0].mxu0 %v1466
      %v1659 = vpop.f32.mrb[0].mxu0
      %v1660 = vadd.f32 0.0, %v1659
      %v1661 = vpop.f32.mrb[0].mxu0
      %v1662 = vpop.f32.mrb[0].mxu0
      %v1663 = vadd.f32 0.0, %v1662
      %v1664 = vpop.f32.mrb[0].mxu0
      %1665 = vmatprep.mubr.bf16.mxu0 0
      %1666 = vmatmul.mubr.bf16.gmra.mrb[0].mxu0 %v1469
      %v1667 = vpop.f32.mrb[0].mxu0
      %v1668 = vadd.f32 0.0, %v1667
      %v1669 = vpop.f32.mrb[0].mxu0
      %v1670 = vpop.f32.mrb[0].mxu0
      %v1671 = vadd.f32 0.0, %v1670
      %v1672 = vpop.f32.mrb[0].mxu0
      %1673 = vmatprep.mubr.bf16.mxu0 0
      %1674 = vmatmul.mubr.bf16.gmra.mrb[0].mxu0 %v1472
      %v1675 = vpop.f32.mrb[0].mxu0
      %v1676 = vadd.f32 0.0, %v1675
      %v1677 = vpop.f32.mrb[0].mxu0
      %v1678 = vpop.f32.mrb[0].mxu0
      %v1679 = vadd.f32 0.0, %v1678
      %v1680 = vpop.f32.mrb[0].mxu0
      %1681 = vmatprep.mubr.bf16.mxu0 0
      %1682 = vmatmul.mubr.bf16.gmra.mrb[0].mxu0 %v1475
      %v1683 = vpop.f32.mrb[0].mxu0
      %v1684 = vadd.f32 0.0, %v1683
      %v1685 = vpop.f32.mrb[0].mxu0
      %v1686 = vpop.f32.mrb[0].mxu0
      %v1687 = vadd.f32 0.0, %v1686
      %v1688 = vpop.f32.mrb[0].mxu0
      %1689 = vmatprep.mubr.bf16.mxu0 0
      %1690 = vmatmul.mubr.bf16.gmra.mrb[0].mxu0 %v1478
      %v1691 = vpop.f32.mrb[0].mxu0
      %v1692 = vadd.f32 0.0, %v1691
      %v1693 = vpop.f32.mrb[0].mxu0
      %v1694 = vpop.f32.mrb[0].mxu0
      %v1695 = vadd.f32 0.0, %v1694
      %v1696 = vpop.f32.mrb[0].mxu0
      %1697 = vmatprep.mubr.bf16.mxu0 0
      %1698 = vmatmul.mubr.bf16.gmra.mrb[0].mxu0 %v1481
      %v1699 = vpop.f32.mrb[0].mxu0
      %v1700 = vadd.f32 0.0, %v1699
      %v1701 = vpop.f32.mrb[0].mxu0
      %v1702 = vpop.f32.mrb[0].mxu0
      %v1703 = vadd.f32 0.0, %v1702
      %v1704 = vpop.f32.mrb[0].mxu0
      %1705 = vmatprep.mubr.bf16.mxu0 0
      %1706 = vmatmul.mubr.bf16.gmra.mrb[0].mxu0 %v1484
      %v1707 = vpop.f32.mrb[0].mxu0
      %v1708 = vadd.f32 0.0, %v1707
      %v1709 = vpop.f32.mrb[0].mxu0
      %v1710 = vpop.f32.mrb[0].mxu0
      %v1711 = vadd.f32 0.0, %v1710
      %v1712 = vpop.f32.mrb[0].mxu0
      %1713 = vdwg.mxu0
      %v1714 = vadd.f32 %v1168, %v1524
      %v1715 = vadd.f32 %v1171, %v1527
      %v1716 = vadd.f32 %v1176, %v1532
      %v1717 = vadd.f32 %v1179, %v1535
      %v1718 = vadd.f32 %v1184, %v1540
      %v1719 = vadd.f32 %v1187, %v1543
      %v1720 = vadd.f32 %v1192, %v1548
      %v1721 = vadd.f32 %v1195, %v1551
      %v1722 = vadd.f32 %v1200, %v1556
      %v1723 = vadd.f32 %v1203, %v1559
      %v1724 = vadd.f32 %v1208, %v1564
      %v1725 = vadd.f32 %v1211, %v1567
      %v1726 = vadd.f32 %v1216, %v1572
      %v1727 = vadd.f32 %v1219, %v1575
      %v1728 = vadd.f32 %v1224, %v1580
      %v1729 = vadd.f32 %v1227, %v1583
      %v1730 = vadd.f32 %v1232, %v1588
      %v1731 = vadd.f32 %v1235, %v1591
      %v1732 = vadd.f32 %v1240, %v1596
      %v1733 = vadd.f32 %v1243, %v1599
      %v1734 = vadd.f32 %v1248, %v1604
      %v1735 = vadd.f32 %v1251, %v1607
      %v1736 = vadd.f32 %v1256, %v1612
      %v1737 = vadd.f32 %v1259, %v1615
      %v1738 = vadd.f32 %v1264, %v1620
      %v1739 = vadd.f32 %v1267, %v1623
      %v1740 = vadd.f32 %v1272, %v1628
      %v1741 = vadd.f32 %v1275, %v1631
      %v1742 = vadd.f32 %v1280, %v1636
      %v1743 = vadd.f32 %v1283, %v1639
      %v1744 = vadd.f32 %v1288, %v1644
      %v1745 = vadd.f32 %v1291, %v1647
      %v1746 = vadd.f32 %v1296, %v1652
      %v1747 = vadd.f32 %v1299, %v1655
      %v1748 = vadd.f32 %v1304, %v1660
      %v1749 = vadd.f32 %v1307, %v1663
      %v1750 = vadd.f32 %v1312, %v1668
      %v1751 = vadd.f32 %v1315, %v1671
      %v1752 = vadd.f32 %v1320, %v1676
      %v1753 = vadd.f32 %v1323, %v1679
      %v1754 = vadd.f32 %v1328, %v1684
      %v1755 = vadd.f32 %v1331, %v1687
      %v1756 = vadd.f32 %v1336, %v1692
      %v1757 = vadd.f32 %v1339, %v1695
      %v1758 = vadd.f32 %v1344, %v1700
      %v1759 = vadd.f32 %v1347, %v1703
      %v1760 = vadd.f32 %v1352, %v1708
      %v1761 = vadd.f32 %v1355, %v1711
      %v1762 = vld [vmem:[%s382 + $0xc] sm:$0xf]
      %v1763 = vld [vmem:[%s382 + $0x10] sm:$0xf]
      %v1764 = vld [vmem:[%s382 + $0x14] sm:$0xf]
      %v1765 = vld [vmem:[%s382 + $0x18] sm:$0xf]
      %v1766 = vld [vmem:[%s382 + $0x1c] sm:$0xf]
      %v1767 = vld [vmem:[%s382 + $0x20] sm:$0xf]
      %v1768 = vld [vmem:[%s382 + $0x24] sm:$0xf]
      %v1769 = vld [vmem:[%s382 + $0x28] sm:$0xf]
      %v1770 = vld [vmem:[%s382 + $0x2c] sm:$0xf]
      %v1771 = vld [vmem:[%s382 + $0x30] sm:$0xf]
      %v1772 = vld [vmem:[%s382 + $0x34] sm:$0xf]
      %v1773 = vld [vmem:[%s382 + $0x38] sm:$0xf]
      %v1774 = vld [vmem:[%s382 + $0x3c] sm:$0xf]
      %v1775 = vld [vmem:[%s382 + $0x40] sm:$0xf]
      %v1776 = vld [vmem:[%s382 + $0x44] sm:$0xf]
      %v1777 = vld [vmem:[%s382 + $0x48] sm:$0xf]
      %v1778 = vld [vmem:[%s382 + $0x4c] sm:$0xf]
      %v1779 = vld [vmem:[%s382 + $0x50] sm:$0xf]
      %v1780 = vld [vmem:[%s382 + $0x54] sm:$0xf]
      %v1781 = vld [vmem:[%s382 + $0x58] sm:$0xf]
      %v1782 = vld [vmem:[%s382 + $0x5c] sm:$0xf]
      %v1783 = vld [vmem:[%s382 + $0x60] sm:$0xf]
      %v1784 = vld [vmem:[%s382 + $0x64] sm:$0xf]
      %v1785 = vld [vmem:[%s382 + $0x68] sm:$0xf]
      %v1786 = vld [vmem:[%s382 + $0x6c] sm:$0xf]
      %v1787 = vld [vmem:[%s382 + $0x70] sm:$0xf]
      %v1788 = vld [vmem:[%s382 + $0x74] sm:$0xf]
      %v1789 = vld [vmem:[%s382 + $0x78] sm:$0xf]
      %v1790 = vld [vmem:[%s382 + $0x7c] sm:$0xf]
      %v1791 = vld [vmem:[%s382 + $0x80] sm:$0xf]
      %v1792 = vld [vmem:[%s382 + $0x84] sm:$0xf]
      %v1793 = vld [vmem:[%s382 + $0x88] sm:$0xf]
      %v1794 = vld [vmem:[%s382 + $0x8c] sm:$0xf]
      %v1795 = vld [vmem:[%s382 + $0x90] sm:$0xf]
      %v1796 = vld [vmem:[%s382 + $0x94] sm:$0xf]
      %v1797 = vld [vmem:[%s382 + $0x98] sm:$0xf]
      %v1798 = vld [vmem:[%s382 + $0x9c] sm:$0xf]
      %v1799 = vld [vmem:[%s382 + $0xa0] sm:$0xf]
      %v1800 = vld [vmem:[%s382 + $0xa4] sm:$0xf]
      %v1801 = vld [vmem:[%s382 + $0xa8] sm:$0xf]
      %v1802 = vld [vmem:[%s382 + $0xac] sm:$0xf]
      %v1803 = vld [vmem:[%s382 + $0xb0] sm:$0xf]
      %v1804 = vld [vmem:[%s382 + $0xb4] sm:$0xf]
      %v1805 = vld [vmem:[%s382 + $0xb8] sm:$0xf]
      %v1806 = vld [vmem:[%s382 + $0xbc] sm:$0xf]
      %v1807 = vld [vmem:[%s382 + $0xc0] sm:$0xf]
      %v1808 = vld [vmem:[%s382 + $0xc4] sm:$0xf]
      %v1809 = vld [vmem:[%s382 + $0xc8] sm:$0xf]
      %s1810 = scalar_lea.vmem %s1, 12
      %v1811 = vld [vmem:[%s1810] sm:$0xf]
      %v1860 = vunpack.c.l.b16 %v1762
      %v1861 = vunpack.c.l.b16 %v1763
      %v1862 = vunpack.c.l.b16 %v1764
      %v1863 = vunpack.c.l.b16 %v1765
      %v1864 = vunpack.c.l.b16 %v1766
      %v1865 = vunpack.c.l.b16 %v1767
      %v1866 = vunpack.c.l.b16 %v1768
      %v1867 = vunpack.c.l.b16 %v1769
      %v1868 = vunpack.c.l.b16 %v1770
      %v1869 = vunpack.c.l.b16 %v1771
      %v1870 = vunpack.c.l.b16 %v1772
      %v1871 = vunpack.c.l.b16 %v1773
      %v1872 = vunpack.c.l.b16 %v1774
      %v1873 = vunpack.c.l.b16 %v1775
      %v1874 = vunpack.c.l.b16 %v1776
      %v1875 = vunpack.c.l.b16 %v1777
      %v1876 = vunpack.c.l.b16 %v1778
      %v1877 = vunpack.c.l.b16 %v1779
      %v1878 = vunpack.c.l.b16 %v1780
      %v1879 = vunpack.c.l.b16 %v1781
      %v1880 = vunpack.c.l.b16 %v1782
      %v1881 = vunpack.c.l.b16 %v1783
      %v1882 = vunpack.c.l.b16 %v1784
      %v1883 = vunpack.c.l.b16 %v1785
      %v1884 = vunpack.c.l.b16 %v1786
      %v1885 = vunpack.c.l.b16 %v1787
      %v1886 = vunpack.c.l.b16 %v1788
      %v1887 = vunpack.c.l.b16 %v1789
      %v1888 = vunpack.c.l.b16 %v1790
      %v1889 = vunpack.c.l.b16 %v1791
      %v1890 = vunpack.c.l.b16 %v1792
      %v1891 = vunpack.c.l.b16 %v1793
      %v1892 = vunpack.c.l.b16 %v1794
      %v1893 = vunpack.c.l.b16 %v1795
      %v1894 = vunpack.c.l.b16 %v1796
      %v1895 = vunpack.c.l.b16 %v1797
      %v1896 = vunpack.c.l.b16 %v1798
      %v1897 = vunpack.c.l.b16 %v1799
      %v1898 = vunpack.c.l.b16 %v1800
      %v1899 = vunpack.c.l.b16 %v1801
      %v1900 = vunpack.c.l.b16 %v1802
      %v1901 = vunpack.c.l.b16 %v1803
      %v1902 = vunpack.c.l.b16 %v1804
      %v1903 = vunpack.c.l.b16 %v1805
      %v1904 = vunpack.c.l.b16 %v1806
      %v1905 = vunpack.c.l.b16 %v1807
      %v1906 = vunpack.c.l.b16 %v1808
      %v1907 = vunpack.c.l.b16 %v1809
      %v1908 = vpack.c.b16 %v1861, %v1860
      %v1909 = vpack.c.b16 %v1863, %v1862
      %v1910 = vpack.c.b16 %v1865, %v1864
      %v1911 = vpack.c.b16 %v1867, %v1866
      %v1912 = vpack.c.b16 %v1869, %v1868
      %v1913 = vpack.c.b16 %v1871, %v1870
      %v1914 = vpack.c.b16 %v1873, %v1872
      %v1915 = vpack.c.b16 %v1875, %v1874
      %v1916 = vpack.c.b16 %v1877, %v1876
      %v1917 = vpack.c.b16 %v1879, %v1878
      %v1918 = vpack.c.b16 %v1881, %v1880
      %v1919 = vpack.c.b16 %v1883, %v1882
      %v1920 = vpack.c.b16 %v1885, %v1884
      %v1921 = vpack.c.b16 %v1887, %v1886
      %v1922 = vpack.c.b16 %v1889, %v1888
      %v1923 = vpack.c.b16 %v1891, %v1890
      %v1924 = vpack.c.b16 %v1893, %v1892
      %v1925 = vpack.c.b16 %v1895, %v1894
      %v1926 = vpack.c.b16 %v1897, %v1896
      %v1927 = vpack.c.b16 %v1899, %v1898
      %v1928 = vpack.c.b16 %v1901, %v1900
      %v1929 = vpack.c.b16 %v1903, %v1902
      %v1930 = vpack.c.b16 %v1905, %v1904
      %v1931 = vpack.c.b16 %v1907, %v1906
      %v1933 = vsel %vm391, %v1908, 0
      %v1936 = vsel %vm391, %v1909, 0
      %v1939 = vsel %vm391, %v1910, 0
      %v1942 = vsel %vm391, %v1911, 0
      %v1945 = vsel %vm391, %v1912, 0
      %v1948 = vsel %vm391, %v1913, 0
      %v1951 = vsel %vm391, %v1914, 0
      %v1954 = vsel %vm391, %v1915, 0
      %v1957 = vsel %vm391, %v1916, 0
      %v1960 = vsel %vm391, %v1917, 0
      %v1963 = vsel %vm391, %v1918, 0
      %v1966 = vsel %vm391, %v1919, 0
      %v1969 = vsel %vm391, %v1920, 0
      %v1972 = vsel %vm391, %v1921, 0
      %v1975 = vsel %vm391, %v1922, 0
      %v1978 = vsel %vm391, %v1923, 0
      %v1981 = vsel %vm391, %v1924, 0
      %v1984 = vsel %vm391, %v1925, 0
      %v1987 = vsel %vm391, %v1926, 0
      %v1990 = vsel %vm391, %v1927, 0
      %v1993 = vsel %vm391, %v1928, 0
      %v1996 = vsel %vm391, %v1929, 0
      %v1999 = vsel %vm391, %v1930, 0
      %v2002 = vsel %vm391, %v1931, 0
      %v2005 = vsel %vm853, %v1811, 0
      %2007 = vmatprep.subr.bf16.mxu0 0
      %2008 = vmatpush1.bf16.msra.mxu0 %v2005
      %2009 = vmatprep.subr.bf16.mxu0 0
      %2010 = vmatpush1.bf16.msra.mxu0 0
      %2011 = vmatprep.subr.bf16.mxu0 0
      %2012 = vmatpush1.bf16.msra.mxu0 0
      %2013 = vmatprep.subr.bf16.mxu0 0
      %2014 = vmatpush1.bf16.msra.mxu0 0
      %2015 = vmatprep.subr.bf16.mxu0 0
      %2016 = vmatpush1.bf16.msra.mxu0 0
      %2017 = vmatprep.subr.bf16.mxu0 0
      %2018 = vmatpush1.bf16.msra.mxu0 0
      %2019 = vmatprep.subr.bf16.mxu0 0
      %2020 = vmatpush1.bf16.msra.mxu0 0
      %2021 = vmatprep.subr.bf16.mxu0 0
      %2022 = vmatpush1.bf16.msra.mxu0 0
      %2023 = vmatprep.subr.bf16.mxu0 0
      %2024 = vmatpush1.bf16.msra.mxu0 0
      %2025 = vmatprep.subr.bf16.mxu0 0
      %2026 = vmatpush1.bf16.msra.mxu0 0
      %2027 = vmatprep.subr.bf16.mxu0 0
      %2028 = vmatpush1.bf16.msra.mxu0 0
      %2029 = vmatprep.subr.bf16.mxu0 0
      %2030 = vmatpush1.bf16.msra.mxu0 0
      %2031 = vmatprep.subr.bf16.mxu0 0
      %2032 = vmatpush1.bf16.msra.mxu0 0
      %2033 = vmatprep.subr.bf16.mxu0 0
      %2034 = vmatpush1.bf16.msra.mxu0 0
      %2035 = vmatprep.subr.bf16.mxu0 0
      %2036 = vmatpush1.bf16.msra.mxu0 0
      %2037 = vmatprep.subr.bf16.mxu0 0
      %2038 = vmatpush1.bf16.msra.mxu0 0
      %2039 = vmatprep.mubr.bf16.mxu0 0
      %2040 = vmatmul.mubr.bf16.gmra.mrb[0].mxu0 %v1933
      %v2041 = vpop.f32.mrb[0].mxu0
      %v2042 = vadd.f32 0.0, %v2041
      %v2043 = vpop.f32.mrb[0].mxu0
      %v2044 = vpop.f32.mrb[0].mxu0
      %v2045 = vadd.f32 0.0, %v2044
      %v2046 = vpop.f32.mrb[0].mxu0
      %2047 = vmatprep.mubr.bf16.mxu0 0
      %2048 = vmatmul.mubr.bf16.gmra.mrb[0].mxu0 %v1936
      %v2049 = vpop.f32.mrb[0].mxu0
      %v2050 = vadd.f32 0.0, %v2049
      %v2051 = vpop.f32.mrb[0].mxu0
      %v2052 = vpop.f32.mrb[0].mxu0
      %v2053 = vadd.f32 0.0, %v2052
      %v2054 = vpop.f32.mrb[0].mxu0
      %2055 = vmatprep.mubr.bf16.mxu0 0
      %2056 = vmatmul.mubr.bf16.gmra.mrb[0].mxu0 %v1939
      %v2057 = vpop.f32.mrb[0].mxu0
      %v2058 = vadd.f32 0.0, %v2057
      %v2059 = vpop.f32.mrb[0].mxu0
      %v2060 = vpop.f32.mrb[0].mxu0
      %v2061 = vadd.f32 0.0, %v2060
      %v2062 = vpop.f32.mrb[0].mxu0
      %2063 = vmatprep.mubr.bf16.mxu0 0
      %2064 = vmatmul.mubr.bf16.gmra.mrb[0].mxu0 %v1942
      %v2065 = vpop.f32.mrb[0].mxu0
      %v2066 = vadd.f32 0.0, %v2065
      %v2067 = vpop.f32.mrb[0].mxu0
      %v2068 = vpop.f32.mrb[0].mxu0
      %v2069 = vadd.f32 0.0, %v2068
      %v2070 = vpop.f32.mrb[0].mxu0
      %2071 = vmatprep.mubr.bf16.mxu0 0
      %2072 = vmatmul.mubr.bf16.gmra.mrb[0].mxu0 %v1945
      %v2073 = vpop.f32.mrb[0].mxu0
      %v2074 = vadd.f32 0.0, %v2073
      %v2075 = vpop.f32.mrb[0].mxu0
      %v2076 = vpop.f32.mrb[0].mxu0
      %v2077 = vadd.f32 0.0, %v2076
      %v2078 = vpop.f32.mrb[0].mxu0
      %2079 = vmatprep.mubr.bf16.mxu0 0
      %2080 = vmatmul.mubr.bf16.gmra.mrb[0].mxu0 %v1948
      %v2081 = vpop.f32.mrb[0].mxu0
      %v2082 = vadd.f32 0.0, %v2081
      %v2083 = vpop.f32.mrb[0].mxu0
      %v2084 = vpop.f32.mrb[0].mxu0
      %v2085 = vadd.f32 0.0, %v2084
      %v2086 = vpop.f32.mrb[0].mxu0
      %2087 = vmatprep.mubr.bf16.mxu0 0
      %2088 = vmatmul.mubr.bf16.gmra.mrb[0].mxu0 %v1951
      %v2089 = vpop.f32.mrb[0].mxu0
      %v2090 = vadd.f32 0.0, %v2089
      %v2091 = vpop.f32.mrb[0].mxu0
      %v2092 = vpop.f32.mrb[0].mxu0
      %v2093 = vadd.f32 0.0, %v2092
      %v2094 = vpop.f32.mrb[0].mxu0
      %2095 = vmatprep.mubr.bf16.mxu0 0
      %2096 = vmatmul.mubr.bf16.gmra.mrb[0].mxu0 %v1954
      %v2097 = vpop.f32.mrb[0].mxu0
      %v2098 = vadd.f32 0.0, %v2097
      %v2099 = vpop.f32.mrb[0].mxu0
      %v2100 = vpop.f32.mrb[0].mxu0
      %v2101 = vadd.f32 0.0, %v2100
      %v2102 = vpop.f32.mrb[0].mxu0
      %2103 = vmatprep.mubr.bf16.mxu0 0
      %2104 = vmatmul.mubr.bf16.gmra.mrb[0].mxu0 %v1957
      %v2105 = vpop.f32.mrb[0].mxu0
      %v2106 = vadd.f32 0.0, %v2105
      %v2107 = vpop.f32.mrb[0].mxu0
      %v2108 = vpop.f32.mrb[0].mxu0
      %v2109 = vadd.f32 0.0, %v2108
      %v2110 = vpop.f32.mrb[0].mxu0
      %2111 = vmatprep.mubr.bf16.mxu0 0
      %2112 = vmatmul.mubr.bf16.gmra.mrb[0].mxu0 %v1960
      %v2113 = vpop.f32.mrb[0].mxu0
      %v2114 = vadd.f32 0.0, %v2113
      %v2115 = vpop.f32.mrb[0].mxu0
      %v2116 = vpop.f32.mrb[0].mxu0
      %v2117 = vadd.f32 0.0, %v2116
      %v2118 = vpop.f32.mrb[0].mxu0
      %2119 = vmatprep.mubr.bf16.mxu0 0
      %2120 = vmatmul.mubr.bf16.gmra.mrb[0].mxu0 %v1963
      %v2121 = vpop.f32.mrb[0].mxu0
      %v2122 = vadd.f32 0.0, %v2121
      %v2123 = vpop.f32.mrb[0].mxu0
      %v2124 = vpop.f32.mrb[0].mxu0
      %v2125 = vadd.f32 0.0, %v2124
      %v2126 = vpop.f32.mrb[0].mxu0
      %2127 = vmatprep.mubr.bf16.mxu0 0
      %2128 = vmatmul.mubr.bf16.gmra.mrb[0].mxu0 %v1966
      %v2129 = vpop.f32.mrb[0].mxu0
      %v2130 = vadd.f32 0.0, %v2129
      %v2131 = vpop.f32.mrb[0].mxu0
      %v2132 = vpop.f32.mrb[0].mxu0
      %v2133 = vadd.f32 0.0, %v2132
      %v2134 = vpop.f32.mrb[0].mxu0
      %2135 = vmatprep.mubr.bf16.mxu0 0
      %2136 = vmatmul.mubr.bf16.gmra.mrb[0].mxu0 %v1969
      %v2137 = vpop.f32.mrb[0].mxu0
      %v2138 = vadd.f32 0.0, %v2137
      %v2139 = vpop.f32.mrb[0].mxu0
      %v2140 = vpop.f32.mrb[0].mxu0
      %v2141 = vadd.f32 0.0, %v2140
      %v2142 = vpop.f32.mrb[0].mxu0
      %2143 = vmatprep.mubr.bf16.mxu0 0
      %2144 = vmatmul.mubr.bf16.gmra.mrb[0].mxu0 %v1972
      %v2145 = vpop.f32.mrb[0].mxu0
      %v2146 = vadd.f32 0.0, %v2145
      %v2147 = vpop.f32.mrb[0].mxu0
      %v2148 = vpop.f32.mrb[0].mxu0
      %v2149 = vadd.f32 0.0, %v2148
      %v2150 = vpop.f32.mrb[0].mxu0
      %2151 = vmatprep.mubr.bf16.mxu0 0
      %2152 = vmatmul.mubr.bf16.gmra.mrb[0].mxu0 %v1975
      %v2153 = vpop.f32.mrb[0].mxu0
      %v2154 = vadd.f32 0.0, %v2153
      %v2155 = vpop.f32.mrb[0].mxu0
      %v2156 = vpop.f32.mrb[0].mxu0
      %v2157 = vadd.f32 0.0, %v2156
      %v2158 = vpop.f32.mrb[0].mxu0
      %2159 = vmatprep.mubr.bf16.mxu0 0
      %2160 = vmatmul.mubr.bf16.gmra.mrb[0].mxu0 %v1978
      %v2161 = vpop.f32.mrb[0].mxu0
      %v2162 = vadd.f32 0.0, %v2161
      %v2163 = vpop.f32.mrb[0].mxu0
      %v2164 = vpop.f32.mrb[0].mxu0
      %v2165 = vadd.f32 0.0, %v2164
      %v2166 = vpop.f32.mrb[0].mxu0
      %2167 = vmatprep.mubr.bf16.mxu0 0
      %2168 = vmatmul.mubr.bf16.gmra.mrb[0].mxu0 %v1981
      %v2169 = vpop.f32.mrb[0].mxu0
      %v2170 = vadd.f32 0.0, %v2169
      %v2171 = vpop.f32.mrb[0].mxu0
      %v2172 = vpop.f32.mrb[0].mxu0
      %v2173 = vadd.f32 0.0, %v2172
      %v2174 = vpop.f32.mrb[0].mxu0
      %2175 = vmatprep.mubr.bf16.mxu0 0
      %2176 = vmatmul.mubr.bf16.gmra.mrb[0].mxu0 %v1984
      %v2177 = vpop.f32.mrb[0].mxu0
      %v2178 = vadd.f32 0.0, %v2177
      %v2179 = vpop.f32.mrb[0].mxu0
      %v2180 = vpop.f32.mrb[0].mxu0
      %v2181 = vadd.f32 0.0, %v2180
      %v2182 = vpop.f32.mrb[0].mxu0
      %2183 = vmatprep.mubr.bf16.mxu0 0
      %2184 = vmatmul.mubr.bf16.gmra.mrb[0].mxu0 %v1987
      %v2185 = vpop.f32.mrb[0].mxu0
      %v2186 = vadd.f32 0.0, %v2185
      %v2187 = vpop.f32.mrb[0].mxu0
      %v2188 = vpop.f32.mrb[0].mxu0
      %v2189 = vadd.f32 0.0, %v2188
      %v2190 = vpop.f32.mrb[0].mxu0
      %2191 = vmatprep.mubr.bf16.mxu0 0
      %2192 = vmatmul.mubr.bf16.gmra.mrb[0].mxu0 %v1990
      %v2193 = vpop.f32.mrb[0].mxu0
      %v2194 = vadd.f32 0.0, %v2193
      %v2195 = vpop.f32.mrb[0].mxu0
      %v2196 = vpop.f32.mrb[0].mxu0
      %v2197 = vadd.f32 0.0, %v2196
      %v2198 = vpop.f32.mrb[0].mxu0
      %2199 = vmatprep.mubr.bf16.mxu0 0
      %2200 = vmatmul.mubr.bf16.gmra.mrb[0].mxu0 %v1993
      %v2201 = vpop.f32.mrb[0].mxu0
      %v2202 = vadd.f32 0.0, %v2201
      %v2203 = vpop.f32.mrb[0].mxu0
      %v2204 = vpop.f32.mrb[0].mxu0
      %v2205 = vadd.f32 0.0, %v2204
      %v2206 = vpop.f32.mrb[0].mxu0
      %2207 = vmatprep.mubr.bf16.mxu0 0
      %2208 = vmatmul.mubr.bf16.gmra.mrb[0].mxu0 %v1996
      %v2209 = vpop.f32.mrb[0].mxu0
      %v2210 = vadd.f32 0.0, %v2209
      %v2211 = vpop.f32.mrb[0].mxu0
      %v2212 = vpop.f32.mrb[0].mxu0
      %v2213 = vadd.f32 0.0, %v2212
      %v2214 = vpop.f32.mrb[0].mxu0
      %2215 = vmatprep.mubr.bf16.mxu0 0
      %2216 = vmatmul.mubr.bf16.gmra.mrb[0].mxu0 %v1999
      %v2217 = vpop.f32.mrb[0].mxu0
      %v2218 = vadd.f32 0.0, %v2217
      %v2219 = vpop.f32.mrb[0].mxu0
      %v2220 = vpop.f32.mrb[0].mxu0
      %v2221 = vadd.f32 0.0, %v2220
      %v2222 = vpop.f32.mrb[0].mxu0
      %2223 = vmatprep.mubr.bf16.mxu0 0
      %2224 = vmatmul.mubr.bf16.gmra.mrb[0].mxu0 %v2002
      %v2225 = vpop.f32.mrb[0].mxu0
      %v2226 = vadd.f32 0.0, %v2225
      %v2227 = vpop.f32.mrb[0].mxu0
      %v2228 = vpop.f32.mrb[0].mxu0
      %v2229 = vadd.f32 0.0, %v2228
      %v2230 = vpop.f32.mrb[0].mxu0
      %2231 = vdwg.mxu0
      %v2232 = vadd.f32 %v1714, %v2042
      %v2233 = vadd.f32 %v1715, %v2045
      %v2234 = vadd.f32 %v1716, %v2050
      %v2235 = vadd.f32 %v1717, %v2053
      %v2236 = vadd.f32 %v1718, %v2058
      %v2237 = vadd.f32 %v1719, %v2061
      %v2238 = vadd.f32 %v1720, %v2066
      %v2239 = vadd.f32 %v1721, %v2069
      %v2240 = vadd.f32 %v1722, %v2074
      %v2241 = vadd.f32 %v1723, %v2077
      %v2242 = vadd.f32 %v1724, %v2082
      %v2243 = vadd.f32 %v1725, %v2085
      %v2244 = vadd.f32 %v1726, %v2090
      %v2245 = vadd.f32 %v1727, %v2093
      %v2246 = vadd.f32 %v1728, %v2098
      %v2247 = vadd.f32 %v1729, %v2101
      %v2248 = vadd.f32 %v1730, %v2106
      %v2249 = vadd.f32 %v1731, %v2109
      %v2250 = vadd.f32 %v1732, %v2114
      %v2251 = vadd.f32 %v1733, %v2117
      %v2252 = vadd.f32 %v1734, %v2122
      %v2253 = vadd.f32 %v1735, %v2125
      %v2254 = vadd.f32 %v1736, %v2130
      %v2255 = vadd.f32 %v1737, %v2133
      %v2256 = vadd.f32 %v1738, %v2138
      %v2257 = vadd.f32 %v1739, %v2141
      %v2258 = vadd.f32 %v1740, %v2146
      %v2259 = vadd.f32 %v1741, %v2149
      %v2260 = vadd.f32 %v1742, %v2154
      %v2261 = vadd.f32 %v1743, %v2157
      %v2262 = vadd.f32 %v1744, %v2162
      %v2263 = vadd.f32 %v1745, %v2165
      %v2264 = vadd.f32 %v1746, %v2170
      %v2265 = vadd.f32 %v1747, %v2173
      %v2266 = vadd.f32 %v1748, %v2178
      %v2267 = vadd.f32 %v1749, %v2181
      %v2268 = vadd.f32 %v1750, %v2186
      %v2269 = vadd.f32 %v1751, %v2189
      %v2270 = vadd.f32 %v1752, %v2194
      %v2271 = vadd.f32 %v1753, %v2197
      %v2272 = vadd.f32 %v1754, %v2202
      %v2273 = vadd.f32 %v1755, %v2205
      %v2274 = vadd.f32 %v1756, %v2210
      %v2275 = vadd.f32 %v1757, %v2213
      %v2276 = vadd.f32 %v1758, %v2218
      %v2277 = vadd.f32 %v1759, %v2221
      %v2278 = vadd.f32 %v1760, %v2226
      %v2279 = vadd.f32 %v1761, %v2229
      %v2280 = vld [vmem:[%s382 + $0xc] sm:$0xf]
      %v2281 = vld [vmem:[%s382 + $0x10] sm:$0xf]
      %v2282 = vld [vmem:[%s382 + $0x14] sm:$0xf]
      %v2283 = vld [vmem:[%s382 + $0x18] sm:$0xf]
      %v2284 = vld [vmem:[%s382 + $0x1c] sm:$0xf]
      %v2285 = vld [vmem:[%s382 + $0x20] sm:$0xf]
      %v2286 = vld [vmem:[%s382 + $0x24] sm:$0xf]
      %v2287 = vld [vmem:[%s382 + $0x28] sm:$0xf]
      %v2288 = vld [vmem:[%s382 + $0x2c] sm:$0xf]
      %v2289 = vld [vmem:[%s382 + $0x30] sm:$0xf]
      %v2290 = vld [vmem:[%s382 + $0x34] sm:$0xf]
      %v2291 = vld [vmem:[%s382 + $0x38] sm:$0xf]
      %v2292 = vld [vmem:[%s382 + $0x3c] sm:$0xf]
      %v2293 = vld [vmem:[%s382 + $0x40] sm:$0xf]
      %v2294 = vld [vmem:[%s382 + $0x44] sm:$0xf]
      %v2295 = vld [vmem:[%s382 + $0x48] sm:$0xf]
      %v2296 = vld [vmem:[%s382 + $0x4c] sm:$0xf]
      %v2297 = vld [vmem:[%s382 + $0x50] sm:$0xf]
      %v2298 = vld [vmem:[%s382 + $0x54] sm:$0xf]
      %v2299 = vld [vmem:[%s382 + $0x58] sm:$0xf]
      %v2300 = vld [vmem:[%s382 + $0x5c] sm:$0xf]
      %v2301 = vld [vmem:[%s382 + $0x60] sm:$0xf]
      %v2302 = vld [vmem:[%s382 + $0x64] sm:$0xf]
      %v2303 = vld [vmem:[%s382 + $0x68] sm:$0xf]
      %v2304 = vld [vmem:[%s382 + $0x6c] sm:$0xf]
      %v2305 = vld [vmem:[%s382 + $0x70] sm:$0xf]
      %v2306 = vld [vmem:[%s382 + $0x74] sm:$0xf]
      %v2307 = vld [vmem:[%s382 + $0x78] sm:$0xf]
      %v2308 = vld [vmem:[%s382 + $0x7c] sm:$0xf]
      %v2309 = vld [vmem:[%s382 + $0x80] sm:$0xf]
      %v2310 = vld [vmem:[%s382 + $0x84] sm:$0xf]
      %v2311 = vld [vmem:[%s382 + $0x88] sm:$0xf]
      %v2312 = vld [vmem:[%s382 + $0x8c] sm:$0xf]
      %v2313 = vld [vmem:[%s382 + $0x90] sm:$0xf]
      %v2314 = vld [vmem:[%s382 + $0x94] sm:$0xf]
      %v2315 = vld [vmem:[%s382 + $0x98] sm:$0xf]
      %v2316 = vld [vmem:[%s382 + $0x9c] sm:$0xf]
      %v2317 = vld [vmem:[%s382 + $0xa0] sm:$0xf]
      %v2318 = vld [vmem:[%s382 + $0xa4] sm:$0xf]
      %v2319 = vld [vmem:[%s382 + $0xa8] sm:$0xf]
      %v2320 = vld [vmem:[%s382 + $0xac] sm:$0xf]
      %v2321 = vld [vmem:[%s382 + $0xb0] sm:$0xf]
      %v2322 = vld [vmem:[%s382 + $0xb4] sm:$0xf]
      %v2323 = vld [vmem:[%s382 + $0xb8] sm:$0xf]
      %v2324 = vld [vmem:[%s382 + $0xbc] sm:$0xf]
      %v2325 = vld [vmem:[%s382 + $0xc0] sm:$0xf]
      %v2326 = vld [vmem:[%s382 + $0xc4] sm:$0xf]
      %v2327 = vld [vmem:[%s382 + $0xc8] sm:$0xf]
      %v2328 = vld [vmem:[%s382 + $0xcc] sm:$0x1]
      %s2329 = scalar_lea.vmem %s1, 16
      %v2330 = vld [vmem:[%s2329] sm:$0xf]
      %v2380 = vunpack.c.l.b16 %v2280
      %v2381 = vunpack.c.l.b16 %v2281
      %v2382 = vunpack.c.l.b16 %v2282
      %v2383 = vunpack.c.l.b16 %v2283
      %v2384 = vunpack.c.l.b16 %v2284
      %v2385 = vunpack.c.l.b16 %v2285
      %v2386 = vunpack.c.l.b16 %v2286
      %v2387 = vunpack.c.l.b16 %v2287
      %v2388 = vunpack.c.l.b16 %v2288
      %v2389 = vunpack.c.l.b16 %v2289
      %v2390 = vunpack.c.l.b16 %v2290
      %v2391 = vunpack.c.l.b16 %v2291
      %v2392 = vunpack.c.l.b16 %v2292
      %v2393 = vunpack.c.l.b16 %v2293
      %v2394 = vunpack.c.l.b16 %v2294
      %v2395 = vunpack.c.l.b16 %v2295
      %v2396 = vunpack.c.l.b16 %v2296
      %v2397 = vunpack.c.l.b16 %v2297
      %v2398 = vunpack.c.l.b16 %v2298
      %v2399 = vunpack.c.l.b16 %v2299
      %v2400 = vunpack.c.l.b16 %v2300
      %v2401 = vunpack.c.l.b16 %v2301
      %v2402 = vunpack.c.l.b16 %v2302
      %v2403 = vunpack.c.l.b16 %v2303
      %v2404 = vunpack.c.l.b16 %v2304
      %v2405 = vunpack.c.l.b16 %v2305
      %v2406 = vunpack.c.l.b16 %v2306
      %v2407 = vunpack.c.l.b16 %v2307
      %v2408 = vunpack.c.l.b16 %v2308
      %v2409 = vunpack.c.l.b16 %v2309
      %v2410 = vunpack.c.l.b16 %v2310
      %v2411 = vunpack.c.l.b16 %v2311
      %v2412 = vunpack.c.l.b16 %v2312
      %v2413 = vunpack.c.l.b16 %v2313
      %v2414 = vunpack.c.l.b16 %v2314
      %v2415 = vunpack.c.l.b16 %v2315
      %v2416 = vunpack.c.l.b16 %v2316
      %v2417 = vunpack.c.l.b16 %v2317
      %v2418 = vunpack.c.l.b16 %v2318
      %v2419 = vunpack.c.l.b16 %v2319
      %v2420 = vunpack.c.l.b16 %v2320
      %v2421 = vunpack.c.l.b16 %v2321
      %v2422 = vunpack.c.l.b16 %v2322
      %v2423 = vunpack.c.l.b16 %v2323
      %v2424 = vunpack.c.l.b16 %v2324
      %v2425 = vunpack.c.l.b16 %v2325
      %v2426 = vunpack.c.l.b16 %v2326
      %v2427 = vunpack.c.l.b16 %v2327
      %v2428 = vunpack.c.l.b16 %v2328
      %v2429 = vpack.c.b16 %v2381, %v2380
      %v2430 = vpack.c.b16 %v2383, %v2382
      %v2431 = vpack.c.b16 %v2385, %v2384
      %v2432 = vpack.c.b16 %v2387, %v2386
      %v2433 = vpack.c.b16 %v2389, %v2388
      %v2434 = vpack.c.b16 %v2391, %v2390
      %v2435 = vpack.c.b16 %v2393, %v2392
      %v2436 = vpack.c.b16 %v2395, %v2394
      %v2437 = vpack.c.b16 %v2397, %v2396
      %v2438 = vpack.c.b16 %v2399, %v2398
      %v2439 = vpack.c.b16 %v2401, %v2400
      %v2440 = vpack.c.b16 %v2403, %v2402
      %v2441 = vpack.c.b16 %v2405, %v2404
      %v2442 = vpack.c.b16 %v2407, %v2406
      %v2443 = vpack.c.b16 %v2409, %v2408
      %v2444 = vpack.c.b16 %v2411, %v2410
      %v2445 = vpack.c.b16 %v2413, %v2412
      %v2446 = vpack.c.b16 %v2415, %v2414
      %v2447 = vpack.c.b16 %v2417, %v2416
      %v2448 = vpack.c.b16 %v2419, %v2418
      %v2449 = vpack.c.b16 %v2421, %v2420
      %v2450 = vpack.c.b16 %v2423, %v2422
      %v2451 = vpack.c.b16 %v2425, %v2424
      %v2452 = vpack.c.b16 %v2427, %v2426
      %v2453 = vpack.c.b16 %v2428, %v2428
      %v2455 = vshrl.u32 %v2429, 16
      %v2457 = vshll.u32 %v2429, 16
      %v2459 = vrot.slane %v2457, 1
      %v2460 = vor.u32 %v2455, %v2459
      %v2462 = vshll.u32 %v2430, 16
      %v2464 = vrot.slane %v2462, 1
      %v2465 = vsel %vm584, %v2460, %v2464
      %v2466 = vshrl.u32 %v2430, 16
      %v2468 = vor.u32 %v2466, %v2464
      %v2470 = vshll.u32 %v2431, 16
      %v2472 = vrot.slane %v2470, 1
      %v2473 = vsel %vm584, %v2468, %v2472
      %v2474 = vshrl.u32 %v2431, 16
      %v2476 = vor.u32 %v2474, %v2472
      %v2478 = vshll.u32 %v2432, 16
      %v2480 = vrot.slane %v2478, 1
      %v2481 = vsel %vm584, %v2476, %v2480
      %v2482 = vshrl.u32 %v2432, 16
      %v2484 = vor.u32 %v2482, %v2480
      %v2486 = vshll.u32 %v2433, 16
      %v2488 = vrot.slane %v2486, 1
      %v2489 = vsel %vm584, %v2484, %v2488
      %v2490 = vshrl.u32 %v2433, 16
      %v2492 = vor.u32 %v2490, %v2488
      %v2494 = vshll.u32 %v2434, 16
      %v2496 = vrot.slane %v2494, 1
      %v2497 = vsel %vm584, %v2492, %v2496
      %v2498 = vshrl.u32 %v2434, 16
      %v2500 = vor.u32 %v2498, %v2496
      %v2502 = vshll.u32 %v2435, 16
      %v2504 = vrot.slane %v2502, 1
      %v2505 = vsel %vm584, %v2500, %v2504
      %v2506 = vshrl.u32 %v2435, 16
      %v2508 = vor.u32 %v2506, %v2504
      %v2510 = vshll.u32 %v2436, 16
      %v2512 = vrot.slane %v2510, 1
      %v2513 = vsel %vm584, %v2508, %v2512
      %v2514 = vshrl.u32 %v2436, 16
      %v2516 = vor.u32 %v2514, %v2512
      %v2518 = vshll.u32 %v2437, 16
      %v2520 = vrot.slane %v2518, 1
      %v2521 = vsel %vm584, %v2516, %v2520
      %v2522 = vshrl.u32 %v2437, 16
      %v2524 = vor.u32 %v2522, %v2520
      %v2526 = vshll.u32 %v2438, 16
      %v2528 = vrot.slane %v2526, 1
      %v2529 = vsel %vm584, %v2524, %v2528
      %v2530 = vshrl.u32 %v2438, 16
      %v2532 = vor.u32 %v2530, %v2528
      %v2534 = vshll.u32 %v2439, 16
      %v2536 = vrot.slane %v2534, 1
      %v2537 = vsel %vm584, %v2532, %v2536
      %v2538 = vshrl.u32 %v2439, 16
      %v2540 = vor.u32 %v2538, %v2536
      %v2542 = vshll.u32 %v2440, 16
      %v2544 = vrot.slane %v2542, 1
      %v2545 = vsel %vm584, %v2540, %v2544
      %v2546 = vshrl.u32 %v2440, 16
      %v2548 = vor.u32 %v2546, %v2544
      %v2550 = vshll.u32 %v2441, 16
      %v2552 = vrot.slane %v2550, 1
      %v2553 = vsel %vm584, %v2548, %v2552
      %v2554 = vshrl.u32 %v2441, 16
      %v2556 = vor.u32 %v2554, %v2552
      %v2558 = vshll.u32 %v2442, 16
      %v2560 = vrot.slane %v2558, 1
      %v2561 = vsel %vm584, %v2556, %v2560
      %v2562 = vshrl.u32 %v2442, 16
      %v2564 = vor.u32 %v2562, %v2560
      %v2566 = vshll.u32 %v2443, 16
      %v2568 = vrot.slane %v2566, 1
      %v2569 = vsel %vm584, %v2564, %v2568
      %v2570 = vshrl.u32 %v2443, 16
      %v2572 = vor.u32 %v2570, %v2568
      %v2574 = vshll.u32 %v2444, 16
      %v2576 = vrot.slane %v2574, 1
      %v2577 = vsel %vm584, %v2572, %v2576
      %v2578 = vshrl.u32 %v2444, 16
      %v2580 = vor.u32 %v2578, %v2576
      %v2582 = vshll.u32 %v2445, 16
      %v2584 = vrot.slane %v2582, 1
      %v2585 = vsel %vm584, %v2580, %v2584
      %v2586 = vshrl.u32 %v2445, 16
      %v2588 = vor.u32 %v2586, %v2584
      %v2590 = vshll.u32 %v2446, 16
      %v2592 = vrot.slane %v2590, 1
      %v2593 = vsel %vm584, %v2588, %v2592
      %v2594 = vshrl.u32 %v2446, 16
      %v2596 = vor.u32 %v2594, %v2592
      %v2598 = vshll.u32 %v2447, 16
      %v2600 = vrot.slane %v2598, 1
      %v2601 = vsel %vm584, %v2596, %v2600
      %v2602 = vshrl.u32 %v2447, 16
      %v2604 = vor.u32 %v2602, %v2600
      %v2606 = vshll.u32 %v2448, 16
      %v2608 = vrot.slane %v2606, 1
      %v2609 = vsel %vm584, %v2604, %v2608
      %v2610 = vshrl.u32 %v2448, 16
      %v2612 = vor.u32 %v2610, %v2608
      %v2614 = vshll.u32 %v2449, 16
      %v2616 = vrot.slane %v2614, 1
      %v2617 = vsel %vm584, %v2612, %v2616
      %v2618 = vshrl.u32 %v2449, 16
      %v2620 = vor.u32 %v2618, %v2616
      %v2622 = vshll.u32 %v2450, 16
      %v2624 = vrot.slane %v2622, 1
      %v2625 = vsel %vm584, %v2620, %v2624
      %v2626 = vshrl.u32 %v2450, 16
      %v2628 = vor.u32 %v2626, %v2624
      %v2630 = vshll.u32 %v2451, 16
      %v2632 = vrot.slane %v2630, 1
      %v2633 = vsel %vm584, %v2628, %v2632
      %v2634 = vshrl.u32 %v2451, 16
      %v2636 = vor.u32 %v2634, %v2632
      %v2638 = vshll.u32 %v2452, 16
      %v2640 = vrot.slane %v2638, 1
      %v2641 = vsel %vm584, %v2636, %v2640
      %v2642 = vshrl.u32 %v2452, 16
      %v2644 = vor.u32 %v2642, %v2640
      %v2646 = vshll.u32 %v2453, 16
      %v2648 = vrot.slane %v2646, 1
      %v2649 = vsel %vm584, %v2644, %v2648
      %v2651 = vsel %vm391, %v2465, 0
      %v2654 = vsel %vm391, %v2473, 0
      %v2657 = vsel %vm391, %v2481, 0
      %v2660 = vsel %vm391, %v2489, 0
      %v2663 = vsel %vm391, %v2497, 0
      %v2666 = vsel %vm391, %v2505, 0
      %v2669 = vsel %vm391, %v2513, 0
      %v2672 = vsel %vm391, %v2521, 0
      %v2675 = vsel %vm391, %v2529, 0
      %v2678 = vsel %vm391, %v2537, 0
      %v2681 = vsel %vm391, %v2545, 0
      %v2684 = vsel %vm391, %v2553, 0
      %v2687 = vsel %vm391, %v2561, 0
      %v2690 = vsel %vm391, %v2569, 0
      %v2693 = vsel %vm391, %v2577, 0
      %v2696 = vsel %vm391, %v2585, 0
      %v2699 = vsel %vm391, %v2593, 0
      %v2702 = vsel %vm391, %v2601, 0
      %v2705 = vsel %vm391, %v2609, 0
      %v2708 = vsel %vm391, %v2617, 0
      %v2711 = vsel %vm391, %v2625, 0
      %v2714 = vsel %vm391, %v2633, 0
      %v2717 = vsel %vm391, %v2641, 0
      %v2720 = vsel %vm391, %v2649, 0
      %v2723 = vsel %vm853, %v2330, 0
      %2725 = vmatprep.subr.bf16.mxu0 0
      %2726 = vmatpush1.bf16.msra.mxu0 %v2723
      %2727 = vmatprep.subr.bf16.mxu0 0
      %2728 = vmatpush1.bf16.msra.mxu0 0
      %2729 = vmatprep.subr.bf16.mxu0 0
      %2730 = vmatpush1.bf16.msra.mxu0 0
      %2731 = vmatprep.subr.bf16.mxu0 0
      %2732 = vmatpush1.bf16.msra.mxu0 0
      %2733 = vmatprep.subr.bf16.mxu0 0
      %2734 = vmatpush1.bf16.msra.mxu0 0
      %2735 = vmatprep.subr.bf16.mxu0 0
      %2736 = vmatpush1.bf16.msra.mxu0 0
      %2737 = vmatprep.subr.bf16.mxu0 0
      %2738 = vmatpush1.bf16.msra.mxu0 0
      %2739 = vmatprep.subr.bf16.mxu0 0
      %2740 = vmatpush1.bf16.msra.mxu0 0
      %2741 = vmatprep.subr.bf16.mxu0 0
      %2742 = vmatpush1.bf16.msra.mxu0 0
      %2743 = vmatprep.subr.bf16.mxu0 0
      %2744 = vmatpush1.bf16.msra.mxu0 0
      %2745 = vmatprep.subr.bf16.mxu0 0
      %2746 = vmatpush1.bf16.msra.mxu0 0
      %2747 = vmatprep.subr.bf16.mxu0 0
      %2748 = vmatpush1.bf16.msra.mxu0 0
      %2749 = vmatprep.subr.bf16.mxu0 0
      %2750 = vmatpush1.bf16.msra.mxu0 0
      %2751 = vmatprep.subr.bf16.mxu0 0
      %2752 = vmatpush1.bf16.msra.mxu0 0
      %2753 = vmatprep.subr.bf16.mxu0 0
      %2754 = vmatpush1.bf16.msra.mxu0 0
      %2755 = vmatprep.subr.bf16.mxu0 0
      %2756 = vmatpush1.bf16.msra.mxu0 0
      %2757 = vmatprep.mubr.bf16.mxu0 0
      %2758 = vmatmul.mubr.bf16.gmra.mrb[0].mxu0 %v2651
      %v2759 = vpop.f32.mrb[0].mxu0
      %v2760 = vadd.f32 0.0, %v2759
      %v2761 = vpop.f32.mrb[0].mxu0
      %v2762 = vpop.f32.mrb[0].mxu0
      %v2763 = vadd.f32 0.0, %v2762
      %v2764 = vpop.f32.mrb[0].mxu0
      %2765 = vmatprep.mubr.bf16.mxu0 0
      %2766 = vmatmul.mubr.bf16.gmra.mrb[0].mxu0 %v2654
      %v2767 = vpop.f32.mrb[0].mxu0
      %v2768 = vadd.f32 0.0, %v2767
      %v2769 = vpop.f32.mrb[0].mxu0
      %v2770 = vpop.f32.mrb[0].mxu0
      %v2771 = vadd.f32 0.0, %v2770
      %v2772 = vpop.f32.mrb[0].mxu0
      %2773 = vmatprep.mubr.bf16.mxu0 0
      %2774 = vmatmul.mubr.bf16.gmra.mrb[0].mxu0 %v2657
      %v2775 = vpop.f32.mrb[0].mxu0
      %v2776 = vadd.f32 0.0, %v2775
      %v2777 = vpop.f32.mrb[0].mxu0
      %v2778 = vpop.f32.mrb[0].mxu0
      %v2779 = vadd.f32 0.0, %v2778
      %v2780 = vpop.f32.mrb[0].mxu0
      %2781 = vmatprep.mubr.bf16.mxu0 0
      %2782 = vmatmul.mubr.bf16.gmra.mrb[0].mxu0 %v2660
      %v2783 = vpop.f32.mrb[0].mxu0
      %v2784 = vadd.f32 0.0, %v2783
      %v2785 = vpop.f32.mrb[0].mxu0
      %v2786 = vpop.f32.mrb[0].mxu0
      %v2787 = vadd.f32 0.0, %v2786
      %v2788 = vpop.f32.mrb[0].mxu0
      %2789 = vmatprep.mubr.bf16.mxu0 0
      %2790 = vmatmul.mubr.bf16.gmra.mrb[0].mxu0 %v2663
      %v2791 = vpop.f32.mrb[0].mxu0
      %v2792 = vadd.f32 0.0, %v2791
      %v2793 = vpop.f32.mrb[0].mxu0
      %v2794 = vpop.f32.mrb[0].mxu0
      %v2795 = vadd.f32 0.0, %v2794
      %v2796 = vpop.f32.mrb[0].mxu0
      %2797 = vmatprep.mubr.bf16.mxu0 0
      %2798 = vmatmul.mubr.bf16.gmra.mrb[0].mxu0 %v2666
      %v2799 = vpop.f32.mrb[0].mxu0
      %v2800 = vadd.f32 0.0, %v2799
      %v2801 = vpop.f32.mrb[0].mxu0
      %v2802 = vpop.f32.mrb[0].mxu0
      %v2803 = vadd.f32 0.0, %v2802
      %v2804 = vpop.f32.mrb[0].mxu0
      %2805 = vmatprep.mubr.bf16.mxu0 0
      %2806 = vmatmul.mubr.bf16.gmra.mrb[0].mxu0 %v2669
      %v2807 = vpop.f32.mrb[0].mxu0
      %v2808 = vadd.f32 0.0, %v2807
      %v2809 = vpop.f32.mrb[0].mxu0
      %v2810 = vpop.f32.mrb[0].mxu0
      %v2811 = vadd.f32 0.0, %v2810
      %v2812 = vpop.f32.mrb[0].mxu0
      %2813 = vmatprep.mubr.bf16.mxu0 0
      %2814 = vmatmul.mubr.bf16.gmra.mrb[0].mxu0 %v2672
      %v2815 = vpop.f32.mrb[0].mxu0
      %v2816 = vadd.f32 0.0, %v2815
      %v2817 = vpop.f32.mrb[0].mxu0
      %v2818 = vpop.f32.mrb[0].mxu0
      %v2819 = vadd.f32 0.0, %v2818
      %v2820 = vpop.f32.mrb[0].mxu0
      %2821 = vmatprep.mubr.bf16.mxu0 0
      %2822 = vmatmul.mubr.bf16.gmra.mrb[0].mxu0 %v2675
      %v2823 = vpop.f32.mrb[0].mxu0
      %v2824 = vadd.f32 0.0, %v2823
      %v2825 = vpop.f32.mrb[0].mxu0
      %v2826 = vpop.f32.mrb[0].mxu0
      %v2827 = vadd.f32 0.0, %v2826
      %v2828 = vpop.f32.mrb[0].mxu0
      %2829 = vmatprep.mubr.bf16.mxu0 0
      %2830 = vmatmul.mubr.bf16.gmra.mrb[0].mxu0 %v2678
      %v2831 = vpop.f32.mrb[0].mxu0
      %v2832 = vadd.f32 0.0, %v2831
      %v2833 = vpop.f32.mrb[0].mxu0
      %v2834 = vpop.f32.mrb[0].mxu0
      %v2835 = vadd.f32 0.0, %v2834
      %v2836 = vpop.f32.mrb[0].mxu0
      %2837 = vmatprep.mubr.bf16.mxu0 0
      %2838 = vmatmul.mubr.bf16.gmra.mrb[0].mxu0 %v2681
      %v2839 = vpop.f32.mrb[0].mxu0
      %v2840 = vadd.f32 0.0, %v2839
      %v2841 = vpop.f32.mrb[0].mxu0
      %v2842 = vpop.f32.mrb[0].mxu0
      %v2843 = vadd.f32 0.0, %v2842
      %v2844 = vpop.f32.mrb[0].mxu0
      %2845 = vmatprep.mubr.bf16.mxu0 0
      %2846 = vmatmul.mubr.bf16.gmra.mrb[0].mxu0 %v2684
      %v2847 = vpop.f32.mrb[0].mxu0
      %v2848 = vadd.f32 0.0, %v2847
      %v2849 = vpop.f32.mrb[0].mxu0
      %v2850 = vpop.f32.mrb[0].mxu0
      %v2851 = vadd.f32 0.0, %v2850
      %v2852 = vpop.f32.mrb[0].mxu0
      %2853 = vmatprep.mubr.bf16.mxu0 0
      %2854 = vmatmul.mubr.bf16.gmra.mrb[0].mxu0 %v2687
      %v2855 = vpop.f32.mrb[0].mxu0
      %v2856 = vadd.f32 0.0, %v2855
      %v2857 = vpop.f32.mrb[0].mxu0
      %v2858 = vpop.f32.mrb[0].mxu0
      %v2859 = vadd.f32 0.0, %v2858
      %v2860 = vpop.f32.mrb[0].mxu0
      %2861 = vmatprep.mubr.bf16.mxu0 0
      %2862 = vmatmul.mubr.bf16.gmra.mrb[0].mxu0 %v2690
      %v2863 = vpop.f32.mrb[0].mxu0
      %v2864 = vadd.f32 0.0, %v2863
      %v2865 = vpop.f32.mrb[0].mxu0
      %v2866 = vpop.f32.mrb[0].mxu0
      %v2867 = vadd.f32 0.0, %v2866
      %v2868 = vpop.f32.mrb[0].mxu0
      %2869 = vmatprep.mubr.bf16.mxu0 0
      %2870 = vmatmul.mubr.bf16.gmra.mrb[0].mxu0 %v2693
      %v2871 = vpop.f32.mrb[0].mxu0
      %v2872 = vadd.f32 0.0, %v2871
      %v2873 = vpop.f32.mrb[0].mxu0
      %v2874 = vpop.f32.mrb[0].mxu0
      %v2875 = vadd.f32 0.0, %v2874
      %v2876 = vpop.f32.mrb[0].mxu0
      %2877 = vmatprep.mubr.bf16.mxu0 0
      %2878 = vmatmul.mubr.bf16.gmra.mrb[0].mxu0 %v2696
      %v2879 = vpop.f32.mrb[0].mxu0
      %v2880 = vadd.f32 0.0, %v2879
      %v2881 = vpop.f32.mrb[0].mxu0
      %v2882 = vpop.f32.mrb[0].mxu0
      %v2883 = vadd.f32 0.0, %v2882
      %v2884 = vpop.f32.mrb[0].mxu0
      %2885 = vmatprep.mubr.bf16.mxu0 0
      %2886 = vmatmul.mubr.bf16.gmra.mrb[0].mxu0 %v2699
      %v2887 = vpop.f32.mrb[0].mxu0
      %v2888 = vadd.f32 0.0, %v2887
      %v2889 = vpop.f32.mrb[0].mxu0
      %v2890 = vpop.f32.mrb[0].mxu0
      %v2891 = vadd.f32 0.0, %v2890
      %v2892 = vpop.f32.mrb[0].mxu0
      %2893 = vmatprep.mubr.bf16.mxu0 0
      %2894 = vmatmul.mubr.bf16.gmra.mrb[0].mxu0 %v2702
      %v2895 = vpop.f32.mrb[0].mxu0
      %v2896 = vadd.f32 0.0, %v2895
      %v2897 = vpop.f32.mrb[0].mxu0
      %v2898 = vpop.f32.mrb[0].mxu0
      %v2899 = vadd.f32 0.0, %v2898
      %v2900 = vpop.f32.mrb[0].mxu0
      %2901 = vmatprep.mubr.bf16.mxu0 0
      %2902 = vmatmul.mubr.bf16.gmra.mrb[0].mxu0 %v2705
      %v2903 = vpop.f32.mrb[0].mxu0
      %v2904 = vadd.f32 0.0, %v2903
      %v2905 = vpop.f32.mrb[0].mxu0
      %v2906 = vpop.f32.mrb[0].mxu0
      %v2907 = vadd.f32 0.0, %v2906
      %v2908 = vpop.f32.mrb[0].mxu0
      %2909 = vmatprep.mubr.bf16.mxu0 0
      %2910 = vmatmul.mubr.bf16.gmra.mrb[0].mxu0 %v2708
      %v2911 = vpop.f32.mrb[0].mxu0
      %v2912 = vadd.f32 0.0, %v2911
      %v2913 = vpop.f32.mrb[0].mxu0
      %v2914 = vpop.f32.mrb[0].mxu0
      %v2915 = vadd.f32 0.0, %v2914
      %v2916 = vpop.f32.mrb[0].mxu0
      %2917 = vmatprep.mubr.bf16.mxu0 0
      %2918 = vmatmul.mubr.bf16.gmra.mrb[0].mxu0 %v2711
      %v2919 = vpop.f32.mrb[0].mxu0
      %v2920 = vadd.f32 0.0, %v2919
      %v2921 = vpop.f32.mrb[0].mxu0
      %v2922 = vpop.f32.mrb[0].mxu0
      %v2923 = vadd.f32 0.0, %v2922
      %v2924 = vpop.f32.mrb[0].mxu0
      %2925 = vmatprep.mubr.bf16.mxu0 0
      %2926 = vmatmul.mubr.bf16.gmra.mrb[0].mxu0 %v2714
      %v2927 = vpop.f32.mrb[0].mxu0
      %v2928 = vadd.f32 0.0, %v2927
      %v2929 = vpop.f32.mrb[0].mxu0
      %v2930 = vpop.f32.mrb[0].mxu0
      %v2931 = vadd.f32 0.0, %v2930
      %v2932 = vpop.f32.mrb[0].mxu0
      %2933 = vmatprep.mubr.bf16.mxu0 0
      %2934 = vmatmul.mubr.bf16.gmra.mrb[0].mxu0 %v2717
      %v2935 = vpop.f32.mrb[0].mxu0
      %v2936 = vadd.f32 0.0, %v2935
      %v2937 = vpop.f32.mrb[0].mxu0
      %v2938 = vpop.f32.mrb[0].mxu0
      %v2939 = vadd.f32 0.0, %v2938
      %v2940 = vpop.f32.mrb[0].mxu0
      %2941 = vmatprep.mubr.bf16.mxu0 0
      %2942 = vmatmul.mubr.bf16.gmra.mrb[0].mxu0 %v2720
      %v2943 = vpop.f32.mrb[0].mxu0
      %v2944 = vadd.f32 0.0, %v2943
      %v2945 = vpop.f32.mrb[0].mxu0
      %v2946 = vpop.f32.mrb[0].mxu0
      %v2947 = vadd.f32 0.0, %v2946
      %v2948 = vpop.f32.mrb[0].mxu0
      %2949 = vdwg.mxu0
      %v2950 = vadd.f32 %v2232, %v2760
      %v2951 = vadd.f32 %v2233, %v2763
      %v2952 = vadd.f32 %v2234, %v2768
      %v2953 = vadd.f32 %v2235, %v2771
      %v2954 = vadd.f32 %v2236, %v2776
      %v2955 = vadd.f32 %v2237, %v2779
      %v2956 = vadd.f32 %v2238, %v2784
      %v2957 = vadd.f32 %v2239, %v2787
      %v2958 = vadd.f32 %v2240, %v2792
      %v2959 = vadd.f32 %v2241, %v2795
      %v2960 = vadd.f32 %v2242, %v2800
      %v2961 = vadd.f32 %v2243, %v2803
      %v2962 = vadd.f32 %v2244, %v2808
      %v2963 = vadd.f32 %v2245, %v2811
      %v2964 = vadd.f32 %v2246, %v2816
      %v2965 = vadd.f32 %v2247, %v2819
      %v2966 = vadd.f32 %v2248, %v2824
      %v2967 = vadd.f32 %v2249, %v2827
      %v2968 = vadd.f32 %v2250, %v2832
      %v2969 = vadd.f32 %v2251, %v2835
      %v2970 = vadd.f32 %v2252, %v2840
      %v2971 = vadd.f32 %v2253, %v2843
      %v2972 = vadd.f32 %v2254, %v2848
      %v2973 = vadd.f32 %v2255, %v2851
      %v2974 = vadd.f32 %v2256, %v2856
      %v2975 = vadd.f32 %v2257, %v2859
      %v2976 = vadd.f32 %v2258, %v2864
      %v2977 = vadd.f32 %v2259, %v2867
      %v2978 = vadd.f32 %v2260, %v2872
      %v2979 = vadd.f32 %v2261, %v2875
      %v2980 = vadd.f32 %v2262, %v2880
      %v2981 = vadd.f32 %v2263, %v2883
      %v2982 = vadd.f32 %v2264, %v2888
      %v2983 = vadd.f32 %v2265, %v2891
      %v2984 = vadd.f32 %v2266, %v2896
      %v2985 = vadd.f32 %v2267, %v2899
      %v2986 = vadd.f32 %v2268, %v2904
      %v2987 = vadd.f32 %v2269, %v2907
      %v2988 = vadd.f32 %v2270, %v2912
      %v2989 = vadd.f32 %v2271, %v2915
      %v2990 = vadd.f32 %v2272, %v2920
      %v2991 = vadd.f32 %v2273, %v2923
      %v2992 = vadd.f32 %v2274, %v2928
      %v2993 = vadd.f32 %v2275, %v2931
      %v2994 = vadd.f32 %v2276, %v2936
      %v2995 = vadd.f32 %v2277, %v2939
      %v2996 = vadd.f32 %v2278, %v2944
      %v2997 = vadd.f32 %v2279, %v2947
      %v2998 = vld [vmem:[%s382 + $0xc] sm:$0xe]
      %s2999 = scalar_lea.vmem %s1, 20
      %v3000 = vld [vmem:[%s2999] sm:$0xf]
      %v3002 = vunpack.c.l.b16 %v2998
      %v3003 = vpack.c.b16 %v2381, %v3002
      %v3004 = vrot.slane %v3003, 1
      %v3005 = vrot.slane %v2430, 1
      %v3006 = vsel %vm1364, %v3004, %v3005
      %v3007 = vrot.slane %v2431, 1
      %v3008 = vsel %vm1364, %v3005, %v3007
      %v3009 = vrot.slane %v2432, 1
      %v3010 = vsel %vm1364, %v3007, %v3009
      %v3011 = vrot.slane %v2433, 1
      %v3012 = vsel %vm1364, %v3009, %v3011
      %v3013 = vrot.slane %v2434, 1
      %v3014 = vsel %vm1364, %v3011, %v3013
      %v3015 = vrot.slane %v2435, 1
      %v3016 = vsel %vm1364, %v3013, %v3015
      %v3017 = vrot.slane %v2436, 1
      %v3018 = vsel %vm1364, %v3015, %v3017
      %v3019 = vrot.slane %v2437, 1
      %v3020 = vsel %vm1364, %v3017, %v3019
      %v3021 = vrot.slane %v2438, 1
      %v3022 = vsel %vm1364, %v3019, %v3021
      %v3023 = vrot.slane %v2439, 1
      %v3024 = vsel %vm1364, %v3021, %v3023
      %v3025 = vrot.slane %v2440, 1
      %v3026 = vsel %vm1364, %v3023, %v3025
      %v3027 = vrot.slane %v2441, 1
      %v3028 = vsel %vm1364, %v3025, %v3027
      %v3029 = vrot.slane %v2442, 1
      %v3030 = vsel %vm1364, %v3027, %v3029
      %v3031 = vrot.slane %v2443, 1
      %v3032 = vsel %vm1364, %v3029, %v3031
      %v3033 = vrot.slane %v2444, 1
      %v3034 = vsel %vm1364, %v3031, %v3033
      %v3035 = vrot.slane %v2445, 1
      %v3036 = vsel %vm1364, %v3033, %v3035
      %v3037 = vrot.slane %v2446, 1
      %v3038 = vsel %vm1364, %v3035, %v3037
      %v3039 = vrot.slane %v2447, 1
      %v3040 = vsel %vm1364, %v3037, %v3039
      %v3041 = vrot.slane %v2448, 1
      %v3042 = vsel %vm1364, %v3039, %v3041
      %v3043 = vrot.slane %v2449, 1
      %v3044 = vsel %vm1364, %v3041, %v3043
      %v3045 = vrot.slane %v2450, 1
      %v3046 = vsel %vm1364, %v3043, %v3045
      %v3047 = vrot.slane %v2451, 1
      %v3048 = vsel %vm1364, %v3045, %v3047
      %v3049 = vrot.slane %v2452, 1
      %v3050 = vsel %vm1364, %v3047, %v3049
      %v3051 = vrot.slane %v2453, 1
      %v3052 = vsel %vm1364, %v3049, %v3051
      %v3054 = vsel %vm391, %v3006, 0
      %v3057 = vsel %vm391, %v3008, 0
      %v3060 = vsel %vm391, %v3010, 0
      %v3063 = vsel %vm391, %v3012, 0
      %v3066 = vsel %vm391, %v3014, 0
      %v3069 = vsel %vm391, %v3016, 0
      %v3072 = vsel %vm391, %v3018, 0
      %v3075 = vsel %vm391, %v3020, 0
      %v3078 = vsel %vm391, %v3022, 0
      %v3081 = vsel %vm391, %v3024, 0
      %v3084 = vsel %vm391, %v3026, 0
      %v3087 = vsel %vm391, %v3028, 0
      %v3090 = vsel %vm391, %v3030, 0
      %v3093 = vsel %vm391, %v3032, 0
      %v3096 = vsel %vm391, %v3034, 0
      %v3099 = vsel %vm391, %v3036, 0
      %v3102 = vsel %vm391, %v3038, 0
      %v3105 = vsel %vm391, %v3040, 0
      %v3108 = vsel %vm391, %v3042, 0
      %v3111 = vsel %vm391, %v3044, 0
      %v3114 = vsel %vm391, %v3046, 0
      %v3117 = vsel %vm391, %v3048, 0
      %v3120 = vsel %vm391, %v3050, 0
      %v3123 = vsel %vm391, %v3052, 0
      %v3126 = vsel %vm853, %v3000, 0
      %3128 = vmatprep.subr.bf16.mxu0 0
      %3129 = vmatpush1.bf16.msra.mxu0 %v3126
      %3130 = vmatprep.subr.bf16.mxu0 0
      %3131 = vmatpush1.bf16.msra.mxu0 0
      %3132 = vmatprep.subr.bf16.mxu0 0
      %3133 = vmatpush1.bf16.msra.mxu0 0
      %3134 = vmatprep.subr.bf16.mxu0 0
      %3135 = vmatpush1.bf16.msra.mxu0 0
      %3136 = vmatprep.subr.bf16.mxu0 0
      %3137 = vmatpush1.bf16.msra.mxu0 0
      %3138 = vmatprep.subr.bf16.mxu0 0
      %3139 = vmatpush1.bf16.msra.mxu0 0
      %3140 = vmatprep.subr.bf16.mxu0 0
      %3141 = vmatpush1.bf16.msra.mxu0 0
      %3142 = vmatprep.subr.bf16.mxu0 0
      %3143 = vmatpush1.bf16.msra.mxu0 0
      %3144 = vmatprep.subr.bf16.mxu0 0
      %3145 = vmatpush1.bf16.msra.mxu0 0
      %3146 = vmatprep.subr.bf16.mxu0 0
      %3147 = vmatpush1.bf16.msra.mxu0 0
      %3148 = vmatprep.subr.bf16.mxu0 0
      %3149 = vmatpush1.bf16.msra.mxu0 0
      %3150 = vmatprep.subr.bf16.mxu0 0
      %3151 = vmatpush1.bf16.msra.mxu0 0
      %3152 = vmatprep.subr.bf16.mxu0 0
      %3153 = vmatpush1.bf16.msra.mxu0 0
      %3154 = vmatprep.subr.bf16.mxu0 0
      %3155 = vmatpush1.bf16.msra.mxu0 0
      %3156 = vmatprep.subr.bf16.mxu0 0
      %3157 = vmatpush1.bf16.msra.mxu0 0
      %3158 = vmatprep.subr.bf16.mxu0 0
      %3159 = vmatpush1.bf16.msra.mxu0 0
      %3160 = vmatprep.mubr.bf16.mxu0 0
      %3161 = vmatmul.mubr.bf16.gmra.mrb[0].mxu0 %v3054
      %v3162 = vpop.f32.mrb[0].mxu0
      %v3163 = vadd.f32 0.0, %v3162
      %v3164 = vpop.f32.mrb[0].mxu0
      %v3165 = vpop.f32.mrb[0].mxu0
      %v3166 = vadd.f32 0.0, %v3165
      %v3167 = vpop.f32.mrb[0].mxu0
      %3168 = vmatprep.mubr.bf16.mxu0 0
      %3169 = vmatmul.mubr.bf16.gmra.mrb[0].mxu0 %v3057
      %v3170 = vpop.f32.mrb[0].mxu0
      %v3171 = vadd.f32 0.0, %v3170
      %v3172 = vpop.f32.mrb[0].mxu0
      %v3173 = vpop.f32.mrb[0].mxu0
      %v3174 = vadd.f32 0.0, %v3173
      %v3175 = vpop.f32.mrb[0].mxu0
      %3176 = vmatprep.mubr.bf16.mxu0 0
      %3177 = vmatmul.mubr.bf16.gmra.mrb[0].mxu0 %v3060
      %v3178 = vpop.f32.mrb[0].mxu0
      %v3179 = vadd.f32 0.0, %v3178
      %v3180 = vpop.f32.mrb[0].mxu0
      %v3181 = vpop.f32.mrb[0].mxu0
      %v3182 = vadd.f32 0.0, %v3181
      %v3183 = vpop.f32.mrb[0].mxu0
      %3184 = vmatprep.mubr.bf16.mxu0 0
      %3185 = vmatmul.mubr.bf16.gmra.mrb[0].mxu0 %v3063
      %v3186 = vpop.f32.mrb[0].mxu0
      %v3187 = vadd.f32 0.0, %v3186
      %v3188 = vpop.f32.mrb[0].mxu0
      %v3189 = vpop.f32.mrb[0].mxu0
      %v3190 = vadd.f32 0.0, %v3189
      %v3191 = vpop.f32.mrb[0].mxu0
      %3192 = vmatprep.mubr.bf16.mxu0 0
      %3193 = vmatmul.mubr.bf16.gmra.mrb[0].mxu0 %v3066
      %v3194 = vpop.f32.mrb[0].mxu0
      %v3195 = vadd.f32 0.0, %v3194
      %v3196 = vpop.f32.mrb[0].mxu0
      %v3197 = vpop.f32.mrb[0].mxu0
      %v3198 = vadd.f32 0.0, %v3197
      %v3199 = vpop.f32.mrb[0].mxu0
      %3200 = vmatprep.mubr.bf16.mxu0 0
      %3201 = vmatmul.mubr.bf16.gmra.mrb[0].mxu0 %v3069
      %v3202 = vpop.f32.mrb[0].mxu0
      %v3203 = vadd.f32 0.0, %v3202
      %v3204 = vpop.f32.mrb[0].mxu0
      %v3205 = vpop.f32.mrb[0].mxu0
      %v3206 = vadd.f32 0.0, %v3205
      %v3207 = vpop.f32.mrb[0].mxu0
      %3208 = vmatprep.mubr.bf16.mxu0 0
      %3209 = vmatmul.mubr.bf16.gmra.mrb[0].mxu0 %v3072
      %v3210 = vpop.f32.mrb[0].mxu0
      %v3211 = vadd.f32 0.0, %v3210
      %v3212 = vpop.f32.mrb[0].mxu0
      %v3213 = vpop.f32.mrb[0].mxu0
      %v3214 = vadd.f32 0.0, %v3213
      %v3215 = vpop.f32.mrb[0].mxu0
      %3216 = vmatprep.mubr.bf16.mxu0 0
      %3217 = vmatmul.mubr.bf16.gmra.mrb[0].mxu0 %v3075
      %v3218 = vpop.f32.mrb[0].mxu0
      %v3219 = vadd.f32 0.0, %v3218
      %v3220 = vpop.f32.mrb[0].mxu0
      %v3221 = vpop.f32.mrb[0].mxu0
      %v3222 = vadd.f32 0.0, %v3221
      %v3223 = vpop.f32.mrb[0].mxu0
      %3224 = vmatprep.mubr.bf16.mxu0 0
      %3225 = vmatmul.mubr.bf16.gmra.mrb[0].mxu0 %v3078
      %v3226 = vpop.f32.mrb[0].mxu0
      %v3227 = vadd.f32 0.0, %v3226
      %v3228 = vpop.f32.mrb[0].mxu0
      %v3229 = vpop.f32.mrb[0].mxu0
      %v3230 = vadd.f32 0.0, %v3229
      %v3231 = vpop.f32.mrb[0].mxu0
      %3232 = vmatprep.mubr.bf16.mxu0 0
      %3233 = vmatmul.mubr.bf16.gmra.mrb[0].mxu0 %v3081
      %v3234 = vpop.f32.mrb[0].mxu0
      %v3235 = vadd.f32 0.0, %v3234
      %v3236 = vpop.f32.mrb[0].mxu0
      %v3237 = vpop.f32.mrb[0].mxu0
      %v3238 = vadd.f32 0.0, %v3237
      %v3239 = vpop.f32.mrb[0].mxu0
      %3240 = vmatprep.mubr.bf16.mxu0 0
      %3241 = vmatmul.mubr.bf16.gmra.mrb[0].mxu0 %v3084
      %v3242 = vpop.f32.mrb[0].mxu0
      %v3243 = vadd.f32 0.0, %v3242
      %v3244 = vpop.f32.mrb[0].mxu0
      %v3245 = vpop.f32.mrb[0].mxu0
      %v3246 = vadd.f32 0.0, %v3245
      %v3247 = vpop.f32.mrb[0].mxu0
      %3248 = vmatprep.mubr.bf16.mxu0 0
      %3249 = vmatmul.mubr.bf16.gmra.mrb[0].mxu0 %v3087
      %v3250 = vpop.f32.mrb[0].mxu0
      %v3251 = vadd.f32 0.0, %v3250
      %v3252 = vpop.f32.mrb[0].mxu0
      %v3253 = vpop.f32.mrb[0].mxu0
      %v3254 = vadd.f32 0.0, %v3253
      %v3255 = vpop.f32.mrb[0].mxu0
      %3256 = vmatprep.mubr.bf16.mxu0 0
      %3257 = vmatmul.mubr.bf16.gmra.mrb[0].mxu0 %v3090
      %v3258 = vpop.f32.mrb[0].mxu0
      %v3259 = vadd.f32 0.0, %v3258
      %v3260 = vpop.f32.mrb[0].mxu0
      %v3261 = vpop.f32.mrb[0].mxu0
      %v3262 = vadd.f32 0.0, %v3261
      %v3263 = vpop.f32.mrb[0].mxu0
      %3264 = vmatprep.mubr.bf16.mxu0 0
      %3265 = vmatmul.mubr.bf16.gmra.mrb[0].mxu0 %v3093
      %v3266 = vpop.f32.mrb[0].mxu0
      %v3267 = vadd.f32 0.0, %v3266
      %v3268 = vpop.f32.mrb[0].mxu0
      %v3269 = vpop.f32.mrb[0].mxu0
      %v3270 = vadd.f32 0.0, %v3269
      %v3271 = vpop.f32.mrb[0].mxu0
      %3272 = vmatprep.mubr.bf16.mxu0 0
      %3273 = vmatmul.mubr.bf16.gmra.mrb[0].mxu0 %v3096
      %v3274 = vpop.f32.mrb[0].mxu0
      %v3275 = vadd.f32 0.0, %v3274
      %v3276 = vpop.f32.mrb[0].mxu0
      %v3277 = vpop.f32.mrb[0].mxu0
      %v3278 = vadd.f32 0.0, %v3277
      %v3279 = vpop.f32.mrb[0].mxu0
      %3280 = vmatprep.mubr.bf16.mxu0 0
      %3281 = vmatmul.mubr.bf16.gmra.mrb[0].mxu0 %v3099
      %v3282 = vpop.f32.mrb[0].mxu0
      %v3283 = vadd.f32 0.0, %v3282
      %v3284 = vpop.f32.mrb[0].mxu0
      %v3285 = vpop.f32.mrb[0].mxu0
      %v3286 = vadd.f32 0.0, %v3285
      %v3287 = vpop.f32.mrb[0].mxu0
      %3288 = vmatprep.mubr.bf16.mxu0 0
      %3289 = vmatmul.mubr.bf16.gmra.mrb[0].mxu0 %v3102
      %v3290 = vpop.f32.mrb[0].mxu0
      %v3291 = vadd.f32 0.0, %v3290
      %v3292 = vpop.f32.mrb[0].mxu0
      %v3293 = vpop.f32.mrb[0].mxu0
      %v3294 = vadd.f32 0.0, %v3293
      %v3295 = vpop.f32.mrb[0].mxu0
      %3296 = vmatprep.mubr.bf16.mxu0 0
      %3297 = vmatmul.mubr.bf16.gmra.mrb[0].mxu0 %v3105
      %v3298 = vpop.f32.mrb[0].mxu0
      %v3299 = vadd.f32 0.0, %v3298
      %v3300 = vpop.f32.mrb[0].mxu0
      %v3301 = vpop.f32.mrb[0].mxu0
      %v3302 = vadd.f32 0.0, %v3301
      %v3303 = vpop.f32.mrb[0].mxu0
      %3304 = vmatprep.mubr.bf16.mxu0 0
      %3305 = vmatmul.mubr.bf16.gmra.mrb[0].mxu0 %v3108
      %v3306 = vpop.f32.mrb[0].mxu0
      %v3307 = vadd.f32 0.0, %v3306
      %v3308 = vpop.f32.mrb[0].mxu0
      %v3309 = vpop.f32.mrb[0].mxu0
      %v3310 = vadd.f32 0.0, %v3309
      %v3311 = vpop.f32.mrb[0].mxu0
      %3312 = vmatprep.mubr.bf16.mxu0 0
      %3313 = vmatmul.mubr.bf16.gmra.mrb[0].mxu0 %v3111
      %v3314 = vpop.f32.mrb[0].mxu0
      %v3315 = vadd.f32 0.0, %v3314
      %v3316 = vpop.f32.mrb[0].mxu0
      %v3317 = vpop.f32.mrb[0].mxu0
      %v3318 = vadd.f32 0.0, %v3317
      %v3319 = vpop.f32.mrb[0].mxu0
      %3320 = vmatprep.mubr.bf16.mxu0 0
      %3321 = vmatmul.mubr.bf16.gmra.mrb[0].mxu0 %v3114
      %v3322 = vpop.f32.mrb[0].mxu0
      %v3323 = vadd.f32 0.0, %v3322
      %v3324 = vpop.f32.mrb[0].mxu0
      %v3325 = vpop.f32.mrb[0].mxu0
      %v3326 = vadd.f32 0.0, %v3325
      %v3327 = vpop.f32.mrb[0].mxu0
      %3328 = vmatprep.mubr.bf16.mxu0 0
      %3329 = vmatmul.mubr.bf16.gmra.mrb[0].mxu0 %v3117
      %v3330 = vpop.f32.mrb[0].mxu0
      %v3331 = vadd.f32 0.0, %v3330
      %v3332 = vpop.f32.mrb[0].mxu0
      %v3333 = vpop.f32.mrb[0].mxu0
      %v3334 = vadd.f32 0.0, %v3333
      %v3335 = vpop.f32.mrb[0].mxu0
      %3336 = vmatprep.mubr.bf16.mxu0 0
      %3337 = vmatmul.mubr.bf16.gmra.mrb[0].mxu0 %v3120
      %v3338 = vpop.f32.mrb[0].mxu0
      %v3339 = vadd.f32 0.0, %v3338
      %v3340 = vpop.f32.mrb[0].mxu0
      %v3341 = vpop.f32.mrb[0].mxu0
      %v3342 = vadd.f32 0.0, %v3341
      %v3343 = vpop.f32.mrb[0].mxu0
      %3344 = vmatprep.mubr.bf16.mxu0 0
      %3345 = vmatmul.mubr.bf16.gmra.mrb[0].mxu0 %v3123
      %v3346 = vpop.f32.mrb[0].mxu0
      %v3347 = vadd.f32 0.0, %v3346
      %v3348 = vpop.f32.mrb[0].mxu0
      %v3349 = vpop.f32.mrb[0].mxu0
      %v3350 = vadd.f32 0.0, %v3349
      %v3351 = vpop.f32.mrb[0].mxu0
      %3352 = vdwg.mxu0
      %v3353 = vadd.f32 %v2950, %v3163
      %v3354 = vadd.f32 %v2951, %v3166
      %v3355 = vadd.f32 %v2952, %v3171
      %v3356 = vadd.f32 %v2953, %v3174
      %v3357 = vadd.f32 %v2954, %v3179
      %v3358 = vadd.f32 %v2955, %v3182
      %v3359 = vadd.f32 %v2956, %v3187
      %v3360 = vadd.f32 %v2957, %v3190
      %v3361 = vadd.f32 %v2958, %v3195
      %v3362 = vadd.f32 %v2959, %v3198
      %v3363 = vadd.f32 %v2960, %v3203
      %v3364 = vadd.f32 %v2961, %v3206
      %v3365 = vadd.f32 %v2962, %v3211
      %v3366 = vadd.f32 %v2963, %v3214
      %v3367 = vadd.f32 %v2964, %v3219
      %v3368 = vadd.f32 %v2965, %v3222
      %v3369 = vadd.f32 %v2966, %v3227
      %v3370 = vadd.f32 %v2967, %v3230
      %v3371 = vadd.f32 %v2968, %v3235
      %v3372 = vadd.f32 %v2969, %v3238
      %v3373 = vadd.f32 %v2970, %v3243
      %v3374 = vadd.f32 %v2971, %v3246
      %v3375 = vadd.f32 %v2972, %v3251
      %v3376 = vadd.f32 %v2973, %v3254
      %v3377 = vadd.f32 %v2974, %v3259
      %v3378 = vadd.f32 %v2975, %v3262
      %v3379 = vadd.f32 %v2976, %v3267
      %v3380 = vadd.f32 %v2977, %v3270
      %v3381 = vadd.f32 %v2978, %v3275
      %v3382 = vadd.f32 %v2979, %v3278
      %v3383 = vadd.f32 %v2980, %v3283
      %v3384 = vadd.f32 %v2981, %v3286
      %v3385 = vadd.f32 %v2982, %v3291
      %v3386 = vadd.f32 %v2983, %v3294
      %v3387 = vadd.f32 %v2984, %v3299
      %v3388 = vadd.f32 %v2985, %v3302
      %v3389 = vadd.f32 %v2986, %v3307
      %v3390 = vadd.f32 %v2987, %v3310
      %v3391 = vadd.f32 %v2988, %v3315
      %v3392 = vadd.f32 %v2989, %v3318
      %v3393 = vadd.f32 %v2990, %v3323
      %v3394 = vadd.f32 %v2991, %v3326
      %v3395 = vadd.f32 %v2992, %v3331
      %v3396 = vadd.f32 %v2993, %v3334
      %v3397 = vadd.f32 %v2994, %v3339
      %v3398 = vadd.f32 %v2995, %v3342
      %v3399 = vadd.f32 %v2996, %v3347
      %v3400 = vadd.f32 %v2997, %v3350
      %v3401 = vld [vmem:[%s382 + $0x18] sm:$0xf]
      %v3402 = vld [vmem:[%s382 + $0x1c] sm:$0xf]
      %v3403 = vld [vmem:[%s382 + $0x20] sm:$0xf]
      %v3404 = vld [vmem:[%s382 + $0x24] sm:$0xf]
      %v3405 = vld [vmem:[%s382 + $0x28] sm:$0xf]
      %v3406 = vld [vmem:[%s382 + $0x2c] sm:$0xf]
      %v3407 = vld [vmem:[%s382 + $0x30] sm:$0xf]
      %v3408 = vld [vmem:[%s382 + $0x34] sm:$0xf]
      %v3409 = vld [vmem:[%s382 + $0x38] sm:$0xf]
      %v3410 = vld [vmem:[%s382 + $0x3c] sm:$0xf]
      %v3411 = vld [vmem:[%s382 + $0x40] sm:$0xf]
      %v3412 = vld [vmem:[%s382 + $0x44] sm:$0xf]
      %v3413 = vld [vmem:[%s382 + $0x48] sm:$0xf]
      %v3414 = vld [vmem:[%s382 + $0x4c] sm:$0xf]
      %v3415 = vld [vmem:[%s382 + $0x50] sm:$0xf]
      %v3416 = vld [vmem:[%s382 + $0x54] sm:$0xf]
      %v3417 = vld [vmem:[%s382 + $0x58] sm:$0xf]
      %v3418 = vld [vmem:[%s382 + $0x5c] sm:$0xf]
      %v3419 = vld [vmem:[%s382 + $0x60] sm:$0xf]
      %v3420 = vld [vmem:[%s382 + $0x64] sm:$0xf]
      %v3421 = vld [vmem:[%s382 + $0x68] sm:$0xf]
      %v3422 = vld [vmem:[%s382 + $0x6c] sm:$0xf]
      %v3423 = vld [vmem:[%s382 + $0x70] sm:$0xf]
      %v3424 = vld [vmem:[%s382 + $0x74] sm:$0xf]
      %v3425 = vld [vmem:[%s382 + $0x78] sm:$0xf]
      %v3426 = vld [vmem:[%s382 + $0x7c] sm:$0xf]
      %v3427 = vld [vmem:[%s382 + $0x80] sm:$0xf]
      %v3428 = vld [vmem:[%s382 + $0x84] sm:$0xf]
      %v3429 = vld [vmem:[%s382 + $0x88] sm:$0xf]
      %v3430 = vld [vmem:[%s382 + $0x8c] sm:$0xf]
      %v3431 = vld [vmem:[%s382 + $0x90] sm:$0xf]
      %v3432 = vld [vmem:[%s382 + $0x94] sm:$0xf]
      %v3433 = vld [vmem:[%s382 + $0x98] sm:$0xf]
      %v3434 = vld [vmem:[%s382 + $0x9c] sm:$0xf]
      %v3435 = vld [vmem:[%s382 + $0xa0] sm:$0xf]
      %v3436 = vld [vmem:[%s382 + $0xa4] sm:$0xf]
      %v3437 = vld [vmem:[%s382 + $0xa8] sm:$0xf]
      %v3438 = vld [vmem:[%s382 + $0xac] sm:$0xf]
      %v3439 = vld [vmem:[%s382 + $0xb0] sm:$0xf]
      %v3440 = vld [vmem:[%s382 + $0xb4] sm:$0xf]
      %v3441 = vld [vmem:[%s382 + $0xb8] sm:$0xf]
      %v3442 = vld [vmem:[%s382 + $0xbc] sm:$0xf]
      %v3443 = vld [vmem:[%s382 + $0xc0] sm:$0xf]
      %v3444 = vld [vmem:[%s382 + $0xc4] sm:$0xf]
      %v3445 = vld [vmem:[%s382 + $0xc8] sm:$0xf]
      %v3446 = vld [vmem:[%s382 + $0xcc] sm:$0xf]
      %v3447 = vld [vmem:[%s382 + $0xd0] sm:$0xf]
      %v3448 = vld [vmem:[%s382 + $0xd4] sm:$0xf]
      %s3449 = scalar_lea.vmem %s1, 24
      %v3450 = vld [vmem:[%s3449] sm:$0xf]
      %v3499 = vunpack.c.l.b16 %v3401
      %v3500 = vunpack.c.l.b16 %v3402
      %v3501 = vunpack.c.l.b16 %v3403
      %v3502 = vunpack.c.l.b16 %v3404
      %v3503 = vunpack.c.l.b16 %v3405
      %v3504 = vunpack.c.l.b16 %v3406
      %v3505 = vunpack.c.l.b16 %v3407
      %v3506 = vunpack.c.l.b16 %v3408
      %v3507 = vunpack.c.l.b16 %v3409
      %v3508 = vunpack.c.l.b16 %v3410
      %v3509 = vunpack.c.l.b16 %v3411
      %v3510 = vunpack.c.l.b16 %v3412
      %v3511 = vunpack.c.l.b16 %v3413
      %v3512 = vunpack.c.l.b16 %v3414
      %v3513 = vunpack.c.l.b16 %v3415
      %v3514 = vunpack.c.l.b16 %v3416
      %v3515 = vunpack.c.l.b16 %v3417
      %v3516 = vunpack.c.l.b16 %v3418
      %v3517 = vunpack.c.l.b16 %v3419
      %v3518 = vunpack.c.l.b16 %v3420
      %v3519 = vunpack.c.l.b16 %v3421
      %v3520 = vunpack.c.l.b16 %v3422
      %v3521 = vunpack.c.l.b16 %v3423
      %v3522 = vunpack.c.l.b16 %v3424
      %v3523 = vunpack.c.l.b16 %v3425
      %v3524 = vunpack.c.l.b16 %v3426
      %v3525 = vunpack.c.l.b16 %v3427
      %v3526 = vunpack.c.l.b16 %v3428
      %v3527 = vunpack.c.l.b16 %v3429
      %v3528 = vunpack.c.l.b16 %v3430
      %v3529 = vunpack.c.l.b16 %v3431
      %v3530 = vunpack.c.l.b16 %v3432
      %v3531 = vunpack.c.l.b16 %v3433
      %v3532 = vunpack.c.l.b16 %v3434
      %v3533 = vunpack.c.l.b16 %v3435
      %v3534 = vunpack.c.l.b16 %v3436
      %v3535 = vunpack.c.l.b16 %v3437
      %v3536 = vunpack.c.l.b16 %v3438
      %v3537 = vunpack.c.l.b16 %v3439
      %v3538 = vunpack.c.l.b16 %v3440
      %v3539 = vunpack.c.l.b16 %v3441
      %v3540 = vunpack.c.l.b16 %v3442
      %v3541 = vunpack.c.l.b16 %v3443
      %v3542 = vunpack.c.l.b16 %v3444
      %v3543 = vunpack.c.l.b16 %v3445
      %v3544 = vunpack.c.l.b16 %v3446
      %v3545 = vunpack.c.l.b16 %v3447
      %v3546 = vunpack.c.l.b16 %v3448
      %v3547 = vpack.c.b16 %v3500, %v3499
      %v3548 = vpack.c.b16 %v3502, %v3501
      %v3549 = vpack.c.b16 %v3504, %v3503
      %v3550 = vpack.c.b16 %v3506, %v3505
      %v3551 = vpack.c.b16 %v3508, %v3507
      %v3552 = vpack.c.b16 %v3510, %v3509
      %v3553 = vpack.c.b16 %v3512, %v3511
      %v3554 = vpack.c.b16 %v3514, %v3513
      %v3555 = vpack.c.b16 %v3516, %v3515
      %v3556 = vpack.c.b16 %v3518, %v3517
      %v3557 = vpack.c.b16 %v3520, %v3519
      %v3558 = vpack.c.b16 %v3522, %v3521
      %v3559 = vpack.c.b16 %v3524, %v3523
      %v3560 = vpack.c.b16 %v3526, %v3525
      %v3561 = vpack.c.b16 %v3528, %v3527
      %v3562 = vpack.c.b16 %v3530, %v3529
      %v3563 = vpack.c.b16 %v3532, %v3531
      %v3564 = vpack.c.b16 %v3534, %v3533
      %v3565 = vpack.c.b16 %v3536, %v3535
      %v3566 = vpack.c.b16 %v3538, %v3537
      %v3567 = vpack.c.b16 %v3540, %v3539
      %v3568 = vpack.c.b16 %v3542, %v3541
      %v3569 = vpack.c.b16 %v3544, %v3543
      %v3570 = vpack.c.b16 %v3546, %v3545
      %v3572 = vsel %vm391, %v3547, 0
      %v3575 = vsel %vm391, %v3548, 0
      %v3578 = vsel %vm391, %v3549, 0
      %v3581 = vsel %vm391, %v3550, 0
      %v3584 = vsel %vm391, %v3551, 0
      %v3587 = vsel %vm391, %v3552, 0
      %v3590 = vsel %vm391, %v3553, 0
      %v3593 = vsel %vm391, %v3554, 0
      %v3596 = vsel %vm391, %v3555, 0
      %v3599 = vsel %vm391, %v3556, 0
      %v3602 = vsel %vm391, %v3557, 0
      %v3605 = vsel %vm391, %v3558, 0
      %v3608 = vsel %vm391, %v3559, 0
      %v3611 = vsel %vm391, %v3560, 0
      %v3614 = vsel %vm391, %v3561, 0
      %v3617 = vsel %vm391, %v3562, 0
      %v3620 = vsel %vm391, %v3563, 0
      %v3623 = vsel %vm391, %v3564, 0
      %v3626 = vsel %vm391, %v3565, 0
      %v3629 = vsel %vm391, %v3566, 0
      %v3632 = vsel %vm391, %v3567, 0
      %v3635 = vsel %vm391, %v3568, 0
      %v3638 = vsel %vm391, %v3569, 0
      %v3641 = vsel %vm391, %v3570, 0
      %v3644 = vsel %vm853, %v3450, 0
      %3646 = vmatprep.subr.bf16.mxu0 0
      %3647 = vmatpush1.bf16.msra.mxu0 %v3644
      %3648 = vmatprep.subr.bf16.mxu0 0
      %3649 = vmatpush1.bf16.msra.mxu0 0
      %3650 = vmatprep.subr.bf16.mxu0 0
      %3651 = vmatpush1.bf16.msra.mxu0 0
      %3652 = vmatprep.subr.bf16.mxu0 0
      %3653 = vmatpush1.bf16.msra.mxu0 0
      %3654 = vmatprep.subr.bf16.mxu0 0
      %3655 = vmatpush1.bf16.msra.mxu0 0
      %3656 = vmatprep.subr.bf16.mxu0 0
      %3657 = vmatpush1.bf16.msra.mxu0 0
      %3658 = vmatprep.subr.bf16.mxu0 0
      %3659 = vmatpush1.bf16.msra.mxu0 0
      %3660 = vmatprep.subr.bf16.mxu0 0
      %3661 = vmatpush1.bf16.msra.mxu0 0
      %3662 = vmatprep.subr.bf16.mxu0 0
      %3663 = vmatpush1.bf16.msra.mxu0 0
      %3664 = vmatprep.subr.bf16.mxu0 0
      %3665 = vmatpush1.bf16.msra.mxu0 0
      %3666 = vmatprep.subr.bf16.mxu0 0
      %3667 = vmatpush1.bf16.msra.mxu0 0
      %3668 = vmatprep.subr.bf16.mxu0 0
      %3669 = vmatpush1.bf16.msra.mxu0 0
      %3670 = vmatprep.subr.bf16.mxu0 0
      %3671 = vmatpush1.bf16.msra.mxu0 0
      %3672 = vmatprep.subr.bf16.mxu0 0
      %3673 = vmatpush1.bf16.msra.mxu0 0
      %3674 = vmatprep.subr.bf16.mxu0 0
      %3675 = vmatpush1.bf16.msra.mxu0 0
      %3676 = vmatprep.subr.bf16.mxu0 0
      %3677 = vmatpush1.bf16.msra.mxu0 0
      %3678 = vmatprep.mubr.bf16.mxu0 0
      %3679 = vmatmul.mubr.bf16.gmra.mrb[0].mxu0 %v3572
      %v3680 = vpop.f32.mrb[0].mxu0
      %v3681 = vadd.f32 0.0, %v3680
      %v3682 = vpop.f32.mrb[0].mxu0
      %v3683 = vpop.f32.mrb[0].mxu0
      %v3684 = vadd.f32 0.0, %v3683
      %v3685 = vpop.f32.mrb[0].mxu0
      %3686 = vmatprep.mubr.bf16.mxu0 0
      %3687 = vmatmul.mubr.bf16.gmra.mrb[0].mxu0 %v3575
      %v3688 = vpop.f32.mrb[0].mxu0
      %v3689 = vadd.f32 0.0, %v3688
      %v3690 = vpop.f32.mrb[0].mxu0
      %v3691 = vpop.f32.mrb[0].mxu0
      %v3692 = vadd.f32 0.0, %v3691
      %v3693 = vpop.f32.mrb[0].mxu0
      %3694 = vmatprep.mubr.bf16.mxu0 0
      %3695 = vmatmul.mubr.bf16.gmra.mrb[0].mxu0 %v3578
      %v3696 = vpop.f32.mrb[0].mxu0
      %v3697 = vadd.f32 0.0, %v3696
      %v3698 = vpop.f32.mrb[0].mxu0
      %v3699 = vpop.f32.mrb[0].mxu0
      %v3700 = vadd.f32 0.0, %v3699
      %v3701 = vpop.f32.mrb[0].mxu0
      %3702 = vmatprep.mubr.bf16.mxu0 0
      %3703 = vmatmul.mubr.bf16.gmra.mrb[0].mxu0 %v3581
      %v3704 = vpop.f32.mrb[0].mxu0
      %v3705 = vadd.f32 0.0, %v3704
      %v3706 = vpop.f32.mrb[0].mxu0
      %v3707 = vpop.f32.mrb[0].mxu0
      %v3708 = vadd.f32 0.0, %v3707
      %v3709 = vpop.f32.mrb[0].mxu0
      %3710 = vmatprep.mubr.bf16.mxu0 0
      %3711 = vmatmul.mubr.bf16.gmra.mrb[0].mxu0 %v3584
      %v3712 = vpop.f32.mrb[0].mxu0
      %v3713 = vadd.f32 0.0, %v3712
      %v3714 = vpop.f32.mrb[0].mxu0
      %v3715 = vpop.f32.mrb[0].mxu0
      %v3716 = vadd.f32 0.0, %v3715
      %v3717 = vpop.f32.mrb[0].mxu0
      %3718 = vmatprep.mubr.bf16.mxu0 0
      %3719 = vmatmul.mubr.bf16.gmra.mrb[0].mxu0 %v3587
      %v3720 = vpop.f32.mrb[0].mxu0
      %v3721 = vadd.f32 0.0, %v3720
      %v3722 = vpop.f32.mrb[0].mxu0
      %v3723 = vpop.f32.mrb[0].mxu0
      %v3724 = vadd.f32 0.0, %v3723
      %v3725 = vpop.f32.mrb[0].mxu0
      %3726 = vmatprep.mubr.bf16.mxu0 0
      %3727 = vmatmul.mubr.bf16.gmra.mrb[0].mxu0 %v3590
      %v3728 = vpop.f32.mrb[0].mxu0
      %v3729 = vadd.f32 0.0, %v3728
      %v3730 = vpop.f32.mrb[0].mxu0
      %v3731 = vpop.f32.mrb[0].mxu0
      %v3732 = vadd.f32 0.0, %v3731
      %v3733 = vpop.f32.mrb[0].mxu0
      %3734 = vmatprep.mubr.bf16.mxu0 0
      %3735 = vmatmul.mubr.bf16.gmra.mrb[0].mxu0 %v3593
      %v3736 = vpop.f32.mrb[0].mxu0
      %v3737 = vadd.f32 0.0, %v3736
      %v3738 = vpop.f32.mrb[0].mxu0
      %v3739 = vpop.f32.mrb[0].mxu0
      %v3740 = vadd.f32 0.0, %v3739
      %v3741 = vpop.f32.mrb[0].mxu0
      %3742 = vmatprep.mubr.bf16.mxu0 0
      %3743 = vmatmul.mubr.bf16.gmra.mrb[0].mxu0 %v3596
      %v3744 = vpop.f32.mrb[0].mxu0
      %v3745 = vadd.f32 0.0, %v3744
      %v3746 = vpop.f32.mrb[0].mxu0
      %v3747 = vpop.f32.mrb[0].mxu0
      %v3748 = vadd.f32 0.0, %v3747
      %v3749 = vpop.f32.mrb[0].mxu0
      %3750 = vmatprep.mubr.bf16.mxu0 0
      %3751 = vmatmul.mubr.bf16.gmra.mrb[0].mxu0 %v3599
      %v3752 = vpop.f32.mrb[0].mxu0
      %v3753 = vadd.f32 0.0, %v3752
      %v3754 = vpop.f32.mrb[0].mxu0
      %v3755 = vpop.f32.mrb[0].mxu0
      %v3756 = vadd.f32 0.0, %v3755
      %v3757 = vpop.f32.mrb[0].mxu0
      %3758 = vmatprep.mubr.bf16.mxu0 0
      %3759 = vmatmul.mubr.bf16.gmra.mrb[0].mxu0 %v3602
      %v3760 = vpop.f32.mrb[0].mxu0
      %v3761 = vadd.f32 0.0, %v3760
      %v3762 = vpop.f32.mrb[0].mxu0
      %v3763 = vpop.f32.mrb[0].mxu0
      %v3764 = vadd.f32 0.0, %v3763
      %v3765 = vpop.f32.mrb[0].mxu0
      %3766 = vmatprep.mubr.bf16.mxu0 0
      %3767 = vmatmul.mubr.bf16.gmra.mrb[0].mxu0 %v3605
      %v3768 = vpop.f32.mrb[0].mxu0
      %v3769 = vadd.f32 0.0, %v3768
      %v3770 = vpop.f32.mrb[0].mxu0
      %v3771 = vpop.f32.mrb[0].mxu0
      %v3772 = vadd.f32 0.0, %v3771
      %v3773 = vpop.f32.mrb[0].mxu0
      %3774 = vmatprep.mubr.bf16.mxu0 0
      %3775 = vmatmul.mubr.bf16.gmra.mrb[0].mxu0 %v3608
      %v3776 = vpop.f32.mrb[0].mxu0
      %v3777 = vadd.f32 0.0, %v3776
      %v3778 = vpop.f32.mrb[0].mxu0
      %v3779 = vpop.f32.mrb[0].mxu0
      %v3780 = vadd.f32 0.0, %v3779
      %v3781 = vpop.f32.mrb[0].mxu0
      %3782 = vmatprep.mubr.bf16.mxu0 0
      %3783 = vmatmul.mubr.bf16.gmra.mrb[0].mxu0 %v3611
      %v3784 = vpop.f32.mrb[0].mxu0
      %v3785 = vadd.f32 0.0, %v3784
      %v3786 = vpop.f32.mrb[0].mxu0
      %v3787 = vpop.f32.mrb[0].mxu0
      %v3788 = vadd.f32 0.0, %v3787
      %v3789 = vpop.f32.mrb[0].mxu0
      %3790 = vmatprep.mubr.bf16.mxu0 0
      %3791 = vmatmul.mubr.bf16.gmra.mrb[0].mxu0 %v3614
      %v3792 = vpop.f32.mrb[0].mxu0
      %v3793 = vadd.f32 0.0, %v3792
      %v3794 = vpop.f32.mrb[0].mxu0
      %v3795 = vpop.f32.mrb[0].mxu0
      %v3796 = vadd.f32 0.0, %v3795
      %v3797 = vpop.f32.mrb[0].mxu0
      %3798 = vmatprep.mubr.bf16.mxu0 0
      %3799 = vmatmul.mubr.bf16.gmra.mrb[0].mxu0 %v3617
      %v3800 = vpop.f32.mrb[0].mxu0
      %v3801 = vadd.f32 0.0, %v3800
      %v3802 = vpop.f32.mrb[0].mxu0
      %v3803 = vpop.f32.mrb[0].mxu0
      %v3804 = vadd.f32 0.0, %v3803
      %v3805 = vpop.f32.mrb[0].mxu0
      %3806 = vmatprep.mubr.bf16.mxu0 0
      %3807 = vmatmul.mubr.bf16.gmra.mrb[0].mxu0 %v3620
      %v3808 = vpop.f32.mrb[0].mxu0
      %v3809 = vadd.f32 0.0, %v3808
      %v3810 = vpop.f32.mrb[0].mxu0
      %v3811 = vpop.f32.mrb[0].mxu0
      %v3812 = vadd.f32 0.0, %v3811
      %v3813 = vpop.f32.mrb[0].mxu0
      %3814 = vmatprep.mubr.bf16.mxu0 0
      %3815 = vmatmul.mubr.bf16.gmra.mrb[0].mxu0 %v3623
      %v3816 = vpop.f32.mrb[0].mxu0
      %v3817 = vadd.f32 0.0, %v3816
      %v3818 = vpop.f32.mrb[0].mxu0
      %v3819 = vpop.f32.mrb[0].mxu0
      %v3820 = vadd.f32 0.0, %v3819
      %v3821 = vpop.f32.mrb[0].mxu0
      %3822 = vmatprep.mubr.bf16.mxu0 0
      %3823 = vmatmul.mubr.bf16.gmra.mrb[0].mxu0 %v3626
      %v3824 = vpop.f32.mrb[0].mxu0
      %v3825 = vadd.f32 0.0, %v3824
      %v3826 = vpop.f32.mrb[0].mxu0
      %v3827 = vpop.f32.mrb[0].mxu0
      %v3828 = vadd.f32 0.0, %v3827
      %v3829 = vpop.f32.mrb[0].mxu0
      %3830 = vmatprep.mubr.bf16.mxu0 0
      %3831 = vmatmul.mubr.bf16.gmra.mrb[0].mxu0 %v3629
      %v3832 = vpop.f32.mrb[0].mxu0
      %v3833 = vadd.f32 0.0, %v3832
      %v3834 = vpop.f32.mrb[0].mxu0
      %v3835 = vpop.f32.mrb[0].mxu0
      %v3836 = vadd.f32 0.0, %v3835
      %v3837 = vpop.f32.mrb[0].mxu0
      %3838 = vmatprep.mubr.bf16.mxu0 0
      %3839 = vmatmul.mubr.bf16.gmra.mrb[0].mxu0 %v3632
      %v3840 = vpop.f32.mrb[0].mxu0
      %v3841 = vadd.f32 0.0, %v3840
      %v3842 = vpop.f32.mrb[0].mxu0
      %v3843 = vpop.f32.mrb[0].mxu0
      %v3844 = vadd.f32 0.0, %v3843
      %v3845 = vpop.f32.mrb[0].mxu0
      %3846 = vmatprep.mubr.bf16.mxu0 0
      %3847 = vmatmul.mubr.bf16.gmra.mrb[0].mxu0 %v3635
      %v3848 = vpop.f32.mrb[0].mxu0
      %v3849 = vadd.f32 0.0, %v3848
      %v3850 = vpop.f32.mrb[0].mxu0
      %v3851 = vpop.f32.mrb[0].mxu0
      %v3852 = vadd.f32 0.0, %v3851
      %v3853 = vpop.f32.mrb[0].mxu0
      %3854 = vmatprep.mubr.bf16.mxu0 0
      %3855 = vmatmul.mubr.bf16.gmra.mrb[0].mxu0 %v3638
      %v3856 = vpop.f32.mrb[0].mxu0
      %v3857 = vadd.f32 0.0, %v3856
      %v3858 = vpop.f32.mrb[0].mxu0
      %v3859 = vpop.f32.mrb[0].mxu0
      %v3860 = vadd.f32 0.0, %v3859
      %v3861 = vpop.f32.mrb[0].mxu0
      %3862 = vmatprep.mubr.bf16.mxu0 0
      %3863 = vmatmul.mubr.bf16.gmra.mrb[0].mxu0 %v3641
      %v3864 = vpop.f32.mrb[0].mxu0
      %v3865 = vadd.f32 0.0, %v3864
      %v3866 = vpop.f32.mrb[0].mxu0
      %v3867 = vpop.f32.mrb[0].mxu0
      %v3868 = vadd.f32 0.0, %v3867
      %v3869 = vpop.f32.mrb[0].mxu0
      %3870 = vdwg.mxu0
      %v3871 = vadd.f32 %v3353, %v3681
      %v3872 = vadd.f32 %v3354, %v3684
      %v3873 = vadd.f32 %v3355, %v3689
      %v3874 = vadd.f32 %v3356, %v3692
      %v3875 = vadd.f32 %v3357, %v3697
      %v3876 = vadd.f32 %v3358, %v3700
      %v3877 = vadd.f32 %v3359, %v3705
      %v3878 = vadd.f32 %v3360, %v3708
      %v3879 = vadd.f32 %v3361, %v3713
      %v3880 = vadd.f32 %v3362, %v3716
      %v3881 = vadd.f32 %v3363, %v3721
      %v3882 = vadd.f32 %v3364, %v3724
      %v3883 = vadd.f32 %v3365, %v3729
      %v3884 = vadd.f32 %v3366, %v3732
      %v3885 = vadd.f32 %v3367, %v3737
      %v3886 = vadd.f32 %v3368, %v3740
      %v3887 = vadd.f32 %v3369, %v3745
      %v3888 = vadd.f32 %v3370, %v3748
      %v3889 = vadd.f32 %v3371, %v3753
      %v3890 = vadd.f32 %v3372, %v3756
      %v3891 = vadd.f32 %v3373, %v3761
      %v3892 = vadd.f32 %v3374, %v3764
      %v3893 = vadd.f32 %v3375, %v3769
      %v3894 = vadd.f32 %v3376, %v3772
      %v3895 = vadd.f32 %v3377, %v3777
      %v3896 = vadd.f32 %v3378, %v3780
      %v3897 = vadd.f32 %v3379, %v3785
      %v3898 = vadd.f32 %v3380, %v3788
      %v3899 = vadd.f32 %v3381, %v3793
      %v3900 = vadd.f32 %v3382, %v3796
      %v3901 = vadd.f32 %v3383, %v3801
      %v3902 = vadd.f32 %v3384, %v3804
      %v3903 = vadd.f32 %v3385, %v3809
      %v3904 = vadd.f32 %v3386, %v3812
      %v3905 = vadd.f32 %v3387, %v3817
      %v3906 = vadd.f32 %v3388, %v3820
      %v3907 = vadd.f32 %v3389, %v3825
      %v3908 = vadd.f32 %v3390, %v3828
      %v3909 = vadd.f32 %v3391, %v3833
      %v3910 = vadd.f32 %v3392, %v3836
      %v3911 = vadd.f32 %v3393, %v3841
      %v3912 = vadd.f32 %v3394, %v3844
      %v3913 = vadd.f32 %v3395, %v3849
      %v3914 = vadd.f32 %v3396, %v3852
      %v3915 = vadd.f32 %v3397, %v3857
      %v3916 = vadd.f32 %v3398, %v3860
      %v3917 = vadd.f32 %v3399, %v3865
      %v3918 = vadd.f32 %v3400, %v3868
      %v3919 = vld [vmem:[%s382 + $0x18] sm:$0xf]
      %v3920 = vld [vmem:[%s382 + $0x1c] sm:$0xf]
      %v3921 = vld [vmem:[%s382 + $0x20] sm:$0xf]
      %v3922 = vld [vmem:[%s382 + $0x24] sm:$0xf]
      %v3923 = vld [vmem:[%s382 + $0x28] sm:$0xf]
      %v3924 = vld [vmem:[%s382 + $0x2c] sm:$0xf]
      %v3925 = vld [vmem:[%s382 + $0x30] sm:$0xf]
      %v3926 = vld [vmem:[%s382 + $0x34] sm:$0xf]
      %v3927 = vld [vmem:[%s382 + $0x38] sm:$0xf]
      %v3928 = vld [vmem:[%s382 + $0x3c] sm:$0xf]
      %v3929 = vld [vmem:[%s382 + $0x40] sm:$0xf]
      %v3930 = vld [vmem:[%s382 + $0x44] sm:$0xf]
      %v3931 = vld [vmem:[%s382 + $0x48] sm:$0xf]
      %v3932 = vld [vmem:[%s382 + $0x4c] sm:$0xf]
      %v3933 = vld [vmem:[%s382 + $0x50] sm:$0xf]
      %v3934 = vld [vmem:[%s382 + $0x54] sm:$0xf]
      %v3935 = vld [vmem:[%s382 + $0x58] sm:$0xf]
      %v3936 = vld [vmem:[%s382 + $0x5c] sm:$0xf]
      %v3937 = vld [vmem:[%s382 + $0x60] sm:$0xf]
      %v3938 = vld [vmem:[%s382 + $0x64] sm:$0xf]
      %v3939 = vld [vmem:[%s382 + $0x68] sm:$0xf]
      %v3940 = vld [vmem:[%s382 + $0x6c] sm:$0xf]
      %v3941 = vld [vmem:[%s382 + $0x70] sm:$0xf]
      %v3942 = vld [vmem:[%s382 + $0x74] sm:$0xf]
      %v3943 = vld [vmem:[%s382 + $0x78] sm:$0xf]
      %v3944 = vld [vmem:[%s382 + $0x7c] sm:$0xf]
      %v3945 = vld [vmem:[%s382 + $0x80] sm:$0xf]
      %v3946 = vld [vmem:[%s382 + $0x84] sm:$0xf]
      %v3947 = vld [vmem:[%s382 + $0x88] sm:$0xf]
      %v3948 = vld [vmem:[%s382 + $0x8c] sm:$0xf]
      %v3949 = vld [vmem:[%s382 + $0x90] sm:$0xf]
      %v3950 = vld [vmem:[%s382 + $0x94] sm:$0xf]
      %v3951 = vld [vmem:[%s382 + $0x98] sm:$0xf]
      %v3952 = vld [vmem:[%s382 + $0x9c] sm:$0xf]
      %v3953 = vld [vmem:[%s382 + $0xa0] sm:$0xf]
      %v3954 = vld [vmem:[%s382 + $0xa4] sm:$0xf]
      %v3955 = vld [vmem:[%s382 + $0xa8] sm:$0xf]
      %v3956 = vld [vmem:[%s382 + $0xac] sm:$0xf]
      %v3957 = vld [vmem:[%s382 + $0xb0] sm:$0xf]
      %v3958 = vld [vmem:[%s382 + $0xb4] sm:$0xf]
      %v3959 = vld [vmem:[%s382 + $0xb8] sm:$0xf]
      %v3960 = vld [vmem:[%s382 + $0xbc] sm:$0xf]
      %v3961 = vld [vmem:[%s382 + $0xc0] sm:$0xf]
      %v3962 = vld [vmem:[%s382 + $0xc4] sm:$0xf]
      %v3963 = vld [vmem:[%s382 + $0xc8] sm:$0xf]
      %v3964 = vld [vmem:[%s382 + $0xcc] sm:$0xf]
      %v3965 = vld [vmem:[%s382 + $0xd0] sm:$0xf]
      %v3966 = vld [vmem:[%s382 + $0xd4] sm:$0xf]
      %v3967 = vld [vmem:[%s382 + $0xd8] sm:$0x1]
      %s3968 = scalar_lea.vmem %s1, 28
      %v3969 = vld [vmem:[%s3968] sm:$0xf]
      %v4019 = vunpack.c.l.b16 %v3919
      %v4020 = vunpack.c.l.b16 %v3920
      %v4021 = vunpack.c.l.b16 %v3921
      %v4022 = vunpack.c.l.b16 %v3922
      %v4023 = vunpack.c.l.b16 %v3923
      %v4024 = vunpack.c.l.b16 %v3924
      %v4025 = vunpack.c.l.b16 %v3925
      %v4026 = vunpack.c.l.b16 %v3926
      %v4027 = vunpack.c.l.b16 %v3927
      %v4028 = vunpack.c.l.b16 %v3928
      %v4029 = vunpack.c.l.b16 %v3929
      %v4030 = vunpack.c.l.b16 %v3930
      %v4031 = vunpack.c.l.b16 %v3931
      %v4032 = vunpack.c.l.b16 %v3932
      %v4033 = vunpack.c.l.b16 %v3933
      %v4034 = vunpack.c.l.b16 %v3934
      %v4035 = vunpack.c.l.b16 %v3935
      %v4036 = vunpack.c.l.b16 %v3936
      %v4037 = vunpack.c.l.b16 %v3937
      %v4038 = vunpack.c.l.b16 %v3938
      %v4039 = vunpack.c.l.b16 %v3939
      %v4040 = vunpack.c.l.b16 %v3940
      %v4041 = vunpack.c.l.b16 %v3941
      %v4042 = vunpack.c.l.b16 %v3942
      %v4043 = vunpack.c.l.b16 %v3943
      %v4044 = vunpack.c.l.b16 %v3944
      %v4045 = vunpack.c.l.b16 %v3945
      %v4046 = vunpack.c.l.b16 %v3946
      %v4047 = vunpack.c.l.b16 %v3947
      %v4048 = vunpack.c.l.b16 %v3948
      %v4049 = vunpack.c.l.b16 %v3949
      %v4050 = vunpack.c.l.b16 %v3950
      %v4051 = vunpack.c.l.b16 %v3951
      %v4052 = vunpack.c.l.b16 %v3952
      %v4053 = vunpack.c.l.b16 %v3953
      %v4054 = vunpack.c.l.b16 %v3954
      %v4055 = vunpack.c.l.b16 %v3955
      %v4056 = vunpack.c.l.b16 %v3956
      %v4057 = vunpack.c.l.b16 %v3957
      %v4058 = vunpack.c.l.b16 %v3958
      %v4059 = vunpack.c.l.b16 %v3959
      %v4060 = vunpack.c.l.b16 %v3960
      %v4061 = vunpack.c.l.b16 %v3961
      %v4062 = vunpack.c.l.b16 %v3962
      %v4063 = vunpack.c.l.b16 %v3963
      %v4064 = vunpack.c.l.b16 %v3964
      %v4065 = vunpack.c.l.b16 %v3965
      %v4066 = vunpack.c.l.b16 %v3966
      %v4067 = vunpack.c.l.b16 %v3967
      %v4068 = vpack.c.b16 %v4020, %v4019
      %v4069 = vpack.c.b16 %v4022, %v4021
      %v4070 = vpack.c.b16 %v4024, %v4023
      %v4071 = vpack.c.b16 %v4026, %v4025
      %v4072 = vpack.c.b16 %v4028, %v4027
      %v4073 = vpack.c.b16 %v4030, %v4029
      %v4074 = vpack.c.b16 %v4032, %v4031
      %v4075 = vpack.c.b16 %v4034, %v4033
      %v4076 = vpack.c.b16 %v4036, %v4035
      %v4077 = vpack.c.b16 %v4038, %v4037
      %v4078 = vpack.c.b16 %v4040, %v4039
      %v4079 = vpack.c.b16 %v4042, %v4041
      %v4080 = vpack.c.b16 %v4044, %v4043
      %v4081 = vpack.c.b16 %v4046, %v4045
      %v4082 = vpack.c.b16 %v4048, %v4047
      %v4083 = vpack.c.b16 %v4050, %v4049
      %v4084 = vpack.c.b16 %v4052, %v4051
      %v4085 = vpack.c.b16 %v4054, %v4053
      %v4086 = vpack.c.b16 %v4056, %v4055
      %v4087 = vpack.c.b16 %v4058, %v4057
      %v4088 = vpack.c.b16 %v4060, %v4059
      %v4089 = vpack.c.b16 %v4062, %v4061
      %v4090 = vpack.c.b16 %v4064, %v4063
      %v4091 = vpack.c.b16 %v4066, %v4065
      %v4092 = vpack.c.b16 %v4067, %v4067
      %v4094 = vshrl.u32 %v4068, 16
      %v4096 = vshll.u32 %v4068, 16
      %v4098 = vrot.slane %v4096, 1
      %v4099 = vor.u32 %v4094, %v4098
      %v4101 = vshll.u32 %v4069, 16
      %v4103 = vrot.slane %v4101, 1
      %v4104 = vsel %vm584, %v4099, %v4103
      %v4105 = vshrl.u32 %v4069, 16
      %v4107 = vor.u32 %v4105, %v4103
      %v4109 = vshll.u32 %v4070, 16
      %v4111 = vrot.slane %v4109, 1
      %v4112 = vsel %vm584, %v4107, %v4111
      %v4113 = vshrl.u32 %v4070, 16
      %v4115 = vor.u32 %v4113, %v4111
      %v4117 = vshll.u32 %v4071, 16
      %v4119 = vrot.slane %v4117, 1
      %v4120 = vsel %vm584, %v4115, %v4119
      %v4121 = vshrl.u32 %v4071, 16
      %v4123 = vor.u32 %v4121, %v4119
      %v4125 = vshll.u32 %v4072, 16
      %v4127 = vrot.slane %v4125, 1
      %v4128 = vsel %vm584, %v4123, %v4127
      %v4129 = vshrl.u32 %v4072, 16
      %v4131 = vor.u32 %v4129, %v4127
      %v4133 = vshll.u32 %v4073, 16
      %v4135 = vrot.slane %v4133, 1
      %v4136 = vsel %vm584, %v4131, %v4135
      %v4137 = vshrl.u32 %v4073, 16
      %v4139 = vor.u32 %v4137, %v4135
      %v4141 = vshll.u32 %v4074, 16
      %v4143 = vrot.slane %v4141, 1
      %v4144 = vsel %vm584, %v4139, %v4143
      %v4145 = vshrl.u32 %v4074, 16
      %v4147 = vor.u32 %v4145, %v4143
      %v4149 = vshll.u32 %v4075, 16
      %v4151 = vrot.slane %v4149, 1
      %v4152 = vsel %vm584, %v4147, %v4151
      %v4153 = vshrl.u32 %v4075, 16
      %v4155 = vor.u32 %v4153, %v4151
      %v4157 = vshll.u32 %v4076, 16
      %v4159 = vrot.slane %v4157, 1
      %v4160 = vsel %vm584, %v4155, %v4159
      %v4161 = vshrl.u32 %v4076, 16
      %v4163 = vor.u32 %v4161, %v4159
      %v4165 = vshll.u32 %v4077, 16
      %v4167 = vrot.slane %v4165, 1
      %v4168 = vsel %vm584, %v4163, %v4167
      %v4169 = vshrl.u32 %v4077, 16
      %v4171 = vor.u32 %v4169, %v4167
      %v4173 = vshll.u32 %v4078, 16
      %v4175 = vrot.slane %v4173, 1
      %v4176 = vsel %vm584, %v4171, %v4175
      %v4177 = vshrl.u32 %v4078, 16
      %v4179 = vor.u32 %v4177, %v4175
      %v4181 = vshll.u32 %v4079, 16
      %v4183 = vrot.slane %v4181, 1
      %v4184 = vsel %vm584, %v4179, %v4183
      %v4185 = vshrl.u32 %v4079, 16
      %v4187 = vor.u32 %v4185, %v4183
      %v4189 = vshll.u32 %v4080, 16
      %v4191 = vrot.slane %v4189, 1
      %v4192 = vsel %vm584, %v4187, %v4191
      %v4193 = vshrl.u32 %v4080, 16
      %v4195 = vor.u32 %v4193, %v4191
      %v4197 = vshll.u32 %v4081, 16
      %v4199 = vrot.slane %v4197, 1
      %v4200 = vsel %vm584, %v4195, %v4199
      %v4201 = vshrl.u32 %v4081, 16
      %v4203 = vor.u32 %v4201, %v4199
      %v4205 = vshll.u32 %v4082, 16
      %v4207 = vrot.slane %v4205, 1
      %v4208 = vsel %vm584, %v4203, %v4207
      %v4209 = vshrl.u32 %v4082, 16
      %v4211 = vor.u32 %v4209, %v4207
      %v4213 = vshll.u32 %v4083, 16
      %v4215 = vrot.slane %v4213, 1
      %v4216 = vsel %vm584, %v4211, %v4215
      %v4217 = vshrl.u32 %v4083, 16
      %v4219 = vor.u32 %v4217, %v4215
      %v4221 = vshll.u32 %v4084, 16
      %v4223 = vrot.slane %v4221, 1
      %v4224 = vsel %vm584, %v4219, %v4223
      %v4225 = vshrl.u32 %v4084, 16
      %v4227 = vor.u32 %v4225, %v4223
      %v4229 = vshll.u32 %v4085, 16
      %v4231 = vrot.slane %v4229, 1
      %v4232 = vsel %vm584, %v4227, %v4231
      %v4233 = vshrl.u32 %v4085, 16
      %v4235 = vor.u32 %v4233, %v4231
      %v4237 = vshll.u32 %v4086, 16
      %v4239 = vrot.slane %v4237, 1
      %v4240 = vsel %vm584, %v4235, %v4239
      %v4241 = vshrl.u32 %v4086, 16
      %v4243 = vor.u32 %v4241, %v4239
      %v4245 = vshll.u32 %v4087, 16
      %v4247 = vrot.slane %v4245, 1
      %v4248 = vsel %vm584, %v4243, %v4247
      %v4249 = vshrl.u32 %v4087, 16
      %v4251 = vor.u32 %v4249, %v4247
      %v4253 = vshll.u32 %v4088, 16
      %v4255 = vrot.slane %v4253, 1
      %v4256 = vsel %vm584, %v4251, %v4255
      %v4257 = vshrl.u32 %v4088, 16
      %v4259 = vor.u32 %v4257, %v4255
      %v4261 = vshll.u32 %v4089, 16
      %v4263 = vrot.slane %v4261, 1
      %v4264 = vsel %vm584, %v4259, %v4263
      %v4265 = vshrl.u32 %v4089, 16
      %v4267 = vor.u32 %v4265, %v4263
      %v4269 = vshll.u32 %v4090, 16
      %v4271 = vrot.slane %v4269, 1
      %v4272 = vsel %vm584, %v4267, %v4271
      %v4273 = vshrl.u32 %v4090, 16
      %v4275 = vor.u32 %v4273, %v4271
      %v4277 = vshll.u32 %v4091, 16
      %v4279 = vrot.slane %v4277, 1
      %v4280 = vsel %vm584, %v4275, %v4279
      %v4281 = vshrl.u32 %v4091, 16
      %v4283 = vor.u32 %v4281, %v4279
      %v4285 = vshll.u32 %v4092, 16
      %v4287 = vrot.slane %v4285, 1
      %v4288 = vsel %vm584, %v4283, %v4287
      %v4290 = vsel %vm391, %v4104, 0
      %v4293 = vsel %vm391, %v4112, 0
      %v4296 = vsel %vm391, %v4120, 0
      %v4299 = vsel %vm391, %v4128, 0
      %v4302 = vsel %vm391, %v4136, 0
      %v4305 = vsel %vm391, %v4144, 0
      %v4308 = vsel %vm391, %v4152, 0
      %v4311 = vsel %vm391, %v4160, 0
      %v4314 = vsel %vm391, %v4168, 0
      %v4317 = vsel %vm391, %v4176, 0
      %v4320 = vsel %vm391, %v4184, 0
      %v4323 = vsel %vm391, %v4192, 0
      %v4326 = vsel %vm391, %v4200, 0
      %v4329 = vsel %vm391, %v4208, 0
      %v4332 = vsel %vm391, %v4216, 0
      %v4335 = vsel %vm391, %v4224, 0
      %v4338 = vsel %vm391, %v4232, 0
      %v4341 = vsel %vm391, %v4240, 0
      %v4344 = vsel %vm391, %v4248, 0
      %v4347 = vsel %vm391, %v4256, 0
      %v4350 = vsel %vm391, %v4264, 0
      %v4353 = vsel %vm391, %v4272, 0
      %v4356 = vsel %vm391, %v4280, 0
      %v4359 = vsel %vm391, %v4288, 0
      %v4362 = vsel %vm853, %v3969, 0
      %4364 = vmatprep.subr.bf16.mxu0 0
      %4365 = vmatpush1.bf16.msra.mxu0 %v4362
      %4366 = vmatprep.subr.bf16.mxu0 0
      %4367 = vmatpush1.bf16.msra.mxu0 0
      %4368 = vmatprep.subr.bf16.mxu0 0
      %4369 = vmatpush1.bf16.msra.mxu0 0
      %4370 = vmatprep.subr.bf16.mxu0 0
      %4371 = vmatpush1.bf16.msra.mxu0 0
      %4372 = vmatprep.subr.bf16.mxu0 0
      %4373 = vmatpush1.bf16.msra.mxu0 0
      %4374 = vmatprep.subr.bf16.mxu0 0
      %4375 = vmatpush1.bf16.msra.mxu0 0
      %4376 = vmatprep.subr.bf16.mxu0 0
      %4377 = vmatpush1.bf16.msra.mxu0 0
      %4378 = vmatprep.subr.bf16.mxu0 0
      %4379 = vmatpush1.bf16.msra.mxu0 0
      %4380 = vmatprep.subr.bf16.mxu0 0
      %4381 = vmatpush1.bf16.msra.mxu0 0
      %4382 = vmatprep.subr.bf16.mxu0 0
      %4383 = vmatpush1.bf16.msra.mxu0 0
      %4384 = vmatprep.subr.bf16.mxu0 0
      %4385 = vmatpush1.bf16.msra.mxu0 0
      %4386 = vmatprep.subr.bf16.mxu0 0
      %4387 = vmatpush1.bf16.msra.mxu0 0
      %4388 = vmatprep.subr.bf16.mxu0 0
      %4389 = vmatpush1.bf16.msra.mxu0 0
      %4390 = vmatprep.subr.bf16.mxu0 0
      %4391 = vmatpush1.bf16.msra.mxu0 0
      %4392 = vmatprep.subr.bf16.mxu0 0
      %4393 = vmatpush1.bf16.msra.mxu0 0
      %4394 = vmatprep.subr.bf16.mxu0 0
      %4395 = vmatpush1.bf16.msra.mxu0 0
      %4396 = vmatprep.mubr.bf16.mxu0 0
      %4397 = vmatmul.mubr.bf16.gmra.mrb[0].mxu0 %v4290
      %v4398 = vpop.f32.mrb[0].mxu0
      %v4399 = vadd.f32 0.0, %v4398
      %v4400 = vpop.f32.mrb[0].mxu0
      %v4401 = vpop.f32.mrb[0].mxu0
      %v4402 = vadd.f32 0.0, %v4401
      %v4403 = vpop.f32.mrb[0].mxu0
      %4404 = vmatprep.mubr.bf16.mxu0 0
      %4405 = vmatmul.mubr.bf16.gmra.mrb[0].mxu0 %v4293
      %v4406 = vpop.f32.mrb[0].mxu0
      %v4407 = vadd.f32 0.0, %v4406
      %v4408 = vpop.f32.mrb[0].mxu0
      %v4409 = vpop.f32.mrb[0].mxu0
      %v4410 = vadd.f32 0.0, %v4409
      %v4411 = vpop.f32.mrb[0].mxu0
      %4412 = vmatprep.mubr.bf16.mxu0 0
      %4413 = vmatmul.mubr.bf16.gmra.mrb[0].mxu0 %v4296
      %v4414 = vpop.f32.mrb[0].mxu0
      %v4415 = vadd.f32 0.0, %v4414
      %v4416 = vpop.f32.mrb[0].mxu0
      %v4417 = vpop.f32.mrb[0].mxu0
      %v4418 = vadd.f32 0.0, %v4417
      %v4419 = vpop.f32.mrb[0].mxu0
      %4420 = vmatprep.mubr.bf16.mxu0 0
      %4421 = vmatmul.mubr.bf16.gmra.mrb[0].mxu0 %v4299
      %v4422 = vpop.f32.mrb[0].mxu0
      %v4423 = vadd.f32 0.0, %v4422
      %v4424 = vpop.f32.mrb[0].mxu0
      %v4425 = vpop.f32.mrb[0].mxu0
      %v4426 = vadd.f32 0.0, %v4425
      %v4427 = vpop.f32.mrb[0].mxu0
      %4428 = vmatprep.mubr.bf16.mxu0 0
      %4429 = vmatmul.mubr.bf16.gmra.mrb[0].mxu0 %v4302
      %v4430 = vpop.f32.mrb[0].mxu0
      %v4431 = vadd.f32 0.0, %v4430
      %v4432 = vpop.f32.mrb[0].mxu0
      %v4433 = vpop.f32.mrb[0].mxu0
      %v4434 = vadd.f32 0.0, %v4433
      %v4435 = vpop.f32.mrb[0].mxu0
      %4436 = vmatprep.mubr.bf16.mxu0 0
      %4437 = vmatmul.mubr.bf16.gmra.mrb[0].mxu0 %v4305
      %v4438 = vpop.f32.mrb[0].mxu0
      %v4439 = vadd.f32 0.0, %v4438
      %v4440 = vpop.f32.mrb[0].mxu0
      %v4441 = vpop.f32.mrb[0].mxu0
      %v4442 = vadd.f32 0.0, %v4441
      %v4443 = vpop.f32.mrb[0].mxu0
      %4444 = vmatprep.mubr.bf16.mxu0 0
      %4445 = vmatmul.mubr.bf16.gmra.mrb[0].mxu0 %v4308
      %v4446 = vpop.f32.mrb[0].mxu0
      %v4447 = vadd.f32 0.0, %v4446
      %v4448 = vpop.f32.mrb[0].mxu0
      %v4449 = vpop.f32.mrb[0].mxu0
      %v4450 = vadd.f32 0.0, %v4449
      %v4451 = vpop.f32.mrb[0].mxu0
      %4452 = vmatprep.mubr.bf16.mxu0 0
      %4453 = vmatmul.mubr.bf16.gmra.mrb[0].mxu0 %v4311
      %v4454 = vpop.f32.mrb[0].mxu0
      %v4455 = vadd.f32 0.0, %v4454
      %v4456 = vpop.f32.mrb[0].mxu0
      %v4457 = vpop.f32.mrb[0].mxu0
      %v4458 = vadd.f32 0.0, %v4457
      %v4459 = vpop.f32.mrb[0].mxu0
      %4460 = vmatprep.mubr.bf16.mxu0 0
      %4461 = vmatmul.mubr.bf16.gmra.mrb[0].mxu0 %v4314
      %v4462 = vpop.f32.mrb[0].mxu0
      %v4463 = vadd.f32 0.0, %v4462
      %v4464 = vpop.f32.mrb[0].mxu0
      %v4465 = vpop.f32.mrb[0].mxu0
      %v4466 = vadd.f32 0.0, %v4465
      %v4467 = vpop.f32.mrb[0].mxu0
      %4468 = vmatprep.mubr.bf16.mxu0 0
      %4469 = vmatmul.mubr.bf16.gmra.mrb[0].mxu0 %v4317
      %v4470 = vpop.f32.mrb[0].mxu0
      %v4471 = vadd.f32 0.0, %v4470
      %v4472 = vpop.f32.mrb[0].mxu0
      %v4473 = vpop.f32.mrb[0].mxu0
      %v4474 = vadd.f32 0.0, %v4473
      %v4475 = vpop.f32.mrb[0].mxu0
      %4476 = vmatprep.mubr.bf16.mxu0 0
      %4477 = vmatmul.mubr.bf16.gmra.mrb[0].mxu0 %v4320
      %v4478 = vpop.f32.mrb[0].mxu0
      %v4479 = vadd.f32 0.0, %v4478
      %v4480 = vpop.f32.mrb[0].mxu0
      %v4481 = vpop.f32.mrb[0].mxu0
      %v4482 = vadd.f32 0.0, %v4481
      %v4483 = vpop.f32.mrb[0].mxu0
      %4484 = vmatprep.mubr.bf16.mxu0 0
      %4485 = vmatmul.mubr.bf16.gmra.mrb[0].mxu0 %v4323
      %v4486 = vpop.f32.mrb[0].mxu0
      %v4487 = vadd.f32 0.0, %v4486
      %v4488 = vpop.f32.mrb[0].mxu0
      %v4489 = vpop.f32.mrb[0].mxu0
      %v4490 = vadd.f32 0.0, %v4489
      %v4491 = vpop.f32.mrb[0].mxu0
      %4492 = vmatprep.mubr.bf16.mxu0 0
      %4493 = vmatmul.mubr.bf16.gmra.mrb[0].mxu0 %v4326
      %v4494 = vpop.f32.mrb[0].mxu0
      %v4495 = vadd.f32 0.0, %v4494
      %v4496 = vpop.f32.mrb[0].mxu0
      %v4497 = vpop.f32.mrb[0].mxu0
      %v4498 = vadd.f32 0.0, %v4497
      %v4499 = vpop.f32.mrb[0].mxu0
      %4500 = vmatprep.mubr.bf16.mxu0 0
      %4501 = vmatmul.mubr.bf16.gmra.mrb[0].mxu0 %v4329
      %v4502 = vpop.f32.mrb[0].mxu0
      %v4503 = vadd.f32 0.0, %v4502
      %v4504 = vpop.f32.mrb[0].mxu0
      %v4505 = vpop.f32.mrb[0].mxu0
      %v4506 = vadd.f32 0.0, %v4505
      %v4507 = vpop.f32.mrb[0].mxu0
      %4508 = vmatprep.mubr.bf16.mxu0 0
      %4509 = vmatmul.mubr.bf16.gmra.mrb[0].mxu0 %v4332
      %v4510 = vpop.f32.mrb[0].mxu0
      %v4511 = vadd.f32 0.0, %v4510
      %v4512 = vpop.f32.mrb[0].mxu0
      %v4513 = vpop.f32.mrb[0].mxu0
      %v4514 = vadd.f32 0.0, %v4513
      %v4515 = vpop.f32.mrb[0].mxu0
      %4516 = vmatprep.mubr.bf16.mxu0 0
      %4517 = vmatmul.mubr.bf16.gmra.mrb[0].mxu0 %v4335
      %v4518 = vpop.f32.mrb[0].mxu0
      %v4519 = vadd.f32 0.0, %v4518
      %v4520 = vpop.f32.mrb[0].mxu0
      %v4521 = vpop.f32.mrb[0].mxu0
      %v4522 = vadd.f32 0.0, %v4521
      %v4523 = vpop.f32.mrb[0].mxu0
      %4524 = vmatprep.mubr.bf16.mxu0 0
      %4525 = vmatmul.mubr.bf16.gmra.mrb[0].mxu0 %v4338
      %v4526 = vpop.f32.mrb[0].mxu0
      %v4527 = vadd.f32 0.0, %v4526
      %v4528 = vpop.f32.mrb[0].mxu0
      %v4529 = vpop.f32.mrb[0].mxu0
      %v4530 = vadd.f32 0.0, %v4529
      %v4531 = vpop.f32.mrb[0].mxu0
      %4532 = vmatprep.mubr.bf16.mxu0 0
      %4533 = vmatmul.mubr.bf16.gmra.mrb[0].mxu0 %v4341
      %v4534 = vpop.f32.mrb[0].mxu0
      %v4535 = vadd.f32 0.0, %v4534
      %v4536 = vpop.f32.mrb[0].mxu0
      %v4537 = vpop.f32.mrb[0].mxu0
      %v4538 = vadd.f32 0.0, %v4537
      %v4539 = vpop.f32.mrb[0].mxu0
      %4540 = vmatprep.mubr.bf16.mxu0 0
      %4541 = vmatmul.mubr.bf16.gmra.mrb[0].mxu0 %v4344
      %v4542 = vpop.f32.mrb[0].mxu0
      %v4543 = vadd.f32 0.0, %v4542
      %v4544 = vpop.f32.mrb[0].mxu0
      %v4545 = vpop.f32.mrb[0].mxu0
      %v4546 = vadd.f32 0.0, %v4545
      %v4547 = vpop.f32.mrb[0].mxu0
      %4548 = vmatprep.mubr.bf16.mxu0 0
      %4549 = vmatmul.mubr.bf16.gmra.mrb[0].mxu0 %v4347
      %v4550 = vpop.f32.mrb[0].mxu0
      %v4551 = vadd.f32 0.0, %v4550
      %v4552 = vpop.f32.mrb[0].mxu0
      %v4553 = vpop.f32.mrb[0].mxu0
      %v4554 = vadd.f32 0.0, %v4553
      %v4555 = vpop.f32.mrb[0].mxu0
      %4556 = vmatprep.mubr.bf16.mxu0 0
      %4557 = vmatmul.mubr.bf16.gmra.mrb[0].mxu0 %v4350
      %v4558 = vpop.f32.mrb[0].mxu0
      %v4559 = vadd.f32 0.0, %v4558
      %v4560 = vpop.f32.mrb[0].mxu0
      %v4561 = vpop.f32.mrb[0].mxu0
      %v4562 = vadd.f32 0.0, %v4561
      %v4563 = vpop.f32.mrb[0].mxu0
      %4564 = vmatprep.mubr.bf16.mxu0 0
      %4565 = vmatmul.mubr.bf16.gmra.mrb[0].mxu0 %v4353
      %v4566 = vpop.f32.mrb[0].mxu0
      %v4567 = vadd.f32 0.0, %v4566
      %v4568 = vpop.f32.mrb[0].mxu0
      %v4569 = vpop.f32.mrb[0].mxu0
      %v4570 = vadd.f32 0.0, %v4569
      %v4571 = vpop.f32.mrb[0].mxu0
      %4572 = vmatprep.mubr.bf16.mxu0 0
      %4573 = vmatmul.mubr.bf16.gmra.mrb[0].mxu0 %v4356
      %v4574 = vpop.f32.mrb[0].mxu0
      %v4575 = vadd.f32 0.0, %v4574
      %v4576 = vpop.f32.mrb[0].mxu0
      %v4577 = vpop.f32.mrb[0].mxu0
      %v4578 = vadd.f32 0.0, %v4577
      %v4579 = vpop.f32.mrb[0].mxu0
      %4580 = vmatprep.mubr.bf16.mxu0 0
      %4581 = vmatmul.mubr.bf16.gmra.mrb[0].mxu0 %v4359
      %v4582 = vpop.f32.mrb[0].mxu0
      %v4583 = vadd.f32 0.0, %v4582
      %v4584 = vpop.f32.mrb[0].mxu0
      %v4585 = vpop.f32.mrb[0].mxu0
      %v4586 = vadd.f32 0.0, %v4585
      %v4587 = vpop.f32.mrb[0].mxu0
      %4588 = vdwg.mxu0
      %v4589 = vadd.f32 %v3871, %v4399
      %v4590 = vadd.f32 %v3872, %v4402
      %v4591 = vadd.f32 %v3873, %v4407
      %v4592 = vadd.f32 %v3874, %v4410
      %v4593 = vadd.f32 %v3875, %v4415
      %v4594 = vadd.f32 %v3876, %v4418
      %v4595 = vadd.f32 %v3877, %v4423
      %v4596 = vadd.f32 %v3878, %v4426
      %v4597 = vadd.f32 %v3879, %v4431
      %v4598 = vadd.f32 %v3880, %v4434
      %v4599 = vadd.f32 %v3881, %v4439
      %v4600 = vadd.f32 %v3882, %v4442
      %v4601 = vadd.f32 %v3883, %v4447
      %v4602 = vadd.f32 %v3884, %v4450
      %v4603 = vadd.f32 %v3885, %v4455
      %v4604 = vadd.f32 %v3886, %v4458
      %v4605 = vadd.f32 %v3887, %v4463
      %v4606 = vadd.f32 %v3888, %v4466
      %v4607 = vadd.f32 %v3889, %v4471
      %v4608 = vadd.f32 %v3890, %v4474
      %v4609 = vadd.f32 %v3891, %v4479
      %v4610 = vadd.f32 %v3892, %v4482
      %v4611 = vadd.f32 %v3893, %v4487
      %v4612 = vadd.f32 %v3894, %v4490
      %v4613 = vadd.f32 %v3895, %v4495
      %v4614 = vadd.f32 %v3896, %v4498
      %v4615 = vadd.f32 %v3897, %v4503
      %v4616 = vadd.f32 %v3898, %v4506
      %v4617 = vadd.f32 %v3899, %v4511
      %v4618 = vadd.f32 %v3900, %v4514
      %v4619 = vadd.f32 %v3901, %v4519
      %v4620 = vadd.f32 %v3902, %v4522
      %v4621 = vadd.f32 %v3903, %v4527
      %v4622 = vadd.f32 %v3904, %v4530
      %v4623 = vadd.f32 %v3905, %v4535
      %v4624 = vadd.f32 %v3906, %v4538
      %v4625 = vadd.f32 %v3907, %v4543
      %v4626 = vadd.f32 %v3908, %v4546
      %v4627 = vadd.f32 %v3909, %v4551
      %v4628 = vadd.f32 %v3910, %v4554
      %v4629 = vadd.f32 %v3911, %v4559
      %v4630 = vadd.f32 %v3912, %v4562
      %v4631 = vadd.f32 %v3913, %v4567
      %v4632 = vadd.f32 %v3914, %v4570
      %v4633 = vadd.f32 %v3915, %v4575
      %v4634 = vadd.f32 %v3916, %v4578
      %v4635 = vadd.f32 %v3917, %v4583
      %v4636 = vadd.f32 %v3918, %v4586
      %v4637 = vld [vmem:[%s382 + $0x18] sm:$0xe]
      %s4638 = scalar_lea.vmem %s1, 32
      %v4639 = vld [vmem:[%s4638] sm:$0xf]
      %v4641 = vunpack.c.l.b16 %v4637
      %v4642 = vpack.c.b16 %v4020, %v4641
      %v4643 = vrot.slane %v4642, 1
      %v4644 = vrot.slane %v4069, 1
      %v4645 = vsel %vm1364, %v4643, %v4644
      %v4646 = vrot.slane %v4070, 1
      %v4647 = vsel %vm1364, %v4644, %v4646
      %v4648 = vrot.slane %v4071, 1
      %v4649 = vsel %vm1364, %v4646, %v4648
      %v4650 = vrot.slane %v4072, 1
      %v4651 = vsel %vm1364, %v4648, %v4650
      %v4652 = vrot.slane %v4073, 1
      %v4653 = vsel %vm1364, %v4650, %v4652
      %v4654 = vrot.slane %v4074, 1
      %v4655 = vsel %vm1364, %v4652, %v4654
      %v4656 = vrot.slane %v4075, 1
      %v4657 = vsel %vm1364, %v4654, %v4656
      %v4658 = vrot.slane %v4076, 1
      %v4659 = vsel %vm1364, %v4656, %v4658
      %v4660 = vrot.slane %v4077, 1
      %v4661 = vsel %vm1364, %v4658, %v4660
      %v4662 = vrot.slane %v4078, 1
      %v4663 = vsel %vm1364, %v4660, %v4662
      %v4664 = vrot.slane %v4079, 1
      %v4665 = vsel %vm1364, %v4662, %v4664
      %v4666 = vrot.slane %v4080, 1
      %v4667 = vsel %vm1364, %v4664, %v4666
      %v4668 = vrot.slane %v4081, 1
      %v4669 = vsel %vm1364, %v4666, %v4668
      %v4670 = vrot.slane %v4082, 1
      %v4671 = vsel %vm1364, %v4668, %v4670
      %v4672 = vrot.slane %v4083, 1
      %v4673 = vsel %vm1364, %v4670, %v4672
      %v4674 = vrot.slane %v4084, 1
      %v4675 = vsel %vm1364, %v4672, %v4674
      %v4676 = vrot.slane %v4085, 1
      %v4677 = vsel %vm1364, %v4674, %v4676
      %v4678 = vrot.slane %v4086, 1
      %v4679 = vsel %vm1364, %v4676, %v4678
      %v4680 = vrot.slane %v4087, 1
      %v4681 = vsel %vm1364, %v4678, %v4680
      %v4682 = vrot.slane %v4088, 1
      %v4683 = vsel %vm1364, %v4680, %v4682
      %v4684 = vrot.slane %v4089, 1
      %v4685 = vsel %vm1364, %v4682, %v4684
      %v4686 = vrot.slane %v4090, 1
      %v4687 = vsel %vm1364, %v4684, %v4686
      %v4688 = vrot.slane %v4091, 1
      %v4689 = vsel %vm1364, %v4686, %v4688
      %v4690 = vrot.slane %v4092, 1
      %v4691 = vsel %vm1364, %v4688, %v4690
      %v4693 = vsel %vm391, %v4645, 0
      %v4696 = vsel %vm391, %v4647, 0
      %v4699 = vsel %vm391, %v4649, 0
      %v4702 = vsel %vm391, %v4651, 0
      %v4705 = vsel %vm391, %v4653, 0
      %v4708 = vsel %vm391, %v4655, 0
      %v4711 = vsel %vm391, %v4657, 0
      %v4714 = vsel %vm391, %v4659, 0
      %v4717 = vsel %vm391, %v4661, 0
      %v4720 = vsel %vm391, %v4663, 0
      %v4723 = vsel %vm391, %v4665, 0
      %v4726 = vsel %vm391, %v4667, 0
      %v4729 = vsel %vm391, %v4669, 0
      %v4732 = vsel %vm391, %v4671, 0
      %v4735 = vsel %vm391, %v4673, 0
      %v4738 = vsel %vm391, %v4675, 0
      %v4741 = vsel %vm391, %v4677, 0
      %v4744 = vsel %vm391, %v4679, 0
      %v4747 = vsel %vm391, %v4681, 0
      %v4750 = vsel %vm391, %v4683, 0
      %v4753 = vsel %vm391, %v4685, 0
      %v4756 = vsel %vm391, %v4687, 0
      %v4759 = vsel %vm391, %v4689, 0
      %v4762 = vsel %vm391, %v4691, 0
      %v4765 = vsel %vm853, %v4639, 0
      %4767 = vmatprep.subr.bf16.mxu0 0
      %4768 = vmatpush1.bf16.msra.mxu0 %v4765
      %4769 = vmatprep.subr.bf16.mxu0 0
      %4770 = vmatpush1.bf16.msra.mxu0 0
      %4771 = vmatprep.subr.bf16.mxu0 0
      %4772 = vmatpush1.bf16.msra.mxu0 0
      %4773 = vmatprep.subr.bf16.mxu0 0
      %4774 = vmatpush1.bf16.msra.mxu0 0
      %4775 = vmatprep.subr.bf16.mxu0 0
      %4776 = vmatpush1.bf16.msra.mxu0 0
      %4777 = vmatprep.subr.bf16.mxu0 0
      %4778 = vmatpush1.bf16.msra.mxu0 0
      %4779 = vmatprep.subr.bf16.mxu0 0
      %4780 = vmatpush1.bf16.msra.mxu0 0
      %4781 = vmatprep.subr.bf16.mxu0 0
      %4782 = vmatpush1.bf16.msra.mxu0 0
      %4783 = vmatprep.subr.bf16.mxu0 0
      %4784 = vmatpush1.bf16.msra.mxu0 0
      %4785 = vmatprep.subr.bf16.mxu0 0
      %4786 = vmatpush1.bf16.msra.mxu0 0
      %4787 = vmatprep.subr.bf16.mxu0 0
      %4788 = vmatpush1.bf16.msra.mxu0 0
      %4789 = vmatprep.subr.bf16.mxu0 0
      %4790 = vmatpush1.bf16.msra.mxu0 0
      %4791 = vmatprep.subr.bf16.mxu0 0
      %4792 = vmatpush1.bf16.msra.mxu0 0
      %4793 = vmatprep.subr.bf16.mxu0 0
      %4794 = vmatpush1.bf16.msra.mxu0 0
      %4795 = vmatprep.subr.bf16.mxu0 0
      %4796 = vmatpush1.bf16.msra.mxu0 0
      %4797 = vmatprep.subr.bf16.mxu0 0
      %4798 = vmatpush1.bf16.msra.mxu0 0
      %4799 = vmatprep.mubr.bf16.mxu0 0
      %4800 = vmatmul.mubr.bf16.gmra.mrb[0].mxu0 %v4693
      %v4801 = vpop.f32.mrb[0].mxu0
      %v4802 = vadd.f32 0.0, %v4801
      %v4803 = vpop.f32.mrb[0].mxu0
      %v4804 = vpop.f32.mrb[0].mxu0
      %v4805 = vadd.f32 0.0, %v4804
      %v4806 = vpop.f32.mrb[0].mxu0
      %4807 = vmatprep.mubr.bf16.mxu0 0
      %4808 = vmatmul.mubr.bf16.gmra.mrb[0].mxu0 %v4696
      %v4809 = vpop.f32.mrb[0].mxu0
      %v4810 = vadd.f32 0.0, %v4809
      %v4811 = vpop.f32.mrb[0].mxu0
      %v4812 = vpop.f32.mrb[0].mxu0
      %v4813 = vadd.f32 0.0, %v4812
      %v4814 = vpop.f32.mrb[0].mxu0
      %4815 = vmatprep.mubr.bf16.mxu0 0
      %4816 = vmatmul.mubr.bf16.gmra.mrb[0].mxu0 %v4699
      %v4817 = vpop.f32.mrb[0].mxu0
      %v4818 = vadd.f32 0.0, %v4817
      %v4819 = vpop.f32.mrb[0].mxu0
      %v4820 = vpop.f32.mrb[0].mxu0
      %v4821 = vadd.f32 0.0, %v4820
      %v4822 = vpop.f32.mrb[0].mxu0
      %4823 = vmatprep.mubr.bf16.mxu0 0
      %4824 = vmatmul.mubr.bf16.gmra.mrb[0].mxu0 %v4702
      %v4825 = vpop.f32.mrb[0].mxu0
      %v4826 = vadd.f32 0.0, %v4825
      %v4827 = vpop.f32.mrb[0].mxu0
      %v4828 = vpop.f32.mrb[0].mxu0
      %v4829 = vadd.f32 0.0, %v4828
      %v4830 = vpop.f32.mrb[0].mxu0
      %4831 = vmatprep.mubr.bf16.mxu0 0
      %4832 = vmatmul.mubr.bf16.gmra.mrb[0].mxu0 %v4705
      %v4833 = vpop.f32.mrb[0].mxu0
      %v4834 = vadd.f32 0.0, %v4833
      %v4835 = vpop.f32.mrb[0].mxu0
      %v4836 = vpop.f32.mrb[0].mxu0
      %v4837 = vadd.f32 0.0, %v4836
      %v4838 = vpop.f32.mrb[0].mxu0
      %4839 = vmatprep.mubr.bf16.mxu0 0
      %4840 = vmatmul.mubr.bf16.gmra.mrb[0].mxu0 %v4708
      %v4841 = vpop.f32.mrb[0].mxu0
      %v4842 = vadd.f32 0.0, %v4841
      %v4843 = vpop.f32.mrb[0].mxu0
      %v4844 = vpop.f32.mrb[0].mxu0
      %v4845 = vadd.f32 0.0, %v4844
      %v4846 = vpop.f32.mrb[0].mxu0
      %4847 = vmatprep.mubr.bf16.mxu0 0
      %4848 = vmatmul.mubr.bf16.gmra.mrb[0].mxu0 %v4711
      %v4849 = vpop.f32.mrb[0].mxu0
      %v4850 = vadd.f32 0.0, %v4849
      %v4851 = vpop.f32.mrb[0].mxu0
      %v4852 = vpop.f32.mrb[0].mxu0
      %v4853 = vadd.f32 0.0, %v4852
      %v4854 = vpop.f32.mrb[0].mxu0
      %4855 = vmatprep.mubr.bf16.mxu0 0
      %4856 = vmatmul.mubr.bf16.gmra.mrb[0].mxu0 %v4714
      %v4857 = vpop.f32.mrb[0].mxu0
      %v4858 = vadd.f32 0.0, %v4857
      %v4859 = vpop.f32.mrb[0].mxu0
      %v4860 = vpop.f32.mrb[0].mxu0
      %v4861 = vadd.f32 0.0, %v4860
      %v4862 = vpop.f32.mrb[0].mxu0
      %4863 = vmatprep.mubr.bf16.mxu0 0
      %4864 = vmatmul.mubr.bf16.gmra.mrb[0].mxu0 %v4717
      %v4865 = vpop.f32.mrb[0].mxu0
      %v4866 = vadd.f32 0.0, %v4865
      %v4867 = vpop.f32.mrb[0].mxu0
      %v4868 = vpop.f32.mrb[0].mxu0
      %v4869 = vadd.f32 0.0, %v4868
      %v4870 = vpop.f32.mrb[0].mxu0
      %4871 = vmatprep.mubr.bf16.mxu0 0
      %4872 = vmatmul.mubr.bf16.gmra.mrb[0].mxu0 %v4720
      %v4873 = vpop.f32.mrb[0].mxu0
      %v4874 = vadd.f32 0.0, %v4873
      %v4875 = vpop.f32.mrb[0].mxu0
      %v4876 = vpop.f32.mrb[0].mxu0
      %v4877 = vadd.f32 0.0, %v4876
      %v4878 = vpop.f32.mrb[0].mxu0
      %4879 = vmatprep.mubr.bf16.mxu0 0
      %4880 = vmatmul.mubr.bf16.gmra.mrb[0].mxu0 %v4723
      %v4881 = vpop.f32.mrb[0].mxu0
      %v4882 = vadd.f32 0.0, %v4881
      %v4883 = vpop.f32.mrb[0].mxu0
      %v4884 = vpop.f32.mrb[0].mxu0
      %v4885 = vadd.f32 0.0, %v4884
      %v4886 = vpop.f32.mrb[0].mxu0
      %4887 = vmatprep.mubr.bf16.mxu0 0
      %4888 = vmatmul.mubr.bf16.gmra.mrb[0].mxu0 %v4726
      %v4889 = vpop.f32.mrb[0].mxu0
      %v4890 = vadd.f32 0.0, %v4889
      %v4891 = vpop.f32.mrb[0].mxu0
      %v4892 = vpop.f32.mrb[0].mxu0
      %v4893 = vadd.f32 0.0, %v4892
      %v4894 = vpop.f32.mrb[0].mxu0
      %4895 = vmatprep.mubr.bf16.mxu0 0
      %4896 = vmatmul.mubr.bf16.gmra.mrb[0].mxu0 %v4729
      %v4897 = vpop.f32.mrb[0].mxu0
      %v4898 = vadd.f32 0.0, %v4897
      %v4899 = vpop.f32.mrb[0].mxu0
      %v4900 = vpop.f32.mrb[0].mxu0
      %v4901 = vadd.f32 0.0, %v4900
      %v4902 = vpop.f32.mrb[0].mxu0
      %4903 = vmatprep.mubr.bf16.mxu0 0
      %4904 = vmatmul.mubr.bf16.gmra.mrb[0].mxu0 %v4732
      %v4905 = vpop.f32.mrb[0].mxu0
      %v4906 = vadd.f32 0.0, %v4905
      %v4907 = vpop.f32.mrb[0].mxu0
      %v4908 = vpop.f32.mrb[0].mxu0
      %v4909 = vadd.f32 0.0, %v4908
      %v4910 = vpop.f32.mrb[0].mxu0
      %4911 = vmatprep.mubr.bf16.mxu0 0
      %4912 = vmatmul.mubr.bf16.gmra.mrb[0].mxu0 %v4735
      %v4913 = vpop.f32.mrb[0].mxu0
      %v4914 = vadd.f32 0.0, %v4913
      %v4915 = vpop.f32.mrb[0].mxu0
      %v4916 = vpop.f32.mrb[0].mxu0
      %v4917 = vadd.f32 0.0, %v4916
      %v4918 = vpop.f32.mrb[0].mxu0
      %4919 = vmatprep.mubr.bf16.mxu0 0
      %4920 = vmatmul.mubr.bf16.gmra.mrb[0].mxu0 %v4738
      %v4921 = vpop.f32.mrb[0].mxu0
      %v4922 = vadd.f32 0.0, %v4921
      %v4923 = vpop.f32.mrb[0].mxu0
      %v4924 = vpop.f32.mrb[0].mxu0
      %v4925 = vadd.f32 0.0, %v4924
      %v4926 = vpop.f32.mrb[0].mxu0
      %4927 = vmatprep.mubr.bf16.mxu0 0
      %4928 = vmatmul.mubr.bf16.gmra.mrb[0].mxu0 %v4741
      %v4929 = vpop.f32.mrb[0].mxu0
      %v4930 = vadd.f32 0.0, %v4929
      %v4931 = vpop.f32.mrb[0].mxu0
      %v4932 = vpop.f32.mrb[0].mxu0
      %v4933 = vadd.f32 0.0, %v4932
      %v4934 = vpop.f32.mrb[0].mxu0
      %4935 = vmatprep.mubr.bf16.mxu0 0
      %4936 = vmatmul.mubr.bf16.gmra.mrb[0].mxu0 %v4744
      %v4937 = vpop.f32.mrb[0].mxu0
      %v4938 = vadd.f32 0.0, %v4937
      %v4939 = vpop.f32.mrb[0].mxu0
      %v4940 = vpop.f32.mrb[0].mxu0
      %v4941 = vadd.f32 0.0, %v4940
      %v4942 = vpop.f32.mrb[0].mxu0
      %4943 = vmatprep.mubr.bf16.mxu0 0
      %4944 = vmatmul.mubr.bf16.gmra.mrb[0].mxu0 %v4747
      %v4945 = vpop.f32.mrb[0].mxu0
      %v4946 = vadd.f32 0.0, %v4945
      %v4947 = vpop.f32.mrb[0].mxu0
      %v4948 = vpop.f32.mrb[0].mxu0
      %v4949 = vadd.f32 0.0, %v4948
      %v4950 = vpop.f32.mrb[0].mxu0
      %4951 = vmatprep.mubr.bf16.mxu0 0
      %4952 = vmatmul.mubr.bf16.gmra.mrb[0].mxu0 %v4750
      %v4953 = vpop.f32.mrb[0].mxu0
      %v4954 = vadd.f32 0.0, %v4953
      %v4955 = vpop.f32.mrb[0].mxu0
      %v4956 = vpop.f32.mrb[0].mxu0
      %v4957 = vadd.f32 0.0, %v4956
      %v4958 = vpop.f32.mrb[0].mxu0
      %4959 = vmatprep.mubr.bf16.mxu0 0
      %4960 = vmatmul.mubr.bf16.gmra.mrb[0].mxu0 %v4753
      %v4961 = vpop.f32.mrb[0].mxu0
      %v4962 = vadd.f32 0.0, %v4961
      %v4963 = vpop.f32.mrb[0].mxu0
      %v4964 = vpop.f32.mrb[0].mxu0
      %v4965 = vadd.f32 0.0, %v4964
      %v4966 = vpop.f32.mrb[0].mxu0
      %4967 = vmatprep.mubr.bf16.mxu0 0
      %4968 = vmatmul.mubr.bf16.gmra.mrb[0].mxu0 %v4756
      %v4969 = vpop.f32.mrb[0].mxu0
      %v4970 = vadd.f32 0.0, %v4969
      %v4971 = vpop.f32.mrb[0].mxu0
      %v4972 = vpop.f32.mrb[0].mxu0
      %v4973 = vadd.f32 0.0, %v4972
      %v4974 = vpop.f32.mrb[0].mxu0
      %4975 = vmatprep.mubr.bf16.mxu0 0
      %4976 = vmatmul.mubr.bf16.gmra.mrb[0].mxu0 %v4759
      %v4977 = vpop.f32.mrb[0].mxu0
      %v4978 = vadd.f32 0.0, %v4977
      %v4979 = vpop.f32.mrb[0].mxu0
      %v4980 = vpop.f32.mrb[0].mxu0
      %v4981 = vadd.f32 0.0, %v4980
      %v4982 = vpop.f32.mrb[0].mxu0
      %4983 = vmatprep.mubr.bf16.mxu0 0
      %4984 = vmatmul.mubr.bf16.gmra.mrb[0].mxu0 %v4762
      %v4985 = vpop.f32.mrb[0].mxu0
      %v4986 = vadd.f32 0.0, %v4985
      %v4987 = vpop.f32.mrb[0].mxu0
      %v4988 = vpop.f32.mrb[0].mxu0
      %v4989 = vadd.f32 0.0, %v4988
      %v4990 = vpop.f32.mrb[0].mxu0
      %4991 = vdwg.mxu0
      %v4992 = vadd.f32 %v4589, %v4802
      %v4993 = vadd.f32 %v4590, %v4805
      %v4994 = vadd.f32 %v4591, %v4810
      %v4995 = vadd.f32 %v4592, %v4813
      %v4996 = vadd.f32 %v4593, %v4818
      %v4997 = vadd.f32 %v4594, %v4821
      %v4998 = vadd.f32 %v4595, %v4826
      %v4999 = vadd.f32 %v4596, %v4829
      %v5000 = vadd.f32 %v4597, %v4834
      %v5001 = vadd.f32 %v4598, %v4837
      %v5002 = vadd.f32 %v4599, %v4842
      %v5003 = vadd.f32 %v4600, %v4845
      %v5004 = vadd.f32 %v4601, %v4850
      %v5005 = vadd.f32 %v4602, %v4853
      %v5006 = vadd.f32 %v4603, %v4858
      %v5007 = vadd.f32 %v4604, %v4861
      %v5008 = vadd.f32 %v4605, %v4866
      %v5009 = vadd.f32 %v4606, %v4869
      %v5010 = vadd.f32 %v4607, %v4874
      %v5011 = vadd.f32 %v4608, %v4877
      %v5012 = vadd.f32 %v4609, %v4882
      %v5013 = vadd.f32 %v4610, %v4885
      %v5014 = vadd.f32 %v4611, %v4890
      %v5015 = vadd.f32 %v4612, %v4893
      %v5016 = vadd.f32 %v4613, %v4898
      %v5017 = vadd.f32 %v4614, %v4901
      %v5018 = vadd.f32 %v4615, %v4906
      %v5019 = vadd.f32 %v4616, %v4909
      %v5020 = vadd.f32 %v4617, %v4914
      %v5021 = vadd.f32 %v4618, %v4917
      %v5022 = vadd.f32 %v4619, %v4922
      %v5023 = vadd.f32 %v4620, %v4925
      %v5024 = vadd.f32 %v4621, %v4930
      %v5025 = vadd.f32 %v4622, %v4933
      %v5026 = vadd.f32 %v4623, %v4938
      %v5027 = vadd.f32 %v4624, %v4941
      %v5028 = vadd.f32 %v4625, %v4946
      %v5029 = vadd.f32 %v4626, %v4949
      %v5030 = vadd.f32 %v4627, %v4954
      %v5031 = vadd.f32 %v4628, %v4957
      %v5032 = vadd.f32 %v4629, %v4962
      %v5033 = vadd.f32 %v4630, %v4965
      %v5034 = vadd.f32 %v4631, %v4970
      %v5035 = vadd.f32 %v4632, %v4973
      %v5036 = vadd.f32 %v4633, %v4978
      %v5037 = vadd.f32 %v4634, %v4981
      %v5038 = vadd.f32 %v4635, %v4986
      %v5039 = vadd.f32 %v4636, %v4989
      %v5040 = vld [vmem:[%s2] sm:$0x1]
      %v5042 = vlaneseq
      %v5043 = vshrl.u32 %v5042, 7
      %v5044 = vsub.s32 0, %v5043
      %v5045 = vrot.slane %v5040, %v5044
      %v5047 = vadd.f32 %v4992, %v5045
      %v5048 = vadd.f32 %v4993, %v5045
      %v5049 = vadd.f32 %v4994, %v5045
      %v5050 = vadd.f32 %v4995, %v5045
      %v5051 = vadd.f32 %v4996, %v5045
      %v5052 = vadd.f32 %v4997, %v5045
      %v5053 = vadd.f32 %v4998, %v5045
      %v5054 = vadd.f32 %v4999, %v5045
      %v5055 = vadd.f32 %v5000, %v5045
      %v5056 = vadd.f32 %v5001, %v5045
      %v5057 = vadd.f32 %v5002, %v5045
      %v5058 = vadd.f32 %v5003, %v5045
      %v5059 = vadd.f32 %v5004, %v5045
      %v5060 = vadd.f32 %v5005, %v5045
      %v5061 = vadd.f32 %v5006, %v5045
      %v5062 = vadd.f32 %v5007, %v5045
      %v5063 = vadd.f32 %v5008, %v5045
      %v5064 = vadd.f32 %v5009, %v5045
      %v5065 = vadd.f32 %v5010, %v5045
      %v5066 = vadd.f32 %v5011, %v5045
      %v5067 = vadd.f32 %v5012, %v5045
      %v5068 = vadd.f32 %v5013, %v5045
      %v5069 = vadd.f32 %v5014, %v5045
      %v5070 = vadd.f32 %v5015, %v5045
      %v5071 = vadd.f32 %v5016, %v5045
      %v5072 = vadd.f32 %v5017, %v5045
      %v5073 = vadd.f32 %v5018, %v5045
      %v5074 = vadd.f32 %v5019, %v5045
      %v5075 = vadd.f32 %v5020, %v5045
      %v5076 = vadd.f32 %v5021, %v5045
      %v5077 = vadd.f32 %v5022, %v5045
      %v5078 = vadd.f32 %v5023, %v5045
      %v5079 = vadd.f32 %v5024, %v5045
      %v5080 = vadd.f32 %v5025, %v5045
      %v5081 = vadd.f32 %v5026, %v5045
      %v5082 = vadd.f32 %v5027, %v5045
      %v5083 = vadd.f32 %v5028, %v5045
      %v5084 = vadd.f32 %v5029, %v5045
      %v5085 = vadd.f32 %v5030, %v5045
      %v5086 = vadd.f32 %v5031, %v5045
      %v5087 = vadd.f32 %v5032, %v5045
      %v5088 = vadd.f32 %v5033, %v5045
      %v5089 = vadd.f32 %v5034, %v5045
      %v5090 = vadd.f32 %v5035, %v5045
      %v5091 = vadd.f32 %v5036, %v5045
      %v5092 = vadd.f32 %v5037, %v5045
      %v5093 = vadd.f32 %v5038, %v5045
      %v5094 = vadd.f32 %v5039, %v5045
      %v5095 = vmax.f32 %v5047, 0.0
      %v5096 = vmax.f32 %v5048, 0.0
      %v5097 = vmax.f32 %v5049, 0.0
      %v5098 = vmax.f32 %v5050, 0.0
      %v5099 = vmax.f32 %v5051, 0.0
      %v5100 = vmax.f32 %v5052, 0.0
      %v5101 = vmax.f32 %v5053, 0.0
      %v5102 = vmax.f32 %v5054, 0.0
      %v5103 = vmax.f32 %v5055, 0.0
      %v5104 = vmax.f32 %v5056, 0.0
      %v5105 = vmax.f32 %v5057, 0.0
      %v5106 = vmax.f32 %v5058, 0.0
      %v5107 = vmax.f32 %v5059, 0.0
      %v5108 = vmax.f32 %v5060, 0.0
      %v5109 = vmax.f32 %v5061, 0.0
      %v5110 = vmax.f32 %v5062, 0.0
      %v5111 = vmax.f32 %v5063, 0.0
      %v5112 = vmax.f32 %v5064, 0.0
      %v5113 = vmax.f32 %v5065, 0.0
      %v5114 = vmax.f32 %v5066, 0.0
      %v5115 = vmax.f32 %v5067, 0.0
      %v5116 = vmax.f32 %v5068, 0.0
      %v5117 = vmax.f32 %v5069, 0.0
      %v5118 = vmax.f32 %v5070, 0.0
      %v5119 = vmax.f32 %v5071, 0.0
      %v5120 = vmax.f32 %v5072, 0.0
      %v5121 = vmax.f32 %v5073, 0.0
      %v5122 = vmax.f32 %v5074, 0.0
      %v5123 = vmax.f32 %v5075, 0.0
      %v5124 = vmax.f32 %v5076, 0.0
      %v5125 = vmax.f32 %v5077, 0.0
      %v5126 = vmax.f32 %v5078, 0.0
      %v5127 = vmax.f32 %v5079, 0.0
      %v5128 = vmax.f32 %v5080, 0.0
      %v5129 = vmax.f32 %v5081, 0.0
      %v5130 = vmax.f32 %v5082, 0.0
      %v5131 = vmax.f32 %v5083, 0.0
      %v5132 = vmax.f32 %v5084, 0.0
      %v5133 = vmax.f32 %v5085, 0.0
      %v5134 = vmax.f32 %v5086, 0.0
      %v5135 = vmax.f32 %v5087, 0.0
      %v5136 = vmax.f32 %v5088, 0.0
      %v5137 = vmax.f32 %v5089, 0.0
      %v5138 = vmax.f32 %v5090, 0.0
      %v5139 = vmax.f32 %v5091, 0.0
      %v5140 = vmax.f32 %v5092, 0.0
      %v5141 = vmax.f32 %v5093, 0.0
      %v5142 = vmax.f32 %v5094, 0.0
      %v5143 = vpack.c.bf16 %v5096, %v5095
      %v5144 = vpack.c.bf16 %v5098, %v5097
      %v5145 = vpack.c.bf16 %v5100, %v5099
      %v5146 = vpack.c.bf16 %v5102, %v5101
      %v5147 = vpack.c.bf16 %v5104, %v5103
      %v5148 = vpack.c.bf16 %v5106, %v5105
      %v5149 = vpack.c.bf16 %v5108, %v5107
      %v5150 = vpack.c.bf16 %v5110, %v5109
      %v5151 = vpack.c.bf16 %v5112, %v5111
      %v5152 = vpack.c.bf16 %v5114, %v5113
      %v5153 = vpack.c.bf16 %v5116, %v5115
      %v5154 = vpack.c.bf16 %v5118, %v5117
      %v5155 = vpack.c.bf16 %v5120, %v5119
      %v5156 = vpack.c.bf16 %v5122, %v5121
      %v5157 = vpack.c.bf16 %v5124, %v5123
      %v5158 = vpack.c.bf16 %v5126, %v5125
      %v5159 = vpack.c.bf16 %v5128, %v5127
      %v5160 = vpack.c.bf16 %v5130, %v5129
      %v5161 = vpack.c.bf16 %v5132, %v5131
      %v5162 = vpack.c.bf16 %v5134, %v5133
      %v5163 = vpack.c.bf16 %v5136, %v5135
      %v5164 = vpack.c.bf16 %v5138, %v5137
      %v5165 = vpack.c.bf16 %v5140, %v5139
      %v5166 = vpack.c.bf16 %v5142, %v5141
      %v5167 = vld [vmem:[%s3] sm:$0xf]
      %v5168 = vld [vmem:[%s3 + $0x4] sm:$0xf]
      %v5169 = vld [vmem:[%s4] sm:$0x1]
      %v5171 = vlaneseq
      %v5172 = vshrl.u32 %v5171, 7
      %v5173 = vsub.s32 0, %v5172
      %v5174 = vrot.slane %v5169, %v5173
      %v5178 = vunpack.c.l.b16 %v5167
      %v5179 = vunpack.c.l.b16 %v5168
      %v5180 = vpack.c.b16 %v5179, %v5178
      %vm5182 = vcmask 130048
      %v5184 = vsel %vm5182, %v5143, 0
      %v5187 = vsel %vm5182, %v5144, 0
      %v5190 = vsel %vm5182, %v5145, 0
      %v5193 = vsel %vm5182, %v5146, 0
      %v5196 = vsel %vm5182, %v5147, 0
      %v5199 = vsel %vm5182, %v5148, 0
      %v5202 = vsel %vm5182, %v5149, 0
      %v5205 = vsel %vm5182, %v5150, 0
      %v5208 = vsel %vm5182, %v5151, 0
      %v5211 = vsel %vm5182, %v5152, 0
      %v5214 = vsel %vm5182, %v5153, 0
      %v5217 = vsel %vm5182, %v5154, 0
      %v5220 = vsel %vm5182, %v5155, 0
      %v5223 = vsel %vm5182, %v5156, 0
      %v5226 = vsel %vm5182, %v5157, 0
      %v5229 = vsel %vm5182, %v5158, 0
      %v5232 = vsel %vm5182, %v5159, 0
      %v5235 = vsel %vm5182, %v5160, 0
      %v5238 = vsel %vm5182, %v5161, 0
      %v5241 = vsel %vm5182, %v5162, 0
      %v5244 = vsel %vm5182, %v5163, 0
      %v5247 = vsel %vm5182, %v5164, 0
      %v5250 = vsel %vm5182, %v5165, 0
      %v5253 = vsel %vm5182, %v5166, 0
      %5255 = vmatprep.subr.bf16.mxu0 0
      %5256 = vmatpush1.bf16.msra.mxu0 %v5180
      %5257 = vmatprep.subr.bf16.mxu0 0
      %5258 = vmatpush1.bf16.msra.mxu0 0
      %5259 = vmatprep.subr.bf16.mxu0 0
      %5260 = vmatpush1.bf16.msra.mxu0 0
      %5261 = vmatprep.subr.bf16.mxu0 0
      %5262 = vmatpush1.bf16.msra.mxu0 0
      %5263 = vmatprep.subr.bf16.mxu0 0
      %5264 = vmatpush1.bf16.msra.mxu0 0
      %5265 = vmatprep.subr.bf16.mxu0 0
      %5266 = vmatpush1.bf16.msra.mxu0 0
      %5267 = vmatprep.subr.bf16.mxu0 0
      %5268 = vmatpush1.bf16.msra.mxu0 0
      %5269 = vmatprep.subr.bf16.mxu0 0
      %5270 = vmatpush1.bf16.msra.mxu0 0
      %5271 = vmatprep.subr.bf16.mxu0 0
      %5272 = vmatpush1.bf16.msra.mxu0 0
      %5273 = vmatprep.subr.bf16.mxu0 0
      %5274 = vmatpush1.bf16.msra.mxu0 0
      %5275 = vmatprep.subr.bf16.mxu0 0
      %5276 = vmatpush1.bf16.msra.mxu0 0
      %5277 = vmatprep.subr.bf16.mxu0 0
      %5278 = vmatpush1.bf16.msra.mxu0 0
      %5279 = vmatprep.subr.bf16.mxu0 0
      %5280 = vmatpush1.bf16.msra.mxu0 0
      %5281 = vmatprep.subr.bf16.mxu0 0
      %5282 = vmatpush1.bf16.msra.mxu0 0
      %5283 = vmatprep.subr.bf16.mxu0 0
      %5284 = vmatpush1.bf16.msra.mxu0 0
      %5285 = vmatprep.subr.bf16.mxu0 0
      %5286 = vmatpush1.bf16.msra.mxu0 0
      %5287 = vmatprep.mubr.bf16.mxu0 0
      %5288 = vmatmul.mubr.bf16.gmra.mrb[0].mxu0 %v5184
      %v5289 = vpop.f32.mrb[0].mxu0
      %v5290 = vadd.f32 %v5174, %v5289
      %v5291 = vpop.f32.mrb[0].mxu0
      %v5292 = vpop.f32.mrb[0].mxu0
      %v5293 = vadd.f32 %v5174, %v5292
      %v5294 = vpop.f32.mrb[0].mxu0
      %5295 = vmatprep.mubr.bf16.mxu0 0
      %5296 = vmatmul.mubr.bf16.gmra.mrb[0].mxu0 %v5187
      %v5297 = vpop.f32.mrb[0].mxu0
      %v5298 = vadd.f32 %v5174, %v5297
      %v5299 = vpop.f32.mrb[0].mxu0
      %v5300 = vpop.f32.mrb[0].mxu0
      %v5301 = vadd.f32 %v5174, %v5300
      %v5302 = vpop.f32.mrb[0].mxu0
      %5303 = vmatprep.mubr.bf16.mxu0 0
      %5304 = vmatmul.mubr.bf16.gmra.mrb[0].mxu0 %v5190
      %v5305 = vpop.f32.mrb[0].mxu0
      %v5306 = vadd.f32 %v5174, %v5305
      %v5307 = vpop.f32.mrb[0].mxu0
      %v5308 = vpop.f32.mrb[0].mxu0
      %v5309 = vadd.f32 %v5174, %v5308
      %v5310 = vpop.f32.mrb[0].mxu0
      %5311 = vmatprep.mubr.bf16.mxu0 0
      %5312 = vmatmul.mubr.bf16.gmra.mrb[0].mxu0 %v5193
      %v5313 = vpop.f32.mrb[0].mxu0
      %v5314 = vadd.f32 %v5174, %v5313
      %v5315 = vpop.f32.mrb[0].mxu0
      %v5316 = vpop.f32.mrb[0].mxu0
      %v5317 = vadd.f32 %v5174, %v5316
      %v5318 = vpop.f32.mrb[0].mxu0
      %5319 = vmatprep.mubr.bf16.mxu0 0
      %5320 = vmatmul.mubr.bf16.gmra.mrb[0].mxu0 %v5196
      %v5321 = vpop.f32.mrb[0].mxu0
      %v5322 = vadd.f32 %v5174, %v5321
      %v5323 = vpop.f32.mrb[0].mxu0
      %v5324 = vpop.f32.mrb[0].mxu0
      %v5325 = vadd.f32 %v5174, %v5324
      %v5326 = vpop.f32.mrb[0].mxu0
      %5327 = vmatprep.mubr.bf16.mxu0 0
      %5328 = vmatmul.mubr.bf16.gmra.mrb[0].mxu0 %v5199
      %v5329 = vpop.f32.mrb[0].mxu0
      %v5330 = vadd.f32 %v5174, %v5329
      %v5331 = vpop.f32.mrb[0].mxu0
      %v5332 = vpop.f32.mrb[0].mxu0
      %v5333 = vadd.f32 %v5174, %v5332
      %v5334 = vpop.f32.mrb[0].mxu0
      %5335 = vmatprep.mubr.bf16.mxu0 0
      %5336 = vmatmul.mubr.bf16.gmra.mrb[0].mxu0 %v5202
      %v5337 = vpop.f32.mrb[0].mxu0
      %v5338 = vadd.f32 %v5174, %v5337
      %v5339 = vpop.f32.mrb[0].mxu0
      %v5340 = vpop.f32.mrb[0].mxu0
      %v5341 = vadd.f32 %v5174, %v5340
      %v5342 = vpop.f32.mrb[0].mxu0
      %5343 = vmatprep.mubr.bf16.mxu0 0
      %5344 = vmatmul.mubr.bf16.gmra.mrb[0].mxu0 %v5205
      %v5345 = vpop.f32.mrb[0].mxu0
      %v5346 = vadd.f32 %v5174, %v5345
      %v5347 = vpop.f32.mrb[0].mxu0
      %v5348 = vpop.f32.mrb[0].mxu0
      %v5349 = vadd.f32 %v5174, %v5348
      %v5350 = vpop.f32.mrb[0].mxu0
      %5351 = vmatprep.mubr.bf16.mxu0 0
      %5352 = vmatmul.mubr.bf16.gmra.mrb[0].mxu0 %v5208
      %v5353 = vpop.f32.mrb[0].mxu0
      %v5354 = vadd.f32 %v5174, %v5353
      %v5355 = vpop.f32.mrb[0].mxu0
      %v5356 = vpop.f32.mrb[0].mxu0
      %v5357 = vadd.f32 %v5174, %v5356
      %v5358 = vpop.f32.mrb[0].mxu0
      %5359 = vmatprep.mubr.bf16.mxu0 0
      %5360 = vmatmul.mubr.bf16.gmra.mrb[0].mxu0 %v5211
      %v5361 = vpop.f32.mrb[0].mxu0
      %v5362 = vadd.f32 %v5174, %v5361
      %v5363 = vpop.f32.mrb[0].mxu0
      %v5364 = vpop.f32.mrb[0].mxu0
      %v5365 = vadd.f32 %v5174, %v5364
      %v5366 = vpop.f32.mrb[0].mxu0
      %5367 = vmatprep.mubr.bf16.mxu0 0
      %5368 = vmatmul.mubr.bf16.gmra.mrb[0].mxu0 %v5214
      %v5369 = vpop.f32.mrb[0].mxu0
      %v5370 = vadd.f32 %v5174, %v5369
      %v5371 = vpop.f32.mrb[0].mxu0
      %v5372 = vpop.f32.mrb[0].mxu0
      %v5373 = vadd.f32 %v5174, %v5372
      %v5374 = vpop.f32.mrb[0].mxu0
      %5375 = vmatprep.mubr.bf16.mxu0 0
      %5376 = vmatmul.mubr.bf16.gmra.mrb[0].mxu0 %v5217
      %v5377 = vpop.f32.mrb[0].mxu0
      %v5378 = vadd.f32 %v5174, %v5377
      %v5379 = vpop.f32.mrb[0].mxu0
      %v5380 = vpop.f32.mrb[0].mxu0
      %v5381 = vadd.f32 %v5174, %v5380
      %v5382 = vpop.f32.mrb[0].mxu0
      %5383 = vmatprep.mubr.bf16.mxu0 0
      %5384 = vmatmul.mubr.bf16.gmra.mrb[0].mxu0 %v5220
      %v5385 = vpop.f32.mrb[0].mxu0
      %v5386 = vadd.f32 %v5174, %v5385
      %v5387 = vpop.f32.mrb[0].mxu0
      %v5388 = vpop.f32.mrb[0].mxu0
      %v5389 = vadd.f32 %v5174, %v5388
      %v5390 = vpop.f32.mrb[0].mxu0
      %5391 = vmatprep.mubr.bf16.mxu0 0
      %5392 = vmatmul.mubr.bf16.gmra.mrb[0].mxu0 %v5223
      %v5393 = vpop.f32.mrb[0].mxu0
      %v5394 = vadd.f32 %v5174, %v5393
      %v5395 = vpop.f32.mrb[0].mxu0
      %v5396 = vpop.f32.mrb[0].mxu0
      %v5397 = vadd.f32 %v5174, %v5396
      %v5398 = vpop.f32.mrb[0].mxu0
      %5399 = vmatprep.mubr.bf16.mxu0 0
      %5400 = vmatmul.mubr.bf16.gmra.mrb[0].mxu0 %v5226
      %v5401 = vpop.f32.mrb[0].mxu0
      %v5402 = vadd.f32 %v5174, %v5401
      %v5403 = vpop.f32.mrb[0].mxu0
      %v5404 = vpop.f32.mrb[0].mxu0
      %v5405 = vadd.f32 %v5174, %v5404
      %v5406 = vpop.f32.mrb[0].mxu0
      %5407 = vmatprep.mubr.bf16.mxu0 0
      %5408 = vmatmul.mubr.bf16.gmra.mrb[0].mxu0 %v5229
      %v5409 = vpop.f32.mrb[0].mxu0
      %v5410 = vadd.f32 %v5174, %v5409
      %v5411 = vpop.f32.mrb[0].mxu0
      %v5412 = vpop.f32.mrb[0].mxu0
      %v5413 = vadd.f32 %v5174, %v5412
      %v5414 = vpop.f32.mrb[0].mxu0
      %5415 = vmatprep.mubr.bf16.mxu0 0
      %5416 = vmatmul.mubr.bf16.gmra.mrb[0].mxu0 %v5232
      %v5417 = vpop.f32.mrb[0].mxu0
      %v5418 = vadd.f32 %v5174, %v5417
      %v5419 = vpop.f32.mrb[0].mxu0
      %v5420 = vpop.f32.mrb[0].mxu0
      %v5421 = vadd.f32 %v5174, %v5420
      %v5422 = vpop.f32.mrb[0].mxu0
      %5423 = vmatprep.mubr.bf16.mxu0 0
      %5424 = vmatmul.mubr.bf16.gmra.mrb[0].mxu0 %v5235
      %v5425 = vpop.f32.mrb[0].mxu0
      %v5426 = vadd.f32 %v5174, %v5425
      %v5427 = vpop.f32.mrb[0].mxu0
      %v5428 = vpop.f32.mrb[0].mxu0
      %v5429 = vadd.f32 %v5174, %v5428
      %v5430 = vpop.f32.mrb[0].mxu0
      %5431 = vmatprep.mubr.bf16.mxu0 0
      %5432 = vmatmul.mubr.bf16.gmra.mrb[0].mxu0 %v5238
      %v5433 = vpop.f32.mrb[0].mxu0
      %v5434 = vadd.f32 %v5174, %v5433
      %v5435 = vpop.f32.mrb[0].mxu0
      %v5436 = vpop.f32.mrb[0].mxu0
      %v5437 = vadd.f32 %v5174, %v5436
      %v5438 = vpop.f32.mrb[0].mxu0
      %5439 = vmatprep.mubr.bf16.mxu0 0
      %5440 = vmatmul.mubr.bf16.gmra.mrb[0].mxu0 %v5241
      %v5441 = vpop.f32.mrb[0].mxu0
      %v5442 = vadd.f32 %v5174, %v5441
      %v5443 = vpop.f32.mrb[0].mxu0
      %v5444 = vpop.f32.mrb[0].mxu0
      %v5445 = vadd.f32 %v5174, %v5444
      %v5446 = vpop.f32.mrb[0].mxu0
      %5447 = vmatprep.mubr.bf16.mxu0 0
      %5448 = vmatmul.mubr.bf16.gmra.mrb[0].mxu0 %v5244
      %v5449 = vpop.f32.mrb[0].mxu0
      %v5450 = vadd.f32 %v5174, %v5449
      %v5451 = vpop.f32.mrb[0].mxu0
      %v5452 = vpop.f32.mrb[0].mxu0
      %v5453 = vadd.f32 %v5174, %v5452
      %v5454 = vpop.f32.mrb[0].mxu0
      %5455 = vmatprep.mubr.bf16.mxu0 0
      %5456 = vmatmul.mubr.bf16.gmra.mrb[0].mxu0 %v5247
      %v5457 = vpop.f32.mrb[0].mxu0
      %v5458 = vadd.f32 %v5174, %v5457
      %v5459 = vpop.f32.mrb[0].mxu0
      %v5460 = vpop.f32.mrb[0].mxu0
      %v5461 = vadd.f32 %v5174, %v5460
      %v5462 = vpop.f32.mrb[0].mxu0
      %5463 = vmatprep.mubr.bf16.mxu0 0
      %5464 = vmatmul.mubr.bf16.gmra.mrb[0].mxu0 %v5250
      %v5465 = vpop.f32.mrb[0].mxu0
      %v5466 = vadd.f32 %v5174, %v5465
      %v5467 = vpop.f32.mrb[0].mxu0
      %v5468 = vpop.f32.mrb[0].mxu0
      %v5469 = vadd.f32 %v5174, %v5468
      %v5470 = vpop.f32.mrb[0].mxu0
      %5471 = vmatprep.mubr.bf16.mxu0 0
      %5472 = vmatmul.mubr.bf16.gmra.mrb[0].mxu0 %v5253
      %v5473 = vpop.f32.mrb[0].mxu0
      %v5474 = vadd.f32 %v5174, %v5473
      %v5475 = vpop.f32.mrb[0].mxu0
      %v5476 = vpop.f32.mrb[0].mxu0
      %v5477 = vadd.f32 %v5174, %v5476
      %v5478 = vpop.f32.mrb[0].mxu0
      %5479 = vdwg.mxu0
      %v5480 = vmax.f32 %v5290, 0.0
      %v5481 = vmax.f32 %v5293, 0.0
      %v5482 = vmax.f32 %v5298, 0.0
      %v5483 = vmax.f32 %v5301, 0.0
      %v5484 = vmax.f32 %v5306, 0.0
      %v5485 = vmax.f32 %v5309, 0.0
      %v5486 = vmax.f32 %v5314, 0.0
      %v5487 = vmax.f32 %v5317, 0.0
      %v5488 = vmax.f32 %v5322, 0.0
      %v5489 = vmax.f32 %v5325, 0.0
      %v5490 = vmax.f32 %v5330, 0.0
      %v5491 = vmax.f32 %v5333, 0.0
      %v5492 = vmax.f32 %v5338, 0.0
      %v5493 = vmax.f32 %v5341, 0.0
      %v5494 = vmax.f32 %v5346, 0.0
      %v5495 = vmax.f32 %v5349, 0.0
      %v5496 = vmax.f32 %v5354, 0.0
      %v5497 = vmax.f32 %v5357, 0.0
      %v5498 = vmax.f32 %v5362, 0.0
      %v5499 = vmax.f32 %v5365, 0.0
      %v5500 = vmax.f32 %v5370, 0.0
      %v5501 = vmax.f32 %v5373, 0.0
      %v5502 = vmax.f32 %v5378, 0.0
      %v5503 = vmax.f32 %v5381, 0.0
      %v5504 = vmax.f32 %v5386, 0.0
      %v5505 = vmax.f32 %v5389, 0.0
      %v5506 = vmax.f32 %v5394, 0.0
      %v5507 = vmax.f32 %v5397, 0.0
      %v5508 = vmax.f32 %v5402, 0.0
      %v5509 = vmax.f32 %v5405, 0.0
      %v5510 = vmax.f32 %v5410, 0.0
      %v5511 = vmax.f32 %v5413, 0.0
      %v5512 = vmax.f32 %v5418, 0.0
      %v5513 = vmax.f32 %v5421, 0.0
      %v5514 = vmax.f32 %v5426, 0.0
      %v5515 = vmax.f32 %v5429, 0.0
      %v5516 = vmax.f32 %v5434, 0.0
      %v5517 = vmax.f32 %v5437, 0.0
      %v5518 = vmax.f32 %v5442, 0.0
      %v5519 = vmax.f32 %v5445, 0.0
      %v5520 = vmax.f32 %v5450, 0.0
      %v5521 = vmax.f32 %v5453, 0.0
      %v5522 = vmax.f32 %v5458, 0.0
      %v5523 = vmax.f32 %v5461, 0.0
      %v5524 = vmax.f32 %v5466, 0.0
      %v5525 = vmax.f32 %v5469, 0.0
      %v5526 = vmax.f32 %v5474, 0.0
      %v5527 = vmax.f32 %v5477, 0.0
      %v5528 = vlaneseq
      %v5529 = vshrl.u32 %v5528, 7
      %v5530 = vadd.s32 %v5529, 8
      %v5531 = vadd.s32 %v5529, 16
      %v5532 = vadd.s32 %v5529, 24
      %v5533 = vadd.s32 %v5529, 32
      %v5534 = vadd.s32 %v5529, 40
      %v5535 = vadd.s32 %v5529, 48
      %v5536 = vadd.s32 %v5529, 56
      %v5537 = vadd.s32 %v5529, 64
      %v5538 = vadd.s32 %v5529, 72
      %v5539 = vadd.s32 %v5529, 80
      %v5540 = vadd.s32 %v5529, 88
      %v5541 = vadd.s32 %v5529, 96
      %v5542 = vadd.s32 %v5529, 104
      %v5543 = vadd.s32 %v5529, 112
      %v5544 = vadd.s32 %v5529, 120
      %v5545 = vadd.s32 %v5529, 128
      %v5546 = vadd.s32 %v5529, 136
      %v5547 = vadd.s32 %v5529, 144
      %v5548 = vadd.s32 %v5529, 152
      %v5549 = vadd.s32 %v5529, 160
      %v5550 = vadd.s32 %v5529, 168
      %v5551 = vadd.s32 %v5529, 176
      %v5552 = vadd.s32 %v5529, 184
      %v5553 = vadd.s32 %v5529, 192
      %v5554 = vadd.s32 %v5529, 200
      %v5555 = vadd.s32 %v5529, 208
      %v5556 = vadd.s32 %v5529, 216
      %v5557 = vadd.s32 %v5529, 224
      %v5558 = vadd.s32 %v5529, 232
      %v5559 = vadd.s32 %v5529, 240
      %v5560 = vadd.s32 %v5529, 248
      %v5561 = vadd.s32 %v5529, 256
      %v5562 = vadd.s32 %v5529, 264
      %v5563 = vadd.s32 %v5529, 272
      %v5564 = vadd.s32 %v5529, 280
      %v5565 = vadd.s32 %v5529, 288
      %v5566 = vadd.s32 %v5529, 296
      %v5567 = vadd.s32 %v5529, 304
      %v5568 = vadd.s32 %v5529, 312
      %v5569 = vadd.s32 %v5529, 320
      %v5570 = vadd.s32 %v5529, 328
      %v5571 = vadd.s32 %v5529, 336
      %v5572 = vadd.s32 %v5529, 344
      %v5573 = vadd.s32 %v5529, 352
      %v5574 = vadd.s32 %v5529, 360
      %v5575 = vadd.s32 %v5529, 368
      %v5576 = vadd.s32 %v5529, 376
      %vm5577 = vcmp.lt.s32.totalorder %v5529, 0
      %v5578 = vsub.s32 0, %v5529
      %v5579 = vsel %vm5577, %v5578, %v5529
      %v5580 = vmul.u32.u64.compose %v5579, 2863311531
      %v5581 = vextract.low.u32 %v5580
      %v5582 = vextract.high.u32 %v5580
      %v5583 = vshrl.u32 %v5582, 4
      %v5584 = vmul.u32 %v5583, 24
      %v5585 = vsub.s32 %v5579, %v5584
      %v5586 = vsub.s32 0, %v5585
      %v5587 = vsel %vm5577, %v5586, %v5585
      %vm5588 = vcmp.lt.s32.totalorder %v5530, 0
      %v5589 = vsub.s32 0, %v5530
      %v5590 = vsel %vm5588, %v5589, %v5530
      %v5591 = vmul.u32.u64.compose %v5590, 2863311531
      %v5592 = vextract.low.u32 %v5591
      %v5593 = vextract.high.u32 %v5591
      %v5594 = vshrl.u32 %v5593, 4
      %v5595 = vmul.u32 %v5594, 24
      %v5596 = vsub.s32 %v5590, %v5595
      %v5597 = vsub.s32 0, %v5596
      %v5598 = vsel %vm5588, %v5597, %v5596
      %vm5599 = vcmp.lt.s32.totalorder %v5531, 0
      %v5600 = vsub.s32 0, %v5531
      %v5601 = vsel %vm5599, %v5600, %v5531
      %v5602 = vmul.u32.u64.compose %v5601, 2863311531
      %v5603 = vextract.low.u32 %v5602
      %v5604 = vextract.high.u32 %v5602
      %v5605 = vshrl.u32 %v5604, 4
      %v5606 = vmul.u32 %v5605, 24
      %v5607 = vsub.s32 %v5601, %v5606
      %v5608 = vsub.s32 0, %v5607
      %v5609 = vsel %vm5599, %v5608, %v5607
      %vm5610 = vcmp.lt.s32.totalorder %v5532, 0
      %v5611 = vsub.s32 0, %v5532
      %v5612 = vsel %vm5610, %v5611, %v5532
      %v5613 = vmul.u32.u64.compose %v5612, 2863311531
      %v5614 = vextract.low.u32 %v5613
      %v5615 = vextract.high.u32 %v5613
      %v5616 = vshrl.u32 %v5615, 4
      %v5617 = vmul.u32 %v5616, 24
      %v5618 = vsub.s32 %v5612, %v5617
      %v5619 = vsub.s32 0, %v5618
      %v5620 = vsel %vm5610, %v5619, %v5618
      %vm5621 = vcmp.lt.s32.totalorder %v5533, 0
      %v5622 = vsub.s32 0, %v5533
      %v5623 = vsel %vm5621, %v5622, %v5533
      %v5624 = vmul.u32.u64.compose %v5623, 2863311531
      %v5625 = vextract.low.u32 %v5624
      %v5626 = vextract.high.u32 %v5624
      %v5627 = vshrl.u32 %v5626, 4
      %v5628 = vmul.u32 %v5627, 24
      %v5629 = vsub.s32 %v5623, %v5628
      %v5630 = vsub.s32 0, %v5629
      %v5631 = vsel %vm5621, %v5630, %v5629
      %vm5632 = vcmp.lt.s32.totalorder %v5534, 0
      %v5633 = vsub.s32 0, %v5534
      %v5634 = vsel %vm5632, %v5633, %v5534
      %v5635 = vmul.u32.u64.compose %v5634, 2863311531
      %v5636 = vextract.low.u32 %v5635
      %v5637 = vextract.high.u32 %v5635
      %v5638 = vshrl.u32 %v5637, 4
      %v5639 = vmul.u32 %v5638, 24
      %v5640 = vsub.s32 %v5634, %v5639
      %v5641 = vsub.s32 0, %v5640
      %v5642 = vsel %vm5632, %v5641, %v5640
      %vm5643 = vcmp.lt.s32.totalorder %v5535, 0
      %v5644 = vsub.s32 0, %v5535
      %v5645 = vsel %vm5643, %v5644, %v5535
      %v5646 = vmul.u32.u64.compose %v5645, 2863311531
      %v5647 = vextract.low.u32 %v5646
      %v5648 = vextract.high.u32 %v5646
      %v5649 = vshrl.u32 %v5648, 4
      %v5650 = vmul.u32 %v5649, 24
      %v5651 = vsub.s32 %v5645, %v5650
      %v5652 = vsub.s32 0, %v5651
      %v5653 = vsel %vm5643, %v5652, %v5651
      %vm5654 = vcmp.lt.s32.totalorder %v5536, 0
      %v5655 = vsub.s32 0, %v5536
      %v5656 = vsel %vm5654, %v5655, %v5536
      %v5657 = vmul.u32.u64.compose %v5656, 2863311531
      %v5658 = vextract.low.u32 %v5657
      %v5659 = vextract.high.u32 %v5657
      %v5660 = vshrl.u32 %v5659, 4
      %v5661 = vmul.u32 %v5660, 24
      %v5662 = vsub.s32 %v5656, %v5661
      %v5663 = vsub.s32 0, %v5662
      %v5664 = vsel %vm5654, %v5663, %v5662
      %vm5665 = vcmp.lt.s32.totalorder %v5537, 0
      %v5666 = vsub.s32 0, %v5537
      %v5667 = vsel %vm5665, %v5666, %v5537
      %v5668 = vmul.u32.u64.compose %v5667, 2863311531
      %v5669 = vextract.low.u32 %v5668
      %v5670 = vextract.high.u32 %v5668
      %v5671 = vshrl.u32 %v5670, 4
      %v5672 = vmul.u32 %v5671, 24
      %v5673 = vsub.s32 %v5667, %v5672
      %v5674 = vsub.s32 0, %v5673
      %v5675 = vsel %vm5665, %v5674, %v5673
      %vm5676 = vcmp.lt.s32.totalorder %v5538, 0
      %v5677 = vsub.s32 0, %v5538
      %v5678 = vsel %vm5676, %v5677, %v5538
      %v5679 = vmul.u32.u64.compose %v5678, 2863311531
      %v5680 = vextract.low.u32 %v5679
      %v5681 = vextract.high.u32 %v5679
      %v5682 = vshrl.u32 %v5681, 4
      %v5683 = vmul.u32 %v5682, 24
      %v5684 = vsub.s32 %v5678, %v5683
      %v5685 = vsub.s32 0, %v5684
      %v5686 = vsel %vm5676, %v5685, %v5684
      %vm5687 = vcmp.lt.s32.totalorder %v5539, 0
      %v5688 = vsub.s32 0, %v5539
      %v5689 = vsel %vm5687, %v5688, %v5539
      %v5690 = vmul.u32.u64.compose %v5689, 2863311531
      %v5691 = vextract.low.u32 %v5690
      %v5692 = vextract.high.u32 %v5690
      %v5693 = vshrl.u32 %v5692, 4
      %v5694 = vmul.u32 %v5693, 24
      %v5695 = vsub.s32 %v5689, %v5694
      %v5696 = vsub.s32 0, %v5695
      %v5697 = vsel %vm5687, %v5696, %v5695
      %vm5698 = vcmp.lt.s32.totalorder %v5540, 0
      %v5699 = vsub.s32 0, %v5540
      %v5700 = vsel %vm5698, %v5699, %v5540
      %v5701 = vmul.u32.u64.compose %v5700, 2863311531
      %v5702 = vextract.low.u32 %v5701
      %v5703 = vextract.high.u32 %v5701
      %v5704 = vshrl.u32 %v5703, 4
      %v5705 = vmul.u32 %v5704, 24
      %v5706 = vsub.s32 %v5700, %v5705
      %v5707 = vsub.s32 0, %v5706
      %v5708 = vsel %vm5698, %v5707, %v5706
      %vm5709 = vcmp.lt.s32.totalorder %v5541, 0
      %v5710 = vsub.s32 0, %v5541
      %v5711 = vsel %vm5709, %v5710, %v5541
      %v5712 = vmul.u32.u64.compose %v5711, 2863311531
      %v5713 = vextract.low.u32 %v5712
      %v5714 = vextract.high.u32 %v5712
      %v5715 = vshrl.u32 %v5714, 4
      %v5716 = vmul.u32 %v5715, 24
      %v5717 = vsub.s32 %v5711, %v5716
      %v5718 = vsub.s32 0, %v5717
      %v5719 = vsel %vm5709, %v5718, %v5717
      %vm5720 = vcmp.lt.s32.totalorder %v5542, 0
      %v5721 = vsub.s32 0, %v5542
      %v5722 = vsel %vm5720, %v5721, %v5542
      %v5723 = vmul.u32.u64.compose %v5722, 2863311531
      %v5724 = vextract.low.u32 %v5723
      %v5725 = vextract.high.u32 %v5723
      %v5726 = vshrl.u32 %v5725, 4
      %v5727 = vmul.u32 %v5726, 24
      %v5728 = vsub.s32 %v5722, %v5727
      %v5729 = vsub.s32 0, %v5728
      %v5730 = vsel %vm5720, %v5729, %v5728
      %vm5731 = vcmp.lt.s32.totalorder %v5543, 0
      %v5732 = vsub.s32 0, %v5543
      %v5733 = vsel %vm5731, %v5732, %v5543
      %v5734 = vmul.u32.u64.compose %v5733, 2863311531
      %v5735 = vextract.low.u32 %v5734
      %v5736 = vextract.high.u32 %v5734
      %v5737 = vshrl.u32 %v5736, 4
      %v5738 = vmul.u32 %v5737, 24
      %v5739 = vsub.s32 %v5733, %v5738
      %v5740 = vsub.s32 0, %v5739
      %v5741 = vsel %vm5731, %v5740, %v5739
      %vm5742 = vcmp.lt.s32.totalorder %v5544, 0
      %v5743 = vsub.s32 0, %v5544
      %v5744 = vsel %vm5742, %v5743, %v5544
      %v5745 = vmul.u32.u64.compose %v5744, 2863311531
      %v5746 = vextract.low.u32 %v5745
      %v5747 = vextract.high.u32 %v5745
      %v5748 = vshrl.u32 %v5747, 4
      %v5749 = vmul.u32 %v5748, 24
      %v5750 = vsub.s32 %v5744, %v5749
      %v5751 = vsub.s32 0, %v5750
      %v5752 = vsel %vm5742, %v5751, %v5750
      %vm5753 = vcmp.lt.s32.totalorder %v5545, 0
      %v5754 = vsub.s32 0, %v5545
      %v5755 = vsel %vm5753, %v5754, %v5545
      %v5756 = vmul.u32.u64.compose %v5755, 2863311531
      %v5757 = vextract.low.u32 %v5756
      %v5758 = vextract.high.u32 %v5756
      %v5759 = vshrl.u32 %v5758, 4
      %v5760 = vmul.u32 %v5759, 24
      %v5761 = vsub.s32 %v5755, %v5760
      %v5762 = vsub.s32 0, %v5761
      %v5763 = vsel %vm5753, %v5762, %v5761
      %vm5764 = vcmp.lt.s32.totalorder %v5546, 0
      %v5765 = vsub.s32 0, %v5546
      %v5766 = vsel %vm5764, %v5765, %v5546
      %v5767 = vmul.u32.u64.compose %v5766, 2863311531
      %v5768 = vextract.low.u32 %v5767
      %v5769 = vextract.high.u32 %v5767
      %v5770 = vshrl.u32 %v5769, 4
      %v5771 = vmul.u32 %v5770, 24
      %v5772 = vsub.s32 %v5766, %v5771
      %v5773 = vsub.s32 0, %v5772
      %v5774 = vsel %vm5764, %v5773, %v5772
      %vm5775 = vcmp.lt.s32.totalorder %v5547, 0
      %v5776 = vsub.s32 0, %v5547
      %v5777 = vsel %vm5775, %v5776, %v5547
      %v5778 = vmul.u32.u64.compose %v5777, 2863311531
      %v5779 = vextract.low.u32 %v5778
      %v5780 = vextract.high.u32 %v5778
      %v5781 = vshrl.u32 %v5780, 4
      %v5782 = vmul.u32 %v5781, 24
      %v5783 = vsub.s32 %v5777, %v5782
      %v5784 = vsub.s32 0, %v5783
      %v5785 = vsel %vm5775, %v5784, %v5783
      %vm5786 = vcmp.lt.s32.totalorder %v5548, 0
      %v5787 = vsub.s32 0, %v5548
      %v5788 = vsel %vm5786, %v5787, %v5548
      %v5789 = vmul.u32.u64.compose %v5788, 2863311531
      %v5790 = vextract.low.u32 %v5789
      %v5791 = vextract.high.u32 %v5789
      %v5792 = vshrl.u32 %v5791, 4
      %v5793 = vmul.u32 %v5792, 24
      %v5794 = vsub.s32 %v5788, %v5793
      %v5795 = vsub.s32 0, %v5794
      %v5796 = vsel %vm5786, %v5795, %v5794
      %vm5797 = vcmp.lt.s32.totalorder %v5549, 0
      %v5798 = vsub.s32 0, %v5549
      %v5799 = vsel %vm5797, %v5798, %v5549
      %v5800 = vmul.u32.u64.compose %v5799, 2863311531
      %v5801 = vextract.low.u32 %v5800
      %v5802 = vextract.high.u32 %v5800
      %v5803 = vshrl.u32 %v5802, 4
      %v5804 = vmul.u32 %v5803, 24
      %v5805 = vsub.s32 %v5799, %v5804
      %v5806 = vsub.s32 0, %v5805
      %v5807 = vsel %vm5797, %v5806, %v5805
      %vm5808 = vcmp.lt.s32.totalorder %v5550, 0
      %v5809 = vsub.s32 0, %v5550
      %v5810 = vsel %vm5808, %v5809, %v5550
      %v5811 = vmul.u32.u64.compose %v5810, 2863311531
      %v5812 = vextract.low.u32 %v5811
      %v5813 = vextract.high.u32 %v5811
      %v5814 = vshrl.u32 %v5813, 4
      %v5815 = vmul.u32 %v5814, 24
      %v5816 = vsub.s32 %v5810, %v5815
      %v5817 = vsub.s32 0, %v5816
      %v5818 = vsel %vm5808, %v5817, %v5816
      %vm5819 = vcmp.lt.s32.totalorder %v5551, 0
      %v5820 = vsub.s32 0, %v5551
      %v5821 = vsel %vm5819, %v5820, %v5551
      %v5822 = vmul.u32.u64.compose %v5821, 2863311531
      %v5823 = vextract.low.u32 %v5822
      %v5824 = vextract.high.u32 %v5822
      %v5825 = vshrl.u32 %v5824, 4
      %v5826 = vmul.u32 %v5825, 24
      %v5827 = vsub.s32 %v5821, %v5826
      %v5828 = vsub.s32 0, %v5827
      %v5829 = vsel %vm5819, %v5828, %v5827
      %vm5830 = vcmp.lt.s32.totalorder %v5552, 0
      %v5831 = vsub.s32 0, %v5552
      %v5832 = vsel %vm5830, %v5831, %v5552
      %v5833 = vmul.u32.u64.compose %v5832, 2863311531
      %v5834 = vextract.low.u32 %v5833
      %v5835 = vextract.high.u32 %v5833
      %v5836 = vshrl.u32 %v5835, 4
      %v5837 = vmul.u32 %v5836, 24
      %v5838 = vsub.s32 %v5832, %v5837
      %v5839 = vsub.s32 0, %v5838
      %v5840 = vsel %vm5830, %v5839, %v5838
      %vm5841 = vcmp.lt.s32.totalorder %v5553, 0
      %v5842 = vsub.s32 0, %v5553
      %v5843 = vsel %vm5841, %v5842, %v5553
      %v5844 = vmul.u32.u64.compose %v5843, 2863311531
      %v5845 = vextract.low.u32 %v5844
      %v5846 = vextract.high.u32 %v5844
      %v5847 = vshrl.u32 %v5846, 4
      %v5848 = vmul.u32 %v5847, 24
      %v5849 = vsub.s32 %v5843, %v5848
      %v5850 = vsub.s32 0, %v5849
      %v5851 = vsel %vm5841, %v5850, %v5849
      %vm5852 = vcmp.lt.s32.totalorder %v5554, 0
      %v5853 = vsub.s32 0, %v5554
      %v5854 = vsel %vm5852, %v5853, %v5554
      %v5855 = vmul.u32.u64.compose %v5854, 2863311531
      %v5856 = vextract.low.u32 %v5855
      %v5857 = vextract.high.u32 %v5855
      %v5858 = vshrl.u32 %v5857, 4
      %v5859 = vmul.u32 %v5858, 24
      %v5860 = vsub.s32 %v5854, %v5859
      %v5861 = vsub.s32 0, %v5860
      %v5862 = vsel %vm5852, %v5861, %v5860
      %vm5863 = vcmp.lt.s32.totalorder %v5555, 0
      %v5864 = vsub.s32 0, %v5555
      %v5865 = vsel %vm5863, %v5864, %v5555
      %v5866 = vmul.u32.u64.compose %v5865, 2863311531
      %v5867 = vextract.low.u32 %v5866
      %v5868 = vextract.high.u32 %v5866
      %v5869 = vshrl.u32 %v5868, 4
      %v5870 = vmul.u32 %v5869, 24
      %v5871 = vsub.s32 %v5865, %v5870
      %v5872 = vsub.s32 0, %v5871
      %v5873 = vsel %vm5863, %v5872, %v5871
      %vm5874 = vcmp.lt.s32.totalorder %v5556, 0
      %v5875 = vsub.s32 0, %v5556
      %v5876 = vsel %vm5874, %v5875, %v5556
      %v5877 = vmul.u32.u64.compose %v5876, 2863311531
      %v5878 = vextract.low.u32 %v5877
      %v5879 = vextract.high.u32 %v5877
      %v5880 = vshrl.u32 %v5879, 4
      %v5881 = vmul.u32 %v5880, 24
      %v5882 = vsub.s32 %v5876, %v5881
      %v5883 = vsub.s32 0, %v5882
      %v5884 = vsel %vm5874, %v5883, %v5882
      %vm5885 = vcmp.lt.s32.totalorder %v5557, 0
      %v5886 = vsub.s32 0, %v5557
      %v5887 = vsel %vm5885, %v5886, %v5557
      %v5888 = vmul.u32.u64.compose %v5887, 2863311531
      %v5889 = vextract.low.u32 %v5888
      %v5890 = vextract.high.u32 %v5888
      %v5891 = vshrl.u32 %v5890, 4
      %v5892 = vmul.u32 %v5891, 24
      %v5893 = vsub.s32 %v5887, %v5892
      %v5894 = vsub.s32 0, %v5893
      %v5895 = vsel %vm5885, %v5894, %v5893
      %vm5896 = vcmp.lt.s32.totalorder %v5558, 0
      %v5897 = vsub.s32 0, %v5558
      %v5898 = vsel %vm5896, %v5897, %v5558
      %v5899 = vmul.u32.u64.compose %v5898, 2863311531
      %v5900 = vextract.low.u32 %v5899
      %v5901 = vextract.high.u32 %v5899
      %v5902 = vshrl.u32 %v5901, 4
      %v5903 = vmul.u32 %v5902, 24
      %v5904 = vsub.s32 %v5898, %v5903
      %v5905 = vsub.s32 0, %v5904
      %v5906 = vsel %vm5896, %v5905, %v5904
      %vm5907 = vcmp.lt.s32.totalorder %v5559, 0
      %v5908 = vsub.s32 0, %v5559
      %v5909 = vsel %vm5907, %v5908, %v5559
      %v5910 = vmul.u32.u64.compose %v5909, 2863311531
      %v5911 = vextract.low.u32 %v5910
      %v5912 = vextract.high.u32 %v5910
      %v5913 = vshrl.u32 %v5912, 4
      %v5914 = vmul.u32 %v5913, 24
      %v5915 = vsub.s32 %v5909, %v5914
      %v5916 = vsub.s32 0, %v5915
      %v5917 = vsel %vm5907, %v5916, %v5915
      %vm5918 = vcmp.lt.s32.totalorder %v5560, 0
      %v5919 = vsub.s32 0, %v5560
      %v5920 = vsel %vm5918, %v5919, %v5560
      %v5921 = vmul.u32.u64.compose %v5920, 2863311531
      %v5922 = vextract.low.u32 %v5921
      %v5923 = vextract.high.u32 %v5921
      %v5924 = vshrl.u32 %v5923, 4
      %v5925 = vmul.u32 %v5924, 24
      %v5926 = vsub.s32 %v5920, %v5925
      %v5927 = vsub.s32 0, %v5926
      %v5928 = vsel %vm5918, %v5927, %v5926
      %vm5929 = vcmp.lt.s32.totalorder %v5561, 0
      %v5930 = vsub.s32 0, %v5561
      %v5931 = vsel %vm5929, %v5930, %v5561
      %v5932 = vmul.u32.u64.compose %v5931, 2863311531
      %v5933 = vextract.low.u32 %v5932
      %v5934 = vextract.high.u32 %v5932
      %v5935 = vshrl.u32 %v5934, 4
      %v5936 = vmul.u32 %v5935, 24
      %v5937 = vsub.s32 %v5931, %v5936
      %v5938 = vsub.s32 0, %v5937
      %v5939 = vsel %vm5929, %v5938, %v5937
      %vm5940 = vcmp.lt.s32.totalorder %v5562, 0
      %v5941 = vsub.s32 0, %v5562
      %v5942 = vsel %vm5940, %v5941, %v5562
      %v5943 = vmul.u32.u64.compose %v5942, 2863311531
      %v5944 = vextract.low.u32 %v5943
      %v5945 = vextract.high.u32 %v5943
      %v5946 = vshrl.u32 %v5945, 4
      %v5947 = vmul.u32 %v5946, 24
      %v5948 = vsub.s32 %v5942, %v5947
      %v5949 = vsub.s32 0, %v5948
      %v5950 = vsel %vm5940, %v5949, %v5948
      %vm5951 = vcmp.lt.s32.totalorder %v5563, 0
      %v5952 = vsub.s32 0, %v5563
      %v5953 = vsel %vm5951, %v5952, %v5563
      %v5954 = vmul.u32.u64.compose %v5953, 2863311531
      %v5955 = vextract.low.u32 %v5954
      %v5956 = vextract.high.u32 %v5954
      %v5957 = vshrl.u32 %v5956, 4
      %v5958 = vmul.u32 %v5957, 24
      %v5959 = vsub.s32 %v5953, %v5958
      %v5960 = vsub.s32 0, %v5959
      %v5961 = vsel %vm5951, %v5960, %v5959
      %vm5962 = vcmp.lt.s32.totalorder %v5564, 0
      %v5963 = vsub.s32 0, %v5564
      %v5964 = vsel %vm5962, %v5963, %v5564
      %v5965 = vmul.u32.u64.compose %v5964, 2863311531
      %v5966 = vextract.low.u32 %v5965
      %v5967 = vextract.high.u32 %v5965
      %v5968 = vshrl.u32 %v5967, 4
      %v5969 = vmul.u32 %v5968, 24
      %v5970 = vsub.s32 %v5964, %v5969
      %v5971 = vsub.s32 0, %v5970
      %v5972 = vsel %vm5962, %v5971, %v5970
      %vm5973 = vcmp.lt.s32.totalorder %v5565, 0
      %v5974 = vsub.s32 0, %v5565
      %v5975 = vsel %vm5973, %v5974, %v5565
      %v5976 = vmul.u32.u64.compose %v5975, 2863311531
      %v5977 = vextract.low.u32 %v5976
      %v5978 = vextract.high.u32 %v5976
      %v5979 = vshrl.u32 %v5978, 4
      %v5980 = vmul.u32 %v5979, 24
      %v5981 = vsub.s32 %v5975, %v5980
      %v5982 = vsub.s32 0, %v5981
      %v5983 = vsel %vm5973, %v5982, %v5981
      %vm5984 = vcmp.lt.s32.totalorder %v5566, 0
      %v5985 = vsub.s32 0, %v5566
      %v5986 = vsel %vm5984, %v5985, %v5566
      %v5987 = vmul.u32.u64.compose %v5986, 2863311531
      %v5988 = vextract.low.u32 %v5987
      %v5989 = vextract.high.u32 %v5987
      %v5990 = vshrl.u32 %v5989, 4
      %v5991 = vmul.u32 %v5990, 24
      %v5992 = vsub.s32 %v5986, %v5991
      %v5993 = vsub.s32 0, %v5992
      %v5994 = vsel %vm5984, %v5993, %v5992
      %vm5995 = vcmp.lt.s32.totalorder %v5567, 0
      %v5996 = vsub.s32 0, %v5567
      %v5997 = vsel %vm5995, %v5996, %v5567
      %v5998 = vmul.u32.u64.compose %v5997, 2863311531
      %v5999 = vextract.low.u32 %v5998
      %v6000 = vextract.high.u32 %v5998
      %v6001 = vshrl.u32 %v6000, 4
      %v6002 = vmul.u32 %v6001, 24
      %v6003 = vsub.s32 %v5997, %v6002
      %v6004 = vsub.s32 0, %v6003
      %v6005 = vsel %vm5995, %v6004, %v6003
      %vm6006 = vcmp.lt.s32.totalorder %v5568, 0
      %v6007 = vsub.s32 0, %v5568
      %v6008 = vsel %vm6006, %v6007, %v5568
      %v6009 = vmul.u32.u64.compose %v6008, 2863311531
      %v6010 = vextract.low.u32 %v6009
      %v6011 = vextract.high.u32 %v6009
      %v6012 = vshrl.u32 %v6011, 4
      %v6013 = vmul.u32 %v6012, 24
      %v6014 = vsub.s32 %v6008, %v6013
      %v6015 = vsub.s32 0, %v6014
      %v6016 = vsel %vm6006, %v6015, %v6014
      %vm6017 = vcmp.lt.s32.totalorder %v5569, 0
      %v6018 = vsub.s32 0, %v5569
      %v6019 = vsel %vm6017, %v6018, %v5569
      %v6020 = vmul.u32.u64.compose %v6019, 2863311531
      %v6021 = vextract.low.u32 %v6020
      %v6022 = vextract.high.u32 %v6020
      %v6023 = vshrl.u32 %v6022, 4
      %v6024 = vmul.u32 %v6023, 24
      %v6025 = vsub.s32 %v6019, %v6024
      %v6026 = vsub.s32 0, %v6025
      %v6027 = vsel %vm6017, %v6026, %v6025
      %vm6028 = vcmp.lt.s32.totalorder %v5570, 0
      %v6029 = vsub.s32 0, %v5570
      %v6030 = vsel %vm6028, %v6029, %v5570
      %v6031 = vmul.u32.u64.compose %v6030, 2863311531
      %v6032 = vextract.low.u32 %v6031
      %v6033 = vextract.high.u32 %v6031
      %v6034 = vshrl.u32 %v6033, 4
      %v6035 = vmul.u32 %v6034, 24
      %v6036 = vsub.s32 %v6030, %v6035
      %v6037 = vsub.s32 0, %v6036
      %v6038 = vsel %vm6028, %v6037, %v6036
      %vm6039 = vcmp.lt.s32.totalorder %v5571, 0
      %v6040 = vsub.s32 0, %v5571
      %v6041 = vsel %vm6039, %v6040, %v5571
      %v6042 = vmul.u32.u64.compose %v6041, 2863311531
      %v6043 = vextract.low.u32 %v6042
      %v6044 = vextract.high.u32 %v6042
      %v6045 = vshrl.u32 %v6044, 4
      %v6046 = vmul.u32 %v6045, 24
      %v6047 = vsub.s32 %v6041, %v6046
      %v6048 = vsub.s32 0, %v6047
      %v6049 = vsel %vm6039, %v6048, %v6047
      %vm6050 = vcmp.lt.s32.totalorder %v5572, 0
      %v6051 = vsub.s32 0, %v5572
      %v6052 = vsel %vm6050, %v6051, %v5572
      %v6053 = vmul.u32.u64.compose %v6052, 2863311531
      %v6054 = vextract.low.u32 %v6053
      %v6055 = vextract.high.u32 %v6053
      %v6056 = vshrl.u32 %v6055, 4
      %v6057 = vmul.u32 %v6056, 24
      %v6058 = vsub.s32 %v6052, %v6057
      %v6059 = vsub.s32 0, %v6058
      %v6060 = vsel %vm6050, %v6059, %v6058
      %vm6061 = vcmp.lt.s32.totalorder %v5573, 0
      %v6062 = vsub.s32 0, %v5573
      %v6063 = vsel %vm6061, %v6062, %v5573
      %v6064 = vmul.u32.u64.compose %v6063, 2863311531
      %v6065 = vextract.low.u32 %v6064
      %v6066 = vextract.high.u32 %v6064
      %v6067 = vshrl.u32 %v6066, 4
      %v6068 = vmul.u32 %v6067, 24
      %v6069 = vsub.s32 %v6063, %v6068
      %v6070 = vsub.s32 0, %v6069
      %v6071 = vsel %vm6061, %v6070, %v6069
      %vm6072 = vcmp.lt.s32.totalorder %v5574, 0
      %v6073 = vsub.s32 0, %v5574
      %v6074 = vsel %vm6072, %v6073, %v5574
      %v6075 = vmul.u32.u64.compose %v6074, 2863311531
      %v6076 = vextract.low.u32 %v6075
      %v6077 = vextract.high.u32 %v6075
      %v6078 = vshrl.u32 %v6077, 4
      %v6079 = vmul.u32 %v6078, 24
      %v6080 = vsub.s32 %v6074, %v6079
      %v6081 = vsub.s32 0, %v6080
      %v6082 = vsel %vm6072, %v6081, %v6080
      %vm6083 = vcmp.lt.s32.totalorder %v5575, 0
      %v6084 = vsub.s32 0, %v5575
      %v6085 = vsel %vm6083, %v6084, %v5575
      %v6086 = vmul.u32.u64.compose %v6085, 2863311531
      %v6087 = vextract.low.u32 %v6086
      %v6088 = vextract.high.u32 %v6086
      %v6089 = vshrl.u32 %v6088, 4
      %v6090 = vmul.u32 %v6089, 24
      %v6091 = vsub.s32 %v6085, %v6090
      %v6092 = vsub.s32 0, %v6091
      %v6093 = vsel %vm6083, %v6092, %v6091
      %vm6094 = vcmp.lt.s32.totalorder %v5576, 0
      %v6095 = vsub.s32 0, %v5576
      %v6096 = vsel %vm6094, %v6095, %v5576
      %v6097 = vmul.u32.u64.compose %v6096, 2863311531
      %v6098 = vextract.low.u32 %v6097
      %v6099 = vextract.high.u32 %v6097
      %v6100 = vshrl.u32 %v6099, 4
      %v6101 = vmul.u32 %v6100, 24
      %v6102 = vsub.s32 %v6096, %v6101
      %v6103 = vsub.s32 0, %v6102
      %v6104 = vsel %vm6094, %v6103, %v6102
      %vm6105 = vcmp.ne.s32.totalorder %v5587, 0
      %vm6106 = vcmp.ne.s32.totalorder %v5598, 0
      %vm6107 = vcmp.ne.s32.totalorder %v5609, 0
      %vm6108 = vcmp.ne.s32.totalorder %v5620, 0
      %vm6109 = vcmp.ne.s32.totalorder %v5631, 0
      %vm6110 = vcmp.ne.s32.totalorder %v5642, 0
      %vm6111 = vcmp.ne.s32.totalorder %v5653, 0
      %vm6112 = vcmp.ne.s32.totalorder %v5664, 0
      %vm6113 = vcmp.ne.s32.totalorder %v5675, 0
      %vm6114 = vcmp.ne.s32.totalorder %v5686, 0
      %vm6115 = vcmp.ne.s32.totalorder %v5697, 0
      %vm6116 = vcmp.ne.s32.totalorder %v5708, 0
      %vm6117 = vcmp.ne.s32.totalorder %v5719, 0
      %vm6118 = vcmp.ne.s32.totalorder %v5730, 0
      %vm6119 = vcmp.ne.s32.totalorder %v5741, 0
      %vm6120 = vcmp.ne.s32.totalorder %v5752, 0
      %vm6121 = vcmp.ne.s32.totalorder %v5763, 0
      %vm6122 = vcmp.ne.s32.totalorder %v5774, 0
      %vm6123 = vcmp.ne.s32.totalorder %v5785, 0
      %vm6124 = vcmp.ne.s32.totalorder %v5796, 0
      %vm6125 = vcmp.ne.s32.totalorder %v5807, 0
      %vm6126 = vcmp.ne.s32.totalorder %v5818, 0
      %vm6127 = vcmp.ne.s32.totalorder %v5829, 0
      %vm6128 = vcmp.ne.s32.totalorder %v5840, 0
      %vm6129 = vcmp.ne.s32.totalorder %v5851, 0
      %vm6130 = vcmp.ne.s32.totalorder %v5862, 0
      %vm6131 = vcmp.ne.s32.totalorder %v5873, 0
      %vm6132 = vcmp.ne.s32.totalorder %v5884, 0
      %vm6133 = vcmp.ne.s32.totalorder %v5895, 0
      %vm6134 = vcmp.ne.s32.totalorder %v5906, 0
      %vm6135 = vcmp.ne.s32.totalorder %v5917, 0
      %vm6136 = vcmp.ne.s32.totalorder %v5928, 0
      %vm6137 = vcmp.ne.s32.totalorder %v5939, 0
      %vm6138 = vcmp.ne.s32.totalorder %v5950, 0
      %vm6139 = vcmp.ne.s32.totalorder %v5961, 0
      %vm6140 = vcmp.ne.s32.totalorder %v5972, 0
      %vm6141 = vcmp.ne.s32.totalorder %v5983, 0
      %vm6142 = vcmp.ne.s32.totalorder %v5994, 0
      %vm6143 = vcmp.ne.s32.totalorder %v6005, 0
      %vm6144 = vcmp.ne.s32.totalorder %v6016, 0
      %vm6145 = vcmp.ne.s32.totalorder %v6027, 0
      %vm6146 = vcmp.ne.s32.totalorder %v6038, 0
      %vm6147 = vcmp.ne.s32.totalorder %v6049, 0
      %vm6148 = vcmp.ne.s32.totalorder %v6060, 0
      %vm6149 = vcmp.ne.s32.totalorder %v6071, 0
      %vm6150 = vcmp.ne.s32.totalorder %v6082, 0
      %vm6151 = vcmp.ne.s32.totalorder %v6093, 0
      %vm6152 = vcmp.ne.s32.totalorder %v6104, 0
      %vm6153 = vcmp.lt.s32.totalorder %v5587, 0
      %vm6154 = vcmp.lt.s32.totalorder %v5598, 0
      %vm6155 = vcmp.lt.s32.totalorder %v5609, 0
      %vm6156 = vcmp.lt.s32.totalorder %v5620, 0
      %vm6157 = vcmp.lt.s32.totalorder %v5631, 0
      %vm6158 = vcmp.lt.s32.totalorder %v5642, 0
      %vm6159 = vcmp.lt.s32.totalorder %v5653, 0
      %vm6160 = vcmp.lt.s32.totalorder %v5664, 0
      %vm6161 = vcmp.lt.s32.totalorder %v5675, 0
      %vm6162 = vcmp.lt.s32.totalorder %v5686, 0
      %vm6163 = vcmp.lt.s32.totalorder %v5697, 0
      %vm6164 = vcmp.lt.s32.totalorder %v5708, 0
      %vm6165 = vcmp.lt.s32.totalorder %v5719, 0
      %vm6166 = vcmp.lt.s32.totalorder %v5730, 0
      %vm6167 = vcmp.lt.s32.totalorder %v5741, 0
      %vm6168 = vcmp.lt.s32.totalorder %v5752, 0
      %vm6169 = vcmp.lt.s32.totalorder %v5763, 0
      %vm6170 = vcmp.lt.s32.totalorder %v5774, 0
      %vm6171 = vcmp.lt.s32.totalorder %v5785, 0
      %vm6172 = vcmp.lt.s32.totalorder %v5796, 0
      %vm6173 = vcmp.lt.s32.totalorder %v5807, 0
      %vm6174 = vcmp.lt.s32.totalorder %v5818, 0
      %vm6175 = vcmp.lt.s32.totalorder %v5829, 0
      %vm6176 = vcmp.lt.s32.totalorder %v5840, 0
      %vm6177 = vcmp.lt.s32.totalorder %v5851, 0
      %vm6178 = vcmp.lt.s32.totalorder %v5862, 0
      %vm6179 = vcmp.lt.s32.totalorder %v5873, 0
      %vm6180 = vcmp.lt.s32.totalorder %v5884, 0
      %vm6181 = vcmp.lt.s32.totalorder %v5895, 0
      %vm6182 = vcmp.lt.s32.totalorder %v5906, 0
      %vm6183 = vcmp.lt.s32.totalorder %v5917, 0
      %vm6184 = vcmp.lt.s32.totalorder %v5928, 0
      %vm6185 = vcmp.lt.s32.totalorder %v5939, 0
      %vm6186 = vcmp.lt.s32.totalorder %v5950, 0
      %vm6187 = vcmp.lt.s32.totalorder %v5961, 0
      %vm6188 = vcmp.lt.s32.totalorder %v5972, 0
      %vm6189 = vcmp.lt.s32.totalorder %v5983, 0
      %vm6190 = vcmp.lt.s32.totalorder %v5994, 0
      %vm6191 = vcmp.lt.s32.totalorder %v6005, 0
      %vm6192 = vcmp.lt.s32.totalorder %v6016, 0
      %vm6193 = vcmp.lt.s32.totalorder %v6027, 0
      %vm6194 = vcmp.lt.s32.totalorder %v6038, 0
      %vm6195 = vcmp.lt.s32.totalorder %v6049, 0
      %vm6196 = vcmp.lt.s32.totalorder %v6060, 0
      %vm6197 = vcmp.lt.s32.totalorder %v6071, 0
      %vm6198 = vcmp.lt.s32.totalorder %v6082, 0
      %vm6199 = vcmp.lt.s32.totalorder %v6093, 0
      %vm6200 = vcmp.lt.s32.totalorder %v6104, 0
      %vm6201 = vmand %vm6153, %vm6105
      %vm6202 = vmand %vm6154, %vm6106
      %vm6203 = vmand %vm6155, %vm6107
      %vm6204 = vmand %vm6156, %vm6108
      %vm6205 = vmand %vm6157, %vm6109
      %vm6206 = vmand %vm6158, %vm6110
      %vm6207 = vmand %vm6159, %vm6111
      %vm6208 = vmand %vm6160, %vm6112
      %vm6209 = vmand %vm6161, %vm6113
      %vm6210 = vmand %vm6162, %vm6114
      %vm6211 = vmand %vm6163, %vm6115
      %vm6212 = vmand %vm6164, %vm6116
      %vm6213 = vmand %vm6165, %vm6117
      %vm6214 = vmand %vm6166, %vm6118
      %vm6215 = vmand %vm6167, %vm6119
      %vm6216 = vmand %vm6168, %vm6120
      %vm6217 = vmand %vm6169, %vm6121
      %vm6218 = vmand %vm6170, %vm6122
      %vm6219 = vmand %vm6171, %vm6123
      %vm6220 = vmand %vm6172, %vm6124
      %vm6221 = vmand %vm6173, %vm6125
      %vm6222 = vmand %vm6174, %vm6126
      %vm6223 = vmand %vm6175, %vm6127
      %vm6224 = vmand %vm6176, %vm6128
      %vm6225 = vmand %vm6177, %vm6129
      %vm6226 = vmand %vm6178, %vm6130
      %vm6227 = vmand %vm6179, %vm6131
      %vm6228 = vmand %vm6180, %vm6132
      %vm6229 = vmand %vm6181, %vm6133
      %vm6230 = vmand %vm6182, %vm6134
      %vm6231 = vmand %vm6183, %vm6135
      %vm6232 = vmand %vm6184, %vm6136
      %vm6233 = vmand %vm6185, %vm6137
      %vm6234 = vmand %vm6186, %vm6138
      %vm6235 = vmand %vm6187, %vm6139
      %vm6236 = vmand %vm6188, %vm6140
      %vm6237 = vmand %vm6189, %vm6141
      %vm6238 = vmand %vm6190, %vm6142
      %vm6239 = vmand %vm6191, %vm6143
      %vm6240 = vmand %vm6192, %vm6144
      %vm6241 = vmand %vm6193, %vm6145
      %vm6242 = vmand %vm6194, %vm6146
      %vm6243 = vmand %vm6195, %vm6147
      %vm6244 = vmand %vm6196, %vm6148
      %vm6245 = vmand %vm6197, %vm6149
      %vm6246 = vmand %vm6198, %vm6150
      %vm6247 = vmand %vm6199, %vm6151
      %vm6248 = vmand %vm6200, %vm6152
      %v6249 = vadd.s32 %v5587, 24
      %v6250 = vadd.s32 %v5598, 24
      %v6251 = vadd.s32 %v5609, 24
      %v6252 = vadd.s32 %v5620, 24
      %v6253 = vadd.s32 %v5631, 24
      %v6254 = vadd.s32 %v5642, 24
      %v6255 = vadd.s32 %v5653, 24
      %v6256 = vadd.s32 %v5664, 24
      %v6257 = vadd.s32 %v5675, 24
      %v6258 = vadd.s32 %v5686, 24
      %v6259 = vadd.s32 %v5697, 24
      %v6260 = vadd.s32 %v5708, 24
      %v6261 = vadd.s32 %v5719, 24
      %v6262 = vadd.s32 %v5730, 24
      %v6263 = vadd.s32 %v5741, 24
      %v6264 = vadd.s32 %v5752, 24
      %v6265 = vadd.s32 %v5763, 24
      %v6266 = vadd.s32 %v5774, 24
      %v6267 = vadd.s32 %v5785, 24
      %v6268 = vadd.s32 %v5796, 24
      %v6269 = vadd.s32 %v5807, 24
      %v6270 = vadd.s32 %v5818, 24
      %v6271 = vadd.s32 %v5829, 24
      %v6272 = vadd.s32 %v5840, 24
      %v6273 = vadd.s32 %v5851, 24
      %v6274 = vadd.s32 %v5862, 24
      %v6275 = vadd.s32 %v5873, 24
      %v6276 = vadd.s32 %v5884, 24
      %v6277 = vadd.s32 %v5895, 24
      %v6278 = vadd.s32 %v5906, 24
      %v6279 = vadd.s32 %v5917, 24
      %v6280 = vadd.s32 %v5928, 24
      %v6281 = vadd.s32 %v5939, 24
      %v6282 = vadd.s32 %v5950, 24
      %v6283 = vadd.s32 %v5961, 24
      %v6284 = vadd.s32 %v5972, 24
      %v6285 = vadd.s32 %v5983, 24
      %v6286 = vadd.s32 %v5994, 24
      %v6287 = vadd.s32 %v6005, 24
      %v6288 = vadd.s32 %v6016, 24
      %v6289 = vadd.s32 %v6027, 24
      %v6290 = vadd.s32 %v6038, 24
      %v6291 = vadd.s32 %v6049, 24
      %v6292 = vadd.s32 %v6060, 24
      %v6293 = vadd.s32 %v6071, 24
      %v6294 = vadd.s32 %v6082, 24
      %v6295 = vadd.s32 %v6093, 24
      %v6296 = vadd.s32 %v6104, 24
      %v6297 = vsel %vm6201, %v6249, %v5587
      %v6298 = vsel %vm6202, %v6250, %v5598
      %v6299 = vsel %vm6203, %v6251, %v5609
      %v6300 = vsel %vm6204, %v6252, %v5620
      %v6301 = vsel %vm6205, %v6253, %v5631
      %v6302 = vsel %vm6206, %v6254, %v5642
      %v6303 = vsel %vm6207, %v6255, %v5653
      %v6304 = vsel %vm6208, %v6256, %v5664
      %v6305 = vsel %vm6209, %v6257, %v5675
      %v6306 = vsel %vm6210, %v6258, %v5686
      %v6307 = vsel %vm6211, %v6259, %v5697
      %v6308 = vsel %vm6212, %v6260, %v5708
      %v6309 = vsel %vm6213, %v6261, %v5719
      %v6310 = vsel %vm6214, %v6262, %v5730
      %v6311 = vsel %vm6215, %v6263, %v5741
      %v6312 = vsel %vm6216, %v6264, %v5752
      %v6313 = vsel %vm6217, %v6265, %v5763
      %v6314 = vsel %vm6218, %v6266, %v5774
      %v6315 = vsel %vm6219, %v6267, %v5785
      %v6316 = vsel %vm6220, %v6268, %v5796
      %v6317 = vsel %vm6221, %v6269, %v5807
      %v6318 = vsel %vm6222, %v6270, %v5818
      %v6319 = vsel %vm6223, %v6271, %v5829
      %v6320 = vsel %vm6224, %v6272, %v5840
      %v6321 = vsel %vm6225, %v6273, %v5851
      %v6322 = vsel %vm6226, %v6274, %v5862
      %v6323 = vsel %vm6227, %v6275, %v5873
      %v6324 = vsel %vm6228, %v6276, %v5884
      %v6325 = vsel %vm6229, %v6277, %v5895
      %v6326 = vsel %vm6230, %v6278, %v5906
      %v6327 = vsel %vm6231, %v6279, %v5917
      %v6328 = vsel %vm6232, %v6280, %v5928
      %v6329 = vsel %vm6233, %v6281, %v5939
      %v6330 = vsel %vm6234, %v6282, %v5950
      %v6331 = vsel %vm6235, %v6283, %v5961
      %v6332 = vsel %vm6236, %v6284, %v5972
      %v6333 = vsel %vm6237, %v6285, %v5983
      %v6334 = vsel %vm6238, %v6286, %v5994
      %v6335 = vsel %vm6239, %v6287, %v6005
      %v6336 = vsel %vm6240, %v6288, %v6016
      %v6337 = vsel %vm6241, %v6289, %v6027
      %v6338 = vsel %vm6242, %v6290, %v6038
      %v6339 = vsel %vm6243, %v6291, %v6049
      %v6340 = vsel %vm6244, %v6292, %v6060
      %v6341 = vsel %vm6245, %v6293, %v6071
      %v6342 = vsel %vm6246, %v6294, %v6082
      %v6343 = vsel %vm6247, %v6295, %v6093
      %v6344 = vsel %vm6248, %v6296, %v6104
      %vm6345 = vcmp.lt.s32.totalorder %v6297, 16
      %vm6346 = vcmp.lt.s32.totalorder %v6298, 16
      %vm6347 = vcmp.lt.s32.totalorder %v6299, 16
      %vm6348 = vcmp.lt.s32.totalorder %v6300, 16
      %vm6349 = vcmp.lt.s32.totalorder %v6301, 16
      %vm6350 = vcmp.lt.s32.totalorder %v6302, 16
      %vm6351 = vcmp.lt.s32.totalorder %v6303, 16
      %vm6352 = vcmp.lt.s32.totalorder %v6304, 16
      %vm6353 = vcmp.lt.s32.totalorder %v6305, 16
      %vm6354 = vcmp.lt.s32.totalorder %v6306, 16
      %vm6355 = vcmp.lt.s32.totalorder %v6307, 16
      %vm6356 = vcmp.lt.s32.totalorder %v6308, 16
      %vm6357 = vcmp.lt.s32.totalorder %v6309, 16
      %vm6358 = vcmp.lt.s32.totalorder %v6310, 16
      %vm6359 = vcmp.lt.s32.totalorder %v6311, 16
      %vm6360 = vcmp.lt.s32.totalorder %v6312, 16
      %vm6361 = vcmp.lt.s32.totalorder %v6313, 16
      %vm6362 = vcmp.lt.s32.totalorder %v6314, 16
      %vm6363 = vcmp.lt.s32.totalorder %v6315, 16
      %vm6364 = vcmp.lt.s32.totalorder %v6316, 16
      %vm6365 = vcmp.lt.s32.totalorder %v6317, 16
      %vm6366 = vcmp.lt.s32.totalorder %v6318, 16
      %vm6367 = vcmp.lt.s32.totalorder %v6319, 16
      %vm6368 = vcmp.lt.s32.totalorder %v6320, 16
      %vm6369 = vcmp.lt.s32.totalorder %v6321, 16
      %vm6370 = vcmp.lt.s32.totalorder %v6322, 16
      %vm6371 = vcmp.lt.s32.totalorder %v6323, 16
      %vm6372 = vcmp.lt.s32.totalorder %v6324, 16
      %vm6373 = vcmp.lt.s32.totalorder %v6325, 16
      %vm6374 = vcmp.lt.s32.totalorder %v6326, 16
      %vm6375 = vcmp.lt.s32.totalorder %v6327, 16
      %vm6376 = vcmp.lt.s32.totalorder %v6328, 16
      %vm6377 = vcmp.lt.s32.totalorder %v6329, 16
      %vm6378 = vcmp.lt.s32.totalorder %v6330, 16
      %vm6379 = vcmp.lt.s32.totalorder %v6331, 16
      %vm6380 = vcmp.lt.s32.totalorder %v6332, 16
      %vm6381 = vcmp.lt.s32.totalorder %v6333, 16
      %vm6382 = vcmp.lt.s32.totalorder %v6334, 16
      %vm6383 = vcmp.lt.s32.totalorder %v6335, 16
      %vm6384 = vcmp.lt.s32.totalorder %v6336, 16
      %vm6385 = vcmp.lt.s32.totalorder %v6337, 16
      %vm6386 = vcmp.lt.s32.totalorder %v6338, 16
      %vm6387 = vcmp.lt.s32.totalorder %v6339, 16
      %vm6388 = vcmp.lt.s32.totalorder %v6340, 16
      %vm6389 = vcmp.lt.s32.totalorder %v6341, 16
      %vm6390 = vcmp.lt.s32.totalorder %v6342, 16
      %vm6391 = vcmp.lt.s32.totalorder %v6343, 16
      %vm6392 = vcmp.lt.s32.totalorder %v6344, 16
      %v6393 = vsel %vm6345, 1, 0
      %v6394 = vsel %vm6346, 1, 0
      %v6395 = vsel %vm6347, 1, 0
      %v6396 = vsel %vm6348, 1, 0
      %v6397 = vsel %vm6349, 1, 0
      %v6398 = vsel %vm6350, 1, 0
      %v6399 = vsel %vm6351, 1, 0
      %v6400 = vsel %vm6352, 1, 0
      %v6401 = vsel %vm6353, 1, 0
      %v6402 = vsel %vm6354, 1, 0
      %v6403 = vsel %vm6355, 1, 0
      %v6404 = vsel %vm6356, 1, 0
      %v6405 = vsel %vm6357, 1, 0
      %v6406 = vsel %vm6358, 1, 0
      %v6407 = vsel %vm6359, 1, 0
      %v6408 = vsel %vm6360, 1, 0
      %v6409 = vsel %vm6361, 1, 0
      %v6410 = vsel %vm6362, 1, 0
      %v6411 = vsel %vm6363, 1, 0
      %v6412 = vsel %vm6364, 1, 0
      %v6413 = vsel %vm6365, 1, 0
      %v6414 = vsel %vm6366, 1, 0
      %v6415 = vsel %vm6367, 1, 0
      %v6416 = vsel %vm6368, 1, 0
      %v6417 = vsel %vm6369, 1, 0
      %v6418 = vsel %vm6370, 1, 0
      %v6419 = vsel %vm6371, 1, 0
      %v6420 = vsel %vm6372, 1, 0
      %v6421 = vsel %vm6373, 1, 0
      %v6422 = vsel %vm6374, 1, 0
      %v6423 = vsel %vm6375, 1, 0
      %v6424 = vsel %vm6376, 1, 0
      %v6425 = vsel %vm6377, 1, 0
      %v6426 = vsel %vm6378, 1, 0
      %v6427 = vsel %vm6379, 1, 0
      %v6428 = vsel %vm6380, 1, 0
      %v6429 = vsel %vm6381, 1, 0
      %v6430 = vsel %vm6382, 1, 0
      %v6431 = vsel %vm6383, 1, 0
      %v6432 = vsel %vm6384, 1, 0
      %v6433 = vsel %vm6385, 1, 0
      %v6434 = vsel %vm6386, 1, 0
      %v6435 = vsel %vm6387, 1, 0
      %v6436 = vsel %vm6388, 1, 0
      %v6437 = vsel %vm6389, 1, 0
      %v6438 = vsel %vm6390, 1, 0
      %v6439 = vsel %vm6391, 1, 0
      %v6440 = vsel %vm6392, 1, 0
      %vm6441 = vcmp.eq.s32.totalorder %v6393, 1
      %vm6442 = vcmp.eq.s32.totalorder %v6394, 1
      %vm6443 = vcmp.eq.s32.totalorder %v6395, 1
      %vm6444 = vcmp.eq.s32.totalorder %v6396, 1
      %vm6445 = vcmp.eq.s32.totalorder %v6397, 1
      %vm6446 = vcmp.eq.s32.totalorder %v6398, 1
      %vm6447 = vcmp.eq.s32.totalorder %v6399, 1
      %vm6448 = vcmp.eq.s32.totalorder %v6400, 1
      %vm6449 = vcmp.eq.s32.totalorder %v6401, 1
      %vm6450 = vcmp.eq.s32.totalorder %v6402, 1
      %vm6451 = vcmp.eq.s32.totalorder %v6403, 1
      %vm6452 = vcmp.eq.s32.totalorder %v6404, 1
      %vm6453 = vcmp.eq.s32.totalorder %v6405, 1
      %vm6454 = vcmp.eq.s32.totalorder %v6406, 1
      %vm6455 = vcmp.eq.s32.totalorder %v6407, 1
      %vm6456 = vcmp.eq.s32.totalorder %v6408, 1
      %vm6457 = vcmp.eq.s32.totalorder %v6409, 1
      %vm6458 = vcmp.eq.s32.totalorder %v6410, 1
      %vm6459 = vcmp.eq.s32.totalorder %v6411, 1
      %vm6460 = vcmp.eq.s32.totalorder %v6412, 1
      %vm6461 = vcmp.eq.s32.totalorder %v6413, 1
      %vm6462 = vcmp.eq.s32.totalorder %v6414, 1
      %vm6463 = vcmp.eq.s32.totalorder %v6415, 1
      %vm6464 = vcmp.eq.s32.totalorder %v6416, 1
      %vm6465 = vcmp.eq.s32.totalorder %v6417, 1
      %vm6466 = vcmp.eq.s32.totalorder %v6418, 1
      %vm6467 = vcmp.eq.s32.totalorder %v6419, 1
      %vm6468 = vcmp.eq.s32.totalorder %v6420, 1
      %vm6469 = vcmp.eq.s32.totalorder %v6421, 1
      %vm6470 = vcmp.eq.s32.totalorder %v6422, 1
      %vm6471 = vcmp.eq.s32.totalorder %v6423, 1
      %vm6472 = vcmp.eq.s32.totalorder %v6424, 1
      %vm6473 = vcmp.eq.s32.totalorder %v6425, 1
      %vm6474 = vcmp.eq.s32.totalorder %v6426, 1
      %vm6475 = vcmp.eq.s32.totalorder %v6427, 1
      %vm6476 = vcmp.eq.s32.totalorder %v6428, 1
      %vm6477 = vcmp.eq.s32.totalorder %v6429, 1
      %vm6478 = vcmp.eq.s32.totalorder %v6430, 1
      %vm6479 = vcmp.eq.s32.totalorder %v6431, 1
      %vm6480 = vcmp.eq.s32.totalorder %v6432, 1
      %vm6481 = vcmp.eq.s32.totalorder %v6433, 1
      %vm6482 = vcmp.eq.s32.totalorder %v6434, 1
      %vm6483 = vcmp.eq.s32.totalorder %v6435, 1
      %vm6484 = vcmp.eq.s32.totalorder %v6436, 1
      %vm6485 = vcmp.eq.s32.totalorder %v6437, 1
      %vm6486 = vcmp.eq.s32.totalorder %v6438, 1
      %vm6487 = vcmp.eq.s32.totalorder %v6439, 1
      %vm6488 = vcmp.eq.s32.totalorder %v6440, 1
      %v6489 = vsel %vm6441, %v5480, 0.0
      %v6490 = vsel %vm6442, %v5481, 0.0
      %v6491 = vsel %vm6443, %v5482, 0.0
      %v6492 = vsel %vm6444, %v5483, 0.0
      %v6493 = vsel %vm6445, %v5484, 0.0
      %v6494 = vsel %vm6446, %v5485, 0.0
      %v6495 = vsel %vm6447, %v5486, 0.0
      %v6496 = vsel %vm6448, %v5487, 0.0
      %v6497 = vsel %vm6449, %v5488, 0.0
      %v6498 = vsel %vm6450, %v5489, 0.0
      %v6499 = vsel %vm6451, %v5490, 0.0
      %v6500 = vsel %vm6452, %v5491, 0.0
      %v6501 = vsel %vm6453, %v5492, 0.0
      %v6502 = vsel %vm6454, %v5493, 0.0
      %v6503 = vsel %vm6455, %v5494, 0.0
      %v6504 = vsel %vm6456, %v5495, 0.0
      %v6505 = vsel %vm6457, %v5496, 0.0
      %v6506 = vsel %vm6458, %v5497, 0.0
      %v6507 = vsel %vm6459, %v5498, 0.0
      %v6508 = vsel %vm6460, %v5499, 0.0
      %v6509 = vsel %vm6461, %v5500, 0.0
      %v6510 = vsel %vm6462, %v5501, 0.0
      %v6511 = vsel %vm6463, %v5502, 0.0
      %v6512 = vsel %vm6464, %v5503, 0.0
      %v6513 = vsel %vm6465, %v5504, 0.0
      %v6514 = vsel %vm6466, %v5505, 0.0
      %v6515 = vsel %vm6467, %v5506, 0.0
      %v6516 = vsel %vm6468, %v5507, 0.0
      %v6517 = vsel %vm6469, %v5508, 0.0
      %v6518 = vsel %vm6470, %v5509, 0.0
      %v6519 = vsel %vm6471, %v5510, 0.0
      %v6520 = vsel %vm6472, %v5511, 0.0
      %v6521 = vsel %vm6473, %v5512, 0.0
      %v6522 = vsel %vm6474, %v5513, 0.0
      %v6523 = vsel %vm6475, %v5514, 0.0
      %v6524 = vsel %vm6476, %v5515, 0.0
      %v6525 = vsel %vm6477, %v5516, 0.0
      %v6526 = vsel %vm6478, %v5517, 0.0
      %v6527 = vsel %vm6479, %v5518, 0.0
      %v6528 = vsel %vm6480, %v5519, 0.0
      %v6529 = vsel %vm6481, %v5520, 0.0
      %v6530 = vsel %vm6482, %v5521, 0.0
      %v6531 = vsel %vm6483, %v5522, 0.0
      %v6532 = vsel %vm6484, %v5523, 0.0
      %v6533 = vsel %vm6485, %v5524, 0.0
      %v6534 = vsel %vm6486, %v5525, 0.0
      %v6535 = vsel %vm6487, %v5526, 0.0
      %v6536 = vsel %vm6488, %v5527, 0.0
      %v6537 = vpack.c.bf16 %v6490, %v6489
      %v6538 = vpack.c.bf16 %v6492, %v6491
      %v6539 = vpack.c.bf16 %v6494, %v6493
      %v6540 = vpack.c.bf16 %v6496, %v6495
      %v6541 = vpack.c.bf16 %v6498, %v6497
      %v6542 = vpack.c.bf16 %v6500, %v6499
      %v6543 = vpack.c.bf16 %v6502, %v6501
      %v6544 = vpack.c.bf16 %v6504, %v6503
      %v6545 = vpack.c.bf16 %v6506, %v6505
      %v6546 = vpack.c.bf16 %v6508, %v6507
      %v6547 = vpack.c.bf16 %v6510, %v6509
      %v6548 = vpack.c.bf16 %v6512, %v6511
      %v6549 = vpack.c.bf16 %v6514, %v6513
      %v6550 = vpack.c.bf16 %v6516, %v6515
      %v6551 = vpack.c.bf16 %v6518, %v6517
      %v6552 = vpack.c.bf16 %v6520, %v6519
      %v6553 = vpack.c.bf16 %v6522, %v6521
      %v6554 = vpack.c.bf16 %v6524, %v6523
      %v6555 = vpack.c.bf16 %v6526, %v6525
      %v6556 = vpack.c.bf16 %v6528, %v6527
      %v6557 = vpack.c.bf16 %v6530, %v6529
      %v6558 = vpack.c.bf16 %v6532, %v6531
      %v6559 = vpack.c.bf16 %v6534, %v6533
      %v6560 = vpack.c.bf16 %v6536, %v6535
      %v6562 = vshrl.u32 %v6537, 16
      %v6564 = vrot.slane %v6562, 3
      %v6565 = vshll.u32 %v6537, 16
      %v6567 = vrot.slane %v6565, 4
      %v6568 = vor.u32 %v6564, %v6567
      %v6570 = vshrl.u32 %v6538, 16
      %v6572 = vrot.slane %v6570, 3
      %v6573 = vshll.u32 %v6538, 16
      %v6575 = vrot.slane %v6573, 4
      %v6576 = vor.u32 %v6572, %v6575
      %v6577 = vsel %vm394, %v6568, %v6576
      %v6579 = vshrl.u32 %v6539, 16
      %v6581 = vrot.slane %v6579, 3
      %v6582 = vshll.u32 %v6539, 16
      %v6584 = vrot.slane %v6582, 4
      %v6585 = vor.u32 %v6581, %v6584
      %v6586 = vsel %vm394, %v6576, %v6585
      %v6588 = vshrl.u32 %v6540, 16
      %v6590 = vrot.slane %v6588, 3
      %v6591 = vshll.u32 %v6540, 16
      %v6593 = vrot.slane %v6591, 4
      %v6594 = vor.u32 %v6590, %v6593
      %v6595 = vsel %vm394, %v6585, %v6594
      %v6597 = vshrl.u32 %v6541, 16
      %v6599 = vrot.slane %v6597, 3
      %v6600 = vshll.u32 %v6541, 16
      %v6602 = vrot.slane %v6600, 4
      %v6603 = vor.u32 %v6599, %v6602
      %v6604 = vsel %vm394, %v6594, %v6603
      %v6606 = vshrl.u32 %v6542, 16
      %v6608 = vrot.slane %v6606, 3
      %v6609 = vshll.u32 %v6542, 16
      %v6611 = vrot.slane %v6609, 4
      %v6612 = vor.u32 %v6608, %v6611
      %v6613 = vsel %vm394, %v6603, %v6612
      %v6615 = vshrl.u32 %v6543, 16
      %v6617 = vrot.slane %v6615, 3
      %v6618 = vshll.u32 %v6543, 16
      %v6620 = vrot.slane %v6618, 4
      %v6621 = vor.u32 %v6617, %v6620
      %v6622 = vsel %vm394, %v6612, %v6621
      %v6624 = vshrl.u32 %v6544, 16
      %v6626 = vrot.slane %v6624, 3
      %v6627 = vshll.u32 %v6544, 16
      %v6629 = vrot.slane %v6627, 4
      %v6630 = vor.u32 %v6626, %v6629
      %v6631 = vsel %vm394, %v6621, %v6630
      %v6633 = vshrl.u32 %v6545, 16
      %v6635 = vrot.slane %v6633, 3
      %v6636 = vshll.u32 %v6545, 16
      %v6638 = vrot.slane %v6636, 4
      %v6639 = vor.u32 %v6635, %v6638
      %v6640 = vsel %vm394, %v6630, %v6639
      %v6642 = vshrl.u32 %v6546, 16
      %v6644 = vrot.slane %v6642, 3
      %v6645 = vshll.u32 %v6546, 16
      %v6647 = vrot.slane %v6645, 4
      %v6648 = vor.u32 %v6644, %v6647
      %v6649 = vsel %vm394, %v6639, %v6648
      %v6651 = vshrl.u32 %v6547, 16
      %v6653 = vrot.slane %v6651, 3
      %v6654 = vshll.u32 %v6547, 16
      %v6656 = vrot.slane %v6654, 4
      %v6657 = vor.u32 %v6653, %v6656
      %v6658 = vsel %vm394, %v6648, %v6657
      %v6660 = vshrl.u32 %v6548, 16
      %v6662 = vrot.slane %v6660, 3
      %v6663 = vshll.u32 %v6548, 16
      %v6665 = vrot.slane %v6663, 4
      %v6666 = vor.u32 %v6662, %v6665
      %v6667 = vsel %vm394, %v6657, %v6666
      %v6669 = vshrl.u32 %v6549, 16
      %v6671 = vrot.slane %v6669, 3
      %v6672 = vshll.u32 %v6549, 16
      %v6674 = vrot.slane %v6672, 4
      %v6675 = vor.u32 %v6671, %v6674
      %v6676 = vsel %vm394, %v6666, %v6675
      %v6678 = vshrl.u32 %v6550, 16
      %v6680 = vrot.slane %v6678, 3
      %v6681 = vshll.u32 %v6550, 16
      %v6683 = vrot.slane %v6681, 4
      %v6684 = vor.u32 %v6680, %v6683
      %v6685 = vsel %vm394, %v6675, %v6684
      %v6687 = vshrl.u32 %v6551, 16
      %v6689 = vrot.slane %v6687, 3
      %v6690 = vshll.u32 %v6551, 16
      %v6692 = vrot.slane %v6690, 4
      %v6693 = vor.u32 %v6689, %v6692
      %v6694 = vsel %vm394, %v6684, %v6693
      %v6696 = vshrl.u32 %v6552, 16
      %v6698 = vrot.slane %v6696, 3
      %v6699 = vshll.u32 %v6552, 16
      %v6701 = vrot.slane %v6699, 4
      %v6702 = vor.u32 %v6698, %v6701
      %v6703 = vsel %vm394, %v6693, %v6702
      %v6705 = vshrl.u32 %v6553, 16
      %v6707 = vrot.slane %v6705, 3
      %v6708 = vshll.u32 %v6553, 16
      %v6710 = vrot.slane %v6708, 4
      %v6711 = vor.u32 %v6707, %v6710
      %v6712 = vsel %vm394, %v6702, %v6711
      %v6714 = vshrl.u32 %v6554, 16
      %v6716 = vrot.slane %v6714, 3
      %v6717 = vshll.u32 %v6554, 16
      %v6719 = vrot.slane %v6717, 4
      %v6720 = vor.u32 %v6716, %v6719
      %v6721 = vsel %vm394, %v6711, %v6720
      %v6723 = vshrl.u32 %v6555, 16
      %v6725 = vrot.slane %v6723, 3
      %v6726 = vshll.u32 %v6555, 16
      %v6728 = vrot.slane %v6726, 4
      %v6729 = vor.u32 %v6725, %v6728
      %v6730 = vsel %vm394, %v6720, %v6729
      %v6732 = vshrl.u32 %v6556, 16
      %v6734 = vrot.slane %v6732, 3
      %v6735 = vshll.u32 %v6556, 16
      %v6737 = vrot.slane %v6735, 4
      %v6738 = vor.u32 %v6734, %v6737
      %v6739 = vsel %vm394, %v6729, %v6738
      %v6741 = vshrl.u32 %v6557, 16
      %v6743 = vrot.slane %v6741, 3
      %v6744 = vshll.u32 %v6557, 16
      %v6746 = vrot.slane %v6744, 4
      %v6747 = vor.u32 %v6743, %v6746
      %v6748 = vsel %vm394, %v6738, %v6747
      %v6750 = vshrl.u32 %v6558, 16
      %v6752 = vrot.slane %v6750, 3
      %v6753 = vshll.u32 %v6558, 16
      %v6755 = vrot.slane %v6753, 4
      %v6756 = vor.u32 %v6752, %v6755
      %v6757 = vsel %vm394, %v6747, %v6756
      %v6759 = vshrl.u32 %v6559, 16
      %v6761 = vrot.slane %v6759, 3
      %v6762 = vshll.u32 %v6559, 16
      %v6764 = vrot.slane %v6762, 4
      %v6765 = vor.u32 %v6761, %v6764
      %v6766 = vsel %vm394, %v6756, %v6765
      %v6768 = vshrl.u32 %v6560, 16
      %v6770 = vrot.slane %v6768, 3
      %v6771 = vshll.u32 %v6560, 16
      %v6773 = vrot.slane %v6771, 4
      %v6774 = vor.u32 %v6770, %v6773
      %v6775 = vsel %vm394, %v6765, %v6774
      %v6801 = vld [vmem:[#allocation2 + $0x8] sm:$0xf0]
      %v6802 = vsel %vm401, %v6568, %v6801
      %6803 = vst [vmem:[#allocation2 + $0x8] sm:$0xf0] %v6802
      %6804 = vst.msk [vmem:[#allocation2 + $0x10] sm:$0xff] %vm391, %v6577
      %6805 = vst.msk [vmem:[#allocation2 + $0x18] sm:$0xff] %vm391, %v6586
      %6806 = vst.msk [vmem:[#allocation2 + $0x20] sm:$0xff] %vm391, %v6595
      %6807 = vst.msk [vmem:[#allocation2 + $0x28] sm:$0xff] %vm391, %v6604
      %6808 = vst.msk [vmem:[#allocation2 + $0x30] sm:$0xff] %vm391, %v6613
      %6809 = vst.msk [vmem:[#allocation2 + $0x38] sm:$0xff] %vm391, %v6622
      %6810 = vst.msk [vmem:[#allocation2 + $0x40] sm:$0xff] %vm391, %v6631
      %6811 = vst.msk [vmem:[#allocation2 + $0x48] sm:$0xff] %vm391, %v6640
      %6812 = vst.msk [vmem:[#allocation2 + $0x50] sm:$0xff] %vm391, %v6649
      %6813 = vst.msk [vmem:[#allocation2 + $0x58] sm:$0xff] %vm391, %v6658
      %6814 = vst.msk [vmem:[#allocation2 + $0x60] sm:$0xff] %vm391, %v6667
      %6815 = vst.msk [vmem:[#allocation2 + $0x68] sm:$0xff] %vm391, %v6676
      %6816 = vst.msk [vmem:[#allocation2 + $0x70] sm:$0xff] %vm391, %v6685
      %6817 = vst.msk [vmem:[#allocation2 + $0x78] sm:$0xff] %vm391, %v6694
      %6818 = vst.msk [vmem:[#allocation2 + $0x80] sm:$0xff] %vm391, %v6703
      %6819 = vst.msk [vmem:[#allocation2 + $0x88] sm:$0xff] %vm391, %v6712
      %6820 = vst.msk [vmem:[#allocation2 + $0x90] sm:$0xff] %vm391, %v6721
      %6821 = vst.msk [vmem:[#allocation2 + $0x98] sm:$0xff] %vm391, %v6730
      %6822 = vst.msk [vmem:[#allocation2 + $0xa0] sm:$0xff] %vm391, %v6739
      %6823 = vst.msk [vmem:[#allocation2 + $0xa8] sm:$0xff] %vm391, %v6748
      %6824 = vst.msk [vmem:[#allocation2 + $0xb0] sm:$0xff] %vm391, %v6757
      %6825 = vst.msk [vmem:[#allocation2 + $0xb8] sm:$0xff] %vm391, %v6766
      %6826 = vst.msk [vmem:[#allocation2 + $0xc0] sm:$0xff] %vm391, %v6775
      %v6827 = vld [vmem:[#allocation2 + $0xc8] sm:$0x1f]
      %v6828 = vsel %vm395, %v6774, %v6827
      %6829 = vst [vmem:[#allocation2 + $0xc8] sm:$0x1f] %v6828
      %v6830 = vld [vmem:[#allocation2] sm:$0xff]
      %v6831 = vld [vmem:[#allocation2 + $0x8] sm:$0xff]
      %v6832 = vld [vmem:[#allocation2 + $0x10] sm:$0xff]
      %v6833 = vld [vmem:[#allocation2 + $0x18] sm:$0xff]
      %v6834 = vld [vmem:[#allocation2 + $0x20] sm:$0xff]
      %v6835 = vld [vmem:[#allocation2 + $0x28] sm:$0xff]
      %v6836 = vld [vmem:[#allocation2 + $0x30] sm:$0xff]
      %v6837 = vld [vmem:[#allocation2 + $0x38] sm:$0xff]
      %v6838 = vld [vmem:[#allocation2 + $0x40] sm:$0xff]
      %v6839 = vld [vmem:[#allocation2 + $0x48] sm:$0xff]
      %v6840 = vld [vmem:[#allocation2 + $0x50] sm:$0xff]
      %v6841 = vld [vmem:[#allocation2 + $0x58] sm:$0xff]
      %v6842 = vld [vmem:[#allocation2 + $0x60] sm:$0xff]
      %v6843 = vld [vmem:[#allocation2 + $0x68] sm:$0xff]
      %v6844 = vld [vmem:[#allocation2 + $0x70] sm:$0xff]
      %v6845 = vld [vmem:[#allocation2 + $0x78] sm:$0xff]
      %v6846 = vld [vmem:[#allocation2 + $0x80] sm:$0xff]
      %v6847 = vld [vmem:[#allocation2 + $0x88] sm:$0xff]
      %v6848 = vld [vmem:[#allocation2 + $0x90] sm:$0xff]
      %v6849 = vld [vmem:[#allocation2 + $0x98] sm:$0xff]
      %v6850 = vld [vmem:[#allocation2 + $0xa0] sm:$0xff]
      %v6851 = vld [vmem:[#allocation2 + $0xa8] sm:$0xff]
      %v6852 = vld [vmem:[#allocation2 + $0xb0] sm:$0xff]
      %v6853 = vld [vmem:[#allocation2 + $0xb8] sm:$0xff]
      %v6854 = vld [vmem:[%s5] sm:$0xf]
      %v6855 = vld [vmem:[#allocation2 + $0xc0] sm:$0x1]
      %s6856 = scalar_lea.vmem %s5, 4
      %v6857 = vld [vmem:[%s6856] sm:$0xf]
      %v6859 = vshrl.u32 %v6830, 16
      %v6861 = vshll.u32 %v6830, 16
      %v6863 = vrot.slane %v6861, 1
      %v6864 = vor.u32 %v6859, %v6863
      %v6866 = vshll.u32 %v6831, 16
      %v6868 = vrot.slane %v6866, 1
      %v6869 = vsel %vm584, %v6864, %v6868
      %v6870 = vshrl.u32 %v6831, 16
      %v6872 = vor.u32 %v6870, %v6868
      %v6874 = vshll.u32 %v6832, 16
      %v6876 = vrot.slane %v6874, 1
      %v6877 = vsel %vm584, %v6872, %v6876
      %v6878 = vshrl.u32 %v6832, 16
      %v6880 = vor.u32 %v6878, %v6876
      %v6882 = vshll.u32 %v6833, 16
      %v6884 = vrot.slane %v6882, 1
      %v6885 = vsel %vm584, %v6880, %v6884
      %v6886 = vshrl.u32 %v6833, 16
      %v6888 = vor.u32 %v6886, %v6884
      %v6890 = vshll.u32 %v6834, 16
      %v6892 = vrot.slane %v6890, 1
      %v6893 = vsel %vm584, %v6888, %v6892
      %v6894 = vshrl.u32 %v6834, 16
      %v6896 = vor.u32 %v6894, %v6892
      %v6898 = vshll.u32 %v6835, 16
      %v6900 = vrot.slane %v6898, 1
      %v6901 = vsel %vm584, %v6896, %v6900
      %v6902 = vshrl.u32 %v6835, 16
      %v6904 = vor.u32 %v6902, %v6900
      %v6906 = vshll.u32 %v6836, 16
      %v6908 = vrot.slane %v6906, 1
      %v6909 = vsel %vm584, %v6904, %v6908
      %v6910 = vshrl.u32 %v6836, 16
      %v6912 = vor.u32 %v6910, %v6908
      %v6914 = vshll.u32 %v6837, 16
      %v6916 = vrot.slane %v6914, 1
      %v6917 = vsel %vm584, %v6912, %v6916
      %v6918 = vshrl.u32 %v6837, 16
      %v6920 = vor.u32 %v6918, %v6916
      %v6922 = vshll.u32 %v6838, 16
      %v6924 = vrot.slane %v6922, 1
      %v6925 = vsel %vm584, %v6920, %v6924
      %v6926 = vshrl.u32 %v6838, 16
      %v6928 = vor.u32 %v6926, %v6924
      %v6930 = vshll.u32 %v6839, 16
      %v6932 = vrot.slane %v6930, 1
      %v6933 = vsel %vm584, %v6928, %v6932
      %v6934 = vshrl.u32 %v6839, 16
      %v6936 = vor.u32 %v6934, %v6932
      %v6938 = vshll.u32 %v6840, 16
      %v6940 = vrot.slane %v6938, 1
      %v6941 = vsel %vm584, %v6936, %v6940
      %v6942 = vshrl.u32 %v6840, 16
      %v6944 = vor.u32 %v6942, %v6940
      %v6946 = vshll.u32 %v6841, 16
      %v6948 = vrot.slane %v6946, 1
      %v6949 = vsel %vm584, %v6944, %v6948
      %v6950 = vshrl.u32 %v6841, 16
      %v6952 = vor.u32 %v6950, %v6948
      %v6954 = vshll.u32 %v6842, 16
      %v6956 = vrot.slane %v6954, 1
      %v6957 = vsel %vm584, %v6952, %v6956
      %v6958 = vshrl.u32 %v6842, 16
      %v6960 = vor.u32 %v6958, %v6956
      %v6962 = vshll.u32 %v6843, 16
      %v6964 = vrot.slane %v6962, 1
      %v6965 = vsel %vm584, %v6960, %v6964
      %v6966 = vshrl.u32 %v6843, 16
      %v6968 = vor.u32 %v6966, %v6964
      %v6970 = vshll.u32 %v6844, 16
      %v6972 = vrot.slane %v6970, 1
      %v6973 = vsel %vm584, %v6968, %v6972
      %v6974 = vshrl.u32 %v6844, 16
      %v6976 = vor.u32 %v6974, %v6972
      %v6978 = vshll.u32 %v6845, 16
      %v6980 = vrot.slane %v6978, 1
      %v6981 = vsel %vm584, %v6976, %v6980
      %v6982 = vshrl.u32 %v6845, 16
      %v6984 = vor.u32 %v6982, %v6980
      %v6986 = vshll.u32 %v6846, 16
      %v6988 = vrot.slane %v6986, 1
      %v6989 = vsel %vm584, %v6984, %v6988
      %v6990 = vshrl.u32 %v6846, 16
      %v6992 = vor.u32 %v6990, %v6988
      %v6994 = vshll.u32 %v6847, 16
      %v6996 = vrot.slane %v6994, 1
      %v6997 = vsel %vm584, %v6992, %v6996
      %v6998 = vshrl.u32 %v6847, 16
      %v7000 = vor.u32 %v6998, %v6996
      %v7002 = vshll.u32 %v6848, 16
      %v7004 = vrot.slane %v7002, 1
      %v7005 = vsel %vm584, %v7000, %v7004
      %v7006 = vshrl.u32 %v6848, 16
      %v7008 = vor.u32 %v7006, %v7004
      %v7010 = vshll.u32 %v6849, 16
      %v7012 = vrot.slane %v7010, 1
      %v7013 = vsel %vm584, %v7008, %v7012
      %v7014 = vshrl.u32 %v6849, 16
      %v7016 = vor.u32 %v7014, %v7012
      %v7018 = vshll.u32 %v6850, 16
      %v7020 = vrot.slane %v7018, 1
      %v7021 = vsel %vm584, %v7016, %v7020
      %v7022 = vshrl.u32 %v6850, 16
      %v7024 = vor.u32 %v7022, %v7020
      %v7026 = vshll.u32 %v6851, 16
      %v7028 = vrot.slane %v7026, 1
      %v7029 = vsel %vm584, %v7024, %v7028
      %v7030 = vshrl.u32 %v6851, 16
      %v7032 = vor.u32 %v7030, %v7028
      %v7034 = vshll.u32 %v6852, 16
      %v7036 = vrot.slane %v7034, 1
      %v7037 = vsel %vm584, %v7032, %v7036
      %v7038 = vshrl.u32 %v6852, 16
      %v7040 = vor.u32 %v7038, %v7036
      %v7042 = vshll.u32 %v6853, 16
      %v7044 = vrot.slane %v7042, 1
      %v7045 = vsel %vm584, %v7040, %v7044
      %v7046 = vshrl.u32 %v6853, 16
      %v7048 = vor.u32 %v7046, %v7044
      %v7050 = vshll.u32 %v6855, 16
      %v7052 = vrot.slane %v7050, 1
      %v7053 = vsel %vm584, %v7048, %v7052
      %v7055 = vsel %vm391, %v6869, 0
      %v7058 = vsel %vm391, %v6877, 0
      %v7061 = vsel %vm391, %v6885, 0
      %v7064 = vsel %vm391, %v6893, 0
      %v7067 = vsel %vm391, %v6901, 0
      %v7070 = vsel %vm391, %v6909, 0
      %v7073 = vsel %vm391, %v6917, 0
      %v7076 = vsel %vm391, %v6925, 0
      %v7079 = vsel %vm391, %v6933, 0
      %v7082 = vsel %vm391, %v6941, 0
      %v7085 = vsel %vm391, %v6949, 0
      %v7088 = vsel %vm391, %v6957, 0
      %v7091 = vsel %vm391, %v6965, 0
      %v7094 = vsel %vm391, %v6973, 0
      %v7097 = vsel %vm391, %v6981, 0
      %v7100 = vsel %vm391, %v6989, 0
      %v7103 = vsel %vm391, %v6997, 0
      %v7106 = vsel %vm391, %v7005, 0
      %v7109 = vsel %vm391, %v7013, 0
      %v7112 = vsel %vm391, %v7021, 0
      %v7115 = vsel %vm391, %v7029, 0
      %v7118 = vsel %vm391, %v7037, 0
      %v7121 = vsel %vm391, %v7045, 0
      %v7124 = vsel %vm391, %v7053, 0
      %v7127 = vsel %vm853, %v6857, 0
      %7129 = vmatprep.subr.bf16.mxu0 0
      %7130 = vmatpush1.bf16.msra.mxu0 %v7127
      %7131 = vmatprep.subr.bf16.mxu0 0
      %7132 = vmatpush1.bf16.msra.mxu0 0
      %7133 = vmatprep.subr.bf16.mxu0 0
      %7134 = vmatpush1.bf16.msra.mxu0 0
      %7135 = vmatprep.subr.bf16.mxu0 0
      %7136 = vmatpush1.bf16.msra.mxu0 0
      %7137 = vmatprep.subr.bf16.mxu0 0
      %7138 = vmatpush1.bf16.msra.mxu0 0
      %7139 = vmatprep.subr.bf16.mxu0 0
      %7140 = vmatpush1.bf16.msra.mxu0 0
      %7141 = vmatprep.subr.bf16.mxu0 0
      %7142 = vmatpush1.bf16.msra.mxu0 0
      %7143 = vmatprep.subr.bf16.mxu0 0
      %7144 = vmatpush1.bf16.msra.mxu0 0
      %7145 = vmatprep.subr.bf16.mxu0 0
      %7146 = vmatpush1.bf16.msra.mxu0 0
      %7147 = vmatprep.subr.bf16.mxu0 0
      %7148 = vmatpush1.bf16.msra.mxu0 0
      %7149 = vmatprep.subr.bf16.mxu0 0
      %7150 = vmatpush1.bf16.msra.mxu0 0
      %7151 = vmatprep.subr.bf16.mxu0 0
      %7152 = vmatpush1.bf16.msra.mxu0 0
      %7153 = vmatprep.subr.bf16.mxu0 0
      %7154 = vmatpush1.bf16.msra.mxu0 0
      %7155 = vmatprep.subr.bf16.mxu0 0
      %7156 = vmatpush1.bf16.msra.mxu0 0
      %7157 = vmatprep.subr.bf16.mxu0 0
      %7158 = vmatpush1.bf16.msra.mxu0 0
      %7159 = vmatprep.subr.bf16.mxu0 0
      %7160 = vmatpush1.bf16.msra.mxu0 0
      %7161 = vmatprep.mubr.bf16.mxu0 0
      %7162 = vmatmul.mubr.bf16.gmra.mrb[0].mxu0 %v7055
      %v7163 = vpop.f32.mrb[0].mxu0
      %v7164 = vadd.f32 0.0, %v7163
      %v7165 = vpop.f32.mrb[0].mxu0
      %v7166 = vpop.f32.mrb[0].mxu0
      %v7167 = vadd.f32 0.0, %v7166
      %v7168 = vpop.f32.mrb[0].mxu0
      %7169 = vmatprep.mubr.bf16.mxu0 0
      %7170 = vmatmul.mubr.bf16.gmra.mrb[0].mxu0 %v7058
      %v7171 = vpop.f32.mrb[0].mxu0
      %v7172 = vadd.f32 0.0, %v7171
      %v7173 = vpop.f32.mrb[0].mxu0
      %v7174 = vpop.f32.mrb[0].mxu0
      %v7175 = vadd.f32 0.0, %v7174
      %v7176 = vpop.f32.mrb[0].mxu0
      %7177 = vmatprep.mubr.bf16.mxu0 0
      %7178 = vmatmul.mubr.bf16.gmra.mrb[0].mxu0 %v7061
      %v7179 = vpop.f32.mrb[0].mxu0
      %v7180 = vadd.f32 0.0, %v7179
      %v7181 = vpop.f32.mrb[0].mxu0
      %v7182 = vpop.f32.mrb[0].mxu0
      %v7183 = vadd.f32 0.0, %v7182
      %v7184 = vpop.f32.mrb[0].mxu0
      %7185 = vmatprep.mubr.bf16.mxu0 0
      %7186 = vmatmul.mubr.bf16.gmra.mrb[0].mxu0 %v7064
      %v7187 = vpop.f32.mrb[0].mxu0
      %v7188 = vadd.f32 0.0, %v7187
      %v7189 = vpop.f32.mrb[0].mxu0
      %v7190 = vpop.f32.mrb[0].mxu0
      %v7191 = vadd.f32 0.0, %v7190
      %v7192 = vpop.f32.mrb[0].mxu0
      %7193 = vmatprep.mubr.bf16.mxu0 0
      %7194 = vmatmul.mubr.bf16.gmra.mrb[0].mxu0 %v7067
      %v7195 = vpop.f32.mrb[0].mxu0
      %v7196 = vadd.f32 0.0, %v7195
      %v7197 = vpop.f32.mrb[0].mxu0
      %v7198 = vpop.f32.mrb[0].mxu0
      %v7199 = vadd.f32 0.0, %v7198
      %v7200 = vpop.f32.mrb[0].mxu0
      %7201 = vmatprep.mubr.bf16.mxu0 0
      %7202 = vmatmul.mubr.bf16.gmra.mrb[0].mxu0 %v7070
      %v7203 = vpop.f32.mrb[0].mxu0
      %v7204 = vadd.f32 0.0, %v7203
      %v7205 = vpop.f32.mrb[0].mxu0
      %v7206 = vpop.f32.mrb[0].mxu0
      %v7207 = vadd.f32 0.0, %v7206
      %v7208 = vpop.f32.mrb[0].mxu0
      %7209 = vmatprep.mubr.bf16.mxu0 0
      %7210 = vmatmul.mubr.bf16.gmra.mrb[0].mxu0 %v7073
      %v7211 = vpop.f32.mrb[0].mxu0
      %v7212 = vadd.f32 0.0, %v7211
      %v7213 = vpop.f32.mrb[0].mxu0
      %v7214 = vpop.f32.mrb[0].mxu0
      %v7215 = vadd.f32 0.0, %v7214
      %v7216 = vpop.f32.mrb[0].mxu0
      %7217 = vmatprep.mubr.bf16.mxu0 0
      %7218 = vmatmul.mubr.bf16.gmra.mrb[0].mxu0 %v7076
      %v7219 = vpop.f32.mrb[0].mxu0
      %v7220 = vadd.f32 0.0, %v7219
      %v7221 = vpop.f32.mrb[0].mxu0
      %v7222 = vpop.f32.mrb[0].mxu0
      %v7223 = vadd.f32 0.0, %v7222
      %v7224 = vpop.f32.mrb[0].mxu0
      %7225 = vmatprep.mubr.bf16.mxu0 0
      %7226 = vmatmul.mubr.bf16.gmra.mrb[0].mxu0 %v7079
      %v7227 = vpop.f32.mrb[0].mxu0
      %v7228 = vadd.f32 0.0, %v7227
      %v7229 = vpop.f32.mrb[0].mxu0
      %v7230 = vpop.f32.mrb[0].mxu0
      %v7231 = vadd.f32 0.0, %v7230
      %v7232 = vpop.f32.mrb[0].mxu0
      %7233 = vmatprep.mubr.bf16.mxu0 0
      %7234 = vmatmul.mubr.bf16.gmra.mrb[0].mxu0 %v7082
      %v7235 = vpop.f32.mrb[0].mxu0
      %v7236 = vadd.f32 0.0, %v7235
      %v7237 = vpop.f32.mrb[0].mxu0
      %v7238 = vpop.f32.mrb[0].mxu0
      %v7239 = vadd.f32 0.0, %v7238
      %v7240 = vpop.f32.mrb[0].mxu0
      %7241 = vmatprep.mubr.bf16.mxu0 0
      %7242 = vmatmul.mubr.bf16.gmra.mrb[0].mxu0 %v7085
      %v7243 = vpop.f32.mrb[0].mxu0
      %v7244 = vadd.f32 0.0, %v7243
      %v7245 = vpop.f32.mrb[0].mxu0
      %v7246 = vpop.f32.mrb[0].mxu0
      %v7247 = vadd.f32 0.0, %v7246
      %v7248 = vpop.f32.mrb[0].mxu0
      %7249 = vmatprep.mubr.bf16.mxu0 0
      %7250 = vmatmul.mubr.bf16.gmra.mrb[0].mxu0 %v7088
      %v7251 = vpop.f32.mrb[0].mxu0
      %v7252 = vadd.f32 0.0, %v7251
      %v7253 = vpop.f32.mrb[0].mxu0
      %v7254 = vpop.f32.mrb[0].mxu0
      %v7255 = vadd.f32 0.0, %v7254
      %v7256 = vpop.f32.mrb[0].mxu0
      %7257 = vmatprep.mubr.bf16.mxu0 0
      %7258 = vmatmul.mubr.bf16.gmra.mrb[0].mxu0 %v7091
      %v7259 = vpop.f32.mrb[0].mxu0
      %v7260 = vadd.f32 0.0, %v7259
      %v7261 = vpop.f32.mrb[0].mxu0
      %v7262 = vpop.f32.mrb[0].mxu0
      %v7263 = vadd.f32 0.0, %v7262
      %v7264 = vpop.f32.mrb[0].mxu0
      %7265 = vmatprep.mubr.bf16.mxu0 0
      %7266 = vmatmul.mubr.bf16.gmra.mrb[0].mxu0 %v7094
      %v7267 = vpop.f32.mrb[0].mxu0
      %v7268 = vadd.f32 0.0, %v7267
      %v7269 = vpop.f32.mrb[0].mxu0
      %v7270 = vpop.f32.mrb[0].mxu0
      %v7271 = vadd.f32 0.0, %v7270
      %v7272 = vpop.f32.mrb[0].mxu0
      %7273 = vmatprep.mubr.bf16.mxu0 0
      %7274 = vmatmul.mubr.bf16.gmra.mrb[0].mxu0 %v7097
      %v7275 = vpop.f32.mrb[0].mxu0
      %v7276 = vadd.f32 0.0, %v7275
      %v7277 = vpop.f32.mrb[0].mxu0
      %v7278 = vpop.f32.mrb[0].mxu0
      %v7279 = vadd.f32 0.0, %v7278
      %v7280 = vpop.f32.mrb[0].mxu0
      %7281 = vmatprep.mubr.bf16.mxu0 0
      %7282 = vmatmul.mubr.bf16.gmra.mrb[0].mxu0 %v7100
      %v7283 = vpop.f32.mrb[0].mxu0
      %v7284 = vadd.f32 0.0, %v7283
      %v7285 = vpop.f32.mrb[0].mxu0
      %v7286 = vpop.f32.mrb[0].mxu0
      %v7287 = vadd.f32 0.0, %v7286
      %v7288 = vpop.f32.mrb[0].mxu0
      %7289 = vmatprep.mubr.bf16.mxu0 0
      %7290 = vmatmul.mubr.bf16.gmra.mrb[0].mxu0 %v7103
      %v7291 = vpop.f32.mrb[0].mxu0
      %v7292 = vadd.f32 0.0, %v7291
      %v7293 = vpop.f32.mrb[0].mxu0
      %v7294 = vpop.f32.mrb[0].mxu0
      %v7295 = vadd.f32 0.0, %v7294
      %v7296 = vpop.f32.mrb[0].mxu0
      %7297 = vmatprep.mubr.bf16.mxu0 0
      %7298 = vmatmul.mubr.bf16.gmra.mrb[0].mxu0 %v7106
      %v7299 = vpop.f32.mrb[0].mxu0
      %v7300 = vadd.f32 0.0, %v7299
      %v7301 = vpop.f32.mrb[0].mxu0
      %v7302 = vpop.f32.mrb[0].mxu0
      %v7303 = vadd.f32 0.0, %v7302
      %v7304 = vpop.f32.mrb[0].mxu0
      %7305 = vmatprep.mubr.bf16.mxu0 0
      %7306 = vmatmul.mubr.bf16.gmra.mrb[0].mxu0 %v7109
      %v7307 = vpop.f32.mrb[0].mxu0
      %v7308 = vadd.f32 0.0, %v7307
      %v7309 = vpop.f32.mrb[0].mxu0
      %v7310 = vpop.f32.mrb[0].mxu0
      %v7311 = vadd.f32 0.0, %v7310
      %v7312 = vpop.f32.mrb[0].mxu0
      %7313 = vmatprep.mubr.bf16.mxu0 0
      %7314 = vmatmul.mubr.bf16.gmra.mrb[0].mxu0 %v7112
      %v7315 = vpop.f32.mrb[0].mxu0
      %v7316 = vadd.f32 0.0, %v7315
      %v7317 = vpop.f32.mrb[0].mxu0
      %v7318 = vpop.f32.mrb[0].mxu0
      %v7319 = vadd.f32 0.0, %v7318
      %v7320 = vpop.f32.mrb[0].mxu0
      %7321 = vmatprep.mubr.bf16.mxu0 0
      %7322 = vmatmul.mubr.bf16.gmra.mrb[0].mxu0 %v7115
      %v7323 = vpop.f32.mrb[0].mxu0
      %v7324 = vadd.f32 0.0, %v7323
      %v7325 = vpop.f32.mrb[0].mxu0
      %v7326 = vpop.f32.mrb[0].mxu0
      %v7327 = vadd.f32 0.0, %v7326
      %v7328 = vpop.f32.mrb[0].mxu0
      %7329 = vmatprep.mubr.bf16.mxu0 0
      %7330 = vmatmul.mubr.bf16.gmra.mrb[0].mxu0 %v7118
      %v7331 = vpop.f32.mrb[0].mxu0
      %v7332 = vadd.f32 0.0, %v7331
      %v7333 = vpop.f32.mrb[0].mxu0
      %v7334 = vpop.f32.mrb[0].mxu0
      %v7335 = vadd.f32 0.0, %v7334
      %v7336 = vpop.f32.mrb[0].mxu0
      %7337 = vmatprep.mubr.bf16.mxu0 0
      %7338 = vmatmul.mubr.bf16.gmra.mrb[0].mxu0 %v7121
      %v7339 = vpop.f32.mrb[0].mxu0
      %v7340 = vadd.f32 0.0, %v7339
      %v7341 = vpop.f32.mrb[0].mxu0
      %v7342 = vpop.f32.mrb[0].mxu0
      %v7343 = vadd.f32 0.0, %v7342
      %v7344 = vpop.f32.mrb[0].mxu0
      %7345 = vmatprep.mubr.bf16.mxu0 0
      %7346 = vmatmul.mubr.bf16.gmra.mrb[0].mxu0 %v7124
      %v7347 = vpop.f32.mrb[0].mxu0
      %v7348 = vadd.f32 0.0, %v7347
      %v7349 = vpop.f32.mrb[0].mxu0
      %v7350 = vpop.f32.mrb[0].mxu0
      %v7351 = vadd.f32 0.0, %v7350
      %v7352 = vpop.f32.mrb[0].mxu0
      %7353 = vdwg.mxu0
      %v7354 = vsel %vm391, %v6830, 0
      %v7356 = vsel %vm391, %v6831, 0
      %v7358 = vsel %vm391, %v6832, 0
      %v7360 = vsel %vm391, %v6833, 0
      %v7362 = vsel %vm391, %v6834, 0
      %v7364 = vsel %vm391, %v6835, 0
      %v7366 = vsel %vm391, %v6836, 0
      %v7368 = vsel %vm391, %v6837, 0
      %v7370 = vsel %vm391, %v6838, 0
      %v7372 = vsel %vm391, %v6839, 0
      %v7374 = vsel %vm391, %v6840, 0
      %v7376 = vsel %vm391, %v6841, 0
      %v7378 = vsel %vm391, %v6842, 0
      %v7380 = vsel %vm391, %v6843, 0
      %v7382 = vsel %vm391, %v6844, 0
      %v7384 = vsel %vm391, %v6845, 0
      %v7386 = vsel %vm391, %v6846, 0
      %v7388 = vsel %vm391, %v6847, 0
      %v7390 = vsel %vm391, %v6848, 0
      %v7392 = vsel %vm391, %v6849, 0
      %v7394 = vsel %vm391, %v6850, 0
      %v7396 = vsel %vm391, %v6851, 0
      %v7398 = vsel %vm391, %v6852, 0
      %v7400 = vsel %vm391, %v6853, 0
      %v7403 = vsel %vm853, %v6854, 0
      %7405 = vmatprep.subr.bf16.mxu0 0
      %7406 = vmatpush1.bf16.msra.mxu0 %v7403
      %7407 = vmatprep.subr.bf16.mxu0 0
      %7408 = vmatpush1.bf16.msra.mxu0 0
      %7409 = vmatprep.subr.bf16.mxu0 0
      %7410 = vmatpush1.bf16.msra.mxu0 0
      %7411 = vmatprep.subr.bf16.mxu0 0
      %7412 = vmatpush1.bf16.msra.mxu0 0
      %7413 = vmatprep.subr.bf16.mxu0 0
      %7414 = vmatpush1.bf16.msra.mxu0 0
      %7415 = vmatprep.subr.bf16.mxu0 0
      %7416 = vmatpush1.bf16.msra.mxu0 0
      %7417 = vmatprep.subr.bf16.mxu0 0
      %7418 = vmatpush1.bf16.msra.mxu0 0
      %7419 = vmatprep.subr.bf16.mxu0 0
      %7420 = vmatpush1.bf16.msra.mxu0 0
      %7421 = vmatprep.subr.bf16.mxu0 0
      %7422 = vmatpush1.bf16.msra.mxu0 0
      %7423 = vmatprep.subr.bf16.mxu0 0
      %7424 = vmatpush1.bf16.msra.mxu0 0
      %7425 = vmatprep.subr.bf16.mxu0 0
      %7426 = vmatpush1.bf16.msra.mxu0 0
      %7427 = vmatprep.subr.bf16.mxu0 0
      %7428 = vmatpush1.bf16.msra.mxu0 0
      %7429 = vmatprep.subr.bf16.mxu0 0
      %7430 = vmatpush1.bf16.msra.mxu0 0
      %7431 = vmatprep.subr.bf16.mxu0 0
      %7432 = vmatpush1.bf16.msra.mxu0 0
      %7433 = vmatprep.subr.bf16.mxu0 0
      %7434 = vmatpush1.bf16.msra.mxu0 0
      %7435 = vmatprep.subr.bf16.mxu0 0
      %7436 = vmatpush1.bf16.msra.mxu0 0
      %7437 = vmatprep.mubr.bf16.mxu0 0
      %7438 = vmatmul.mubr.bf16.gmra.mrb[0].mxu0 %v7354
      %v7439 = vpop.f32.mrb[0].mxu0
      %v7440 = vadd.f32 %v7164, %v7439
      %v7441 = vpop.f32.mrb[0].mxu0
      %v7442 = vpop.f32.mrb[0].mxu0
      %v7443 = vadd.f32 %v7167, %v7442
      %v7444 = vpop.f32.mrb[0].mxu0
      %7445 = vmatprep.mubr.bf16.mxu0 0
      %7446 = vmatmul.mubr.bf16.gmra.mrb[0].mxu0 %v7356
      %v7447 = vpop.f32.mrb[0].mxu0
      %v7448 = vadd.f32 %v7172, %v7447
      %v7449 = vpop.f32.mrb[0].mxu0
      %v7450 = vpop.f32.mrb[0].mxu0
      %v7451 = vadd.f32 %v7175, %v7450
      %v7452 = vpop.f32.mrb[0].mxu0
      %7453 = vmatprep.mubr.bf16.mxu0 0
      %7454 = vmatmul.mubr.bf16.gmra.mrb[0].mxu0 %v7358
      %v7455 = vpop.f32.mrb[0].mxu0
      %v7456 = vadd.f32 %v7180, %v7455
      %v7457 = vpop.f32.mrb[0].mxu0
      %v7458 = vpop.f32.mrb[0].mxu0
      %v7459 = vadd.f32 %v7183, %v7458
      %v7460 = vpop.f32.mrb[0].mxu0
      %7461 = vmatprep.mubr.bf16.mxu0 0
      %7462 = vmatmul.mubr.bf16.gmra.mrb[0].mxu0 %v7360
      %v7463 = vpop.f32.mrb[0].mxu0
      %v7464 = vadd.f32 %v7188, %v7463
      %v7465 = vpop.f32.mrb[0].mxu0
      %v7466 = vpop.f32.mrb[0].mxu0
      %v7467 = vadd.f32 %v7191, %v7466
      %v7468 = vpop.f32.mrb[0].mxu0
      %7469 = vmatprep.mubr.bf16.mxu0 0
      %7470 = vmatmul.mubr.bf16.gmra.mrb[0].mxu0 %v7362
      %v7471 = vpop.f32.mrb[0].mxu0
      %v7472 = vadd.f32 %v7196, %v7471
      %v7473 = vpop.f32.mrb[0].mxu0
      %v7474 = vpop.f32.mrb[0].mxu0
      %v7475 = vadd.f32 %v7199, %v7474
      %v7476 = vpop.f32.mrb[0].mxu0
      %7477 = vmatprep.mubr.bf16.mxu0 0
      %7478 = vmatmul.mubr.bf16.gmra.mrb[0].mxu0 %v7364
      %v7479 = vpop.f32.mrb[0].mxu0
      %v7480 = vadd.f32 %v7204, %v7479
      %v7481 = vpop.f32.mrb[0].mxu0
      %v7482 = vpop.f32.mrb[0].mxu0
      %v7483 = vadd.f32 %v7207, %v7482
      %v7484 = vpop.f32.mrb[0].mxu0
      %7485 = vmatprep.mubr.bf16.mxu0 0
      %7486 = vmatmul.mubr.bf16.gmra.mrb[0].mxu0 %v7366
      %v7487 = vpop.f32.mrb[0].mxu0
      %v7488 = vadd.f32 %v7212, %v7487
      %v7489 = vpop.f32.mrb[0].mxu0
      %v7490 = vpop.f32.mrb[0].mxu0
      %v7491 = vadd.f32 %v7215, %v7490
      %v7492 = vpop.f32.mrb[0].mxu0
      %7493 = vmatprep.mubr.bf16.mxu0 0
      %7494 = vmatmul.mubr.bf16.gmra.mrb[0].mxu0 %v7368
      %v7495 = vpop.f32.mrb[0].mxu0
      %v7496 = vadd.f32 %v7220, %v7495
      %v7497 = vpop.f32.mrb[0].mxu0
      %v7498 = vpop.f32.mrb[0].mxu0
      %v7499 = vadd.f32 %v7223, %v7498
      %v7500 = vpop.f32.mrb[0].mxu0
      %7501 = vmatprep.mubr.bf16.mxu0 0
      %7502 = vmatmul.mubr.bf16.gmra.mrb[0].mxu0 %v7370
      %v7503 = vpop.f32.mrb[0].mxu0
      %v7504 = vadd.f32 %v7228, %v7503
      %v7505 = vpop.f32.mrb[0].mxu0
      %v7506 = vpop.f32.mrb[0].mxu0
      %v7507 = vadd.f32 %v7231, %v7506
      %v7508 = vpop.f32.mrb[0].mxu0
      %7509 = vmatprep.mubr.bf16.mxu0 0
      %7510 = vmatmul.mubr.bf16.gmra.mrb[0].mxu0 %v7372
      %v7511 = vpop.f32.mrb[0].mxu0
      %v7512 = vadd.f32 %v7236, %v7511
      %v7513 = vpop.f32.mrb[0].mxu0
      %v7514 = vpop.f32.mrb[0].mxu0
      %v7515 = vadd.f32 %v7239, %v7514
      %v7516 = vpop.f32.mrb[0].mxu0
      %7517 = vmatprep.mubr.bf16.mxu0 0
      %7518 = vmatmul.mubr.bf16.gmra.mrb[0].mxu0 %v7374
      %v7519 = vpop.f32.mrb[0].mxu0
      %v7520 = vadd.f32 %v7244, %v7519
      %v7521 = vpop.f32.mrb[0].mxu0
      %v7522 = vpop.f32.mrb[0].mxu0
      %v7523 = vadd.f32 %v7247, %v7522
      %v7524 = vpop.f32.mrb[0].mxu0
      %7525 = vmatprep.mubr.bf16.mxu0 0
      %7526 = vmatmul.mubr.bf16.gmra.mrb[0].mxu0 %v7376
      %v7527 = vpop.f32.mrb[0].mxu0
      %v7528 = vadd.f32 %v7252, %v7527
      %v7529 = vpop.f32.mrb[0].mxu0
      %v7530 = vpop.f32.mrb[0].mxu0
      %v7531 = vadd.f32 %v7255, %v7530
      %v7532 = vpop.f32.mrb[0].mxu0
      %7533 = vmatprep.mubr.bf16.mxu0 0
      %7534 = vmatmul.mubr.bf16.gmra.mrb[0].mxu0 %v7378
      %v7535 = vpop.f32.mrb[0].mxu0
      %v7536 = vadd.f32 %v7260, %v7535
      %v7537 = vpop.f32.mrb[0].mxu0
      %v7538 = vpop.f32.mrb[0].mxu0
      %v7539 = vadd.f32 %v7263, %v7538
      %v7540 = vpop.f32.mrb[0].mxu0
      %7541 = vmatprep.mubr.bf16.mxu0 0
      %7542 = vmatmul.mubr.bf16.gmra.mrb[0].mxu0 %v7380
      %v7543 = vpop.f32.mrb[0].mxu0
      %v7544 = vadd.f32 %v7268, %v7543
      %v7545 = vpop.f32.mrb[0].mxu0
      %v7546 = vpop.f32.mrb[0].mxu0
      %v7547 = vadd.f32 %v7271, %v7546
      %v7548 = vpop.f32.mrb[0].mxu0
      %7549 = vmatprep.mubr.bf16.mxu0 0
      %7550 = vmatmul.mubr.bf16.gmra.mrb[0].mxu0 %v7382
      %v7551 = vpop.f32.mrb[0].mxu0
      %v7552 = vadd.f32 %v7276, %v7551
      %v7553 = vpop.f32.mrb[0].mxu0
      %v7554 = vpop.f32.mrb[0].mxu0
      %v7555 = vadd.f32 %v7279, %v7554
      %v7556 = vpop.f32.mrb[0].mxu0
      %7557 = vmatprep.mubr.bf16.mxu0 0
      %7558 = vmatmul.mubr.bf16.gmra.mrb[0].mxu0 %v7384
      %v7559 = vpop.f32.mrb[0].mxu0
      %v7560 = vadd.f32 %v7284, %v7559
      %v7561 = vpop.f32.mrb[0].mxu0
      %v7562 = vpop.f32.mrb[0].mxu0
      %v7563 = vadd.f32 %v7287, %v7562
      %v7564 = vpop.f32.mrb[0].mxu0
      %7565 = vmatprep.mubr.bf16.mxu0 0
      %7566 = vmatmul.mubr.bf16.gmra.mrb[0].mxu0 %v7386
      %v7567 = vpop.f32.mrb[0].mxu0
      %v7568 = vadd.f32 %v7292, %v7567
      %v7569 = vpop.f32.mrb[0].mxu0
      %v7570 = vpop.f32.mrb[0].mxu0
      %v7571 = vadd.f32 %v7295, %v7570
      %v7572 = vpop.f32.mrb[0].mxu0
      %7573 = vmatprep.mubr.bf16.mxu0 0
      %7574 = vmatmul.mubr.bf16.gmra.mrb[0].mxu0 %v7388
      %v7575 = vpop.f32.mrb[0].mxu0
      %v7576 = vadd.f32 %v7300, %v7575
      %v7577 = vpop.f32.mrb[0].mxu0
      %v7578 = vpop.f32.mrb[0].mxu0
      %v7579 = vadd.f32 %v7303, %v7578
      %v7580 = vpop.f32.mrb[0].mxu0
      %7581 = vmatprep.mubr.bf16.mxu0 0
      %7582 = vmatmul.mubr.bf16.gmra.mrb[0].mxu0 %v7390
      %v7583 = vpop.f32.mrb[0].mxu0
      %v7584 = vadd.f32 %v7308, %v7583
      %v7585 = vpop.f32.mrb[0].mxu0
      %v7586 = vpop.f32.mrb[0].mxu0
      %v7587 = vadd.f32 %v7311, %v7586
      %v7588 = vpop.f32.mrb[0].mxu0
      %7589 = vmatprep.mubr.bf16.mxu0 0
      %7590 = vmatmul.mubr.bf16.gmra.mrb[0].mxu0 %v7392
      %v7591 = vpop.f32.mrb[0].mxu0
      %v7592 = vadd.f32 %v7316, %v7591
      %v7593 = vpop.f32.mrb[0].mxu0
      %v7594 = vpop.f32.mrb[0].mxu0
      %v7595 = vadd.f32 %v7319, %v7594
      %v7596 = vpop.f32.mrb[0].mxu0
      %7597 = vmatprep.mubr.bf16.mxu0 0
      %7598 = vmatmul.mubr.bf16.gmra.mrb[0].mxu0 %v7394
      %v7599 = vpop.f32.mrb[0].mxu0
      %v7600 = vadd.f32 %v7324, %v7599
      %v7601 = vpop.f32.mrb[0].mxu0
      %v7602 = vpop.f32.mrb[0].mxu0
      %v7603 = vadd.f32 %v7327, %v7602
      %v7604 = vpop.f32.mrb[0].mxu0
      %7605 = vmatprep.mubr.bf16.mxu0 0
      %7606 = vmatmul.mubr.bf16.gmra.mrb[0].mxu0 %v7396
      %v7607 = vpop.f32.mrb[0].mxu0
      %v7608 = vadd.f32 %v7332, %v7607
      %v7609 = vpop.f32.mrb[0].mxu0
      %v7610 = vpop.f32.mrb[0].mxu0
      %v7611 = vadd.f32 %v7335, %v7610
      %v7612 = vpop.f32.mrb[0].mxu0
      %7613 = vmatprep.mubr.bf16.mxu0 0
      %7614 = vmatmul.mubr.bf16.gmra.mrb[0].mxu0 %v7398
      %v7615 = vpop.f32.mrb[0].mxu0
      %v7616 = vadd.f32 %v7340, %v7615
      %v7617 = vpop.f32.mrb[0].mxu0
      %v7618 = vpop.f32.mrb[0].mxu0
      %v7619 = vadd.f32 %v7343, %v7618
      %v7620 = vpop.f32.mrb[0].mxu0
      %7621 = vmatprep.mubr.bf16.mxu0 0
      %7622 = vmatmul.mubr.bf16.gmra.mrb[0].mxu0 %v7400
      %v7623 = vpop.f32.mrb[0].mxu0
      %v7624 = vadd.f32 %v7348, %v7623
      %v7625 = vpop.f32.mrb[0].mxu0
      %v7626 = vpop.f32.mrb[0].mxu0
      %v7627 = vadd.f32 %v7351, %v7626
      %v7628 = vpop.f32.mrb[0].mxu0
      %7629 = vdwg.mxu0
      %v7630 = vld [vmem:[#allocation2] sm:$0xfe]
      %s7631 = scalar_lea.vmem %s5, 8
      %v7632 = vld [vmem:[%s7631] sm:$0xf]
      %v7658 = vrot.slane %v7630, 1
      %v7659 = vrot.slane %v6831, 1
      %v7660 = vsel %vm1364, %v7658, %v7659
      %v7661 = vrot.slane %v6832, 1
      %v7662 = vsel %vm1364, %v7659, %v7661
      %v7663 = vrot.slane %v6833, 1
      %v7664 = vsel %vm1364, %v7661, %v7663
      %v7665 = vrot.slane %v6834, 1
      %v7666 = vsel %vm1364, %v7663, %v7665
      %v7667 = vrot.slane %v6835, 1
      %v7668 = vsel %vm1364, %v7665, %v7667
      %v7669 = vrot.slane %v6836, 1
      %v7670 = vsel %vm1364, %v7667, %v7669
      %v7671 = vrot.slane %v6837, 1
      %v7672 = vsel %vm1364, %v7669, %v7671
      %v7673 = vrot.slane %v6838, 1
      %v7674 = vsel %vm1364, %v7671, %v7673
      %v7675 = vrot.slane %v6839, 1
      %v7676 = vsel %vm1364, %v7673, %v7675
      %v7677 = vrot.slane %v6840, 1
      %v7678 = vsel %vm1364, %v7675, %v7677
      %v7679 = vrot.slane %v6841, 1
      %v7680 = vsel %vm1364, %v7677, %v7679
      %v7681 = vrot.slane %v6842, 1
      %v7682 = vsel %vm1364, %v7679, %v7681
      %v7683 = vrot.slane %v6843, 1
      %v7684 = vsel %vm1364, %v7681, %v7683
      %v7685 = vrot.slane %v6844, 1
      %v7686 = vsel %vm1364, %v7683, %v7685
      %v7687 = vrot.slane %v6845, 1
      %v7688 = vsel %vm1364, %v7685, %v7687
      %v7689 = vrot.slane %v6846, 1
      %v7690 = vsel %vm1364, %v7687, %v7689
      %v7691 = vrot.slane %v6847, 1
      %v7692 = vsel %vm1364, %v7689, %v7691
      %v7693 = vrot.slane %v6848, 1
      %v7694 = vsel %vm1364, %v7691, %v7693
      %v7695 = vrot.slane %v6849, 1
      %v7696 = vsel %vm1364, %v7693, %v7695
      %v7697 = vrot.slane %v6850, 1
      %v7698 = vsel %vm1364, %v7695, %v7697
      %v7699 = vrot.slane %v6851, 1
      %v7700 = vsel %vm1364, %v7697, %v7699
      %v7701 = vrot.slane %v6852, 1
      %v7702 = vsel %vm1364, %v7699, %v7701
      %v7703 = vrot.slane %v6853, 1
      %v7704 = vsel %vm1364, %v7701, %v7703
      %v7705 = vrot.slane %v6855, 1
      %v7706 = vsel %vm1364, %v7703, %v7705
      %v7708 = vsel %vm391, %v7660, 0
      %v7711 = vsel %vm391, %v7662, 0
      %v7714 = vsel %vm391, %v7664, 0
      %v7717 = vsel %vm391, %v7666, 0
      %v7720 = vsel %vm391, %v7668, 0
      %v7723 = vsel %vm391, %v7670, 0
      %v7726 = vsel %vm391, %v7672, 0
      %v7729 = vsel %vm391, %v7674, 0
      %v7732 = vsel %vm391, %v7676, 0
      %v7735 = vsel %vm391, %v7678, 0
      %v7738 = vsel %vm391, %v7680, 0
      %v7741 = vsel %vm391, %v7682, 0
      %v7744 = vsel %vm391, %v7684, 0
      %v7747 = vsel %vm391, %v7686, 0
      %v7750 = vsel %vm391, %v7688, 0
      %v7753 = vsel %vm391, %v7690, 0
      %v7756 = vsel %vm391, %v7692, 0
      %v7759 = vsel %vm391, %v7694, 0
      %v7762 = vsel %vm391, %v7696, 0
      %v7765 = vsel %vm391, %v7698, 0
      %v7768 = vsel %vm391, %v7700, 0
      %v7771 = vsel %vm391, %v7702, 0
      %v7774 = vsel %vm391, %v7704, 0
      %v7777 = vsel %vm391, %v7706, 0
      %v7780 = vsel %vm853, %v7632, 0
      %7782 = vmatprep.subr.bf16.mxu0 0
      %7783 = vmatpush1.bf16.msra.mxu0 %v7780
      %7784 = vmatprep.subr.bf16.mxu0 0
      %7785 = vmatpush1.bf16.msra.mxu0 0
      %7786 = vmatprep.subr.bf16.mxu0 0
      %7787 = vmatpush1.bf16.msra.mxu0 0
      %7788 = vmatprep.subr.bf16.mxu0 0
      %7789 = vmatpush1.bf16.msra.mxu0 0
      %7790 = vmatprep.subr.bf16.mxu0 0
      %7791 = vmatpush1.bf16.msra.mxu0 0
      %7792 = vmatprep.subr.bf16.mxu0 0
      %7793 = vmatpush1.bf16.msra.mxu0 0
      %7794 = vmatprep.subr.bf16.mxu0 0
      %7795 = vmatpush1.bf16.msra.mxu0 0
      %7796 = vmatprep.subr.bf16.mxu0 0
      %7797 = vmatpush1.bf16.msra.mxu0 0
      %7798 = vmatprep.subr.bf16.mxu0 0
      %7799 = vmatpush1.bf16.msra.mxu0 0
      %7800 = vmatprep.subr.bf16.mxu0 0
      %7801 = vmatpush1.bf16.msra.mxu0 0
      %7802 = vmatprep.subr.bf16.mxu0 0
      %7803 = vmatpush1.bf16.msra.mxu0 0
      %7804 = vmatprep.subr.bf16.mxu0 0
      %7805 = vmatpush1.bf16.msra.mxu0 0
      %7806 = vmatprep.subr.bf16.mxu0 0
      %7807 = vmatpush1.bf16.msra.mxu0 0
      %7808 = vmatprep.subr.bf16.mxu0 0
      %7809 = vmatpush1.bf16.msra.mxu0 0
      %7810 = vmatprep.subr.bf16.mxu0 0
      %7811 = vmatpush1.bf16.msra.mxu0 0
      %7812 = vmatprep.subr.bf16.mxu0 0
      %7813 = vmatpush1.bf16.msra.mxu0 0
      %7814 = vmatprep.mubr.bf16.mxu0 0
      %7815 = vmatmul.mubr.bf16.gmra.mrb[0].mxu0 %v7708
      %v7816 = vpop.f32.mrb[0].mxu0
      %v7817 = vadd.f32 0.0, %v7816
      %v7818 = vpop.f32.mrb[0].mxu0
      %v7819 = vpop.f32.mrb[0].mxu0
      %v7820 = vadd.f32 0.0, %v7819
      %v7821 = vpop.f32.mrb[0].mxu0
      %7822 = vmatprep.mubr.bf16.mxu0 0
      %7823 = vmatmul.mubr.bf16.gmra.mrb[0].mxu0 %v7711
      %v7824 = vpop.f32.mrb[0].mxu0
      %v7825 = vadd.f32 0.0, %v7824
      %v7826 = vpop.f32.mrb[0].mxu0
      %v7827 = vpop.f32.mrb[0].mxu0
      %v7828 = vadd.f32 0.0, %v7827
      %v7829 = vpop.f32.mrb[0].mxu0
      %7830 = vmatprep.mubr.bf16.mxu0 0
      %7831 = vmatmul.mubr.bf16.gmra.mrb[0].mxu0 %v7714
      %v7832 = vpop.f32.mrb[0].mxu0
      %v7833 = vadd.f32 0.0, %v7832
      %v7834 = vpop.f32.mrb[0].mxu0
      %v7835 = vpop.f32.mrb[0].mxu0
      %v7836 = vadd.f32 0.0, %v7835
      %v7837 = vpop.f32.mrb[0].mxu0
      %7838 = vmatprep.mubr.bf16.mxu0 0
      %7839 = vmatmul.mubr.bf16.gmra.mrb[0].mxu0 %v7717
      %v7840 = vpop.f32.mrb[0].mxu0
      %v7841 = vadd.f32 0.0, %v7840
      %v7842 = vpop.f32.mrb[0].mxu0
      %v7843 = vpop.f32.mrb[0].mxu0
      %v7844 = vadd.f32 0.0, %v7843
      %v7845 = vpop.f32.mrb[0].mxu0
      %7846 = vmatprep.mubr.bf16.mxu0 0
      %7847 = vmatmul.mubr.bf16.gmra.mrb[0].mxu0 %v7720
      %v7848 = vpop.f32.mrb[0].mxu0
      %v7849 = vadd.f32 0.0, %v7848
      %v7850 = vpop.f32.mrb[0].mxu0
      %v7851 = vpop.f32.mrb[0].mxu0
      %v7852 = vadd.f32 0.0, %v7851
      %v7853 = vpop.f32.mrb[0].mxu0
      %7854 = vmatprep.mubr.bf16.mxu0 0
      %7855 = vmatmul.mubr.bf16.gmra.mrb[0].mxu0 %v7723
      %v7856 = vpop.f32.mrb[0].mxu0
      %v7857 = vadd.f32 0.0, %v7856
      %v7858 = vpop.f32.mrb[0].mxu0
      %v7859 = vpop.f32.mrb[0].mxu0
      %v7860 = vadd.f32 0.0, %v7859
      %v7861 = vpop.f32.mrb[0].mxu0
      %7862 = vmatprep.mubr.bf16.mxu0 0
      %7863 = vmatmul.mubr.bf16.gmra.mrb[0].mxu0 %v7726
      %v7864 = vpop.f32.mrb[0].mxu0
      %v7865 = vadd.f32 0.0, %v7864
      %v7866 = vpop.f32.mrb[0].mxu0
      %v7867 = vpop.f32.mrb[0].mxu0
      %v7868 = vadd.f32 0.0, %v7867
      %v7869 = vpop.f32.mrb[0].mxu0
      %7870 = vmatprep.mubr.bf16.mxu0 0
      %7871 = vmatmul.mubr.bf16.gmra.mrb[0].mxu0 %v7729
      %v7872 = vpop.f32.mrb[0].mxu0
      %v7873 = vadd.f32 0.0, %v7872
      %v7874 = vpop.f32.mrb[0].mxu0
      %v7875 = vpop.f32.mrb[0].mxu0
      %v7876 = vadd.f32 0.0, %v7875
      %v7877 = vpop.f32.mrb[0].mxu0
      %7878 = vmatprep.mubr.bf16.mxu0 0
      %7879 = vmatmul.mubr.bf16.gmra.mrb[0].mxu0 %v7732
      %v7880 = vpop.f32.mrb[0].mxu0
      %v7881 = vadd.f32 0.0, %v7880
      %v7882 = vpop.f32.mrb[0].mxu0
      %v7883 = vpop.f32.mrb[0].mxu0
      %v7884 = vadd.f32 0.0, %v7883
      %v7885 = vpop.f32.mrb[0].mxu0
      %7886 = vmatprep.mubr.bf16.mxu0 0
      %7887 = vmatmul.mubr.bf16.gmra.mrb[0].mxu0 %v7735
      %v7888 = vpop.f32.mrb[0].mxu0
      %v7889 = vadd.f32 0.0, %v7888
      %v7890 = vpop.f32.mrb[0].mxu0
      %v7891 = vpop.f32.mrb[0].mxu0
      %v7892 = vadd.f32 0.0, %v7891
      %v7893 = vpop.f32.mrb[0].mxu0
      %7894 = vmatprep.mubr.bf16.mxu0 0
      %7895 = vmatmul.mubr.bf16.gmra.mrb[0].mxu0 %v7738
      %v7896 = vpop.f32.mrb[0].mxu0
      %v7897 = vadd.f32 0.0, %v7896
      %v7898 = vpop.f32.mrb[0].mxu0
      %v7899 = vpop.f32.mrb[0].mxu0
      %v7900 = vadd.f32 0.0, %v7899
      %v7901 = vpop.f32.mrb[0].mxu0
      %7902 = vmatprep.mubr.bf16.mxu0 0
      %7903 = vmatmul.mubr.bf16.gmra.mrb[0].mxu0 %v7741
      %v7904 = vpop.f32.mrb[0].mxu0
      %v7905 = vadd.f32 0.0, %v7904
      %v7906 = vpop.f32.mrb[0].mxu0
      %v7907 = vpop.f32.mrb[0].mxu0
      %v7908 = vadd.f32 0.0, %v7907
      %v7909 = vpop.f32.mrb[0].mxu0
      %7910 = vmatprep.mubr.bf16.mxu0 0
      %7911 = vmatmul.mubr.bf16.gmra.mrb[0].mxu0 %v7744
      %v7912 = vpop.f32.mrb[0].mxu0
      %v7913 = vadd.f32 0.0, %v7912
      %v7914 = vpop.f32.mrb[0].mxu0
      %v7915 = vpop.f32.mrb[0].mxu0
      %v7916 = vadd.f32 0.0, %v7915
      %v7917 = vpop.f32.mrb[0].mxu0
      %7918 = vmatprep.mubr.bf16.mxu0 0
      %7919 = vmatmul.mubr.bf16.gmra.mrb[0].mxu0 %v7747
      %v7920 = vpop.f32.mrb[0].mxu0
      %v7921 = vadd.f32 0.0, %v7920
      %v7922 = vpop.f32.mrb[0].mxu0
      %v7923 = vpop.f32.mrb[0].mxu0
      %v7924 = vadd.f32 0.0, %v7923
      %v7925 = vpop.f32.mrb[0].mxu0
      %7926 = vmatprep.mubr.bf16.mxu0 0
      %7927 = vmatmul.mubr.bf16.gmra.mrb[0].mxu0 %v7750
      %v7928 = vpop.f32.mrb[0].mxu0
      %v7929 = vadd.f32 0.0, %v7928
      %v7930 = vpop.f32.mrb[0].mxu0
      %v7931 = vpop.f32.mrb[0].mxu0
      %v7932 = vadd.f32 0.0, %v7931
      %v7933 = vpop.f32.mrb[0].mxu0
      %7934 = vmatprep.mubr.bf16.mxu0 0
      %7935 = vmatmul.mubr.bf16.gmra.mrb[0].mxu0 %v7753
      %v7936 = vpop.f32.mrb[0].mxu0
      %v7937 = vadd.f32 0.0, %v7936
      %v7938 = vpop.f32.mrb[0].mxu0
      %v7939 = vpop.f32.mrb[0].mxu0
      %v7940 = vadd.f32 0.0, %v7939
      %v7941 = vpop.f32.mrb[0].mxu0
      %7942 = vmatprep.mubr.bf16.mxu0 0
      %7943 = vmatmul.mubr.bf16.gmra.mrb[0].mxu0 %v7756
      %v7944 = vpop.f32.mrb[0].mxu0
      %v7945 = vadd.f32 0.0, %v7944
      %v7946 = vpop.f32.mrb[0].mxu0
      %v7947 = vpop.f32.mrb[0].mxu0
      %v7948 = vadd.f32 0.0, %v7947
      %v7949 = vpop.f32.mrb[0].mxu0
      %7950 = vmatprep.mubr.bf16.mxu0 0
      %7951 = vmatmul.mubr.bf16.gmra.mrb[0].mxu0 %v7759
      %v7952 = vpop.f32.mrb[0].mxu0
      %v7953 = vadd.f32 0.0, %v7952
      %v7954 = vpop.f32.mrb[0].mxu0
      %v7955 = vpop.f32.mrb[0].mxu0
      %v7956 = vadd.f32 0.0, %v7955
      %v7957 = vpop.f32.mrb[0].mxu0
      %7958 = vmatprep.mubr.bf16.mxu0 0
      %7959 = vmatmul.mubr.bf16.gmra.mrb[0].mxu0 %v7762
      %v7960 = vpop.f32.mrb[0].mxu0
      %v7961 = vadd.f32 0.0, %v7960
      %v7962 = vpop.f32.mrb[0].mxu0
      %v7963 = vpop.f32.mrb[0].mxu0
      %v7964 = vadd.f32 0.0, %v7963
      %v7965 = vpop.f32.mrb[0].mxu0
      %7966 = vmatprep.mubr.bf16.mxu0 0
      %7967 = vmatmul.mubr.bf16.gmra.mrb[0].mxu0 %v7765
      %v7968 = vpop.f32.mrb[0].mxu0
      %v7969 = vadd.f32 0.0, %v7968
      %v7970 = vpop.f32.mrb[0].mxu0
      %v7971 = vpop.f32.mrb[0].mxu0
      %v7972 = vadd.f32 0.0, %v7971
      %v7973 = vpop.f32.mrb[0].mxu0
      %7974 = vmatprep.mubr.bf16.mxu0 0
      %7975 = vmatmul.mubr.bf16.gmra.mrb[0].mxu0 %v7768
      %v7976 = vpop.f32.mrb[0].mxu0
      %v7977 = vadd.f32 0.0, %v7976
      %v7978 = vpop.f32.mrb[0].mxu0
      %v7979 = vpop.f32.mrb[0].mxu0
      %v7980 = vadd.f32 0.0, %v7979
      %v7981 = vpop.f32.mrb[0].mxu0
      %7982 = vmatprep.mubr.bf16.mxu0 0
      %7983 = vmatmul.mubr.bf16.gmra.mrb[0].mxu0 %v7771
      %v7984 = vpop.f32.mrb[0].mxu0
      %v7985 = vadd.f32 0.0, %v7984
      %v7986 = vpop.f32.mrb[0].mxu0
      %v7987 = vpop.f32.mrb[0].mxu0
      %v7988 = vadd.f32 0.0, %v7987
      %v7989 = vpop.f32.mrb[0].mxu0
      %7990 = vmatprep.mubr.bf16.mxu0 0
      %7991 = vmatmul.mubr.bf16.gmra.mrb[0].mxu0 %v7774
      %v7992 = vpop.f32.mrb[0].mxu0
      %v7993 = vadd.f32 0.0, %v7992
      %v7994 = vpop.f32.mrb[0].mxu0
      %v7995 = vpop.f32.mrb[0].mxu0
      %v7996 = vadd.f32 0.0, %v7995
      %v7997 = vpop.f32.mrb[0].mxu0
      %7998 = vmatprep.mubr.bf16.mxu0 0
      %7999 = vmatmul.mubr.bf16.gmra.mrb[0].mxu0 %v7777
      %v8000 = vpop.f32.mrb[0].mxu0
      %v8001 = vadd.f32 0.0, %v8000
      %v8002 = vpop.f32.mrb[0].mxu0
      %v8003 = vpop.f32.mrb[0].mxu0
      %v8004 = vadd.f32 0.0, %v8003
      %v8005 = vpop.f32.mrb[0].mxu0
      %8006 = vdwg.mxu0
      %v8007 = vadd.f32 %v7440, %v7817
      %v8008 = vadd.f32 %v7443, %v7820
      %v8009 = vadd.f32 %v7448, %v7825
      %v8010 = vadd.f32 %v7451, %v7828
      %v8011 = vadd.f32 %v7456, %v7833
      %v8012 = vadd.f32 %v7459, %v7836
      %v8013 = vadd.f32 %v7464, %v7841
      %v8014 = vadd.f32 %v7467, %v7844
      %v8015 = vadd.f32 %v7472, %v7849
      %v8016 = vadd.f32 %v7475, %v7852
      %v8017 = vadd.f32 %v7480, %v7857
      %v8018 = vadd.f32 %v7483, %v7860
      %v8019 = vadd.f32 %v7488, %v7865
      %v8020 = vadd.f32 %v7491, %v7868
      %v8021 = vadd.f32 %v7496, %v7873
      %v8022 = vadd.f32 %v7499, %v7876
      %v8023 = vadd.f32 %v7504, %v7881
      %v8024 = vadd.f32 %v7507, %v7884
      %v8025 = vadd.f32 %v7512, %v7889
      %v8026 = vadd.f32 %v7515, %v7892
      %v8027 = vadd.f32 %v7520, %v7897
      %v8028 = vadd.f32 %v7523, %v7900
      %v8029 = vadd.f32 %v7528, %v7905
      %v8030 = vadd.f32 %v7531, %v7908
      %v8031 = vadd.f32 %v7536, %v7913
      %v8032 = vadd.f32 %v7539, %v7916
      %v8033 = vadd.f32 %v7544, %v7921
      %v8034 = vadd.f32 %v7547, %v7924
      %v8035 = vadd.f32 %v7552, %v7929
      %v8036 = vadd.f32 %v7555, %v7932
      %v8037 = vadd.f32 %v7560, %v7937
      %v8038 = vadd.f32 %v7563, %v7940
      %v8039 = vadd.f32 %v7568, %v7945
      %v8040 = vadd.f32 %v7571, %v7948
      %v8041 = vadd.f32 %v7576, %v7953
      %v8042 = vadd.f32 %v7579, %v7956
      %v8043 = vadd.f32 %v7584, %v7961
      %v8044 = vadd.f32 %v7587, %v7964
      %v8045 = vadd.f32 %v7592, %v7969
      %v8046 = vadd.f32 %v7595, %v7972
      %v8047 = vadd.f32 %v7600, %v7977
      %v8048 = vadd.f32 %v7603, %v7980
      %v8049 = vadd.f32 %v7608, %v7985
      %v8050 = vadd.f32 %v7611, %v7988
      %v8051 = vadd.f32 %v7616, %v7993
      %v8052 = vadd.f32 %v7619, %v7996
      %v8053 = vadd.f32 %v7624, %v8001
      %v8054 = vadd.f32 %v7627, %v8004
      %v8055 = vld [vmem:[#allocation2 + $0x8] sm:$0xf0]
      %v8056 = vld [vmem:[#allocation2 + $0x10] sm:$0xff]
      %v8057 = vld [vmem:[#allocation2 + $0x18] sm:$0xff]
      %v8058 = vld [vmem:[#allocation2 + $0x20] sm:$0xff]
      %v8059 = vld [vmem:[#allocation2 + $0x28] sm:$0xff]
      %v8060 = vld [vmem:[#allocation2 + $0x30] sm:$0xff]
      %v8061 = vld [vmem:[#allocation2 + $0x38] sm:$0xff]
      %v8062 = vld [vmem:[#allocation2 + $0x40] sm:$0xff]
      %v8063 = vld [vmem:[#allocation2 + $0x48] sm:$0xff]
      %v8064 = vld [vmem:[#allocation2 + $0x50] sm:$0xff]
      %v8065 = vld [vmem:[#allocation2 + $0x58] sm:$0xff]
      %v8066 = vld [vmem:[#allocation2 + $0x60] sm:$0xff]
      %v8067 = vld [vmem:[#allocation2 + $0x68] sm:$0xff]
      %v8068 = vld [vmem:[#allocation2 + $0x70] sm:$0xff]
      %v8069 = vld [vmem:[#allocation2 + $0x78] sm:$0xff]
      %v8070 = vld [vmem:[#allocation2 + $0x80] sm:$0xff]
      %v8071 = vld [vmem:[#allocation2 + $0x88] sm:$0xff]
      %v8072 = vld [vmem:[#allocation2 + $0x90] sm:$0xff]
      %v8073 = vld [vmem:[#allocation2 + $0x98] sm:$0xff]
      %v8074 = vld [vmem:[#allocation2 + $0xa0] sm:$0xff]
      %v8075 = vld [vmem:[#allocation2 + $0xa8] sm:$0xff]
      %v8076 = vld [vmem:[#allocation2 + $0xb0] sm:$0xff]
      %v8077 = vld [vmem:[#allocation2 + $0xb8] sm:$0xff]
      %v8078 = vld [vmem:[#allocation2 + $0xc0] sm:$0xff]
      %v8079 = vld [vmem:[#allocation2 + $0xc8] sm:$0xf]
      %s8080 = scalar_lea.vmem %s5, 12
      %v8081 = vld [vmem:[%s8080] sm:$0xf]
      %vm8107 = vcmask 1043456
      %v8108 = vrot.slane %v8055, 4
      %v8109 = vrot.slane %v8056, 4
      %v8110 = vsel %vm8107, %v8108, %v8109
      %v8111 = vrot.slane %v8057, 4
      %v8112 = vsel %vm8107, %v8109, %v8111
      %v8113 = vrot.slane %v8058, 4
      %v8114 = vsel %vm8107, %v8111, %v8113
      %v8115 = vrot.slane %v8059, 4
      %v8116 = vsel %vm8107, %v8113, %v8115
      %v8117 = vrot.slane %v8060, 4
      %v8118 = vsel %vm8107, %v8115, %v8117
      %v8119 = vrot.slane %v8061, 4
      %v8120 = vsel %vm8107, %v8117, %v8119
      %v8121 = vrot.slane %v8062, 4
      %v8122 = vsel %vm8107, %v8119, %v8121
      %v8123 = vrot.slane %v8063, 4
      %v8124 = vsel %vm8107, %v8121, %v8123
      %v8125 = vrot.slane %v8064, 4
      %v8126 = vsel %vm8107, %v8123, %v8125
      %v8127 = vrot.slane %v8065, 4
      %v8128 = vsel %vm8107, %v8125, %v8127
      %v8129 = vrot.slane %v8066, 4
      %v8130 = vsel %vm8107, %v8127, %v8129
      %v8131 = vrot.slane %v8067, 4
      %v8132 = vsel %vm8107, %v8129, %v8131
      %v8133 = vrot.slane %v8068, 4
      %v8134 = vsel %vm8107, %v8131, %v8133
      %v8135 = vrot.slane %v8069, 4
      %v8136 = vsel %vm8107, %v8133, %v8135
      %v8137 = vrot.slane %v8070, 4
      %v8138 = vsel %vm8107, %v8135, %v8137
      %v8139 = vrot.slane %v8071, 4
      %v8140 = vsel %vm8107, %v8137, %v8139
      %v8141 = vrot.slane %v8072, 4
      %v8142 = vsel %vm8107, %v8139, %v8141
      %v8143 = vrot.slane %v8073, 4
      %v8144 = vsel %vm8107, %v8141, %v8143
      %v8145 = vrot.slane %v8074, 4
      %v8146 = vsel %vm8107, %v8143, %v8145
      %v8147 = vrot.slane %v8075, 4
      %v8148 = vsel %vm8107, %v8145, %v8147
      %v8149 = vrot.slane %v8076, 4
      %v8150 = vsel %vm8107, %v8147, %v8149
      %v8151 = vrot.slane %v8077, 4
      %v8152 = vsel %vm8107, %v8149, %v8151
      %v8153 = vrot.slane %v8078, 4
      %v8154 = vsel %vm8107, %v8151, %v8153
      %v8155 = vrot.slane %v8079, 4
      %v8156 = vsel %vm8107, %v8153, %v8155
      %v8158 = vsel %vm391, %v8110, 0
      %v8161 = vsel %vm391, %v8112, 0
      %v8164 = vsel %vm391, %v8114, 0
      %v8167 = vsel %vm391, %v8116, 0
      %v8170 = vsel %vm391, %v8118, 0
      %v8173 = vsel %vm391, %v8120, 0
      %v8176 = vsel %vm391, %v8122, 0
      %v8179 = vsel %vm391, %v8124, 0
      %v8182 = vsel %vm391, %v8126, 0
      %v8185 = vsel %vm391, %v8128, 0
      %v8188 = vsel %vm391, %v8130, 0
      %v8191 = vsel %vm391, %v8132, 0
      %v8194 = vsel %vm391, %v8134, 0
      %v8197 = vsel %vm391, %v8136, 0
      %v8200 = vsel %vm391, %v8138, 0
      %v8203 = vsel %vm391, %v8140, 0
      %v8206 = vsel %vm391, %v8142, 0
      %v8209 = vsel %vm391, %v8144, 0
      %v8212 = vsel %vm391, %v8146, 0
      %v8215 = vsel %vm391, %v8148, 0
      %v8218 = vsel %vm391, %v8150, 0
      %v8221 = vsel %vm391, %v8152, 0
      %v8224 = vsel %vm391, %v8154, 0
      %v8227 = vsel %vm391, %v8156, 0
      %v8230 = vsel %vm853, %v8081, 0
      %8232 = vmatprep.subr.bf16.mxu0 0
      %8233 = vmatpush1.bf16.msra.mxu0 %v8230
      %8234 = vmatprep.subr.bf16.mxu0 0
      %8235 = vmatpush1.bf16.msra.mxu0 0
      %8236 = vmatprep.subr.bf16.mxu0 0
      %8237 = vmatpush1.bf16.msra.mxu0 0
      %8238 = vmatprep.subr.bf16.mxu0 0
      %8239 = vmatpush1.bf16.msra.mxu0 0
      %8240 = vmatprep.subr.bf16.mxu0 0
      %8241 = vmatpush1.bf16.msra.mxu0 0
      %8242 = vmatprep.subr.bf16.mxu0 0
      %8243 = vmatpush1.bf16.msra.mxu0 0
      %8244 = vmatprep.subr.bf16.mxu0 0
      %8245 = vmatpush1.bf16.msra.mxu0 0
      %8246 = vmatprep.subr.bf16.mxu0 0
      %8247 = vmatpush1.bf16.msra.mxu0 0
      %8248 = vmatprep.subr.bf16.mxu0 0
      %8249 = vmatpush1.bf16.msra.mxu0 0
      %8250 = vmatprep.subr.bf16.mxu0 0
      %8251 = vmatpush1.bf16.msra.mxu0 0
      %8252 = vmatprep.subr.bf16.mxu0 0
      %8253 = vmatpush1.bf16.msra.mxu0 0
      %8254 = vmatprep.subr.bf16.mxu0 0
      %8255 = vmatpush1.bf16.msra.mxu0 0
      %8256 = vmatprep.subr.bf16.mxu0 0
      %8257 = vmatpush1.bf16.msra.mxu0 0
      %8258 = vmatprep.subr.bf16.mxu0 0
      %8259 = vmatpush1.bf16.msra.mxu0 0
      %8260 = vmatprep.subr.bf16.mxu0 0
      %8261 = vmatpush1.bf16.msra.mxu0 0
      %8262 = vmatprep.subr.bf16.mxu0 0
      %8263 = vmatpush1.bf16.msra.mxu0 0
      %8264 = vmatprep.mubr.bf16.mxu0 0
      %8265 = vmatmul.mubr.bf16.gmra.mrb[0].mxu0 %v8158
      %v8266 = vpop.f32.mrb[0].mxu0
      %v8267 = vadd.f32 0.0, %v8266
      %v8268 = vpop.f32.mrb[0].mxu0
      %v8269 = vpop.f32.mrb[0].mxu0
      %v8270 = vadd.f32 0.0, %v8269
      %v8271 = vpop.f32.mrb[0].mxu0
      %8272 = vmatprep.mubr.bf16.mxu0 0
      %8273 = vmatmul.mubr.bf16.gmra.mrb[0].mxu0 %v8161
      %v8274 = vpop.f32.mrb[0].mxu0
      %v8275 = vadd.f32 0.0, %v8274
      %v8276 = vpop.f32.mrb[0].mxu0
      %v8277 = vpop.f32.mrb[0].mxu0
      %v8278 = vadd.f32 0.0, %v8277
      %v8279 = vpop.f32.mrb[0].mxu0
      %8280 = vmatprep.mubr.bf16.mxu0 0
      %8281 = vmatmul.mubr.bf16.gmra.mrb[0].mxu0 %v8164
      %v8282 = vpop.f32.mrb[0].mxu0
      %v8283 = vadd.f32 0.0, %v8282
      %v8284 = vpop.f32.mrb[0].mxu0
      %v8285 = vpop.f32.mrb[0].mxu0
      %v8286 = vadd.f32 0.0, %v8285
      %v8287 = vpop.f32.mrb[0].mxu0
      %8288 = vmatprep.mubr.bf16.mxu0 0
      %8289 = vmatmul.mubr.bf16.gmra.mrb[0].mxu0 %v8167
      %v8290 = vpop.f32.mrb[0].mxu0
      %v8291 = vadd.f32 0.0, %v8290
      %v8292 = vpop.f32.mrb[0].mxu0
      %v8293 = vpop.f32.mrb[0].mxu0
      %v8294 = vadd.f32 0.0, %v8293
      %v8295 = vpop.f32.mrb[0].mxu0
      %8296 = vmatprep.mubr.bf16.mxu0 0
      %8297 = vmatmul.mubr.bf16.gmra.mrb[0].mxu0 %v8170
      %v8298 = vpop.f32.mrb[0].mxu0
      %v8299 = vadd.f32 0.0, %v8298
      %v8300 = vpop.f32.mrb[0].mxu0
      %v8301 = vpop.f32.mrb[0].mxu0
      %v8302 = vadd.f32 0.0, %v8301
      %v8303 = vpop.f32.mrb[0].mxu0
      %8304 = vmatprep.mubr.bf16.mxu0 0
      %8305 = vmatmul.mubr.bf16.gmra.mrb[0].mxu0 %v8173
      %v8306 = vpop.f32.mrb[0].mxu0
      %v8307 = vadd.f32 0.0, %v8306
      %v8308 = vpop.f32.mrb[0].mxu0
      %v8309 = vpop.f32.mrb[0].mxu0
      %v8310 = vadd.f32 0.0, %v8309
      %v8311 = vpop.f32.mrb[0].mxu0
      %8312 = vmatprep.mubr.bf16.mxu0 0
      %8313 = vmatmul.mubr.bf16.gmra.mrb[0].mxu0 %v8176
      %v8314 = vpop.f32.mrb[0].mxu0
      %v8315 = vadd.f32 0.0, %v8314
      %v8316 = vpop.f32.mrb[0].mxu0
      %v8317 = vpop.f32.mrb[0].mxu0
      %v8318 = vadd.f32 0.0, %v8317
      %v8319 = vpop.f32.mrb[0].mxu0
      %8320 = vmatprep.mubr.bf16.mxu0 0
      %8321 = vmatmul.mubr.bf16.gmra.mrb[0].mxu0 %v8179
      %v8322 = vpop.f32.mrb[0].mxu0
      %v8323 = vadd.f32 0.0, %v8322
      %v8324 = vpop.f32.mrb[0].mxu0
      %v8325 = vpop.f32.mrb[0].mxu0
      %v8326 = vadd.f32 0.0, %v8325
      %v8327 = vpop.f32.mrb[0].mxu0
      %8328 = vmatprep.mubr.bf16.mxu0 0
      %8329 = vmatmul.mubr.bf16.gmra.mrb[0].mxu0 %v8182
      %v8330 = vpop.f32.mrb[0].mxu0
      %v8331 = vadd.f32 0.0, %v8330
      %v8332 = vpop.f32.mrb[0].mxu0
      %v8333 = vpop.f32.mrb[0].mxu0
      %v8334 = vadd.f32 0.0, %v8333
      %v8335 = vpop.f32.mrb[0].mxu0
      %8336 = vmatprep.mubr.bf16.mxu0 0
      %8337 = vmatmul.mubr.bf16.gmra.mrb[0].mxu0 %v8185
      %v8338 = vpop.f32.mrb[0].mxu0
      %v8339 = vadd.f32 0.0, %v8338
      %v8340 = vpop.f32.mrb[0].mxu0
      %v8341 = vpop.f32.mrb[0].mxu0
      %v8342 = vadd.f32 0.0, %v8341
      %v8343 = vpop.f32.mrb[0].mxu0
      %8344 = vmatprep.mubr.bf16.mxu0 0
      %8345 = vmatmul.mubr.bf16.gmra.mrb[0].mxu0 %v8188
      %v8346 = vpop.f32.mrb[0].mxu0
      %v8347 = vadd.f32 0.0, %v8346
      %v8348 = vpop.f32.mrb[0].mxu0
      %v8349 = vpop.f32.mrb[0].mxu0
      %v8350 = vadd.f32 0.0, %v8349
      %v8351 = vpop.f32.mrb[0].mxu0
      %8352 = vmatprep.mubr.bf16.mxu0 0
      %8353 = vmatmul.mubr.bf16.gmra.mrb[0].mxu0 %v8191
      %v8354 = vpop.f32.mrb[0].mxu0
      %v8355 = vadd.f32 0.0, %v8354
      %v8356 = vpop.f32.mrb[0].mxu0
      %v8357 = vpop.f32.mrb[0].mxu0
      %v8358 = vadd.f32 0.0, %v8357
      %v8359 = vpop.f32.mrb[0].mxu0
      %8360 = vmatprep.mubr.bf16.mxu0 0
      %8361 = vmatmul.mubr.bf16.gmra.mrb[0].mxu0 %v8194
      %v8362 = vpop.f32.mrb[0].mxu0
      %v8363 = vadd.f32 0.0, %v8362
      %v8364 = vpop.f32.mrb[0].mxu0
      %v8365 = vpop.f32.mrb[0].mxu0
      %v8366 = vadd.f32 0.0, %v8365
      %v8367 = vpop.f32.mrb[0].mxu0
      %8368 = vmatprep.mubr.bf16.mxu0 0
      %8369 = vmatmul.mubr.bf16.gmra.mrb[0].mxu0 %v8197
      %v8370 = vpop.f32.mrb[0].mxu0
      %v8371 = vadd.f32 0.0, %v8370
      %v8372 = vpop.f32.mrb[0].mxu0
      %v8373 = vpop.f32.mrb[0].mxu0
      %v8374 = vadd.f32 0.0, %v8373
      %v8375 = vpop.f32.mrb[0].mxu0
      %8376 = vmatprep.mubr.bf16.mxu0 0
      %8377 = vmatmul.mubr.bf16.gmra.mrb[0].mxu0 %v8200
      %v8378 = vpop.f32.mrb[0].mxu0
      %v8379 = vadd.f32 0.0, %v8378
      %v8380 = vpop.f32.mrb[0].mxu0
      %v8381 = vpop.f32.mrb[0].mxu0
      %v8382 = vadd.f32 0.0, %v8381
      %v8383 = vpop.f32.mrb[0].mxu0
      %8384 = vmatprep.mubr.bf16.mxu0 0
      %8385 = vmatmul.mubr.bf16.gmra.mrb[0].mxu0 %v8203
      %v8386 = vpop.f32.mrb[0].mxu0
      %v8387 = vadd.f32 0.0, %v8386
      %v8388 = vpop.f32.mrb[0].mxu0
      %v8389 = vpop.f32.mrb[0].mxu0
      %v8390 = vadd.f32 0.0, %v8389
      %v8391 = vpop.f32.mrb[0].mxu0
      %8392 = vmatprep.mubr.bf16.mxu0 0
      %8393 = vmatmul.mubr.bf16.gmra.mrb[0].mxu0 %v8206
      %v8394 = vpop.f32.mrb[0].mxu0
      %v8395 = vadd.f32 0.0, %v8394
      %v8396 = vpop.f32.mrb[0].mxu0
      %v8397 = vpop.f32.mrb[0].mxu0
      %v8398 = vadd.f32 0.0, %v8397
      %v8399 = vpop.f32.mrb[0].mxu0
      %8400 = vmatprep.mubr.bf16.mxu0 0
      %8401 = vmatmul.mubr.bf16.gmra.mrb[0].mxu0 %v8209
      %v8402 = vpop.f32.mrb[0].mxu0
      %v8403 = vadd.f32 0.0, %v8402
      %v8404 = vpop.f32.mrb[0].mxu0
      %v8405 = vpop.f32.mrb[0].mxu0
      %v8406 = vadd.f32 0.0, %v8405
      %v8407 = vpop.f32.mrb[0].mxu0
      %8408 = vmatprep.mubr.bf16.mxu0 0
      %8409 = vmatmul.mubr.bf16.gmra.mrb[0].mxu0 %v8212
      %v8410 = vpop.f32.mrb[0].mxu0
      %v8411 = vadd.f32 0.0, %v8410
      %v8412 = vpop.f32.mrb[0].mxu0
      %v8413 = vpop.f32.mrb[0].mxu0
      %v8414 = vadd.f32 0.0, %v8413
      %v8415 = vpop.f32.mrb[0].mxu0
      %8416 = vmatprep.mubr.bf16.mxu0 0
      %8417 = vmatmul.mubr.bf16.gmra.mrb[0].mxu0 %v8215
      %v8418 = vpop.f32.mrb[0].mxu0
      %v8419 = vadd.f32 0.0, %v8418
      %v8420 = vpop.f32.mrb[0].mxu0
      %v8421 = vpop.f32.mrb[0].mxu0
      %v8422 = vadd.f32 0.0, %v8421
      %v8423 = vpop.f32.mrb[0].mxu0
      %8424 = vmatprep.mubr.bf16.mxu0 0
      %8425 = vmatmul.mubr.bf16.gmra.mrb[0].mxu0 %v8218
      %v8426 = vpop.f32.mrb[0].mxu0
      %v8427 = vadd.f32 0.0, %v8426
      %v8428 = vpop.f32.mrb[0].mxu0
      %v8429 = vpop.f32.mrb[0].mxu0
      %v8430 = vadd.f32 0.0, %v8429
      %v8431 = vpop.f32.mrb[0].mxu0
      %8432 = vmatprep.mubr.bf16.mxu0 0
      %8433 = vmatmul.mubr.bf16.gmra.mrb[0].mxu0 %v8221
      %v8434 = vpop.f32.mrb[0].mxu0
      %v8435 = vadd.f32 0.0, %v8434
      %v8436 = vpop.f32.mrb[0].mxu0
      %v8437 = vpop.f32.mrb[0].mxu0
      %v8438 = vadd.f32 0.0, %v8437
      %v8439 = vpop.f32.mrb[0].mxu0
      %8440 = vmatprep.mubr.bf16.mxu0 0
      %8441 = vmatmul.mubr.bf16.gmra.mrb[0].mxu0 %v8224
      %v8442 = vpop.f32.mrb[0].mxu0
      %v8443 = vadd.f32 0.0, %v8442
      %v8444 = vpop.f32.mrb[0].mxu0
      %v8445 = vpop.f32.mrb[0].mxu0
      %v8446 = vadd.f32 0.0, %v8445
      %v8447 = vpop.f32.mrb[0].mxu0
      %8448 = vmatprep.mubr.bf16.mxu0 0
      %8449 = vmatmul.mubr.bf16.gmra.mrb[0].mxu0 %v8227
      %v8450 = vpop.f32.mrb[0].mxu0
      %v8451 = vadd.f32 0.0, %v8450
      %v8452 = vpop.f32.mrb[0].mxu0
      %v8453 = vpop.f32.mrb[0].mxu0
      %v8454 = vadd.f32 0.0, %v8453
      %v8455 = vpop.f32.mrb[0].mxu0
      %8456 = vdwg.mxu0
      %v8457 = vadd.f32 %v8007, %v8267
      %v8458 = vadd.f32 %v8008, %v8270
      %v8459 = vadd.f32 %v8009, %v8275
      %v8460 = vadd.f32 %v8010, %v8278
      %v8461 = vadd.f32 %v8011, %v8283
      %v8462 = vadd.f32 %v8012, %v8286
      %v8463 = vadd.f32 %v8013, %v8291
      %v8464 = vadd.f32 %v8014, %v8294
      %v8465 = vadd.f32 %v8015, %v8299
      %v8466 = vadd.f32 %v8016, %v8302
      %v8467 = vadd.f32 %v8017, %v8307
      %v8468 = vadd.f32 %v8018, %v8310
      %v8469 = vadd.f32 %v8019, %v8315
      %v8470 = vadd.f32 %v8020, %v8318
      %v8471 = vadd.f32 %v8021, %v8323
      %v8472 = vadd.f32 %v8022, %v8326
      %v8473 = vadd.f32 %v8023, %v8331
      %v8474 = vadd.f32 %v8024, %v8334
      %v8475 = vadd.f32 %v8025, %v8339
      %v8476 = vadd.f32 %v8026, %v8342
      %v8477 = vadd.f32 %v8027, %v8347
      %v8478 = vadd.f32 %v8028, %v8350
      %v8479 = vadd.f32 %v8029, %v8355
      %v8480 = vadd.f32 %v8030, %v8358
      %v8481 = vadd.f32 %v8031, %v8363
      %v8482 = vadd.f32 %v8032, %v8366
      %v8483 = vadd.f32 %v8033, %v8371
      %v8484 = vadd.f32 %v8034, %v8374
      %v8485 = vadd.f32 %v8035, %v8379
      %v8486 = vadd.f32 %v8036, %v8382
      %v8487 = vadd.f32 %v8037, %v8387
      %v8488 = vadd.f32 %v8038, %v8390
      %v8489 = vadd.f32 %v8039, %v8395
      %v8490 = vadd.f32 %v8040, %v8398
      %v8491 = vadd.f32 %v8041, %v8403
      %v8492 = vadd.f32 %v8042, %v8406
      %v8493 = vadd.f32 %v8043, %v8411
      %v8494 = vadd.f32 %v8044, %v8414
      %v8495 = vadd.f32 %v8045, %v8419
      %v8496 = vadd.f32 %v8046, %v8422
      %v8497 = vadd.f32 %v8047, %v8427
      %v8498 = vadd.f32 %v8048, %v8430
      %v8499 = vadd.f32 %v8049, %v8435
      %v8500 = vadd.f32 %v8050, %v8438
      %v8501 = vadd.f32 %v8051, %v8443
      %v8502 = vadd.f32 %v8052, %v8446
      %v8503 = vadd.f32 %v8053, %v8451
      %v8504 = vadd.f32 %v8054, %v8454
      %v8505 = vld [vmem:[#allocation2 + $0xc8] sm:$0x1f]
      %s8506 = scalar_lea.vmem %s5, 16
      %v8507 = vld [vmem:[%s8506] sm:$0xf]
      %vm8508 = vsmask.f32 3328
      %v8510 = vshrl.u32 %v8055, 16
      %v8512 = vrot.slane %v8510, 4
      %v8513 = vshll.u32 %v8055, 16
      %v8515 = vrot.slane %v8513, 5
      %v8516 = vor.u32 %v8512, %v8515
      %v8518 = vshrl.u32 %v8056, 16
      %v8520 = vrot.slane %v8518, 4
      %v8521 = vshll.u32 %v8056, 16
      %v8523 = vrot.slane %v8521, 5
      %v8524 = vor.u32 %v8520, %v8523
      %v8525 = vsel %vm8508, %v8516, %v8524
      %v8527 = vshrl.u32 %v8057, 16
      %v8529 = vrot.slane %v8527, 4
      %v8530 = vshll.u32 %v8057, 16
      %v8532 = vrot.slane %v8530, 5
      %v8533 = vor.u32 %v8529, %v8532
      %v8534 = vsel %vm8508, %v8524, %v8533
      %v8536 = vshrl.u32 %v8058, 16
      %v8538 = vrot.slane %v8536, 4
      %v8539 = vshll.u32 %v8058, 16
      %v8541 = vrot.slane %v8539, 5
      %v8542 = vor.u32 %v8538, %v8541
      %v8543 = vsel %vm8508, %v8533, %v8542
      %v8545 = vshrl.u32 %v8059, 16
      %v8547 = vrot.slane %v8545, 4
      %v8548 = vshll.u32 %v8059, 16
      %v8550 = vrot.slane %v8548, 5
      %v8551 = vor.u32 %v8547, %v8550
      %v8552 = vsel %vm8508, %v8542, %v8551
      %v8554 = vshrl.u32 %v8060, 16
      %v8556 = vrot.slane %v8554, 4
      %v8557 = vshll.u32 %v8060, 16
      %v8559 = vrot.slane %v8557, 5
      %v8560 = vor.u32 %v8556, %v8559
      %v8561 = vsel %vm8508, %v8551, %v8560
      %v8563 = vshrl.u32 %v8061, 16
      %v8565 = vrot.slane %v8563, 4
      %v8566 = vshll.u32 %v8061, 16
      %v8568 = vrot.slane %v8566, 5
      %v8569 = vor.u32 %v8565, %v8568
      %v8570 = vsel %vm8508, %v8560, %v8569
      %v8572 = vshrl.u32 %v8062, 16
      %v8574 = vrot.slane %v8572, 4
      %v8575 = vshll.u32 %v8062, 16
      %v8577 = vrot.slane %v8575, 5
      %v8578 = vor.u32 %v8574, %v8577
      %v8579 = vsel %vm8508, %v8569, %v8578
      %v8581 = vshrl.u32 %v8063, 16
      %v8583 = vrot.slane %v8581, 4
      %v8584 = vshll.u32 %v8063, 16
      %v8586 = vrot.slane %v8584, 5
      %v8587 = vor.u32 %v8583, %v8586
      %v8588 = vsel %vm8508, %v8578, %v8587
      %v8590 = vshrl.u32 %v8064, 16
      %v8592 = vrot.slane %v8590, 4
      %v8593 = vshll.u32 %v8064, 16
      %v8595 = vrot.slane %v8593, 5
      %v8596 = vor.u32 %v8592, %v8595
      %v8597 = vsel %vm8508, %v8587, %v8596
      %v8599 = vshrl.u32 %v8065, 16
      %v8601 = vrot.slane %v8599, 4
      %v8602 = vshll.u32 %v8065, 16
      %v8604 = vrot.slane %v8602, 5
      %v8605 = vor.u32 %v8601, %v8604
      %v8606 = vsel %vm8508, %v8596, %v8605
      %v8608 = vshrl.u32 %v8066, 16
      %v8610 = vrot.slane %v8608, 4
      %v8611 = vshll.u32 %v8066, 16
      %v8613 = vrot.slane %v8611, 5
      %v8614 = vor.u32 %v8610, %v8613
      %v8615 = vsel %vm8508, %v8605, %v8614
      %v8617 = vshrl.u32 %v8067, 16
      %v8619 = vrot.slane %v8617, 4
      %v8620 = vshll.u32 %v8067, 16
      %v8622 = vrot.slane %v8620, 5
      %v8623 = vor.u32 %v8619, %v8622
      %v8624 = vsel %vm8508, %v8614, %v8623
      %v8626 = vshrl.u32 %v8068, 16
      %v8628 = vrot.slane %v8626, 4
      %v8629 = vshll.u32 %v8068, 16
      %v8631 = vrot.slane %v8629, 5
      %v8632 = vor.u32 %v8628, %v8631
      %v8633 = vsel %vm8508, %v8623, %v8632
      %v8635 = vshrl.u32 %v8069, 16
      %v8637 = vrot.slane %v8635, 4
      %v8638 = vshll.u32 %v8069, 16
      %v8640 = vrot.slane %v8638, 5
      %v8641 = vor.u32 %v8637, %v8640
      %v8642 = vsel %vm8508, %v8632, %v8641
      %v8644 = vshrl.u32 %v8070, 16
      %v8646 = vrot.slane %v8644, 4
      %v8647 = vshll.u32 %v8070, 16
      %v8649 = vrot.slane %v8647, 5
      %v8650 = vor.u32 %v8646, %v8649
      %v8651 = vsel %vm8508, %v8641, %v8650
      %v8653 = vshrl.u32 %v8071, 16
      %v8655 = vrot.slane %v8653, 4
      %v8656 = vshll.u32 %v8071, 16
      %v8658 = vrot.slane %v8656, 5
      %v8659 = vor.u32 %v8655, %v8658
      %v8660 = vsel %vm8508, %v8650, %v8659
      %v8662 = vshrl.u32 %v8072, 16
      %v8664 = vrot.slane %v8662, 4
      %v8665 = vshll.u32 %v8072, 16
      %v8667 = vrot.slane %v8665, 5
      %v8668 = vor.u32 %v8664, %v8667
      %v8669 = vsel %vm8508, %v8659, %v8668
      %v8671 = vshrl.u32 %v8073, 16
      %v8673 = vrot.slane %v8671, 4
      %v8674 = vshll.u32 %v8073, 16
      %v8676 = vrot.slane %v8674, 5
      %v8677 = vor.u32 %v8673, %v8676
      %v8678 = vsel %vm8508, %v8668, %v8677
      %v8680 = vshrl.u32 %v8074, 16
      %v8682 = vrot.slane %v8680, 4
      %v8683 = vshll.u32 %v8074, 16
      %v8685 = vrot.slane %v8683, 5
      %v8686 = vor.u32 %v8682, %v8685
      %v8687 = vsel %vm8508, %v8677, %v8686
      %v8689 = vshrl.u32 %v8075, 16
      %v8691 = vrot.slane %v8689, 4
      %v8692 = vshll.u32 %v8075, 16
      %v8694 = vrot.slane %v8692, 5
      %v8695 = vor.u32 %v8691, %v8694
      %v8696 = vsel %vm8508, %v8686, %v8695
      %v8698 = vshrl.u32 %v8076, 16
      %v8700 = vrot.slane %v8698, 4
      %v8701 = vshll.u32 %v8076, 16
      %v8703 = vrot.slane %v8701, 5
      %v8704 = vor.u32 %v8700, %v8703
      %v8705 = vsel %vm8508, %v8695, %v8704
      %v8707 = vshrl.u32 %v8077, 16
      %v8709 = vrot.slane %v8707, 4
      %v8710 = vshll.u32 %v8077, 16
      %v8712 = vrot.slane %v8710, 5
      %v8713 = vor.u32 %v8709, %v8712
      %v8714 = vsel %vm8508, %v8704, %v8713
      %v8716 = vshrl.u32 %v8078, 16
      %v8718 = vrot.slane %v8716, 4
      %v8719 = vshll.u32 %v8078, 16
      %v8721 = vrot.slane %v8719, 5
      %v8722 = vor.u32 %v8718, %v8721
      %v8723 = vsel %vm8508, %v8713, %v8722
      %v8725 = vshrl.u32 %v8505, 16
      %v8727 = vrot.slane %v8725, 4
      %v8728 = vshll.u32 %v8505, 16
      %v8730 = vrot.slane %v8728, 5
      %v8731 = vor.u32 %v8727, %v8730
      %v8732 = vsel %vm8508, %v8722, %v8731
      %v8734 = vsel %vm391, %v8525, 0
      %v8737 = vsel %vm391, %v8534, 0
      %v8740 = vsel %vm391, %v8543, 0
      %v8743 = vsel %vm391, %v8552, 0
      %v8746 = vsel %vm391, %v8561, 0
      %v8749 = vsel %vm391, %v8570, 0
      %v8752 = vsel %vm391, %v8579, 0
      %v8755 = vsel %vm391, %v8588, 0
      %v8758 = vsel %vm391, %v8597, 0
      %v8761 = vsel %vm391, %v8606, 0
      %v8764 = vsel %vm391, %v8615, 0
      %v8767 = vsel %vm391, %v8624, 0
      %v8770 = vsel %vm391, %v8633, 0
      %v8773 = vsel %vm391, %v8642, 0
      %v8776 = vsel %vm391, %v8651, 0
      %v8779 = vsel %vm391, %v8660, 0
      %v8782 = vsel %vm391, %v8669, 0
      %v8785 = vsel %vm391, %v8678, 0
      %v8788 = vsel %vm391, %v8687, 0
      %v8791 = vsel %vm391, %v8696, 0
      %v8794 = vsel %vm391, %v8705, 0
      %v8797 = vsel %vm391, %v8714, 0
      %v8800 = vsel %vm391, %v8723, 0
      %v8803 = vsel %vm391, %v8732, 0
      %v8806 = vsel %vm853, %v8507, 0
      %8808 = vmatprep.subr.bf16.mxu0 0
      %8809 = vmatpush1.bf16.msra.mxu0 %v8806
      %8810 = vmatprep.subr.bf16.mxu0 0
      %8811 = vmatpush1.bf16.msra.mxu0 0
      %8812 = vmatprep.subr.bf16.mxu0 0
      %8813 = vmatpush1.bf16.msra.mxu0 0
      %8814 = vmatprep.subr.bf16.mxu0 0
      %8815 = vmatpush1.bf16.msra.mxu0 0
      %8816 = vmatprep.subr.bf16.mxu0 0
      %8817 = vmatpush1.bf16.msra.mxu0 0
      %8818 = vmatprep.subr.bf16.mxu0 0
      %8819 = vmatpush1.bf16.msra.mxu0 0
      %8820 = vmatprep.subr.bf16.mxu0 0
      %8821 = vmatpush1.bf16.msra.mxu0 0
      %8822 = vmatprep.subr.bf16.mxu0 0
      %8823 = vmatpush1.bf16.msra.mxu0 0
      %8824 = vmatprep.subr.bf16.mxu0 0
      %8825 = vmatpush1.bf16.msra.mxu0 0
      %8826 = vmatprep.subr.bf16.mxu0 0
      %8827 = vmatpush1.bf16.msra.mxu0 0
      %8828 = vmatprep.subr.bf16.mxu0 0
      %8829 = vmatpush1.bf16.msra.mxu0 0
      %8830 = vmatprep.subr.bf16.mxu0 0
      %8831 = vmatpush1.bf16.msra.mxu0 0
      %8832 = vmatprep.subr.bf16.mxu0 0
      %8833 = vmatpush1.bf16.msra.mxu0 0
      %8834 = vmatprep.subr.bf16.mxu0 0
      %8835 = vmatpush1.bf16.msra.mxu0 0
      %8836 = vmatprep.subr.bf16.mxu0 0
      %8837 = vmatpush1.bf16.msra.mxu0 0
      %8838 = vmatprep.subr.bf16.mxu0 0
      %8839 = vmatpush1.bf16.msra.mxu0 0
      %8840 = vmatprep.mubr.bf16.mxu0 0
      %8841 = vmatmul.mubr.bf16.gmra.mrb[0].mxu0 %v8734
      %v8842 = vpop.f32.mrb[0].mxu0
      %v8843 = vadd.f32 0.0, %v8842
      %v8844 = vpop.f32.mrb[0].mxu0
      %v8845 = vpop.f32.mrb[0].mxu0
      %v8846 = vadd.f32 0.0, %v8845
      %v8847 = vpop.f32.mrb[0].mxu0
      %8848 = vmatprep.mubr.bf16.mxu0 0
      %8849 = vmatmul.mubr.bf16.gmra.mrb[0].mxu0 %v8737
      %v8850 = vpop.f32.mrb[0].mxu0
      %v8851 = vadd.f32 0.0, %v8850
      %v8852 = vpop.f32.mrb[0].mxu0
      %v8853 = vpop.f32.mrb[0].mxu0
      %v8854 = vadd.f32 0.0, %v8853
      %v8855 = vpop.f32.mrb[0].mxu0
      %8856 = vmatprep.mubr.bf16.mxu0 0
      %8857 = vmatmul.mubr.bf16.gmra.mrb[0].mxu0 %v8740
      %v8858 = vpop.f32.mrb[0].mxu0
      %v8859 = vadd.f32 0.0, %v8858
      %v8860 = vpop.f32.mrb[0].mxu0
      %v8861 = vpop.f32.mrb[0].mxu0
      %v8862 = vadd.f32 0.0, %v8861
      %v8863 = vpop.f32.mrb[0].mxu0
      %8864 = vmatprep.mubr.bf16.mxu0 0
      %8865 = vmatmul.mubr.bf16.gmra.mrb[0].mxu0 %v8743
      %v8866 = vpop.f32.mrb[0].mxu0
      %v8867 = vadd.f32 0.0, %v8866
      %v8868 = vpop.f32.mrb[0].mxu0
      %v8869 = vpop.f32.mrb[0].mxu0
      %v8870 = vadd.f32 0.0, %v8869
      %v8871 = vpop.f32.mrb[0].mxu0
      %8872 = vmatprep.mubr.bf16.mxu0 0
      %8873 = vmatmul.mubr.bf16.gmra.mrb[0].mxu0 %v8746
      %v8874 = vpop.f32.mrb[0].mxu0
      %v8875 = vadd.f32 0.0, %v8874
      %v8876 = vpop.f32.mrb[0].mxu0
      %v8877 = vpop.f32.mrb[0].mxu0
      %v8878 = vadd.f32 0.0, %v8877
      %v8879 = vpop.f32.mrb[0].mxu0
      %8880 = vmatprep.mubr.bf16.mxu0 0
      %8881 = vmatmul.mubr.bf16.gmra.mrb[0].mxu0 %v8749
      %v8882 = vpop.f32.mrb[0].mxu0
      %v8883 = vadd.f32 0.0, %v8882
      %v8884 = vpop.f32.mrb[0].mxu0
      %v8885 = vpop.f32.mrb[0].mxu0
      %v8886 = vadd.f32 0.0, %v8885
      %v8887 = vpop.f32.mrb[0].mxu0
      %8888 = vmatprep.mubr.bf16.mxu0 0
      %8889 = vmatmul.mubr.bf16.gmra.mrb[0].mxu0 %v8752
      %v8890 = vpop.f32.mrb[0].mxu0
      %v8891 = vadd.f32 0.0, %v8890
      %v8892 = vpop.f32.mrb[0].mxu0
      %v8893 = vpop.f32.mrb[0].mxu0
      %v8894 = vadd.f32 0.0, %v8893
      %v8895 = vpop.f32.mrb[0].mxu0
      %8896 = vmatprep.mubr.bf16.mxu0 0
      %8897 = vmatmul.mubr.bf16.gmra.mrb[0].mxu0 %v8755
      %v8898 = vpop.f32.mrb[0].mxu0
      %v8899 = vadd.f32 0.0, %v8898
      %v8900 = vpop.f32.mrb[0].mxu0
      %v8901 = vpop.f32.mrb[0].mxu0
      %v8902 = vadd.f32 0.0, %v8901
      %v8903 = vpop.f32.mrb[0].mxu0
      %8904 = vmatprep.mubr.bf16.mxu0 0
      %8905 = vmatmul.mubr.bf16.gmra.mrb[0].mxu0 %v8758
      %v8906 = vpop.f32.mrb[0].mxu0
      %v8907 = vadd.f32 0.0, %v8906
      %v8908 = vpop.f32.mrb[0].mxu0
      %v8909 = vpop.f32.mrb[0].mxu0
      %v8910 = vadd.f32 0.0, %v8909
      %v8911 = vpop.f32.mrb[0].mxu0
      %8912 = vmatprep.mubr.bf16.mxu0 0
      %8913 = vmatmul.mubr.bf16.gmra.mrb[0].mxu0 %v8761
      %v8914 = vpop.f32.mrb[0].mxu0
      %v8915 = vadd.f32 0.0, %v8914
      %v8916 = vpop.f32.mrb[0].mxu0
      %v8917 = vpop.f32.mrb[0].mxu0
      %v8918 = vadd.f32 0.0, %v8917
      %v8919 = vpop.f32.mrb[0].mxu0
      %8920 = vmatprep.mubr.bf16.mxu0 0
      %8921 = vmatmul.mubr.bf16.gmra.mrb[0].mxu0 %v8764
      %v8922 = vpop.f32.mrb[0].mxu0
      %v8923 = vadd.f32 0.0, %v8922
      %v8924 = vpop.f32.mrb[0].mxu0
      %v8925 = vpop.f32.mrb[0].mxu0
      %v8926 = vadd.f32 0.0, %v8925
      %v8927 = vpop.f32.mrb[0].mxu0
      %8928 = vmatprep.mubr.bf16.mxu0 0
      %8929 = vmatmul.mubr.bf16.gmra.mrb[0].mxu0 %v8767
      %v8930 = vpop.f32.mrb[0].mxu0
      %v8931 = vadd.f32 0.0, %v8930
      %v8932 = vpop.f32.mrb[0].mxu0
      %v8933 = vpop.f32.mrb[0].mxu0
      %v8934 = vadd.f32 0.0, %v8933
      %v8935 = vpop.f32.mrb[0].mxu0
      %8936 = vmatprep.mubr.bf16.mxu0 0
      %8937 = vmatmul.mubr.bf16.gmra.mrb[0].mxu0 %v8770
      %v8938 = vpop.f32.mrb[0].mxu0
      %v8939 = vadd.f32 0.0, %v8938
      %v8940 = vpop.f32.mrb[0].mxu0
      %v8941 = vpop.f32.mrb[0].mxu0
      %v8942 = vadd.f32 0.0, %v8941
      %v8943 = vpop.f32.mrb[0].mxu0
      %8944 = vmatprep.mubr.bf16.mxu0 0
      %8945 = vmatmul.mubr.bf16.gmra.mrb[0].mxu0 %v8773
      %v8946 = vpop.f32.mrb[0].mxu0
      %v8947 = vadd.f32 0.0, %v8946
      %v8948 = vpop.f32.mrb[0].mxu0
      %v8949 = vpop.f32.mrb[0].mxu0
      %v8950 = vadd.f32 0.0, %v8949
      %v8951 = vpop.f32.mrb[0].mxu0
      %8952 = vmatprep.mubr.bf16.mxu0 0
      %8953 = vmatmul.mubr.bf16.gmra.mrb[0].mxu0 %v8776
      %v8954 = vpop.f32.mrb[0].mxu0
      %v8955 = vadd.f32 0.0, %v8954
      %v8956 = vpop.f32.mrb[0].mxu0
      %v8957 = vpop.f32.mrb[0].mxu0
      %v8958 = vadd.f32 0.0, %v8957
      %v8959 = vpop.f32.mrb[0].mxu0
      %8960 = vmatprep.mubr.bf16.mxu0 0
      %8961 = vmatmul.mubr.bf16.gmra.mrb[0].mxu0 %v8779
      %v8962 = vpop.f32.mrb[0].mxu0
      %v8963 = vadd.f32 0.0, %v8962
      %v8964 = vpop.f32.mrb[0].mxu0
      %v8965 = vpop.f32.mrb[0].mxu0
      %v8966 = vadd.f32 0.0, %v8965
      %v8967 = vpop.f32.mrb[0].mxu0
      %8968 = vmatprep.mubr.bf16.mxu0 0
      %8969 = vmatmul.mubr.bf16.gmra.mrb[0].mxu0 %v8782
      %v8970 = vpop.f32.mrb[0].mxu0
      %v8971 = vadd.f32 0.0, %v8970
      %v8972 = vpop.f32.mrb[0].mxu0
      %v8973 = vpop.f32.mrb[0].mxu0
      %v8974 = vadd.f32 0.0, %v8973
      %v8975 = vpop.f32.mrb[0].mxu0
      %8976 = vmatprep.mubr.bf16.mxu0 0
      %8977 = vmatmul.mubr.bf16.gmra.mrb[0].mxu0 %v8785
      %v8978 = vpop.f32.mrb[0].mxu0
      %v8979 = vadd.f32 0.0, %v8978
      %v8980 = vpop.f32.mrb[0].mxu0
      %v8981 = vpop.f32.mrb[0].mxu0
      %v8982 = vadd.f32 0.0, %v8981
      %v8983 = vpop.f32.mrb[0].mxu0
      %8984 = vmatprep.mubr.bf16.mxu0 0
      %8985 = vmatmul.mubr.bf16.gmra.mrb[0].mxu0 %v8788
      %v8986 = vpop.f32.mrb[0].mxu0
      %v8987 = vadd.f32 0.0, %v8986
      %v8988 = vpop.f32.mrb[0].mxu0
      %v8989 = vpop.f32.mrb[0].mxu0
      %v8990 = vadd.f32 0.0, %v8989
      %v8991 = vpop.f32.mrb[0].mxu0
      %8992 = vmatprep.mubr.bf16.mxu0 0
      %8993 = vmatmul.mubr.bf16.gmra.mrb[0].mxu0 %v8791
      %v8994 = vpop.f32.mrb[0].mxu0
      %v8995 = vadd.f32 0.0, %v8994
      %v8996 = vpop.f32.mrb[0].mxu0
      %v8997 = vpop.f32.mrb[0].mxu0
      %v8998 = vadd.f32 0.0, %v8997
      %v8999 = vpop.f32.mrb[0].mxu0
      %9000 = vmatprep.mubr.bf16.mxu0 0
      %9001 = vmatmul.mubr.bf16.gmra.mrb[0].mxu0 %v8794
      %v9002 = vpop.f32.mrb[0].mxu0
      %v9003 = vadd.f32 0.0, %v9002
      %v9004 = vpop.f32.mrb[0].mxu0
      %v9005 = vpop.f32.mrb[0].mxu0
      %v9006 = vadd.f32 0.0, %v9005
      %v9007 = vpop.f32.mrb[0].mxu0
      %9008 = vmatprep.mubr.bf16.mxu0 0
      %9009 = vmatmul.mubr.bf16.gmra.mrb[0].mxu0 %v8797
      %v9010 = vpop.f32.mrb[0].mxu0
      %v9011 = vadd.f32 0.0, %v9010
      %v9012 = vpop.f32.mrb[0].mxu0
      %v9013 = vpop.f32.mrb[0].mxu0
      %v9014 = vadd.f32 0.0, %v9013
      %v9015 = vpop.f32.mrb[0].mxu0
      %9016 = vmatprep.mubr.bf16.mxu0 0
      %9017 = vmatmul.mubr.bf16.gmra.mrb[0].mxu0 %v8800
      %v9018 = vpop.f32.mrb[0].mxu0
      %v9019 = vadd.f32 0.0, %v9018
      %v9020 = vpop.f32.mrb[0].mxu0
      %v9021 = vpop.f32.mrb[0].mxu0
      %v9022 = vadd.f32 0.0, %v9021
      %v9023 = vpop.f32.mrb[0].mxu0
      %9024 = vmatprep.mubr.bf16.mxu0 0
      %9025 = vmatmul.mubr.bf16.gmra.mrb[0].mxu0 %v8803
      %v9026 = vpop.f32.mrb[0].mxu0
      %v9027 = vadd.f32 0.0, %v9026
      %v9028 = vpop.f32.mrb[0].mxu0
      %v9029 = vpop.f32.mrb[0].mxu0
      %v9030 = vadd.f32 0.0, %v9029
      %v9031 = vpop.f32.mrb[0].mxu0
      %9032 = vdwg.mxu0
      %v9033 = vadd.f32 %v8457, %v8843
      %v9034 = vadd.f32 %v8458, %v8846
      %v9035 = vadd.f32 %v8459, %v8851
      %v9036 = vadd.f32 %v8460, %v8854
      %v9037 = vadd.f32 %v8461, %v8859
      %v9038 = vadd.f32 %v8462, %v8862
      %v9039 = vadd.f32 %v8463, %v8867
      %v9040 = vadd.f32 %v8464, %v8870
      %v9041 = vadd.f32 %v8465, %v8875
      %v9042 = vadd.f32 %v8466, %v8878
      %v9043 = vadd.f32 %v8467, %v8883
      %v9044 = vadd.f32 %v8468, %v8886
      %v9045 = vadd.f32 %v8469, %v8891
      %v9046 = vadd.f32 %v8470, %v8894
      %v9047 = vadd.f32 %v8471, %v8899
      %v9048 = vadd.f32 %v8472, %v8902
      %v9049 = vadd.f32 %v8473, %v8907
      %v9050 = vadd.f32 %v8474, %v8910
      %v9051 = vadd.f32 %v8475, %v8915
      %v9052 = vadd.f32 %v8476, %v8918
      %v9053 = vadd.f32 %v8477, %v8923
      %v9054 = vadd.f32 %v8478, %v8926
      %v9055 = vadd.f32 %v8479, %v8931
      %v9056 = vadd.f32 %v8480, %v8934
      %v9057 = vadd.f32 %v8481, %v8939
      %v9058 = vadd.f32 %v8482, %v8942
      %v9059 = vadd.f32 %v8483, %v8947
      %v9060 = vadd.f32 %v8484, %v8950
      %v9061 = vadd.f32 %v8485, %v8955
      %v9062 = vadd.f32 %v8486, %v8958
      %v9063 = vadd.f32 %v8487, %v8963
      %v9064 = vadd.f32 %v8488, %v8966
      %v9065 = vadd.f32 %v8489, %v8971
      %v9066 = vadd.f32 %v8490, %v8974
      %v9067 = vadd.f32 %v8491, %v8979
      %v9068 = vadd.f32 %v8492, %v8982
      %v9069 = vadd.f32 %v8493, %v8987
      %v9070 = vadd.f32 %v8494, %v8990
      %v9071 = vadd.f32 %v8495, %v8995
      %v9072 = vadd.f32 %v8496, %v8998
      %v9073 = vadd.f32 %v8497, %v9003
      %v9074 = vadd.f32 %v8498, %v9006
      %v9075 = vadd.f32 %v8499, %v9011
      %v9076 = vadd.f32 %v8500, %v9014
      %v9077 = vadd.f32 %v8501, %v9019
      %v9078 = vadd.f32 %v8502, %v9022
      %v9079 = vadd.f32 %v8503, %v9027
      %v9080 = vadd.f32 %v8504, %v9030
      %v9081 = vld [vmem:[#allocation2 + $0x8] sm:$0xe0]
      %s9082 = scalar_lea.vmem %s5, 20
      %v9083 = vld [vmem:[%s9082] sm:$0xf]
      %vm9086 = vcmask 1042432
      %v9087 = vrot.slane %v9081, 5
      %v9088 = vrot.slane %v8056, 5
      %v9089 = vsel %vm9086, %v9087, %v9088
      %v9090 = vrot.slane %v8057, 5
      %v9091 = vsel %vm9086, %v9088, %v9090
      %v9092 = vrot.slane %v8058, 5
      %v9093 = vsel %vm9086, %v9090, %v9092
      %v9094 = vrot.slane %v8059, 5
      %v9095 = vsel %vm9086, %v9092, %v9094
      %v9096 = vrot.slane %v8060, 5
      %v9097 = vsel %vm9086, %v9094, %v9096
      %v9098 = vrot.slane %v8061, 5
      %v9099 = vsel %vm9086, %v9096, %v9098
      %v9100 = vrot.slane %v8062, 5
      %v9101 = vsel %vm9086, %v9098, %v9100
      %v9102 = vrot.slane %v8063, 5
      %v9103 = vsel %vm9086, %v9100, %v9102
      %v9104 = vrot.slane %v8064, 5
      %v9105 = vsel %vm9086, %v9102, %v9104
      %v9106 = vrot.slane %v8065, 5
      %v9107 = vsel %vm9086, %v9104, %v9106
      %v9108 = vrot.slane %v8066, 5
      %v9109 = vsel %vm9086, %v9106, %v9108
      %v9110 = vrot.slane %v8067, 5
      %v9111 = vsel %vm9086, %v9108, %v9110
      %v9112 = vrot.slane %v8068, 5
      %v9113 = vsel %vm9086, %v9110, %v9112
      %v9114 = vrot.slane %v8069, 5
      %v9115 = vsel %vm9086, %v9112, %v9114
      %v9116 = vrot.slane %v8070, 5
      %v9117 = vsel %vm9086, %v9114, %v9116
      %v9118 = vrot.slane %v8071, 5
      %v9119 = vsel %vm9086, %v9116, %v9118
      %v9120 = vrot.slane %v8072, 5
      %v9121 = vsel %vm9086, %v9118, %v9120
      %v9122 = vrot.slane %v8073, 5
      %v9123 = vsel %vm9086, %v9120, %v9122
      %v9124 = vrot.slane %v8074, 5
      %v9125 = vsel %vm9086, %v9122, %v9124
      %v9126 = vrot.slane %v8075, 5
      %v9127 = vsel %vm9086, %v9124, %v9126
      %v9128 = vrot.slane %v8076, 5
      %v9129 = vsel %vm9086, %v9126, %v9128
      %v9130 = vrot.slane %v8077, 5
      %v9131 = vsel %vm9086, %v9128, %v9130
      %v9132 = vrot.slane %v8078, 5
      %v9133 = vsel %vm9086, %v9130, %v9132
      %v9134 = vrot.slane %v8505, 5
      %v9135 = vsel %vm9086, %v9132, %v9134
      %v9137 = vsel %vm391, %v9089, 0
      %v9140 = vsel %vm391, %v9091, 0
      %v9143 = vsel %vm391, %v9093, 0
      %v9146 = vsel %vm391, %v9095, 0
      %v9149 = vsel %vm391, %v9097, 0
      %v9152 = vsel %vm391, %v9099, 0
      %v9155 = vsel %vm391, %v9101, 0
      %v9158 = vsel %vm391, %v9103, 0
      %v9161 = vsel %vm391, %v9105, 0
      %v9164 = vsel %vm391, %v9107, 0
      %v9167 = vsel %vm391, %v9109, 0
      %v9170 = vsel %vm391, %v9111, 0
      %v9173 = vsel %vm391, %v9113, 0
      %v9176 = vsel %vm391, %v9115, 0
      %v9179 = vsel %vm391, %v9117, 0
      %v9182 = vsel %vm391, %v9119, 0
      %v9185 = vsel %vm391, %v9121, 0
      %v9188 = vsel %vm391, %v9123, 0
      %v9191 = vsel %vm391, %v9125, 0
      %v9194 = vsel %vm391, %v9127, 0
      %v9197 = vsel %vm391, %v9129, 0
      %v9200 = vsel %vm391, %v9131, 0
      %v9203 = vsel %vm391, %v9133, 0
      %v9206 = vsel %vm391, %v9135, 0
      %v9209 = vsel %vm853, %v9083, 0
      %9211 = vmatprep.subr.bf16.mxu0 0
      %9212 = vmatpush1.bf16.msra.mxu0 %v9209
      %9213 = vmatprep.subr.bf16.mxu0 0
      %9214 = vmatpush1.bf16.msra.mxu0 0
      %9215 = vmatprep.subr.bf16.mxu0 0
      %9216 = vmatpush1.bf16.msra.mxu0 0
      %9217 = vmatprep.subr.bf16.mxu0 0
      %9218 = vmatpush1.bf16.msra.mxu0 0
      %9219 = vmatprep.subr.bf16.mxu0 0
      %9220 = vmatpush1.bf16.msra.mxu0 0
      %9221 = vmatprep.subr.bf16.mxu0 0
      %9222 = vmatpush1.bf16.msra.mxu0 0
      %9223 = vmatprep.subr.bf16.mxu0 0
      %9224 = vmatpush1.bf16.msra.mxu0 0
      %9225 = vmatprep.subr.bf16.mxu0 0
      %9226 = vmatpush1.bf16.msra.mxu0 0
      %9227 = vmatprep.subr.bf16.mxu0 0
      %9228 = vmatpush1.bf16.msra.mxu0 0
      %9229 = vmatprep.subr.bf16.mxu0 0
      %9230 = vmatpush1.bf16.msra.mxu0 0
      %9231 = vmatprep.subr.bf16.mxu0 0
      %9232 = vmatpush1.bf16.msra.mxu0 0
      %9233 = vmatprep.subr.bf16.mxu0 0
      %9234 = vmatpush1.bf16.msra.mxu0 0
      %9235 = vmatprep.subr.bf16.mxu0 0
      %9236 = vmatpush1.bf16.msra.mxu0 0
      %9237 = vmatprep.subr.bf16.mxu0 0
      %9238 = vmatpush1.bf16.msra.mxu0 0
      %9239 = vmatprep.subr.bf16.mxu0 0
      %9240 = vmatpush1.bf16.msra.mxu0 0
      %9241 = vmatprep.subr.bf16.mxu0 0
      %9242 = vmatpush1.bf16.msra.mxu0 0
      %9243 = vmatprep.mubr.bf16.mxu0 0
      %9244 = vmatmul.mubr.bf16.gmra.mrb[0].mxu0 %v9137
      %v9245 = vpop.f32.mrb[0].mxu0
      %v9246 = vadd.f32 0.0, %v9245
      %v9247 = vpop.f32.mrb[0].mxu0
      %v9248 = vpop.f32.mrb[0].mxu0
      %v9249 = vadd.f32 0.0, %v9248
      %v9250 = vpop.f32.mrb[0].mxu0
      %9251 = vmatprep.mubr.bf16.mxu0 0
      %9252 = vmatmul.mubr.bf16.gmra.mrb[0].mxu0 %v9140
      %v9253 = vpop.f32.mrb[0].mxu0
      %v9254 = vadd.f32 0.0, %v9253
      %v9255 = vpop.f32.mrb[0].mxu0
      %v9256 = vpop.f32.mrb[0].mxu0
      %v9257 = vadd.f32 0.0, %v9256
      %v9258 = vpop.f32.mrb[0].mxu0
      %9259 = vmatprep.mubr.bf16.mxu0 0
      %9260 = vmatmul.mubr.bf16.gmra.mrb[0].mxu0 %v9143
      %v9261 = vpop.f32.mrb[0].mxu0
      %v9262 = vadd.f32 0.0, %v9261
      %v9263 = vpop.f32.mrb[0].mxu0
      %v9264 = vpop.f32.mrb[0].mxu0
      %v9265 = vadd.f32 0.0, %v9264
      %v9266 = vpop.f32.mrb[0].mxu0
      %9267 = vmatprep.mubr.bf16.mxu0 0
      %9268 = vmatmul.mubr.bf16.gmra.mrb[0].mxu0 %v9146
      %v9269 = vpop.f32.mrb[0].mxu0
      %v9270 = vadd.f32 0.0, %v9269
      %v9271 = vpop.f32.mrb[0].mxu0
      %v9272 = vpop.f32.mrb[0].mxu0
      %v9273 = vadd.f32 0.0, %v9272
      %v9274 = vpop.f32.mrb[0].mxu0
      %9275 = vmatprep.mubr.bf16.mxu0 0
      %9276 = vmatmul.mubr.bf16.gmra.mrb[0].mxu0 %v9149
      %v9277 = vpop.f32.mrb[0].mxu0
      %v9278 = vadd.f32 0.0, %v9277
      %v9279 = vpop.f32.mrb[0].mxu0
      %v9280 = vpop.f32.mrb[0].mxu0
      %v9281 = vadd.f32 0.0, %v9280
      %v9282 = vpop.f32.mrb[0].mxu0
      %9283 = vmatprep.mubr.bf16.mxu0 0
      %9284 = vmatmul.mubr.bf16.gmra.mrb[0].mxu0 %v9152
      %v9285 = vpop.f32.mrb[0].mxu0
      %v9286 = vadd.f32 0.0, %v9285
      %v9287 = vpop.f32.mrb[0].mxu0
      %v9288 = vpop.f32.mrb[0].mxu0
      %v9289 = vadd.f32 0.0, %v9288
      %v9290 = vpop.f32.mrb[0].mxu0
      %9291 = vmatprep.mubr.bf16.mxu0 0
      %9292 = vmatmul.mubr.bf16.gmra.mrb[0].mxu0 %v9155
      %v9293 = vpop.f32.mrb[0].mxu0
      %v9294 = vadd.f32 0.0, %v9293
      %v9295 = vpop.f32.mrb[0].mxu0
      %v9296 = vpop.f32.mrb[0].mxu0
      %v9297 = vadd.f32 0.0, %v9296
      %v9298 = vpop.f32.mrb[0].mxu0
      %9299 = vmatprep.mubr.bf16.mxu0 0
      %9300 = vmatmul.mubr.bf16.gmra.mrb[0].mxu0 %v9158
      %v9301 = vpop.f32.mrb[0].mxu0
      %v9302 = vadd.f32 0.0, %v9301
      %v9303 = vpop.f32.mrb[0].mxu0
      %v9304 = vpop.f32.mrb[0].mxu0
      %v9305 = vadd.f32 0.0, %v9304
      %v9306 = vpop.f32.mrb[0].mxu0
      %9307 = vmatprep.mubr.bf16.mxu0 0
      %9308 = vmatmul.mubr.bf16.gmra.mrb[0].mxu0 %v9161
      %v9309 = vpop.f32.mrb[0].mxu0
      %v9310 = vadd.f32 0.0, %v9309
      %v9311 = vpop.f32.mrb[0].mxu0
      %v9312 = vpop.f32.mrb[0].mxu0
      %v9313 = vadd.f32 0.0, %v9312
      %v9314 = vpop.f32.mrb[0].mxu0
      %9315 = vmatprep.mubr.bf16.mxu0 0
      %9316 = vmatmul.mubr.bf16.gmra.mrb[0].mxu0 %v9164
      %v9317 = vpop.f32.mrb[0].mxu0
      %v9318 = vadd.f32 0.0, %v9317
      %v9319 = vpop.f32.mrb[0].mxu0
      %v9320 = vpop.f32.mrb[0].mxu0
      %v9321 = vadd.f32 0.0, %v9320
      %v9322 = vpop.f32.mrb[0].mxu0
      %9323 = vmatprep.mubr.bf16.mxu0 0
      %9324 = vmatmul.mubr.bf16.gmra.mrb[0].mxu0 %v9167
      %v9325 = vpop.f32.mrb[0].mxu0
      %v9326 = vadd.f32 0.0, %v9325
      %v9327 = vpop.f32.mrb[0].mxu0
      %v9328 = vpop.f32.mrb[0].mxu0
      %v9329 = vadd.f32 0.0, %v9328
      %v9330 = vpop.f32.mrb[0].mxu0
      %9331 = vmatprep.mubr.bf16.mxu0 0
      %9332 = vmatmul.mubr.bf16.gmra.mrb[0].mxu0 %v9170
      %v9333 = vpop.f32.mrb[0].mxu0
      %v9334 = vadd.f32 0.0, %v9333
      %v9335 = vpop.f32.mrb[0].mxu0
      %v9336 = vpop.f32.mrb[0].mxu0
      %v9337 = vadd.f32 0.0, %v9336
      %v9338 = vpop.f32.mrb[0].mxu0
      %9339 = vmatprep.mubr.bf16.mxu0 0
      %9340 = vmatmul.mubr.bf16.gmra.mrb[0].mxu0 %v9173
      %v9341 = vpop.f32.mrb[0].mxu0
      %v9342 = vadd.f32 0.0, %v9341
      %v9343 = vpop.f32.mrb[0].mxu0
      %v9344 = vpop.f32.mrb[0].mxu0
      %v9345 = vadd.f32 0.0, %v9344
      %v9346 = vpop.f32.mrb[0].mxu0
      %9347 = vmatprep.mubr.bf16.mxu0 0
      %9348 = vmatmul.mubr.bf16.gmra.mrb[0].mxu0 %v9176
      %v9349 = vpop.f32.mrb[0].mxu0
      %v9350 = vadd.f32 0.0, %v9349
      %v9351 = vpop.f32.mrb[0].mxu0
      %v9352 = vpop.f32.mrb[0].mxu0
      %v9353 = vadd.f32 0.0, %v9352
      %v9354 = vpop.f32.mrb[0].mxu0
      %9355 = vmatprep.mubr.bf16.mxu0 0
      %9356 = vmatmul.mubr.bf16.gmra.mrb[0].mxu0 %v9179
      %v9357 = vpop.f32.mrb[0].mxu0
      %v9358 = vadd.f32 0.0, %v9357
      %v9359 = vpop.f32.mrb[0].mxu0
      %v9360 = vpop.f32.mrb[0].mxu0
      %v9361 = vadd.f32 0.0, %v9360
      %v9362 = vpop.f32.mrb[0].mxu0
      %9363 = vmatprep.mubr.bf16.mxu0 0
      %9364 = vmatmul.mubr.bf16.gmra.mrb[0].mxu0 %v9182
      %v9365 = vpop.f32.mrb[0].mxu0
      %v9366 = vadd.f32 0.0, %v9365
      %v9367 = vpop.f32.mrb[0].mxu0
      %v9368 = vpop.f32.mrb[0].mxu0
      %v9369 = vadd.f32 0.0, %v9368
      %v9370 = vpop.f32.mrb[0].mxu0
      %9371 = vmatprep.mubr.bf16.mxu0 0
      %9372 = vmatmul.mubr.bf16.gmra.mrb[0].mxu0 %v9185
      %v9373 = vpop.f32.mrb[0].mxu0
      %v9374 = vadd.f32 0.0, %v9373
      %v9375 = vpop.f32.mrb[0].mxu0
      %v9376 = vpop.f32.mrb[0].mxu0
      %v9377 = vadd.f32 0.0, %v9376
      %v9378 = vpop.f32.mrb[0].mxu0
      %9379 = vmatprep.mubr.bf16.mxu0 0
      %9380 = vmatmul.mubr.bf16.gmra.mrb[0].mxu0 %v9188
      %v9381 = vpop.f32.mrb[0].mxu0
      %v9382 = vadd.f32 0.0, %v9381
      %v9383 = vpop.f32.mrb[0].mxu0
      %v9384 = vpop.f32.mrb[0].mxu0
      %v9385 = vadd.f32 0.0, %v9384
      %v9386 = vpop.f32.mrb[0].mxu0
      %9387 = vmatprep.mubr.bf16.mxu0 0
      %9388 = vmatmul.mubr.bf16.gmra.mrb[0].mxu0 %v9191
      %v9389 = vpop.f32.mrb[0].mxu0
      %v9390 = vadd.f32 0.0, %v9389
      %v9391 = vpop.f32.mrb[0].mxu0
      %v9392 = vpop.f32.mrb[0].mxu0
      %v9393 = vadd.f32 0.0, %v9392
      %v9394 = vpop.f32.mrb[0].mxu0
      %9395 = vmatprep.mubr.bf16.mxu0 0
      %9396 = vmatmul.mubr.bf16.gmra.mrb[0].mxu0 %v9194
      %v9397 = vpop.f32.mrb[0].mxu0
      %v9398 = vadd.f32 0.0, %v9397
      %v9399 = vpop.f32.mrb[0].mxu0
      %v9400 = vpop.f32.mrb[0].mxu0
      %v9401 = vadd.f32 0.0, %v9400
      %v9402 = vpop.f32.mrb[0].mxu0
      %9403 = vmatprep.mubr.bf16.mxu0 0
      %9404 = vmatmul.mubr.bf16.gmra.mrb[0].mxu0 %v9197
      %v9405 = vpop.f32.mrb[0].mxu0
      %v9406 = vadd.f32 0.0, %v9405
      %v9407 = vpop.f32.mrb[0].mxu0
      %v9408 = vpop.f32.mrb[0].mxu0
      %v9409 = vadd.f32 0.0, %v9408
      %v9410 = vpop.f32.mrb[0].mxu0
      %9411 = vmatprep.mubr.bf16.mxu0 0
      %9412 = vmatmul.mubr.bf16.gmra.mrb[0].mxu0 %v9200
      %v9413 = vpop.f32.mrb[0].mxu0
      %v9414 = vadd.f32 0.0, %v9413
      %v9415 = vpop.f32.mrb[0].mxu0
      %v9416 = vpop.f32.mrb[0].mxu0
      %v9417 = vadd.f32 0.0, %v9416
      %v9418 = vpop.f32.mrb[0].mxu0
      %9419 = vmatprep.mubr.bf16.mxu0 0
      %9420 = vmatmul.mubr.bf16.gmra.mrb[0].mxu0 %v9203
      %v9421 = vpop.f32.mrb[0].mxu0
      %v9422 = vadd.f32 0.0, %v9421
      %v9423 = vpop.f32.mrb[0].mxu0
      %v9424 = vpop.f32.mrb[0].mxu0
      %v9425 = vadd.f32 0.0, %v9424
      %v9426 = vpop.f32.mrb[0].mxu0
      %9427 = vmatprep.mubr.bf16.mxu0 0
      %9428 = vmatmul.mubr.bf16.gmra.mrb[0].mxu0 %v9206
      %v9429 = vpop.f32.mrb[0].mxu0
      %v9430 = vadd.f32 0.0, %v9429
      %v9431 = vpop.f32.mrb[0].mxu0
      %v9432 = vpop.f32.mrb[0].mxu0
      %v9433 = vadd.f32 0.0, %v9432
      %v9434 = vpop.f32.mrb[0].mxu0
      %9435 = vdwg.mxu0
      %v9436 = vadd.f32 %v9033, %v9246
      %v9437 = vadd.f32 %v9034, %v9249
      %v9438 = vadd.f32 %v9035, %v9254
      %v9439 = vadd.f32 %v9036, %v9257
      %v9440 = vadd.f32 %v9037, %v9262
      %v9441 = vadd.f32 %v9038, %v9265
      %v9442 = vadd.f32 %v9039, %v9270
      %v9443 = vadd.f32 %v9040, %v9273
      %v9444 = vadd.f32 %v9041, %v9278
      %v9445 = vadd.f32 %v9042, %v9281
      %v9446 = vadd.f32 %v9043, %v9286
      %v9447 = vadd.f32 %v9044, %v9289
      %v9448 = vadd.f32 %v9045, %v9294
      %v9449 = vadd.f32 %v9046, %v9297
      %v9450 = vadd.f32 %v9047, %v9302
      %v9451 = vadd.f32 %v9048, %v9305
      %v9452 = vadd.f32 %v9049, %v9310
      %v9453 = vadd.f32 %v9050, %v9313
      %v9454 = vadd.f32 %v9051, %v9318
      %v9455 = vadd.f32 %v9052, %v9321
      %v9456 = vadd.f32 %v9053, %v9326
      %v9457 = vadd.f32 %v9054, %v9329
      %v9458 = vadd.f32 %v9055, %v9334
      %v9459 = vadd.f32 %v9056, %v9337
      %v9460 = vadd.f32 %v9057, %v9342
      %v9461 = vadd.f32 %v9058, %v9345
      %v9462 = vadd.f32 %v9059, %v9350
      %v9463 = vadd.f32 %v9060, %v9353
      %v9464 = vadd.f32 %v9061, %v9358
      %v9465 = vadd.f32 %v9062, %v9361
      %v9466 = vadd.f32 %v9063, %v9366
      %v9467 = vadd.f32 %v9064, %v9369
      %v9468 = vadd.f32 %v9065, %v9374
      %v9469 = vadd.f32 %v9066, %v9377
      %v9470 = vadd.f32 %v9067, %v9382
      %v9471 = vadd.f32 %v9068, %v9385
      %v9472 = vadd.f32 %v9069, %v9390
      %v9473 = vadd.f32 %v9070, %v9393
      %v9474 = vadd.f32 %v9071, %v9398
      %v9475 = vadd.f32 %v9072, %v9401
      %v9476 = vadd.f32 %v9073, %v9406
      %v9477 = vadd.f32 %v9074, %v9409
      %v9478 = vadd.f32 %v9075, %v9414
      %v9479 = vadd.f32 %v9076, %v9417
      %v9480 = vadd.f32 %v9077, %v9422
      %v9481 = vadd.f32 %v9078, %v9425
      %v9482 = vadd.f32 %v9079, %v9430
      %v9483 = vadd.f32 %v9080, %v9433
      %v9484 = vld [vmem:[#allocation2 + $0x18] sm:$0xff]
      %v9485 = vld [vmem:[#allocation2 + $0x20] sm:$0xff]
      %v9486 = vld [vmem:[#allocation2 + $0x28] sm:$0xff]
      %v9487 = vld [vmem:[#allocation2 + $0x30] sm:$0xff]
      %v9488 = vld [vmem:[#allocation2 + $0x38] sm:$0xff]
      %v9489 = vld [vmem:[#allocation2 + $0x40] sm:$0xff]
      %v9490 = vld [vmem:[#allocation2 + $0x48] sm:$0xff]
      %v9491 = vld [vmem:[#allocation2 + $0x50] sm:$0xff]
      %v9492 = vld [vmem:[#allocation2 + $0x58] sm:$0xff]
      %v9493 = vld [vmem:[#allocation2 + $0x60] sm:$0xff]
      %v9494 = vld [vmem:[#allocation2 + $0x68] sm:$0xff]
      %v9495 = vld [vmem:[#allocation2 + $0x70] sm:$0xff]
      %v9496 = vld [vmem:[#allocation2 + $0x78] sm:$0xff]
      %v9497 = vld [vmem:[#allocation2 + $0x80] sm:$0xff]
      %v9498 = vld [vmem:[#allocation2 + $0x88] sm:$0xff]
      %v9499 = vld [vmem:[#allocation2 + $0x90] sm:$0xff]
      %v9500 = vld [vmem:[#allocation2 + $0x98] sm:$0xff]
      %v9501 = vld [vmem:[#allocation2 + $0xa0] sm:$0xff]
      %v9502 = vld [vmem:[#allocation2 + $0xa8] sm:$0xff]
      %v9503 = vld [vmem:[#allocation2 + $0xb0] sm:$0xff]
      %v9504 = vld [vmem:[#allocation2 + $0xb8] sm:$0xff]
      %v9505 = vld [vmem:[#allocation2 + $0xc0] sm:$0xff]
      %v9506 = vld [vmem:[#allocation2 + $0xc8] sm:$0xff]
      %v9507 = vld [vmem:[#allocation2 + $0xd0] sm:$0xff]
      %s9508 = scalar_lea.vmem %s5, 24
      %v9509 = vld [vmem:[%s9508] sm:$0xf]
      %v9511 = vsel %vm391, %v9484, 0
      %v9514 = vsel %vm391, %v9485, 0
      %v9517 = vsel %vm391, %v9486, 0
      %v9520 = vsel %vm391, %v9487, 0
      %v9523 = vsel %vm391, %v9488, 0
      %v9526 = vsel %vm391, %v9489, 0
      %v9529 = vsel %vm391, %v9490, 0
      %v9532 = vsel %vm391, %v9491, 0
      %v9535 = vsel %vm391, %v9492, 0
      %v9538 = vsel %vm391, %v9493, 0
      %v9541 = vsel %vm391, %v9494, 0
      %v9544 = vsel %vm391, %v9495, 0
      %v9547 = vsel %vm391, %v9496, 0
      %v9550 = vsel %vm391, %v9497, 0
      %v9553 = vsel %vm391, %v9498, 0
      %v9556 = vsel %vm391, %v9499, 0
      %v9559 = vsel %vm391, %v9500, 0
      %v9562 = vsel %vm391, %v9501, 0
      %v9565 = vsel %vm391, %v9502, 0
      %v9568 = vsel %vm391, %v9503, 0
      %v9571 = vsel %vm391, %v9504, 0
      %v9574 = vsel %vm391, %v9505, 0
      %v9577 = vsel %vm391, %v9506, 0
      %v9580 = vsel %vm391, %v9507, 0
      %v9583 = vsel %vm853, %v9509, 0
      %9585 = vmatprep.subr.bf16.mxu0 0
      %9586 = vmatpush1.bf16.msra.mxu0 %v9583
      %9587 = vmatprep.subr.bf16.mxu0 0
      %9588 = vmatpush1.bf16.msra.mxu0 0
      %9589 = vmatprep.subr.bf16.mxu0 0
      %9590 = vmatpush1.bf16.msra.mxu0 0
      %9591 = vmatprep.subr.bf16.mxu0 0
      %9592 = vmatpush1.bf16.msra.mxu0 0
      %9593 = vmatprep.subr.bf16.mxu0 0
      %9594 = vmatpush1.bf16.msra.mxu0 0
      %9595 = vmatprep.subr.bf16.mxu0 0
      %9596 = vmatpush1.bf16.msra.mxu0 0
      %9597 = vmatprep.subr.bf16.mxu0 0
      %9598 = vmatpush1.bf16.msra.mxu0 0
      %9599 = vmatprep.subr.bf16.mxu0 0
      %9600 = vmatpush1.bf16.msra.mxu0 0
      %9601 = vmatprep.subr.bf16.mxu0 0
      %9602 = vmatpush1.bf16.msra.mxu0 0
      %9603 = vmatprep.subr.bf16.mxu0 0
      %9604 = vmatpush1.bf16.msra.mxu0 0
      %9605 = vmatprep.subr.bf16.mxu0 0
      %9606 = vmatpush1.bf16.msra.mxu0 0
      %9607 = vmatprep.subr.bf16.mxu0 0
      %9608 = vmatpush1.bf16.msra.mxu0 0
      %9609 = vmatprep.subr.bf16.mxu0 0
      %9610 = vmatpush1.bf16.msra.mxu0 0
      %9611 = vmatprep.subr.bf16.mxu0 0
      %9612 = vmatpush1.bf16.msra.mxu0 0
      %9613 = vmatprep.subr.bf16.mxu0 0
      %9614 = vmatpush1.bf16.msra.mxu0 0
      %9615 = vmatprep.subr.bf16.mxu0 0
      %9616 = vmatpush1.bf16.msra.mxu0 0
      %9617 = vmatprep.mubr.bf16.mxu0 0
      %9618 = vmatmul.mubr.bf16.gmra.mrb[0].mxu0 %v9511
      %v9619 = vpop.f32.mrb[0].mxu0
      %v9620 = vadd.f32 0.0, %v9619
      %v9621 = vpop.f32.mrb[0].mxu0
      %v9622 = vpop.f32.mrb[0].mxu0
      %v9623 = vadd.f32 0.0, %v9622
      %v9624 = vpop.f32.mrb[0].mxu0
      %9625 = vmatprep.mubr.bf16.mxu0 0
      %9626 = vmatmul.mubr.bf16.gmra.mrb[0].mxu0 %v9514
      %v9627 = vpop.f32.mrb[0].mxu0
      %v9628 = vadd.f32 0.0, %v9627
      %v9629 = vpop.f32.mrb[0].mxu0
      %v9630 = vpop.f32.mrb[0].mxu0
      %v9631 = vadd.f32 0.0, %v9630
      %v9632 = vpop.f32.mrb[0].mxu0
      %9633 = vmatprep.mubr.bf16.mxu0 0
      %9634 = vmatmul.mubr.bf16.gmra.mrb[0].mxu0 %v9517
      %v9635 = vpop.f32.mrb[0].mxu0
      %v9636 = vadd.f32 0.0, %v9635
      %v9637 = vpop.f32.mrb[0].mxu0
      %v9638 = vpop.f32.mrb[0].mxu0
      %v9639 = vadd.f32 0.0, %v9638
      %v9640 = vpop.f32.mrb[0].mxu0
      %9641 = vmatprep.mubr.bf16.mxu0 0
      %9642 = vmatmul.mubr.bf16.gmra.mrb[0].mxu0 %v9520
      %v9643 = vpop.f32.mrb[0].mxu0
      %v9644 = vadd.f32 0.0, %v9643
      %v9645 = vpop.f32.mrb[0].mxu0
      %v9646 = vpop.f32.mrb[0].mxu0
      %v9647 = vadd.f32 0.0, %v9646
      %v9648 = vpop.f32.mrb[0].mxu0
      %9649 = vmatprep.mubr.bf16.mxu0 0
      %9650 = vmatmul.mubr.bf16.gmra.mrb[0].mxu0 %v9523
      %v9651 = vpop.f32.mrb[0].mxu0
      %v9652 = vadd.f32 0.0, %v9651
      %v9653 = vpop.f32.mrb[0].mxu0
      %v9654 = vpop.f32.mrb[0].mxu0
      %v9655 = vadd.f32 0.0, %v9654
      %v9656 = vpop.f32.mrb[0].mxu0
      %9657 = vmatprep.mubr.bf16.mxu0 0
      %9658 = vmatmul.mubr.bf16.gmra.mrb[0].mxu0 %v9526
      %v9659 = vpop.f32.mrb[0].mxu0
      %v9660 = vadd.f32 0.0, %v9659
      %v9661 = vpop.f32.mrb[0].mxu0
      %v9662 = vpop.f32.mrb[0].mxu0
      %v9663 = vadd.f32 0.0, %v9662
      %v9664 = vpop.f32.mrb[0].mxu0
      %9665 = vmatprep.mubr.bf16.mxu0 0
      %9666 = vmatmul.mubr.bf16.gmra.mrb[0].mxu0 %v9529
      %v9667 = vpop.f32.mrb[0].mxu0
      %v9668 = vadd.f32 0.0, %v9667
      %v9669 = vpop.f32.mrb[0].mxu0
      %v9670 = vpop.f32.mrb[0].mxu0
      %v9671 = vadd.f32 0.0, %v9670
      %v9672 = vpop.f32.mrb[0].mxu0
      %9673 = vmatprep.mubr.bf16.mxu0 0
      %9674 = vmatmul.mubr.bf16.gmra.mrb[0].mxu0 %v9532
      %v9675 = vpop.f32.mrb[0].mxu0
      %v9676 = vadd.f32 0.0, %v9675
      %v9677 = vpop.f32.mrb[0].mxu0
      %v9678 = vpop.f32.mrb[0].mxu0
      %v9679 = vadd.f32 0.0, %v9678
      %v9680 = vpop.f32.mrb[0].mxu0
      %9681 = vmatprep.mubr.bf16.mxu0 0
      %9682 = vmatmul.mubr.bf16.gmra.mrb[0].mxu0 %v9535
      %v9683 = vpop.f32.mrb[0].mxu0
      %v9684 = vadd.f32 0.0, %v9683
      %v9685 = vpop.f32.mrb[0].mxu0
      %v9686 = vpop.f32.mrb[0].mxu0
      %v9687 = vadd.f32 0.0, %v9686
      %v9688 = vpop.f32.mrb[0].mxu0
      %9689 = vmatprep.mubr.bf16.mxu0 0
      %9690 = vmatmul.mubr.bf16.gmra.mrb[0].mxu0 %v9538
      %v9691 = vpop.f32.mrb[0].mxu0
      %v9692 = vadd.f32 0.0, %v9691
      %v9693 = vpop.f32.mrb[0].mxu0
      %v9694 = vpop.f32.mrb[0].mxu0
      %v9695 = vadd.f32 0.0, %v9694
      %v9696 = vpop.f32.mrb[0].mxu0
      %9697 = vmatprep.mubr.bf16.mxu0 0
      %9698 = vmatmul.mubr.bf16.gmra.mrb[0].mxu0 %v9541
      %v9699 = vpop.f32.mrb[0].mxu0
      %v9700 = vadd.f32 0.0, %v9699
      %v9701 = vpop.f32.mrb[0].mxu0
      %v9702 = vpop.f32.mrb[0].mxu0
      %v9703 = vadd.f32 0.0, %v9702
      %v9704 = vpop.f32.mrb[0].mxu0
      %9705 = vmatprep.mubr.bf16.mxu0 0
      %9706 = vmatmul.mubr.bf16.gmra.mrb[0].mxu0 %v9544
      %v9707 = vpop.f32.mrb[0].mxu0
      %v9708 = vadd.f32 0.0, %v9707
      %v9709 = vpop.f32.mrb[0].mxu0
      %v9710 = vpop.f32.mrb[0].mxu0
      %v9711 = vadd.f32 0.0, %v9710
      %v9712 = vpop.f32.mrb[0].mxu0
      %9713 = vmatprep.mubr.bf16.mxu0 0
      %9714 = vmatmul.mubr.bf16.gmra.mrb[0].mxu0 %v9547
      %v9715 = vpop.f32.mrb[0].mxu0
      %v9716 = vadd.f32 0.0, %v9715
      %v9717 = vpop.f32.mrb[0].mxu0
      %v9718 = vpop.f32.mrb[0].mxu0
      %v9719 = vadd.f32 0.0, %v9718
      %v9720 = vpop.f32.mrb[0].mxu0
      %9721 = vmatprep.mubr.bf16.mxu0 0
      %9722 = vmatmul.mubr.bf16.gmra.mrb[0].mxu0 %v9550
      %v9723 = vpop.f32.mrb[0].mxu0
      %v9724 = vadd.f32 0.0, %v9723
      %v9725 = vpop.f32.mrb[0].mxu0
      %v9726 = vpop.f32.mrb[0].mxu0
      %v9727 = vadd.f32 0.0, %v9726
      %v9728 = vpop.f32.mrb[0].mxu0
      %9729 = vmatprep.mubr.bf16.mxu0 0
      %9730 = vmatmul.mubr.bf16.gmra.mrb[0].mxu0 %v9553
      %v9731 = vpop.f32.mrb[0].mxu0
      %v9732 = vadd.f32 0.0, %v9731
      %v9733 = vpop.f32.mrb[0].mxu0
      %v9734 = vpop.f32.mrb[0].mxu0
      %v9735 = vadd.f32 0.0, %v9734
      %v9736 = vpop.f32.mrb[0].mxu0
      %9737 = vmatprep.mubr.bf16.mxu0 0
      %9738 = vmatmul.mubr.bf16.gmra.mrb[0].mxu0 %v9556
      %v9739 = vpop.f32.mrb[0].mxu0
      %v9740 = vadd.f32 0.0, %v9739
      %v9741 = vpop.f32.mrb[0].mxu0
      %v9742 = vpop.f32.mrb[0].mxu0
      %v9743 = vadd.f32 0.0, %v9742
      %v9744 = vpop.f32.mrb[0].mxu0
      %9745 = vmatprep.mubr.bf16.mxu0 0
      %9746 = vmatmul.mubr.bf16.gmra.mrb[0].mxu0 %v9559
      %v9747 = vpop.f32.mrb[0].mxu0
      %v9748 = vadd.f32 0.0, %v9747
      %v9749 = vpop.f32.mrb[0].mxu0
      %v9750 = vpop.f32.mrb[0].mxu0
      %v9751 = vadd.f32 0.0, %v9750
      %v9752 = vpop.f32.mrb[0].mxu0
      %9753 = vmatprep.mubr.bf16.mxu0 0
      %9754 = vmatmul.mubr.bf16.gmra.mrb[0].mxu0 %v9562
      %v9755 = vpop.f32.mrb[0].mxu0
      %v9756 = vadd.f32 0.0, %v9755
      %v9757 = vpop.f32.mrb[0].mxu0
      %v9758 = vpop.f32.mrb[0].mxu0
      %v9759 = vadd.f32 0.0, %v9758
      %v9760 = vpop.f32.mrb[0].mxu0
      %9761 = vmatprep.mubr.bf16.mxu0 0
      %9762 = vmatmul.mubr.bf16.gmra.mrb[0].mxu0 %v9565
      %v9763 = vpop.f32.mrb[0].mxu0
      %v9764 = vadd.f32 0.0, %v9763
      %v9765 = vpop.f32.mrb[0].mxu0
      %v9766 = vpop.f32.mrb[0].mxu0
      %v9767 = vadd.f32 0.0, %v9766
      %v9768 = vpop.f32.mrb[0].mxu0
      %9769 = vmatprep.mubr.bf16.mxu0 0
      %9770 = vmatmul.mubr.bf16.gmra.mrb[0].mxu0 %v9568
      %v9771 = vpop.f32.mrb[0].mxu0
      %v9772 = vadd.f32 0.0, %v9771
      %v9773 = vpop.f32.mrb[0].mxu0
      %v9774 = vpop.f32.mrb[0].mxu0
      %v9775 = vadd.f32 0.0, %v9774
      %v9776 = vpop.f32.mrb[0].mxu0
      %9777 = vmatprep.mubr.bf16.mxu0 0
      %9778 = vmatmul.mubr.bf16.gmra.mrb[0].mxu0 %v9571
      %v9779 = vpop.f32.mrb[0].mxu0
      %v9780 = vadd.f32 0.0, %v9779
      %v9781 = vpop.f32.mrb[0].mxu0
      %v9782 = vpop.f32.mrb[0].mxu0
      %v9783 = vadd.f32 0.0, %v9782
      %v9784 = vpop.f32.mrb[0].mxu0
      %9785 = vmatprep.mubr.bf16.mxu0 0
      %9786 = vmatmul.mubr.bf16.gmra.mrb[0].mxu0 %v9574
      %v9787 = vpop.f32.mrb[0].mxu0
      %v9788 = vadd.f32 0.0, %v9787
      %v9789 = vpop.f32.mrb[0].mxu0
      %v9790 = vpop.f32.mrb[0].mxu0
      %v9791 = vadd.f32 0.0, %v9790
      %v9792 = vpop.f32.mrb[0].mxu0
      %9793 = vmatprep.mubr.bf16.mxu0 0
      %9794 = vmatmul.mubr.bf16.gmra.mrb[0].mxu0 %v9577
      %v9795 = vpop.f32.mrb[0].mxu0
      %v9796 = vadd.f32 0.0, %v9795
      %v9797 = vpop.f32.mrb[0].mxu0
      %v9798 = vpop.f32.mrb[0].mxu0
      %v9799 = vadd.f32 0.0, %v9798
      %v9800 = vpop.f32.mrb[0].mxu0
      %9801 = vmatprep.mubr.bf16.mxu0 0
      %9802 = vmatmul.mubr.bf16.gmra.mrb[0].mxu0 %v9580
      %v9803 = vpop.f32.mrb[0].mxu0
      %v9804 = vadd.f32 0.0, %v9803
      %v9805 = vpop.f32.mrb[0].mxu0
      %v9806 = vpop.f32.mrb[0].mxu0
      %v9807 = vadd.f32 0.0, %v9806
      %v9808 = vpop.f32.mrb[0].mxu0
      %9809 = vdwg.mxu0
      %v9810 = vadd.f32 %v9436, %v9620
      %v9811 = vadd.f32 %v9437, %v9623
      %v9812 = vadd.f32 %v9438, %v9628
      %v9813 = vadd.f32 %v9439, %v9631
      %v9814 = vadd.f32 %v9440, %v9636
      %v9815 = vadd.f32 %v9441, %v9639
      %v9816 = vadd.f32 %v9442, %v9644
      %v9817 = vadd.f32 %v9443, %v9647
      %v9818 = vadd.f32 %v9444, %v9652
      %v9819 = vadd.f32 %v9445, %v9655
      %v9820 = vadd.f32 %v9446, %v9660
      %v9821 = vadd.f32 %v9447, %v9663
      %v9822 = vadd.f32 %v9448, %v9668
      %v9823 = vadd.f32 %v9449, %v9671
      %v9824 = vadd.f32 %v9450, %v9676
      %v9825 = vadd.f32 %v9451, %v9679
      %v9826 = vadd.f32 %v9452, %v9684
      %v9827 = vadd.f32 %v9453, %v9687
      %v9828 = vadd.f32 %v9454, %v9692
      %v9829 = vadd.f32 %v9455, %v9695
      %v9830 = vadd.f32 %v9456, %v9700
      %v9831 = vadd.f32 %v9457, %v9703
      %v9832 = vadd.f32 %v9458, %v9708
      %v9833 = vadd.f32 %v9459, %v9711
      %v9834 = vadd.f32 %v9460, %v9716
      %v9835 = vadd.f32 %v9461, %v9719
      %v9836 = vadd.f32 %v9462, %v9724
      %v9837 = vadd.f32 %v9463, %v9727
      %v9838 = vadd.f32 %v9464, %v9732
      %v9839 = vadd.f32 %v9465, %v9735
      %v9840 = vadd.f32 %v9466, %v9740
      %v9841 = vadd.f32 %v9467, %v9743
      %v9842 = vadd.f32 %v9468, %v9748
      %v9843 = vadd.f32 %v9469, %v9751
      %v9844 = vadd.f32 %v9470, %v9756
      %v9845 = vadd.f32 %v9471, %v9759
      %v9846 = vadd.f32 %v9472, %v9764
      %v9847 = vadd.f32 %v9473, %v9767
      %v9848 = vadd.f32 %v9474, %v9772
      %v9849 = vadd.f32 %v9475, %v9775
      %v9850 = vadd.f32 %v9476, %v9780
      %v9851 = vadd.f32 %v9477, %v9783
      %v9852 = vadd.f32 %v9478, %v9788
      %v9853 = vadd.f32 %v9479, %v9791
      %v9854 = vadd.f32 %v9480, %v9796
      %v9855 = vadd.f32 %v9481, %v9799
      %v9856 = vadd.f32 %v9482, %v9804
      %v9857 = vadd.f32 %v9483, %v9807
      %v9858 = vld [vmem:[#allocation2 + $0x18] sm:$0xff]
      %v9859 = vld [vmem:[#allocation2 + $0x20] sm:$0xff]
      %v9860 = vld [vmem:[#allocation2 + $0x28] sm:$0xff]
      %v9861 = vld [vmem:[#allocation2 + $0x30] sm:$0xff]
      %v9862 = vld [vmem:[#allocation2 + $0x38] sm:$0xff]
      %v9863 = vld [vmem:[#allocation2 + $0x40] sm:$0xff]
      %v9864 = vld [vmem:[#allocation2 + $0x48] sm:$0xff]
      %v9865 = vld [vmem:[#allocation2 + $0x50] sm:$0xff]
      %v9866 = vld [vmem:[#allocation2 + $0x58] sm:$0xff]
      %v9867 = vld [vmem:[#allocation2 + $0x60] sm:$0xff]
      %v9868 = vld [vmem:[#allocation2 + $0x68] sm:$0xff]
      %v9869 = vld [vmem:[#allocation2 + $0x70] sm:$0xff]
      %v9870 = vld [vmem:[#allocation2 + $0x78] sm:$0xff]
      %v9871 = vld [vmem:[#allocation2 + $0x80] sm:$0xff]
      %v9872 = vld [vmem:[#allocation2 + $0x88] sm:$0xff]
      %v9873 = vld [vmem:[#allocation2 + $0x90] sm:$0xff]
      %v9874 = vld [vmem:[#allocation2 + $0x98] sm:$0xff]
      %v9875 = vld [vmem:[#allocation2 + $0xa0] sm:$0xff]
      %v9876 = vld [vmem:[#allocation2 + $0xa8] sm:$0xff]
      %v9877 = vld [vmem:[#allocation2 + $0xb0] sm:$0xff]
      %v9878 = vld [vmem:[#allocation2 + $0xb8] sm:$0xff]
      %v9879 = vld [vmem:[#allocation2 + $0xc0] sm:$0xff]
      %v9880 = vld [vmem:[#allocation2 + $0xc8] sm:$0xff]
      %v9881 = vld [vmem:[#allocation2 + $0xd0] sm:$0xff]
      %v9882 = vld [vmem:[#allocation2 + $0xd8] sm:$0x1]
      %s9883 = scalar_lea.vmem %s5, 28
      %v9884 = vld [vmem:[%s9883] sm:$0xf]
      %v9886 = vshrl.u32 %v9858, 16
      %v9888 = vshll.u32 %v9858, 16
      %v9890 = vrot.slane %v9888, 1
      %v9891 = vor.u32 %v9886, %v9890
      %v9893 = vshll.u32 %v9859, 16
      %v9895 = vrot.slane %v9893, 1
      %v9896 = vsel %vm584, %v9891, %v9895
      %v9897 = vshrl.u32 %v9859, 16
      %v9899 = vor.u32 %v9897, %v9895
      %v9901 = vshll.u32 %v9860, 16
      %v9903 = vrot.slane %v9901, 1
      %v9904 = vsel %vm584, %v9899, %v9903
      %v9905 = vshrl.u32 %v9860, 16
      %v9907 = vor.u32 %v9905, %v9903
      %v9909 = vshll.u32 %v9861, 16
      %v9911 = vrot.slane %v9909, 1
      %v9912 = vsel %vm584, %v9907, %v9911
      %v9913 = vshrl.u32 %v9861, 16
      %v9915 = vor.u32 %v9913, %v9911
      %v9917 = vshll.u32 %v9862, 16
      %v9919 = vrot.slane %v9917, 1
      %v9920 = vsel %vm584, %v9915, %v9919
      %v9921 = vshrl.u32 %v9862, 16
      %v9923 = vor.u32 %v9921, %v9919
      %v9925 = vshll.u32 %v9863, 16
      %v9927 = vrot.slane %v9925, 1
      %v9928 = vsel %vm584, %v9923, %v9927
      %v9929 = vshrl.u32 %v9863, 16
      %v9931 = vor.u32 %v9929, %v9927
      %v9933 = vshll.u32 %v9864, 16
      %v9935 = vrot.slane %v9933, 1
      %v9936 = vsel %vm584, %v9931, %v9935
      %v9937 = vshrl.u32 %v9864, 16
      %v9939 = vor.u32 %v9937, %v9935
      %v9941 = vshll.u32 %v9865, 16
      %v9943 = vrot.slane %v9941, 1
      %v9944 = vsel %vm584, %v9939, %v9943
      %v9945 = vshrl.u32 %v9865, 16
      %v9947 = vor.u32 %v9945, %v9943
      %v9949 = vshll.u32 %v9866, 16
      %v9951 = vrot.slane %v9949, 1
      %v9952 = vsel %vm584, %v9947, %v9951
      %v9953 = vshrl.u32 %v9866, 16
      %v9955 = vor.u32 %v9953, %v9951
      %v9957 = vshll.u32 %v9867, 16
      %v9959 = vrot.slane %v9957, 1
      %v9960 = vsel %vm584, %v9955, %v9959
      %v9961 = vshrl.u32 %v9867, 16
      %v9963 = vor.u32 %v9961, %v9959
      %v9965 = vshll.u32 %v9868, 16
      %v9967 = vrot.slane %v9965, 1
      %v9968 = vsel %vm584, %v9963, %v9967
      %v9969 = vshrl.u32 %v9868, 16
      %v9971 = vor.u32 %v9969, %v9967
      %v9973 = vshll.u32 %v9869, 16
      %v9975 = vrot.slane %v9973, 1
      %v9976 = vsel %vm584, %v9971, %v9975
      %v9977 = vshrl.u32 %v9869, 16
      %v9979 = vor.u32 %v9977, %v9975
      %v9981 = vshll.u32 %v9870, 16
      %v9983 = vrot.slane %v9981, 1
      %v9984 = vsel %vm584, %v9979, %v9983
      %v9985 = vshrl.u32 %v9870, 16
      %v9987 = vor.u32 %v9985, %v9983
      %v9989 = vshll.u32 %v9871, 16
      %v9991 = vrot.slane %v9989, 1
      %v9992 = vsel %vm584, %v9987, %v9991
      %v9993 = vshrl.u32 %v9871, 16
      %v9995 = vor.u32 %v9993, %v9991
      %v9997 = vshll.u32 %v9872, 16
      %v9999 = vrot.slane %v9997, 1
      %v10000 = vsel %vm584, %v9995, %v9999
      %v10001 = vshrl.u32 %v9872, 16
      %v10003 = vor.u32 %v10001, %v9999
      %v10005 = vshll.u32 %v9873, 16
      %v10007 = vrot.slane %v10005, 1
      %v10008 = vsel %vm584, %v10003, %v10007
      %v10009 = vshrl.u32 %v9873, 16
      %v10011 = vor.u32 %v10009, %v10007
      %v10013 = vshll.u32 %v9874, 16
      %v10015 = vrot.slane %v10013, 1
      %v10016 = vsel %vm584, %v10011, %v10015
      %v10017 = vshrl.u32 %v9874, 16
      %v10019 = vor.u32 %v10017, %v10015
      %v10021 = vshll.u32 %v9875, 16
      %v10023 = vrot.slane %v10021, 1
      %v10024 = vsel %vm584, %v10019, %v10023
      %v10025 = vshrl.u32 %v9875, 16
      %v10027 = vor.u32 %v10025, %v10023
      %v10029 = vshll.u32 %v9876, 16
      %v10031 = vrot.slane %v10029, 1
      %v10032 = vsel %vm584, %v10027, %v10031
      %v10033 = vshrl.u32 %v9876, 16
      %v10035 = vor.u32 %v10033, %v10031
      %v10037 = vshll.u32 %v9877, 16
      %v10039 = vrot.slane %v10037, 1
      %v10040 = vsel %vm584, %v10035, %v10039
      %v10041 = vshrl.u32 %v9877, 16
      %v10043 = vor.u32 %v10041, %v10039
      %v10045 = vshll.u32 %v9878, 16
      %v10047 = vrot.slane %v10045, 1
      %v10048 = vsel %vm584, %v10043, %v10047
      %v10049 = vshrl.u32 %v9878, 16
      %v10051 = vor.u32 %v10049, %v10047
      %v10053 = vshll.u32 %v9879, 16
      %v10055 = vrot.slane %v10053, 1
      %v10056 = vsel %vm584, %v10051, %v10055
      %v10057 = vshrl.u32 %v9879, 16
      %v10059 = vor.u32 %v10057, %v10055
      %v10061 = vshll.u32 %v9880, 16
      %v10063 = vrot.slane %v10061, 1
      %v10064 = vsel %vm584, %v10059, %v10063
      %v10065 = vshrl.u32 %v9880, 16
      %v10067 = vor.u32 %v10065, %v10063
      %v10069 = vshll.u32 %v9881, 16
      %v10071 = vrot.slane %v10069, 1
      %v10072 = vsel %vm584, %v10067, %v10071
      %v10073 = vshrl.u32 %v9881, 16
      %v10075 = vor.u32 %v10073, %v10071
      %v10077 = vshll.u32 %v9882, 16
      %v10079 = vrot.slane %v10077, 1
      %v10080 = vsel %vm584, %v10075, %v10079
      %v10082 = vsel %vm391, %v9896, 0
      %v10085 = vsel %vm391, %v9904, 0
      %v10088 = vsel %vm391, %v9912, 0
      %v10091 = vsel %vm391, %v9920, 0
      %v10094 = vsel %vm391, %v9928, 0
      %v10097 = vsel %vm391, %v9936, 0
      %v10100 = vsel %vm391, %v9944, 0
      %v10103 = vsel %vm391, %v9952, 0
      %v10106 = vsel %vm391, %v9960, 0
      %v10109 = vsel %vm391, %v9968, 0
      %v10112 = vsel %vm391, %v9976, 0
      %v10115 = vsel %vm391, %v9984, 0
      %v10118 = vsel %vm391, %v9992, 0
      %v10121 = vsel %vm391, %v10000, 0
      %v10124 = vsel %vm391, %v10008, 0
      %v10127 = vsel %vm391, %v10016, 0
      %v10130 = vsel %vm391, %v10024, 0
      %v10133 = vsel %vm391, %v10032, 0
      %v10136 = vsel %vm391, %v10040, 0
      %v10139 = vsel %vm391, %v10048, 0
      %v10142 = vsel %vm391, %v10056, 0
      %v10145 = vsel %vm391, %v10064, 0
      %v10148 = vsel %vm391, %v10072, 0
      %v10151 = vsel %vm391, %v10080, 0
      %v10154 = vsel %vm853, %v9884, 0
      %10156 = vmatprep.subr.bf16.mxu0 0
      %10157 = vmatpush1.bf16.msra.mxu0 %v10154
      %10158 = vmatprep.subr.bf16.mxu0 0
      %10159 = vmatpush1.bf16.msra.mxu0 0
      %10160 = vmatprep.subr.bf16.mxu0 0
      %10161 = vmatpush1.bf16.msra.mxu0 0
      %10162 = vmatprep.subr.bf16.mxu0 0
      %10163 = vmatpush1.bf16.msra.mxu0 0
      %10164 = vmatprep.subr.bf16.mxu0 0
      %10165 = vmatpush1.bf16.msra.mxu0 0
      %10166 = vmatprep.subr.bf16.mxu0 0
      %10167 = vmatpush1.bf16.msra.mxu0 0
      %10168 = vmatprep.subr.bf16.mxu0 0
      %10169 = vmatpush1.bf16.msra.mxu0 0
      %10170 = vmatprep.subr.bf16.mxu0 0
      %10171 = vmatpush1.bf16.msra.mxu0 0
      %10172 = vmatprep.subr.bf16.mxu0 0
      %10173 = vmatpush1.bf16.msra.mxu0 0
      %10174 = vmatprep.subr.bf16.mxu0 0
      %10175 = vmatpush1.bf16.msra.mxu0 0
      %10176 = vmatprep.subr.bf16.mxu0 0
      %10177 = vmatpush1.bf16.msra.mxu0 0
      %10178 = vmatprep.subr.bf16.mxu0 0
      %10179 = vmatpush1.bf16.msra.mxu0 0
      %10180 = vmatprep.subr.bf16.mxu0 0
      %10181 = vmatpush1.bf16.msra.mxu0 0
      %10182 = vmatprep.subr.bf16.mxu0 0
      %10183 = vmatpush1.bf16.msra.mxu0 0
      %10184 = vmatprep.subr.bf16.mxu0 0
      %10185 = vmatpush1.bf16.msra.mxu0 0
      %10186 = vmatprep.subr.bf16.mxu0 0
      %10187 = vmatpush1.bf16.msra.mxu0 0
      %10188 = vmatprep.mubr.bf16.mxu0 0
      %10189 = vmatmul.mubr.bf16.gmra.mrb[0].mxu0 %v10082
      %v10190 = vpop.f32.mrb[0].mxu0
      %v10191 = vadd.f32 0.0, %v10190
      %v10192 = vpop.f32.mrb[0].mxu0
      %v10193 = vpop.f32.mrb[0].mxu0
      %v10194 = vadd.f32 0.0, %v10193
      %v10195 = vpop.f32.mrb[0].mxu0
      %10196 = vmatprep.mubr.bf16.mxu0 0
      %10197 = vmatmul.mubr.bf16.gmra.mrb[0].mxu0 %v10085
      %v10198 = vpop.f32.mrb[0].mxu0
      %v10199 = vadd.f32 0.0, %v10198
      %v10200 = vpop.f32.mrb[0].mxu0
      %v10201 = vpop.f32.mrb[0].mxu0
      %v10202 = vadd.f32 0.0, %v10201
      %v10203 = vpop.f32.mrb[0].mxu0
      %10204 = vmatprep.mubr.bf16.mxu0 0
      %10205 = vmatmul.mubr.bf16.gmra.mrb[0].mxu0 %v10088
      %v10206 = vpop.f32.mrb[0].mxu0
      %v10207 = vadd.f32 0.0, %v10206
      %v10208 = vpop.f32.mrb[0].mxu0
      %v10209 = vpop.f32.mrb[0].mxu0
      %v10210 = vadd.f32 0.0, %v10209
      %v10211 = vpop.f32.mrb[0].mxu0
      %10212 = vmatprep.mubr.bf16.mxu0 0
      %10213 = vmatmul.mubr.bf16.gmra.mrb[0].mxu0 %v10091
      %v10214 = vpop.f32.mrb[0].mxu0
      %v10215 = vadd.f32 0.0, %v10214
      %v10216 = vpop.f32.mrb[0].mxu0
      %v10217 = vpop.f32.mrb[0].mxu0
      %v10218 = vadd.f32 0.0, %v10217
      %v10219 = vpop.f32.mrb[0].mxu0
      %10220 = vmatprep.mubr.bf16.mxu0 0
      %10221 = vmatmul.mubr.bf16.gmra.mrb[0].mxu0 %v10094
      %v10222 = vpop.f32.mrb[0].mxu0
      %v10223 = vadd.f32 0.0, %v10222
      %v10224 = vpop.f32.mrb[0].mxu0
      %v10225 = vpop.f32.mrb[0].mxu0
      %v10226 = vadd.f32 0.0, %v10225
      %v10227 = vpop.f32.mrb[0].mxu0
      %10228 = vmatprep.mubr.bf16.mxu0 0
      %10229 = vmatmul.mubr.bf16.gmra.mrb[0].mxu0 %v10097
      %v10230 = vpop.f32.mrb[0].mxu0
      %v10231 = vadd.f32 0.0, %v10230
      %v10232 = vpop.f32.mrb[0].mxu0
      %v10233 = vpop.f32.mrb[0].mxu0
      %v10234 = vadd.f32 0.0, %v10233
      %v10235 = vpop.f32.mrb[0].mxu0
      %10236 = vmatprep.mubr.bf16.mxu0 0
      %10237 = vmatmul.mubr.bf16.gmra.mrb[0].mxu0 %v10100
      %v10238 = vpop.f32.mrb[0].mxu0
      %v10239 = vadd.f32 0.0, %v10238
      %v10240 = vpop.f32.mrb[0].mxu0
      %v10241 = vpop.f32.mrb[0].mxu0
      %v10242 = vadd.f32 0.0, %v10241
      %v10243 = vpop.f32.mrb[0].mxu0
      %10244 = vmatprep.mubr.bf16.mxu0 0
      %10245 = vmatmul.mubr.bf16.gmra.mrb[0].mxu0 %v10103
      %v10246 = vpop.f32.mrb[0].mxu0
      %v10247 = vadd.f32 0.0, %v10246
      %v10248 = vpop.f32.mrb[0].mxu0
      %v10249 = vpop.f32.mrb[0].mxu0
      %v10250 = vadd.f32 0.0, %v10249
      %v10251 = vpop.f32.mrb[0].mxu0
      %10252 = vmatprep.mubr.bf16.mxu0 0
      %10253 = vmatmul.mubr.bf16.gmra.mrb[0].mxu0 %v10106
      %v10254 = vpop.f32.mrb[0].mxu0
      %v10255 = vadd.f32 0.0, %v10254
      %v10256 = vpop.f32.mrb[0].mxu0
      %v10257 = vpop.f32.mrb[0].mxu0
      %v10258 = vadd.f32 0.0, %v10257
      %v10259 = vpop.f32.mrb[0].mxu0
      %10260 = vmatprep.mubr.bf16.mxu0 0
      %10261 = vmatmul.mubr.bf16.gmra.mrb[0].mxu0 %v10109
      %v10262 = vpop.f32.mrb[0].mxu0
      %v10263 = vadd.f32 0.0, %v10262
      %v10264 = vpop.f32.mrb[0].mxu0
      %v10265 = vpop.f32.mrb[0].mxu0
      %v10266 = vadd.f32 0.0, %v10265
      %v10267 = vpop.f32.mrb[0].mxu0
      %10268 = vmatprep.mubr.bf16.mxu0 0
      %10269 = vmatmul.mubr.bf16.gmra.mrb[0].mxu0 %v10112
      %v10270 = vpop.f32.mrb[0].mxu0
      %v10271 = vadd.f32 0.0, %v10270
      %v10272 = vpop.f32.mrb[0].mxu0
      %v10273 = vpop.f32.mrb[0].mxu0
      %v10274 = vadd.f32 0.0, %v10273
      %v10275 = vpop.f32.mrb[0].mxu0
      %10276 = vmatprep.mubr.bf16.mxu0 0
      %10277 = vmatmul.mubr.bf16.gmra.mrb[0].mxu0 %v10115
      %v10278 = vpop.f32.mrb[0].mxu0
      %v10279 = vadd.f32 0.0, %v10278
      %v10280 = vpop.f32.mrb[0].mxu0
      %v10281 = vpop.f32.mrb[0].mxu0
      %v10282 = vadd.f32 0.0, %v10281
      %v10283 = vpop.f32.mrb[0].mxu0
      %10284 = vmatprep.mubr.bf16.mxu0 0
      %10285 = vmatmul.mubr.bf16.gmra.mrb[0].mxu0 %v10118
      %v10286 = vpop.f32.mrb[0].mxu0
      %v10287 = vadd.f32 0.0, %v10286
      %v10288 = vpop.f32.mrb[0].mxu0
      %v10289 = vpop.f32.mrb[0].mxu0
      %v10290 = vadd.f32 0.0, %v10289
      %v10291 = vpop.f32.mrb[0].mxu0
      %10292 = vmatprep.mubr.bf16.mxu0 0
      %10293 = vmatmul.mubr.bf16.gmra.mrb[0].mxu0 %v10121
      %v10294 = vpop.f32.mrb[0].mxu0
      %v10295 = vadd.f32 0.0, %v10294
      %v10296 = vpop.f32.mrb[0].mxu0
      %v10297 = vpop.f32.mrb[0].mxu0
      %v10298 = vadd.f32 0.0, %v10297
      %v10299 = vpop.f32.mrb[0].mxu0
      %10300 = vmatprep.mubr.bf16.mxu0 0
      %10301 = vmatmul.mubr.bf16.gmra.mrb[0].mxu0 %v10124
      %v10302 = vpop.f32.mrb[0].mxu0
      %v10303 = vadd.f32 0.0, %v10302
      %v10304 = vpop.f32.mrb[0].mxu0
      %v10305 = vpop.f32.mrb[0].mxu0
      %v10306 = vadd.f32 0.0, %v10305
      %v10307 = vpop.f32.mrb[0].mxu0
      %10308 = vmatprep.mubr.bf16.mxu0 0
      %10309 = vmatmul.mubr.bf16.gmra.mrb[0].mxu0 %v10127
      %v10310 = vpop.f32.mrb[0].mxu0
      %v10311 = vadd.f32 0.0, %v10310
      %v10312 = vpop.f32.mrb[0].mxu0
      %v10313 = vpop.f32.mrb[0].mxu0
      %v10314 = vadd.f32 0.0, %v10313
      %v10315 = vpop.f32.mrb[0].mxu0
      %10316 = vmatprep.mubr.bf16.mxu0 0
      %10317 = vmatmul.mubr.bf16.gmra.mrb[0].mxu0 %v10130
      %v10318 = vpop.f32.mrb[0].mxu0
      %v10319 = vadd.f32 0.0, %v10318
      %v10320 = vpop.f32.mrb[0].mxu0
      %v10321 = vpop.f32.mrb[0].mxu0
      %v10322 = vadd.f32 0.0, %v10321
      %v10323 = vpop.f32.mrb[0].mxu0
      %10324 = vmatprep.mubr.bf16.mxu0 0
      %10325 = vmatmul.mubr.bf16.gmra.mrb[0].mxu0 %v10133
      %v10326 = vpop.f32.mrb[0].mxu0
      %v10327 = vadd.f32 0.0, %v10326
      %v10328 = vpop.f32.mrb[0].mxu0
      %v10329 = vpop.f32.mrb[0].mxu0
      %v10330 = vadd.f32 0.0, %v10329
      %v10331 = vpop.f32.mrb[0].mxu0
      %10332 = vmatprep.mubr.bf16.mxu0 0
      %10333 = vmatmul.mubr.bf16.gmra.mrb[0].mxu0 %v10136
      %v10334 = vpop.f32.mrb[0].mxu0
      %v10335 = vadd.f32 0.0, %v10334
      %v10336 = vpop.f32.mrb[0].mxu0
      %v10337 = vpop.f32.mrb[0].mxu0
      %v10338 = vadd.f32 0.0, %v10337
      %v10339 = vpop.f32.mrb[0].mxu0
      %10340 = vmatprep.mubr.bf16.mxu0 0
      %10341 = vmatmul.mubr.bf16.gmra.mrb[0].mxu0 %v10139
      %v10342 = vpop.f32.mrb[0].mxu0
      %v10343 = vadd.f32 0.0, %v10342
      %v10344 = vpop.f32.mrb[0].mxu0
      %v10345 = vpop.f32.mrb[0].mxu0
      %v10346 = vadd.f32 0.0, %v10345
      %v10347 = vpop.f32.mrb[0].mxu0
      %10348 = vmatprep.mubr.bf16.mxu0 0
      %10349 = vmatmul.mubr.bf16.gmra.mrb[0].mxu0 %v10142
      %v10350 = vpop.f32.mrb[0].mxu0
      %v10351 = vadd.f32 0.0, %v10350
      %v10352 = vpop.f32.mrb[0].mxu0
      %v10353 = vpop.f32.mrb[0].mxu0
      %v10354 = vadd.f32 0.0, %v10353
      %v10355 = vpop.f32.mrb[0].mxu0
      %10356 = vmatprep.mubr.bf16.mxu0 0
      %10357 = vmatmul.mubr.bf16.gmra.mrb[0].mxu0 %v10145
      %v10358 = vpop.f32.mrb[0].mxu0
      %v10359 = vadd.f32 0.0, %v10358
      %v10360 = vpop.f32.mrb[0].mxu0
      %v10361 = vpop.f32.mrb[0].mxu0
      %v10362 = vadd.f32 0.0, %v10361
      %v10363 = vpop.f32.mrb[0].mxu0
      %10364 = vmatprep.mubr.bf16.mxu0 0
      %10365 = vmatmul.mubr.bf16.gmra.mrb[0].mxu0 %v10148
      %v10366 = vpop.f32.mrb[0].mxu0
      %v10367 = vadd.f32 0.0, %v10366
      %v10368 = vpop.f32.mrb[0].mxu0
      %v10369 = vpop.f32.mrb[0].mxu0
      %v10370 = vadd.f32 0.0, %v10369
      %v10371 = vpop.f32.mrb[0].mxu0
      %10372 = vmatprep.mubr.bf16.mxu0 0
      %10373 = vmatmul.mubr.bf16.gmra.mrb[0].mxu0 %v10151
      %v10374 = vpop.f32.mrb[0].mxu0
      %v10375 = vadd.f32 0.0, %v10374
      %v10376 = vpop.f32.mrb[0].mxu0
      %v10377 = vpop.f32.mrb[0].mxu0
      %v10378 = vadd.f32 0.0, %v10377
      %v10379 = vpop.f32.mrb[0].mxu0
      %10380 = vdwg.mxu0
      %v10381 = vadd.f32 %v9810, %v10191
      %v10382 = vadd.f32 %v9811, %v10194
      %v10383 = vadd.f32 %v9812, %v10199
      %v10384 = vadd.f32 %v9813, %v10202
      %v10385 = vadd.f32 %v9814, %v10207
      %v10386 = vadd.f32 %v9815, %v10210
      %v10387 = vadd.f32 %v9816, %v10215
      %v10388 = vadd.f32 %v9817, %v10218
      %v10389 = vadd.f32 %v9818, %v10223
      %v10390 = vadd.f32 %v9819, %v10226
      %v10391 = vadd.f32 %v9820, %v10231
      %v10392 = vadd.f32 %v9821, %v10234
      %v10393 = vadd.f32 %v9822, %v10239
      %v10394 = vadd.f32 %v9823, %v10242
      %v10395 = vadd.f32 %v9824, %v10247
      %v10396 = vadd.f32 %v9825, %v10250
      %v10397 = vadd.f32 %v9826, %v10255
      %v10398 = vadd.f32 %v9827, %v10258
      %v10399 = vadd.f32 %v9828, %v10263
      %v10400 = vadd.f32 %v9829, %v10266
      %v10401 = vadd.f32 %v9830, %v10271
      %v10402 = vadd.f32 %v9831, %v10274
      %v10403 = vadd.f32 %v9832, %v10279
      %v10404 = vadd.f32 %v9833, %v10282
      %v10405 = vadd.f32 %v9834, %v10287
      %v10406 = vadd.f32 %v9835, %v10290
      %v10407 = vadd.f32 %v9836, %v10295
      %v10408 = vadd.f32 %v9837, %v10298
      %v10409 = vadd.f32 %v9838, %v10303
      %v10410 = vadd.f32 %v9839, %v10306
      %v10411 = vadd.f32 %v9840, %v10311
      %v10412 = vadd.f32 %v9841, %v10314
      %v10413 = vadd.f32 %v9842, %v10319
      %v10414 = vadd.f32 %v9843, %v10322
      %v10415 = vadd.f32 %v9844, %v10327
      %v10416 = vadd.f32 %v9845, %v10330
      %v10417 = vadd.f32 %v9846, %v10335
      %v10418 = vadd.f32 %v9847, %v10338
      %v10419 = vadd.f32 %v9848, %v10343
      %v10420 = vadd.f32 %v9849, %v10346
      %v10421 = vadd.f32 %v9850, %v10351
      %v10422 = vadd.f32 %v9851, %v10354
      %v10423 = vadd.f32 %v9852, %v10359
      %v10424 = vadd.f32 %v9853, %v10362
      %v10425 = vadd.f32 %v9854, %v10367
      %v10426 = vadd.f32 %v9855, %v10370
      %v10427 = vadd.f32 %v9856, %v10375
      %v10428 = vadd.f32 %v9857, %v10378
      %v10429 = vld [vmem:[#allocation2 + $0x18] sm:$0xfe]
      %s10430 = scalar_lea.vmem %s5, 32
      %v10431 = vld [vmem:[%s10430] sm:$0xf]
      %v10457 = vrot.slane %v10429, 1
      %v10458 = vrot.slane %v9859, 1
      %v10459 = vsel %vm1364, %v10457, %v10458
      %v10460 = vrot.slane %v9860, 1
      %v10461 = vsel %vm1364, %v10458, %v10460
      %v10462 = vrot.slane %v9861, 1
      %v10463 = vsel %vm1364, %v10460, %v10462
      %v10464 = vrot.slane %v9862, 1
      %v10465 = vsel %vm1364, %v10462, %v10464
      %v10466 = vrot.slane %v9863, 1
      %v10467 = vsel %vm1364, %v10464, %v10466
      %v10468 = vrot.slane %v9864, 1
      %v10469 = vsel %vm1364, %v10466, %v10468
      %v10470 = vrot.slane %v9865, 1
      %v10471 = vsel %vm1364, %v10468, %v10470
      %v10472 = vrot.slane %v9866, 1
      %v10473 = vsel %vm1364, %v10470, %v10472
      %v10474 = vrot.slane %v9867, 1
      %v10475 = vsel %vm1364, %v10472, %v10474
      %v10476 = vrot.slane %v9868, 1
      %v10477 = vsel %vm1364, %v10474, %v10476
      %v10478 = vrot.slane %v9869, 1
      %v10479 = vsel %vm1364, %v10476, %v10478
      %v10480 = vrot.slane %v9870, 1
      %v10481 = vsel %vm1364, %v10478, %v10480
      %v10482 = vrot.slane %v9871, 1
      %v10483 = vsel %vm1364, %v10480, %v10482
      %v10484 = vrot.slane %v9872, 1
      %v10485 = vsel %vm1364, %v10482, %v10484
      %v10486 = vrot.slane %v9873, 1
      %v10487 = vsel %vm1364, %v10484, %v10486
      %v10488 = vrot.slane %v9874, 1
      %v10489 = vsel %vm1364, %v10486, %v10488
      %v10490 = vrot.slane %v9875, 1
      %v10491 = vsel %vm1364, %v10488, %v10490
      %v10492 = vrot.slane %v9876, 1
      %v10493 = vsel %vm1364, %v10490, %v10492
      %v10494 = vrot.slane %v9877, 1
      %v10495 = vsel %vm1364, %v10492, %v10494
      %v10496 = vrot.slane %v9878, 1
      %v10497 = vsel %vm1364, %v10494, %v10496
      %v10498 = vrot.slane %v9879, 1
      %v10499 = vsel %vm1364, %v10496, %v10498
      %v10500 = vrot.slane %v9880, 1
      %v10501 = vsel %vm1364, %v10498, %v10500
      %v10502 = vrot.slane %v9881, 1
      %v10503 = vsel %vm1364, %v10500, %v10502
      %v10504 = vrot.slane %v9882, 1
      %v10505 = vsel %vm1364, %v10502, %v10504
      %v10507 = vsel %vm391, %v10459, 0
      %v10510 = vsel %vm391, %v10461, 0
      %v10513 = vsel %vm391, %v10463, 0
      %v10516 = vsel %vm391, %v10465, 0
      %v10519 = vsel %vm391, %v10467, 0
      %v10522 = vsel %vm391, %v10469, 0
      %v10525 = vsel %vm391, %v10471, 0
      %v10528 = vsel %vm391, %v10473, 0
      %v10531 = vsel %vm391, %v10475, 0
      %v10534 = vsel %vm391, %v10477, 0
      %v10537 = vsel %vm391, %v10479, 0
      %v10540 = vsel %vm391, %v10481, 0
      %v10543 = vsel %vm391, %v10483, 0
      %v10546 = vsel %vm391, %v10485, 0
      %v10549 = vsel %vm391, %v10487, 0
      %v10552 = vsel %vm391, %v10489, 0
      %v10555 = vsel %vm391, %v10491, 0
      %v10558 = vsel %vm391, %v10493, 0
      %v10561 = vsel %vm391, %v10495, 0
      %v10564 = vsel %vm391, %v10497, 0
      %v10567 = vsel %vm391, %v10499, 0
      %v10570 = vsel %vm391, %v10501, 0
      %v10573 = vsel %vm391, %v10503, 0
      %v10576 = vsel %vm391, %v10505, 0
      %v10579 = vsel %vm853, %v10431, 0
      %10581 = vmatprep.subr.bf16.mxu0 0
      %10582 = vmatpush1.bf16.msra.mxu0 %v10579
      %10583 = vmatprep.subr.bf16.mxu0 0
      %10584 = vmatpush1.bf16.msra.mxu0 0
      %10585 = vmatprep.subr.bf16.mxu0 0
      %10586 = vmatpush1.bf16.msra.mxu0 0
      %10587 = vmatprep.subr.bf16.mxu0 0
      %10588 = vmatpush1.bf16.msra.mxu0 0
      %10589 = vmatprep.subr.bf16.mxu0 0
      %10590 = vmatpush1.bf16.msra.mxu0 0
      %10591 = vmatprep.subr.bf16.mxu0 0
      %10592 = vmatpush1.bf16.msra.mxu0 0
      %10593 = vmatprep.subr.bf16.mxu0 0
      %10594 = vmatpush1.bf16.msra.mxu0 0
      %10595 = vmatprep.subr.bf16.mxu0 0
      %10596 = vmatpush1.bf16.msra.mxu0 0
      %10597 = vmatprep.subr.bf16.mxu0 0
      %10598 = vmatpush1.bf16.msra.mxu0 0
      %10599 = vmatprep.subr.bf16.mxu0 0
      %10600 = vmatpush1.bf16.msra.mxu0 0
      %10601 = vmatprep.subr.bf16.mxu0 0
      %10602 = vmatpush1.bf16.msra.mxu0 0
      %10603 = vmatprep.subr.bf16.mxu0 0
      %10604 = vmatpush1.bf16.msra.mxu0 0
      %10605 = vmatprep.subr.bf16.mxu0 0
      %10606 = vmatpush1.bf16.msra.mxu0 0
      %10607 = vmatprep.subr.bf16.mxu0 0
      %10608 = vmatpush1.bf16.msra.mxu0 0
      %10609 = vmatprep.subr.bf16.mxu0 0
      %10610 = vmatpush1.bf16.msra.mxu0 0
      %10611 = vmatprep.subr.bf16.mxu0 0
      %10612 = vmatpush1.bf16.msra.mxu0 0
      %10613 = vmatprep.mubr.bf16.mxu0 0
      %10614 = vmatmul.mubr.bf16.gmra.mrb[0].mxu0 %v10507
      %v10615 = vpop.f32.mrb[0].mxu0
      %v10616 = vadd.f32 0.0, %v10615
      %v10617 = vpop.f32.mrb[0].mxu0
      %v10618 = vpop.f32.mrb[0].mxu0
      %v10619 = vadd.f32 0.0, %v10618
      %v10620 = vpop.f32.mrb[0].mxu0
      %10621 = vmatprep.mubr.bf16.mxu0 0
      %10622 = vmatmul.mubr.bf16.gmra.mrb[0].mxu0 %v10510
      %v10623 = vpop.f32.mrb[0].mxu0
      %v10624 = vadd.f32 0.0, %v10623
      %v10625 = vpop.f32.mrb[0].mxu0
      %v10626 = vpop.f32.mrb[0].mxu0
      %v10627 = vadd.f32 0.0, %v10626
      %v10628 = vpop.f32.mrb[0].mxu0
      %10629 = vmatprep.mubr.bf16.mxu0 0
      %10630 = vmatmul.mubr.bf16.gmra.mrb[0].mxu0 %v10513
      %v10631 = vpop.f32.mrb[0].mxu0
      %v10632 = vadd.f32 0.0, %v10631
      %v10633 = vpop.f32.mrb[0].mxu0
      %v10634 = vpop.f32.mrb[0].mxu0
      %v10635 = vadd.f32 0.0, %v10634
      %v10636 = vpop.f32.mrb[0].mxu0
      %10637 = vmatprep.mubr.bf16.mxu0 0
      %10638 = vmatmul.mubr.bf16.gmra.mrb[0].mxu0 %v10516
      %v10639 = vpop.f32.mrb[0].mxu0
      %v10640 = vadd.f32 0.0, %v10639
      %v10641 = vpop.f32.mrb[0].mxu0
      %v10642 = vpop.f32.mrb[0].mxu0
      %v10643 = vadd.f32 0.0, %v10642
      %v10644 = vpop.f32.mrb[0].mxu0
      %10645 = vmatprep.mubr.bf16.mxu0 0
      %10646 = vmatmul.mubr.bf16.gmra.mrb[0].mxu0 %v10519
      %v10647 = vpop.f32.mrb[0].mxu0
      %v10648 = vadd.f32 0.0, %v10647
      %v10649 = vpop.f32.mrb[0].mxu0
      %v10650 = vpop.f32.mrb[0].mxu0
      %v10651 = vadd.f32 0.0, %v10650
      %v10652 = vpop.f32.mrb[0].mxu0
      %10653 = vmatprep.mubr.bf16.mxu0 0
      %10654 = vmatmul.mubr.bf16.gmra.mrb[0].mxu0 %v10522
      %v10655 = vpop.f32.mrb[0].mxu0
      %v10656 = vadd.f32 0.0, %v10655
      %v10657 = vpop.f32.mrb[0].mxu0
      %v10658 = vpop.f32.mrb[0].mxu0
      %v10659 = vadd.f32 0.0, %v10658
      %v10660 = vpop.f32.mrb[0].mxu0
      %10661 = vmatprep.mubr.bf16.mxu0 0
      %10662 = vmatmul.mubr.bf16.gmra.mrb[0].mxu0 %v10525
      %v10663 = vpop.f32.mrb[0].mxu0
      %v10664 = vadd.f32 0.0, %v10663
      %v10665 = vpop.f32.mrb[0].mxu0
      %v10666 = vpop.f32.mrb[0].mxu0
      %v10667 = vadd.f32 0.0, %v10666
      %v10668 = vpop.f32.mrb[0].mxu0
      %10669 = vmatprep.mubr.bf16.mxu0 0
      %10670 = vmatmul.mubr.bf16.gmra.mrb[0].mxu0 %v10528
      %v10671 = vpop.f32.mrb[0].mxu0
      %v10672 = vadd.f32 0.0, %v10671
      %v10673 = vpop.f32.mrb[0].mxu0
      %v10674 = vpop.f32.mrb[0].mxu0
      %v10675 = vadd.f32 0.0, %v10674
      %v10676 = vpop.f32.mrb[0].mxu0
      %10677 = vmatprep.mubr.bf16.mxu0 0
      %10678 = vmatmul.mubr.bf16.gmra.mrb[0].mxu0 %v10531
      %v10679 = vpop.f32.mrb[0].mxu0
      %v10680 = vadd.f32 0.0, %v10679
      %v10681 = vpop.f32.mrb[0].mxu0
      %v10682 = vpop.f32.mrb[0].mxu0
      %v10683 = vadd.f32 0.0, %v10682
      %v10684 = vpop.f32.mrb[0].mxu0
      %10685 = vmatprep.mubr.bf16.mxu0 0
      %10686 = vmatmul.mubr.bf16.gmra.mrb[0].mxu0 %v10534
      %v10687 = vpop.f32.mrb[0].mxu0
      %v10688 = vadd.f32 0.0, %v10687
      %v10689 = vpop.f32.mrb[0].mxu0
      %v10690 = vpop.f32.mrb[0].mxu0
      %v10691 = vadd.f32 0.0, %v10690
      %v10692 = vpop.f32.mrb[0].mxu0
      %10693 = vmatprep.mubr.bf16.mxu0 0
      %10694 = vmatmul.mubr.bf16.gmra.mrb[0].mxu0 %v10537
      %v10695 = vpop.f32.mrb[0].mxu0
      %v10696 = vadd.f32 0.0, %v10695
      %v10697 = vpop.f32.mrb[0].mxu0
      %v10698 = vpop.f32.mrb[0].mxu0
      %v10699 = vadd.f32 0.0, %v10698
      %v10700 = vpop.f32.mrb[0].mxu0
      %10701 = vmatprep.mubr.bf16.mxu0 0
      %10702 = vmatmul.mubr.bf16.gmra.mrb[0].mxu0 %v10540
      %v10703 = vpop.f32.mrb[0].mxu0
      %v10704 = vadd.f32 0.0, %v10703
      %v10705 = vpop.f32.mrb[0].mxu0
      %v10706 = vpop.f32.mrb[0].mxu0
      %v10707 = vadd.f32 0.0, %v10706
      %v10708 = vpop.f32.mrb[0].mxu0
      %10709 = vmatprep.mubr.bf16.mxu0 0
      %10710 = vmatmul.mubr.bf16.gmra.mrb[0].mxu0 %v10543
      %v10711 = vpop.f32.mrb[0].mxu0
      %v10712 = vadd.f32 0.0, %v10711
      %v10713 = vpop.f32.mrb[0].mxu0
      %v10714 = vpop.f32.mrb[0].mxu0
      %v10715 = vadd.f32 0.0, %v10714
      %v10716 = vpop.f32.mrb[0].mxu0
      %10717 = vmatprep.mubr.bf16.mxu0 0
      %10718 = vmatmul.mubr.bf16.gmra.mrb[0].mxu0 %v10546
      %v10719 = vpop.f32.mrb[0].mxu0
      %v10720 = vadd.f32 0.0, %v10719
      %v10721 = vpop.f32.mrb[0].mxu0
      %v10722 = vpop.f32.mrb[0].mxu0
      %v10723 = vadd.f32 0.0, %v10722
      %v10724 = vpop.f32.mrb[0].mxu0
      %10725 = vmatprep.mubr.bf16.mxu0 0
      %10726 = vmatmul.mubr.bf16.gmra.mrb[0].mxu0 %v10549
      %v10727 = vpop.f32.mrb[0].mxu0
      %v10728 = vadd.f32 0.0, %v10727
      %v10729 = vpop.f32.mrb[0].mxu0
      %v10730 = vpop.f32.mrb[0].mxu0
      %v10731 = vadd.f32 0.0, %v10730
      %v10732 = vpop.f32.mrb[0].mxu0
      %10733 = vmatprep.mubr.bf16.mxu0 0
      %10734 = vmatmul.mubr.bf16.gmra.mrb[0].mxu0 %v10552
      %v10735 = vpop.f32.mrb[0].mxu0
      %v10736 = vadd.f32 0.0, %v10735
      %v10737 = vpop.f32.mrb[0].mxu0
      %v10738 = vpop.f32.mrb[0].mxu0
      %v10739 = vadd.f32 0.0, %v10738
      %v10740 = vpop.f32.mrb[0].mxu0
      %10741 = vmatprep.mubr.bf16.mxu0 0
      %10742 = vmatmul.mubr.bf16.gmra.mrb[0].mxu0 %v10555
      %v10743 = vpop.f32.mrb[0].mxu0
      %v10744 = vadd.f32 0.0, %v10743
      %v10745 = vpop.f32.mrb[0].mxu0
      %v10746 = vpop.f32.mrb[0].mxu0
      %v10747 = vadd.f32 0.0, %v10746
      %v10748 = vpop.f32.mrb[0].mxu0
      %10749 = vmatprep.mubr.bf16.mxu0 0
      %10750 = vmatmul.mubr.bf16.gmra.mrb[0].mxu0 %v10558
      %v10751 = vpop.f32.mrb[0].mxu0
      %v10752 = vadd.f32 0.0, %v10751
      %v10753 = vpop.f32.mrb[0].mxu0
      %v10754 = vpop.f32.mrb[0].mxu0
      %v10755 = vadd.f32 0.0, %v10754
      %v10756 = vpop.f32.mrb[0].mxu0
      %10757 = vmatprep.mubr.bf16.mxu0 0
      %10758 = vmatmul.mubr.bf16.gmra.mrb[0].mxu0 %v10561
      %v10759 = vpop.f32.mrb[0].mxu0
      %v10760 = vadd.f32 0.0, %v10759
      %v10761 = vpop.f32.mrb[0].mxu0
      %v10762 = vpop.f32.mrb[0].mxu0
      %v10763 = vadd.f32 0.0, %v10762
      %v10764 = vpop.f32.mrb[0].mxu0
      %10765 = vmatprep.mubr.bf16.mxu0 0
      %10766 = vmatmul.mubr.bf16.gmra.mrb[0].mxu0 %v10564
      %v10767 = vpop.f32.mrb[0].mxu0
      %v10768 = vadd.f32 0.0, %v10767
      %v10769 = vpop.f32.mrb[0].mxu0
      %v10770 = vpop.f32.mrb[0].mxu0
      %v10771 = vadd.f32 0.0, %v10770
      %v10772 = vpop.f32.mrb[0].mxu0
      %10773 = vmatprep.mubr.bf16.mxu0 0
      %10774 = vmatmul.mubr.bf16.gmra.mrb[0].mxu0 %v10567
      %v10775 = vpop.f32.mrb[0].mxu0
      %v10776 = vadd.f32 0.0, %v10775
      %v10777 = vpop.f32.mrb[0].mxu0
      %v10778 = vpop.f32.mrb[0].mxu0
      %v10779 = vadd.f32 0.0, %v10778
      %v10780 = vpop.f32.mrb[0].mxu0
      %10781 = vmatprep.mubr.bf16.mxu0 0
      %10782 = vmatmul.mubr.bf16.gmra.mrb[0].mxu0 %v10570
      %v10783 = vpop.f32.mrb[0].mxu0
      %v10784 = vadd.f32 0.0, %v10783
      %v10785 = vpop.f32.mrb[0].mxu0
      %v10786 = vpop.f32.mrb[0].mxu0
      %v10787 = vadd.f32 0.0, %v10786
      %v10788 = vpop.f32.mrb[0].mxu0
      %10789 = vmatprep.mubr.bf16.mxu0 0
      %10790 = vmatmul.mubr.bf16.gmra.mrb[0].mxu0 %v10573
      %v10791 = vpop.f32.mrb[0].mxu0
      %v10792 = vadd.f32 0.0, %v10791
      %v10793 = vpop.f32.mrb[0].mxu0
      %v10794 = vpop.f32.mrb[0].mxu0
      %v10795 = vadd.f32 0.0, %v10794
      %v10796 = vpop.f32.mrb[0].mxu0
      %10797 = vmatprep.mubr.bf16.mxu0 0
      %10798 = vmatmul.mubr.bf16.gmra.mrb[0].mxu0 %v10576
      %v10799 = vpop.f32.mrb[0].mxu0
      %v10800 = vadd.f32 0.0, %v10799
      %v10801 = vpop.f32.mrb[0].mxu0
      %v10802 = vpop.f32.mrb[0].mxu0
      %v10803 = vadd.f32 0.0, %v10802
      %v10804 = vpop.f32.mrb[0].mxu0
      %10805 = vdwg.mxu0
      %v10806 = vadd.f32 %v10381, %v10616
      %v10807 = vadd.f32 %v10382, %v10619
      %v10808 = vadd.f32 %v10383, %v10624
      %v10809 = vadd.f32 %v10384, %v10627
      %v10810 = vadd.f32 %v10385, %v10632
      %v10811 = vadd.f32 %v10386, %v10635
      %v10812 = vadd.f32 %v10387, %v10640
      %v10813 = vadd.f32 %v10388, %v10643
      %v10814 = vadd.f32 %v10389, %v10648
      %v10815 = vadd.f32 %v10390, %v10651
      %v10816 = vadd.f32 %v10391, %v10656
      %v10817 = vadd.f32 %v10392, %v10659
      %v10818 = vadd.f32 %v10393, %v10664
      %v10819 = vadd.f32 %v10394, %v10667
      %v10820 = vadd.f32 %v10395, %v10672
      %v10821 = vadd.f32 %v10396, %v10675
      %v10822 = vadd.f32 %v10397, %v10680
      %v10823 = vadd.f32 %v10398, %v10683
      %v10824 = vadd.f32 %v10399, %v10688
      %v10825 = vadd.f32 %v10400, %v10691
      %v10826 = vadd.f32 %v10401, %v10696
      %v10827 = vadd.f32 %v10402, %v10699
      %v10828 = vadd.f32 %v10403, %v10704
      %v10829 = vadd.f32 %v10404, %v10707
      %v10830 = vadd.f32 %v10405, %v10712
      %v10831 = vadd.f32 %v10406, %v10715
      %v10832 = vadd.f32 %v10407, %v10720
      %v10833 = vadd.f32 %v10408, %v10723
      %v10834 = vadd.f32 %v10409, %v10728
      %v10835 = vadd.f32 %v10410, %v10731
      %v10836 = vadd.f32 %v10411, %v10736
      %v10837 = vadd.f32 %v10412, %v10739
      %v10838 = vadd.f32 %v10413, %v10744
      %v10839 = vadd.f32 %v10414, %v10747
      %v10840 = vadd.f32 %v10415, %v10752
      %v10841 = vadd.f32 %v10416, %v10755
      %v10842 = vadd.f32 %v10417, %v10760
      %v10843 = vadd.f32 %v10418, %v10763
      %v10844 = vadd.f32 %v10419, %v10768
      %v10845 = vadd.f32 %v10420, %v10771
      %v10846 = vadd.f32 %v10421, %v10776
      %v10847 = vadd.f32 %v10422, %v10779
      %v10848 = vadd.f32 %v10423, %v10784
      %v10849 = vadd.f32 %v10424, %v10787
      %v10850 = vadd.f32 %v10425, %v10792
      %v10851 = vadd.f32 %v10426, %v10795
      %v10852 = vadd.f32 %v10427, %v10800
      %v10853 = vadd.f32 %v10428, %v10803
      %v10854 = vld [vmem:[%s6] sm:$0x1]
      %v10856 = vlaneseq
      %v10857 = vshrl.u32 %v10856, 7
      %v10858 = vsub.s32 0, %v10857
      %v10859 = vrot.slane %v10854, %v10858
      %v10861 = vadd.f32 %v10806, %v10859
      %v10862 = vadd.f32 %v10807, %v10859
      %v10863 = vadd.f32 %v10808, %v10859
      %v10864 = vadd.f32 %v10809, %v10859
      %v10865 = vadd.f32 %v10810, %v10859
      %v10866 = vadd.f32 %v10811, %v10859
      %v10867 = vadd.f32 %v10812, %v10859
      %v10868 = vadd.f32 %v10813, %v10859
      %v10869 = vadd.f32 %v10814, %v10859
      %v10870 = vadd.f32 %v10815, %v10859
      %v10871 = vadd.f32 %v10816, %v10859
      %v10872 = vadd.f32 %v10817, %v10859
      %v10873 = vadd.f32 %v10818, %v10859
      %v10874 = vadd.f32 %v10819, %v10859
      %v10875 = vadd.f32 %v10820, %v10859
      %v10876 = vadd.f32 %v10821, %v10859
      %v10877 = vadd.f32 %v10822, %v10859
      %v10878 = vadd.f32 %v10823, %v10859
      %v10879 = vadd.f32 %v10824, %v10859
      %v10880 = vadd.f32 %v10825, %v10859
      %v10881 = vadd.f32 %v10826, %v10859
      %v10882 = vadd.f32 %v10827, %v10859
      %v10883 = vadd.f32 %v10828, %v10859
      %v10884 = vadd.f32 %v10829, %v10859
      %v10885 = vadd.f32 %v10830, %v10859
      %v10886 = vadd.f32 %v10831, %v10859
      %v10887 = vadd.f32 %v10832, %v10859
      %v10888 = vadd.f32 %v10833, %v10859
      %v10889 = vadd.f32 %v10834, %v10859
      %v10890 = vadd.f32 %v10835, %v10859
      %v10891 = vadd.f32 %v10836, %v10859
      %v10892 = vadd.f32 %v10837, %v10859
      %v10893 = vadd.f32 %v10838, %v10859
      %v10894 = vadd.f32 %v10839, %v10859
      %v10895 = vadd.f32 %v10840, %v10859
      %v10896 = vadd.f32 %v10841, %v10859
      %v10897 = vadd.f32 %v10842, %v10859
      %v10898 = vadd.f32 %v10843, %v10859
      %v10899 = vadd.f32 %v10844, %v10859
      %v10900 = vadd.f32 %v10845, %v10859
      %v10901 = vadd.f32 %v10846, %v10859
      %v10902 = vadd.f32 %v10847, %v10859
      %v10903 = vadd.f32 %v10848, %v10859
      %v10904 = vadd.f32 %v10849, %v10859
      %v10905 = vadd.f32 %v10850, %v10859
      %v10906 = vadd.f32 %v10851, %v10859
      %v10907 = vadd.f32 %v10852, %v10859
      %v10908 = vadd.f32 %v10853, %v10859
      %v10909 = vmax.f32 %v10861, 0.0
      %v10910 = vmax.f32 %v10862, 0.0
      %v10911 = vmax.f32 %v10863, 0.0
      %v10912 = vmax.f32 %v10864, 0.0
      %v10913 = vmax.f32 %v10865, 0.0
      %v10914 = vmax.f32 %v10866, 0.0
      %v10915 = vmax.f32 %v10867, 0.0
      %v10916 = vmax.f32 %v10868, 0.0
      %v10917 = vmax.f32 %v10869, 0.0
      %v10918 = vmax.f32 %v10870, 0.0
      %v10919 = vmax.f32 %v10871, 0.0
      %v10920 = vmax.f32 %v10872, 0.0
      %v10921 = vmax.f32 %v10873, 0.0
      %v10922 = vmax.f32 %v10874, 0.0
      %v10923 = vmax.f32 %v10875, 0.0
      %v10924 = vmax.f32 %v10876, 0.0
      %v10925 = vmax.f32 %v10877, 0.0
      %v10926 = vmax.f32 %v10878, 0.0
      %v10927 = vmax.f32 %v10879, 0.0
      %v10928 = vmax.f32 %v10880, 0.0
      %v10929 = vmax.f32 %v10881, 0.0
      %v10930 = vmax.f32 %v10882, 0.0
      %v10931 = vmax.f32 %v10883, 0.0
      %v10932 = vmax.f32 %v10884, 0.0
      %v10933 = vmax.f32 %v10885, 0.0
      %v10934 = vmax.f32 %v10886, 0.0
      %v10935 = vmax.f32 %v10887, 0.0
      %v10936 = vmax.f32 %v10888, 0.0
      %v10937 = vmax.f32 %v10889, 0.0
      %v10938 = vmax.f32 %v10890, 0.0
      %v10939 = vmax.f32 %v10891, 0.0
      %v10940 = vmax.f32 %v10892, 0.0
      %v10941 = vmax.f32 %v10893, 0.0
      %v10942 = vmax.f32 %v10894, 0.0
      %v10943 = vmax.f32 %v10895, 0.0
      %v10944 = vmax.f32 %v10896, 0.0
      %v10945 = vmax.f32 %v10897, 0.0
      %v10946 = vmax.f32 %v10898, 0.0
      %v10947 = vmax.f32 %v10899, 0.0
      %v10948 = vmax.f32 %v10900, 0.0
      %v10949 = vmax.f32 %v10901, 0.0
      %v10950 = vmax.f32 %v10902, 0.0
      %v10951 = vmax.f32 %v10903, 0.0
      %v10952 = vmax.f32 %v10904, 0.0
      %v10953 = vmax.f32 %v10905, 0.0
      %v10954 = vmax.f32 %v10906, 0.0
      %v10955 = vmax.f32 %v10907, 0.0
      %v10956 = vmax.f32 %v10908, 0.0
      %v10957 = vpack.c.bf16 %v10910, %v10909
      %v10958 = vpack.c.bf16 %v10912, %v10911
      %v10959 = vpack.c.bf16 %v10914, %v10913
      %v10960 = vpack.c.bf16 %v10916, %v10915
      %v10961 = vpack.c.bf16 %v10918, %v10917
      %v10962 = vpack.c.bf16 %v10920, %v10919
      %v10963 = vpack.c.bf16 %v10922, %v10921
      %v10964 = vpack.c.bf16 %v10924, %v10923
      %v10965 = vpack.c.bf16 %v10926, %v10925
      %v10966 = vpack.c.bf16 %v10928, %v10927
      %v10967 = vpack.c.bf16 %v10930, %v10929
      %v10968 = vpack.c.bf16 %v10932, %v10931
      %v10969 = vpack.c.bf16 %v10934, %v10933
      %v10970 = vpack.c.bf16 %v10936, %v10935
      %v10971 = vpack.c.bf16 %v10938, %v10937
      %v10972 = vpack.c.bf16 %v10940, %v10939
      %v10973 = vpack.c.bf16 %v10942, %v10941
      %v10974 = vpack.c.bf16 %v10944, %v10943
      %v10975 = vpack.c.bf16 %v10946, %v10945
      %v10976 = vpack.c.bf16 %v10948, %v10947
      %v10977 = vpack.c.bf16 %v10950, %v10949
      %v10978 = vpack.c.bf16 %v10952, %v10951
      %v10979 = vpack.c.bf16 %v10954, %v10953
      %v10980 = vpack.c.bf16 %v10956, %v10955
      %v10981 = vld [vmem:[%s7] sm:$0xf]
      %v10982 = vld [vmem:[%s382 + $0xc] sm:$0xf]
      %v10983 = vld [vmem:[%s382 + $0x10] sm:$0xf]
      %v10984 = vld [vmem:[%s382 + $0x14] sm:$0xf]
      %v10985 = vld [vmem:[%s382 + $0x18] sm:$0xf]
      %v10986 = vld [vmem:[%s382 + $0x1c] sm:$0xf]
      %v10987 = vld [vmem:[%s382 + $0x20] sm:$0xf]
      %v10988 = vld [vmem:[%s382 + $0x24] sm:$0xf]
      %v10989 = vld [vmem:[%s382 + $0x28] sm:$0xf]
      %v10990 = vld [vmem:[%s382 + $0x2c] sm:$0xf]
      %v10991 = vld [vmem:[%s382 + $0x30] sm:$0xf]
      %v10992 = vld [vmem:[%s382 + $0x34] sm:$0xf]
      %v10993 = vld [vmem:[%s382 + $0x38] sm:$0xf]
      %v10994 = vld [vmem:[%s382 + $0x3c] sm:$0xf]
      %v10995 = vld [vmem:[%s382 + $0x40] sm:$0xf]
      %v10996 = vld [vmem:[%s382 + $0x44] sm:$0xf]
      %v10997 = vld [vmem:[%s382 + $0x48] sm:$0xf]
      %v10998 = vld [vmem:[%s382 + $0x4c] sm:$0xf]
      %v10999 = vld [vmem:[%s382 + $0x50] sm:$0xf]
      %v11000 = vld [vmem:[%s382 + $0x54] sm:$0xf]
      %v11001 = vld [vmem:[%s382 + $0x58] sm:$0xf]
      %v11002 = vld [vmem:[%s382 + $0x5c] sm:$0xf]
      %v11003 = vld [vmem:[%s382 + $0x60] sm:$0xf]
      %v11004 = vld [vmem:[%s382 + $0x64] sm:$0xf]
      %v11005 = vld [vmem:[%s382 + $0x68] sm:$0xf]
      %v11006 = vld [vmem:[%s382 + $0x6c] sm:$0xf]
      %v11007 = vld [vmem:[%s382 + $0x70] sm:$0xf]
      %v11008 = vld [vmem:[%s382 + $0x74] sm:$0xf]
      %v11009 = vld [vmem:[%s382 + $0x78] sm:$0xf]
      %v11010 = vld [vmem:[%s382 + $0x7c] sm:$0xf]
      %v11011 = vld [vmem:[%s382 + $0x80] sm:$0xf]
      %v11012 = vld [vmem:[%s382 + $0x84] sm:$0xf]
      %v11013 = vld [vmem:[%s382 + $0x88] sm:$0xf]
      %v11014 = vld [vmem:[%s382 + $0x8c] sm:$0xf]
      %v11015 = vld [vmem:[%s382 + $0x90] sm:$0xf]
      %v11016 = vld [vmem:[%s382 + $0x94] sm:$0xf]
      %v11017 = vld [vmem:[%s382 + $0x98] sm:$0xf]
      %v11018 = vld [vmem:[%s382 + $0x9c] sm:$0xf]
      %v11019 = vld [vmem:[%s382 + $0xa0] sm:$0xf]
      %v11020 = vld [vmem:[%s382 + $0xa4] sm:$0xf]
      %v11021 = vld [vmem:[%s382 + $0xa8] sm:$0xf]
      %v11022 = vld [vmem:[%s382 + $0xac] sm:$0xf]
      %v11023 = vld [vmem:[%s382 + $0xb0] sm:$0xf]
      %v11024 = vld [vmem:[%s382 + $0xb4] sm:$0xf]
      %v11025 = vld [vmem:[%s382 + $0xb8] sm:$0xf]
      %v11026 = vld [vmem:[%s382 + $0xbc] sm:$0xf]
      %v11027 = vld [vmem:[%s382 + $0xc0] sm:$0xf]
      %v11028 = vld [vmem:[%s382 + $0xc4] sm:$0xf]
      %v11029 = vld [vmem:[%s382 + $0xc8] sm:$0xf]
      %v11030 = vld [vmem:[%s382 + $0xcc] sm:$0x1]
      %v11031 = vld [vmem:[%s9] sm:$0xf]
      %v11081 = vunpack.c.l.b16 %v10982
      %v11082 = vunpack.c.l.b16 %v10983
      %v11083 = vunpack.c.l.b16 %v10984
      %v11084 = vunpack.c.l.b16 %v10985
      %v11085 = vunpack.c.l.b16 %v10986
      %v11086 = vunpack.c.l.b16 %v10987
      %v11087 = vunpack.c.l.b16 %v10988
      %v11088 = vunpack.c.l.b16 %v10989
      %v11089 = vunpack.c.l.b16 %v10990
      %v11090 = vunpack.c.l.b16 %v10991
      %v11091 = vunpack.c.l.b16 %v10992
      %v11092 = vunpack.c.l.b16 %v10993
      %v11093 = vunpack.c.l.b16 %v10994
      %v11094 = vunpack.c.l.b16 %v10995
      %v11095 = vunpack.c.l.b16 %v10996
      %v11096 = vunpack.c.l.b16 %v10997
      %v11097 = vunpack.c.l.b16 %v10998
      %v11098 = vunpack.c.l.b16 %v10999
      %v11099 = vunpack.c.l.b16 %v11000
      %v11100 = vunpack.c.l.b16 %v11001
      %v11101 = vunpack.c.l.b16 %v11002
      %v11102 = vunpack.c.l.b16 %v11003
      %v11103 = vunpack.c.l.b16 %v11004
      %v11104 = vunpack.c.l.b16 %v11005
      %v11105 = vunpack.c.l.b16 %v11006
      %v11106 = vunpack.c.l.b16 %v11007
      %v11107 = vunpack.c.l.b16 %v11008
      %v11108 = vunpack.c.l.b16 %v11009
      %v11109 = vunpack.c.l.b16 %v11010
      %v11110 = vunpack.c.l.b16 %v11011
      %v11111 = vunpack.c.l.b16 %v11012
      %v11112 = vunpack.c.l.b16 %v11013
      %v11113 = vunpack.c.l.b16 %v11014
      %v11114 = vunpack.c.l.b16 %v11015
      %v11115 = vunpack.c.l.b16 %v11016
      %v11116 = vunpack.c.l.b16 %v11017
      %v11117 = vunpack.c.l.b16 %v11018
      %v11118 = vunpack.c.l.b16 %v11019
      %v11119 = vunpack.c.l.b16 %v11020
      %v11120 = vunpack.c.l.b16 %v11021
      %v11121 = vunpack.c.l.b16 %v11022
      %v11122 = vunpack.c.l.b16 %v11023
      %v11123 = vunpack.c.l.b16 %v11024
      %v11124 = vunpack.c.l.b16 %v11025
      %v11125 = vunpack.c.l.b16 %v11026
      %v11126 = vunpack.c.l.b16 %v11027
      %v11127 = vunpack.c.l.b16 %v11028
      %v11128 = vunpack.c.l.b16 %v11029
      %v11129 = vunpack.c.l.b16 %v11030
      %v11130 = vpack.c.b16 %v11082, %v11081
      %v11131 = vpack.c.b16 %v11084, %v11083
      %v11132 = vpack.c.b16 %v11086, %v11085
      %v11133 = vpack.c.b16 %v11088, %v11087
      %v11134 = vpack.c.b16 %v11090, %v11089
      %v11135 = vpack.c.b16 %v11092, %v11091
      %v11136 = vpack.c.b16 %v11094, %v11093
      %v11137 = vpack.c.b16 %v11096, %v11095
      %v11138 = vpack.c.b16 %v11098, %v11097
      %v11139 = vpack.c.b16 %v11100, %v11099
      %v11140 = vpack.c.b16 %v11102, %v11101
      %v11141 = vpack.c.b16 %v11104, %v11103
      %v11142 = vpack.c.b16 %v11106, %v11105
      %v11143 = vpack.c.b16 %v11108, %v11107
      %v11144 = vpack.c.b16 %v11110, %v11109
      %v11145 = vpack.c.b16 %v11112, %v11111
      %v11146 = vpack.c.b16 %v11114, %v11113
      %v11147 = vpack.c.b16 %v11116, %v11115
      %v11148 = vpack.c.b16 %v11118, %v11117
      %v11149 = vpack.c.b16 %v11120, %v11119
      %v11150 = vpack.c.b16 %v11122, %v11121
      %v11151 = vpack.c.b16 %v11124, %v11123
      %v11152 = vpack.c.b16 %v11126, %v11125
      %v11153 = vpack.c.b16 %v11128, %v11127
      %v11154 = vpack.c.b16 %v11129, %v11129
      %v11156 = vshrl.u32 %v11130, 16
      %v11158 = vshll.u32 %v11130, 16
      %v11160 = vrot.slane %v11158, 1
      %v11161 = vor.u32 %v11156, %v11160
      %v11163 = vshll.u32 %v11131, 16
      %v11165 = vrot.slane %v11163, 1
      %v11166 = vsel %vm584, %v11161, %v11165
      %v11167 = vshrl.u32 %v11131, 16
      %v11169 = vor.u32 %v11167, %v11165
      %v11171 = vshll.u32 %v11132, 16
      %v11173 = vrot.slane %v11171, 1
      %v11174 = vsel %vm584, %v11169, %v11173
      %v11175 = vshrl.u32 %v11132, 16
      %v11177 = vor.u32 %v11175, %v11173
      %v11179 = vshll.u32 %v11133, 16
      %v11181 = vrot.slane %v11179, 1
      %v11182 = vsel %vm584, %v11177, %v11181
      %v11183 = vshrl.u32 %v11133, 16
      %v11185 = vor.u32 %v11183, %v11181
      %v11187 = vshll.u32 %v11134, 16
      %v11189 = vrot.slane %v11187, 1
      %v11190 = vsel %vm584, %v11185, %v11189
      %v11191 = vshrl.u32 %v11134, 16
      %v11193 = vor.u32 %v11191, %v11189
      %v11195 = vshll.u32 %v11135, 16
      %v11197 = vrot.slane %v11195, 1
      %v11198 = vsel %vm584, %v11193, %v11197
      %v11199 = vshrl.u32 %v11135, 16
      %v11201 = vor.u32 %v11199, %v11197
      %v11203 = vshll.u32 %v11136, 16
      %v11205 = vrot.slane %v11203, 1
      %v11206 = vsel %vm584, %v11201, %v11205
      %v11207 = vshrl.u32 %v11136, 16
      %v11209 = vor.u32 %v11207, %v11205
      %v11211 = vshll.u32 %v11137, 16
      %v11213 = vrot.slane %v11211, 1
      %v11214 = vsel %vm584, %v11209, %v11213
      %v11215 = vshrl.u32 %v11137, 16
      %v11217 = vor.u32 %v11215, %v11213
      %v11219 = vshll.u32 %v11138, 16
      %v11221 = vrot.slane %v11219, 1
      %v11222 = vsel %vm584, %v11217, %v11221
      %v11223 = vshrl.u32 %v11138, 16
      %v11225 = vor.u32 %v11223, %v11221
      %v11227 = vshll.u32 %v11139, 16
      %v11229 = vrot.slane %v11227, 1
      %v11230 = vsel %vm584, %v11225, %v11229
      %v11231 = vshrl.u32 %v11139, 16
      %v11233 = vor.u32 %v11231, %v11229
      %v11235 = vshll.u32 %v11140, 16
      %v11237 = vrot.slane %v11235, 1
      %v11238 = vsel %vm584, %v11233, %v11237
      %v11239 = vshrl.u32 %v11140, 16
      %v11241 = vor.u32 %v11239, %v11237
      %v11243 = vshll.u32 %v11141, 16
      %v11245 = vrot.slane %v11243, 1
      %v11246 = vsel %vm584, %v11241, %v11245
      %v11247 = vshrl.u32 %v11141, 16
      %v11249 = vor.u32 %v11247, %v11245
      %v11251 = vshll.u32 %v11142, 16
      %v11253 = vrot.slane %v11251, 1
      %v11254 = vsel %vm584, %v11249, %v11253
      %v11255 = vshrl.u32 %v11142, 16
      %v11257 = vor.u32 %v11255, %v11253
      %v11259 = vshll.u32 %v11143, 16
      %v11261 = vrot.slane %v11259, 1
      %v11262 = vsel %vm584, %v11257, %v11261
      %v11263 = vshrl.u32 %v11143, 16
      %v11265 = vor.u32 %v11263, %v11261
      %v11267 = vshll.u32 %v11144, 16
      %v11269 = vrot.slane %v11267, 1
      %v11270 = vsel %vm584, %v11265, %v11269
      %v11271 = vshrl.u32 %v11144, 16
      %v11273 = vor.u32 %v11271, %v11269
      %v11275 = vshll.u32 %v11145, 16
      %v11277 = vrot.slane %v11275, 1
      %v11278 = vsel %vm584, %v11273, %v11277
      %v11279 = vshrl.u32 %v11145, 16
      %v11281 = vor.u32 %v11279, %v11277
      %v11283 = vshll.u32 %v11146, 16
      %v11285 = vrot.slane %v11283, 1
      %v11286 = vsel %vm584, %v11281, %v11285
      %v11287 = vshrl.u32 %v11146, 16
      %v11289 = vor.u32 %v11287, %v11285
      %v11291 = vshll.u32 %v11147, 16
      %v11293 = vrot.slane %v11291, 1
      %v11294 = vsel %vm584, %v11289, %v11293
      %v11295 = vshrl.u32 %v11147, 16
      %v11297 = vor.u32 %v11295, %v11293
      %v11299 = vshll.u32 %v11148, 16
      %v11301 = vrot.slane %v11299, 1
      %v11302 = vsel %vm584, %v11297, %v11301
      %v11303 = vshrl.u32 %v11148, 16
      %v11305 = vor.u32 %v11303, %v11301
      %v11307 = vshll.u32 %v11149, 16
      %v11309 = vrot.slane %v11307, 1
      %v11310 = vsel %vm584, %v11305, %v11309
      %v11311 = vshrl.u32 %v11149, 16
      %v11313 = vor.u32 %v11311, %v11309
      %v11315 = vshll.u32 %v11150, 16
      %v11317 = vrot.slane %v11315, 1
      %v11318 = vsel %vm584, %v11313, %v11317
      %v11319 = vshrl.u32 %v11150, 16
      %v11321 = vor.u32 %v11319, %v11317
      %v11323 = vshll.u32 %v11151, 16
      %v11325 = vrot.slane %v11323, 1
      %v11326 = vsel %vm584, %v11321, %v11325
      %v11327 = vshrl.u32 %v11151, 16
      %v11329 = vor.u32 %v11327, %v11325
      %v11331 = vshll.u32 %v11152, 16
      %v11333 = vrot.slane %v11331, 1
      %v11334 = vsel %vm584, %v11329, %v11333
      %v11335 = vshrl.u32 %v11152, 16
      %v11337 = vor.u32 %v11335, %v11333
      %v11339 = vshll.u32 %v11153, 16
      %v11341 = vrot.slane %v11339, 1
      %v11342 = vsel %vm584, %v11337, %v11341
      %v11343 = vshrl.u32 %v11153, 16
      %v11345 = vor.u32 %v11343, %v11341
      %v11347 = vshll.u32 %v11154, 16
      %v11349 = vrot.slane %v11347, 1
      %v11350 = vsel %vm584, %v11345, %v11349
      %v11352 = vsel %vm391, %v11166, 0
      %v11355 = vsel %vm391, %v11174, 0
      %v11358 = vsel %vm391, %v11182, 0
      %v11361 = vsel %vm391, %v11190, 0
      %v11364 = vsel %vm391, %v11198, 0
      %v11367 = vsel %vm391, %v11206, 0
      %v11370 = vsel %vm391, %v11214, 0
      %v11373 = vsel %vm391, %v11222, 0
      %v11376 = vsel %vm391, %v11230, 0
      %v11379 = vsel %vm391, %v11238, 0
      %v11382 = vsel %vm391, %v11246, 0
      %v11385 = vsel %vm391, %v11254, 0
      %v11388 = vsel %vm391, %v11262, 0
      %v11391 = vsel %vm391, %v11270, 0
      %v11394 = vsel %vm391, %v11278, 0
      %v11397 = vsel %vm391, %v11286, 0
      %v11400 = vsel %vm391, %v11294, 0
      %v11403 = vsel %vm391, %v11302, 0
      %v11406 = vsel %vm391, %v11310, 0
      %v11409 = vsel %vm391, %v11318, 0
      %v11412 = vsel %vm391, %v11326, 0
      %v11415 = vsel %vm391, %v11334, 0
      %v11418 = vsel %vm391, %v11342, 0
      %v11421 = vsel %vm391, %v11350, 0
      %v11424 = vsel %vm853, %v11031, 0
      %11426 = vmatprep.subr.bf16.mxu0 0
      %11427 = vmatpush1.bf16.msra.mxu0 %v11424
      %11428 = vmatprep.subr.bf16.mxu0 0
      %11429 = vmatpush1.bf16.msra.mxu0 0
      %11430 = vmatprep.subr.bf16.mxu0 0
      %11431 = vmatpush1.bf16.msra.mxu0 0
      %11432 = vmatprep.subr.bf16.mxu0 0
      %11433 = vmatpush1.bf16.msra.mxu0 0
      %11434 = vmatprep.subr.bf16.mxu0 0
      %11435 = vmatpush1.bf16.msra.mxu0 0
      %11436 = vmatprep.subr.bf16.mxu0 0
      %11437 = vmatpush1.bf16.msra.mxu0 0
      %11438 = vmatprep.subr.bf16.mxu0 0
      %11439 = vmatpush1.bf16.msra.mxu0 0
      %11440 = vmatprep.subr.bf16.mxu0 0
      %11441 = vmatpush1.bf16.msra.mxu0 0
      %11442 = vmatprep.subr.bf16.mxu0 0
      %11443 = vmatpush1.bf16.msra.mxu0 0
      %11444 = vmatprep.subr.bf16.mxu0 0
      %11445 = vmatpush1.bf16.msra.mxu0 0
      %11446 = vmatprep.subr.bf16.mxu0 0
      %11447 = vmatpush1.bf16.msra.mxu0 0
      %11448 = vmatprep.subr.bf16.mxu0 0
      %11449 = vmatpush1.bf16.msra.mxu0 0
      %11450 = vmatprep.subr.bf16.mxu0 0
      %11451 = vmatpush1.bf16.msra.mxu0 0
      %11452 = vmatprep.subr.bf16.mxu0 0
      %11453 = vmatpush1.bf16.msra.mxu0 0
      %11454 = vmatprep.subr.bf16.mxu0 0
      %11455 = vmatpush1.bf16.msra.mxu0 0
      %11456 = vmatprep.subr.bf16.mxu0 0
      %11457 = vmatpush1.bf16.msra.mxu0 0
      %11458 = vmatprep.mubr.bf16.mxu0 0
      %11459 = vmatmul.mubr.bf16.gmra.mrb[0].mxu0 %v11352
      %v11460 = vpop.f32.mrb[0].mxu0
      %v11461 = vadd.f32 0.0, %v11460
      %v11462 = vpop.f32.mrb[0].mxu0
      %v11463 = vpop.f32.mrb[0].mxu0
      %v11464 = vadd.f32 0.0, %v11463
      %v11465 = vpop.f32.mrb[0].mxu0
      %11466 = vmatprep.mubr.bf16.mxu0 0
      %11467 = vmatmul.mubr.bf16.gmra.mrb[0].mxu0 %v11355
      %v11468 = vpop.f32.mrb[0].mxu0
      %v11469 = vadd.f32 0.0, %v11468
      %v11470 = vpop.f32.mrb[0].mxu0
      %v11471 = vpop.f32.mrb[0].mxu0
      %v11472 = vadd.f32 0.0, %v11471
      %v11473 = vpop.f32.mrb[0].mxu0
      %11474 = vmatprep.mubr.bf16.mxu0 0
      %11475 = vmatmul.mubr.bf16.gmra.mrb[0].mxu0 %v11358
      %v11476 = vpop.f32.mrb[0].mxu0
      %v11477 = vadd.f32 0.0, %v11476
      %v11478 = vpop.f32.mrb[0].mxu0
      %v11479 = vpop.f32.mrb[0].mxu0
      %v11480 = vadd.f32 0.0, %v11479
      %v11481 = vpop.f32.mrb[0].mxu0
      %11482 = vmatprep.mubr.bf16.mxu0 0
      %11483 = vmatmul.mubr.bf16.gmra.mrb[0].mxu0 %v11361
      %v11484 = vpop.f32.mrb[0].mxu0
      %v11485 = vadd.f32 0.0, %v11484
      %v11486 = vpop.f32.mrb[0].mxu0
      %v11487 = vpop.f32.mrb[0].mxu0
      %v11488 = vadd.f32 0.0, %v11487
      %v11489 = vpop.f32.mrb[0].mxu0
      %11490 = vmatprep.mubr.bf16.mxu0 0
      %11491 = vmatmul.mubr.bf16.gmra.mrb[0].mxu0 %v11364
      %v11492 = vpop.f32.mrb[0].mxu0
      %v11493 = vadd.f32 0.0, %v11492
      %v11494 = vpop.f32.mrb[0].mxu0
      %v11495 = vpop.f32.mrb[0].mxu0
      %v11496 = vadd.f32 0.0, %v11495
      %v11497 = vpop.f32.mrb[0].mxu0
      %11498 = vmatprep.mubr.bf16.mxu0 0
      %11499 = vmatmul.mubr.bf16.gmra.mrb[0].mxu0 %v11367
      %v11500 = vpop.f32.mrb[0].mxu0
      %v11501 = vadd.f32 0.0, %v11500
      %v11502 = vpop.f32.mrb[0].mxu0
      %v11503 = vpop.f32.mrb[0].mxu0
      %v11504 = vadd.f32 0.0, %v11503
      %v11505 = vpop.f32.mrb[0].mxu0
      %11506 = vmatprep.mubr.bf16.mxu0 0
      %11507 = vmatmul.mubr.bf16.gmra.mrb[0].mxu0 %v11370
      %v11508 = vpop.f32.mrb[0].mxu0
      %v11509 = vadd.f32 0.0, %v11508
      %v11510 = vpop.f32.mrb[0].mxu0
      %v11511 = vpop.f32.mrb[0].mxu0
      %v11512 = vadd.f32 0.0, %v11511
      %v11513 = vpop.f32.mrb[0].mxu0
      %11514 = vmatprep.mubr.bf16.mxu0 0
      %11515 = vmatmul.mubr.bf16.gmra.mrb[0].mxu0 %v11373
      %v11516 = vpop.f32.mrb[0].mxu0
      %v11517 = vadd.f32 0.0, %v11516
      %v11518 = vpop.f32.mrb[0].mxu0
      %v11519 = vpop.f32.mrb[0].mxu0
      %v11520 = vadd.f32 0.0, %v11519
      %v11521 = vpop.f32.mrb[0].mxu0
      %11522 = vmatprep.mubr.bf16.mxu0 0
      %11523 = vmatmul.mubr.bf16.gmra.mrb[0].mxu0 %v11376
      %v11524 = vpop.f32.mrb[0].mxu0
      %v11525 = vadd.f32 0.0, %v11524
      %v11526 = vpop.f32.mrb[0].mxu0
      %v11527 = vpop.f32.mrb[0].mxu0
      %v11528 = vadd.f32 0.0, %v11527
      %v11529 = vpop.f32.mrb[0].mxu0
      %11530 = vmatprep.mubr.bf16.mxu0 0
      %11531 = vmatmul.mubr.bf16.gmra.mrb[0].mxu0 %v11379
      %v11532 = vpop.f32.mrb[0].mxu0
      %v11533 = vadd.f32 0.0, %v11532
      %v11534 = vpop.f32.mrb[0].mxu0
      %v11535 = vpop.f32.mrb[0].mxu0
      %v11536 = vadd.f32 0.0, %v11535
      %v11537 = vpop.f32.mrb[0].mxu0
      %11538 = vmatprep.mubr.bf16.mxu0 0
      %11539 = vmatmul.mubr.bf16.gmra.mrb[0].mxu0 %v11382
      %v11540 = vpop.f32.mrb[0].mxu0
      %v11541 = vadd.f32 0.0, %v11540
      %v11542 = vpop.f32.mrb[0].mxu0
      %v11543 = vpop.f32.mrb[0].mxu0
      %v11544 = vadd.f32 0.0, %v11543
      %v11545 = vpop.f32.mrb[0].mxu0
      %11546 = vmatprep.mubr.bf16.mxu0 0
      %11547 = vmatmul.mubr.bf16.gmra.mrb[0].mxu0 %v11385
      %v11548 = vpop.f32.mrb[0].mxu0
      %v11549 = vadd.f32 0.0, %v11548
      %v11550 = vpop.f32.mrb[0].mxu0
      %v11551 = vpop.f32.mrb[0].mxu0
      %v11552 = vadd.f32 0.0, %v11551
      %v11553 = vpop.f32.mrb[0].mxu0
      %11554 = vmatprep.mubr.bf16.mxu0 0
      %11555 = vmatmul.mubr.bf16.gmra.mrb[0].mxu0 %v11388
      %v11556 = vpop.f32.mrb[0].mxu0
      %v11557 = vadd.f32 0.0, %v11556
      %v11558 = vpop.f32.mrb[0].mxu0
      %v11559 = vpop.f32.mrb[0].mxu0
      %v11560 = vadd.f32 0.0, %v11559
      %v11561 = vpop.f32.mrb[0].mxu0
      %11562 = vmatprep.mubr.bf16.mxu0 0
      %11563 = vmatmul.mubr.bf16.gmra.mrb[0].mxu0 %v11391
      %v11564 = vpop.f32.mrb[0].mxu0
      %v11565 = vadd.f32 0.0, %v11564
      %v11566 = vpop.f32.mrb[0].mxu0
      %v11567 = vpop.f32.mrb[0].mxu0
      %v11568 = vadd.f32 0.0, %v11567
      %v11569 = vpop.f32.mrb[0].mxu0
      %11570 = vmatprep.mubr.bf16.mxu0 0
      %11571 = vmatmul.mubr.bf16.gmra.mrb[0].mxu0 %v11394
      %v11572 = vpop.f32.mrb[0].mxu0
      %v11573 = vadd.f32 0.0, %v11572
      %v11574 = vpop.f32.mrb[0].mxu0
      %v11575 = vpop.f32.mrb[0].mxu0
      %v11576 = vadd.f32 0.0, %v11575
      %v11577 = vpop.f32.mrb[0].mxu0
      %11578 = vmatprep.mubr.bf16.mxu0 0
      %11579 = vmatmul.mubr.bf16.gmra.mrb[0].mxu0 %v11397
      %v11580 = vpop.f32.mrb[0].mxu0
      %v11581 = vadd.f32 0.0, %v11580
      %v11582 = vpop.f32.mrb[0].mxu0
      %v11583 = vpop.f32.mrb[0].mxu0
      %v11584 = vadd.f32 0.0, %v11583
      %v11585 = vpop.f32.mrb[0].mxu0
      %11586 = vmatprep.mubr.bf16.mxu0 0
      %11587 = vmatmul.mubr.bf16.gmra.mrb[0].mxu0 %v11400
      %v11588 = vpop.f32.mrb[0].mxu0
      %v11589 = vadd.f32 0.0, %v11588
      %v11590 = vpop.f32.mrb[0].mxu0
      %v11591 = vpop.f32.mrb[0].mxu0
      %v11592 = vadd.f32 0.0, %v11591
      %v11593 = vpop.f32.mrb[0].mxu0
      %11594 = vmatprep.mubr.bf16.mxu0 0
      %11595 = vmatmul.mubr.bf16.gmra.mrb[0].mxu0 %v11403
      %v11596 = vpop.f32.mrb[0].mxu0
      %v11597 = vadd.f32 0.0, %v11596
      %v11598 = vpop.f32.mrb[0].mxu0
      %v11599 = vpop.f32.mrb[0].mxu0
      %v11600 = vadd.f32 0.0, %v11599
      %v11601 = vpop.f32.mrb[0].mxu0
      %11602 = vmatprep.mubr.bf16.mxu0 0
      %11603 = vmatmul.mubr.bf16.gmra.mrb[0].mxu0 %v11406
      %v11604 = vpop.f32.mrb[0].mxu0
      %v11605 = vadd.f32 0.0, %v11604
      %v11606 = vpop.f32.mrb[0].mxu0
      %v11607 = vpop.f32.mrb[0].mxu0
      %v11608 = vadd.f32 0.0, %v11607
      %v11609 = vpop.f32.mrb[0].mxu0
      %11610 = vmatprep.mubr.bf16.mxu0 0
      %11611 = vmatmul.mubr.bf16.gmra.mrb[0].mxu0 %v11409
      %v11612 = vpop.f32.mrb[0].mxu0
      %v11613 = vadd.f32 0.0, %v11612
      %v11614 = vpop.f32.mrb[0].mxu0
      %v11615 = vpop.f32.mrb[0].mxu0
      %v11616 = vadd.f32 0.0, %v11615
      %v11617 = vpop.f32.mrb[0].mxu0
      %11618 = vmatprep.mubr.bf16.mxu0 0
      %11619 = vmatmul.mubr.bf16.gmra.mrb[0].mxu0 %v11412
      %v11620 = vpop.f32.mrb[0].mxu0
      %v11621 = vadd.f32 0.0, %v11620
      %v11622 = vpop.f32.mrb[0].mxu0
      %v11623 = vpop.f32.mrb[0].mxu0
      %v11624 = vadd.f32 0.0, %v11623
      %v11625 = vpop.f32.mrb[0].mxu0
      %11626 = vmatprep.mubr.bf16.mxu0 0
      %11627 = vmatmul.mubr.bf16.gmra.mrb[0].mxu0 %v11415
      %v11628 = vpop.f32.mrb[0].mxu0
      %v11629 = vadd.f32 0.0, %v11628
      %v11630 = vpop.f32.mrb[0].mxu0
      %v11631 = vpop.f32.mrb[0].mxu0
      %v11632 = vadd.f32 0.0, %v11631
      %v11633 = vpop.f32.mrb[0].mxu0
      %11634 = vmatprep.mubr.bf16.mxu0 0
      %11635 = vmatmul.mubr.bf16.gmra.mrb[0].mxu0 %v11418
      %v11636 = vpop.f32.mrb[0].mxu0
      %v11637 = vadd.f32 0.0, %v11636
      %v11638 = vpop.f32.mrb[0].mxu0
      %v11639 = vpop.f32.mrb[0].mxu0
      %v11640 = vadd.f32 0.0, %v11639
      %v11641 = vpop.f32.mrb[0].mxu0
      %11642 = vmatprep.mubr.bf16.mxu0 0
      %11643 = vmatmul.mubr.bf16.gmra.mrb[0].mxu0 %v11421
      %v11644 = vpop.f32.mrb[0].mxu0
      %v11645 = vadd.f32 0.0, %v11644
      %v11646 = vpop.f32.mrb[0].mxu0
      %v11647 = vpop.f32.mrb[0].mxu0
      %v11648 = vadd.f32 0.0, %v11647
      %v11649 = vpop.f32.mrb[0].mxu0
      %11650 = vdwg.mxu0
      %v11651 = vld [vmem:[%s8] sm:$0x1]
      %v11653 = vlaneseq
      %v11654 = vshrl.u32 %v11653, 7
      %v11655 = vsub.s32 0, %v11654
      %v11656 = vrot.slane %v11651, %v11655
      %v11659 = vsel %vm391, %v10957, 0
      %v11662 = vsel %vm391, %v10958, 0
      %v11665 = vsel %vm391, %v10959, 0
      %v11668 = vsel %vm391, %v10960, 0
      %v11671 = vsel %vm391, %v10961, 0
      %v11674 = vsel %vm391, %v10962, 0
      %v11677 = vsel %vm391, %v10963, 0
      %v11680 = vsel %vm391, %v10964, 0
      %v11683 = vsel %vm391, %v10965, 0
      %v11686 = vsel %vm391, %v10966, 0
      %v11689 = vsel %vm391, %v10967, 0
      %v11692 = vsel %vm391, %v10968, 0
      %v11695 = vsel %vm391, %v10969, 0
      %v11698 = vsel %vm391, %v10970, 0
      %v11701 = vsel %vm391, %v10971, 0
      %v11704 = vsel %vm391, %v10972, 0
      %v11707 = vsel %vm391, %v10973, 0
      %v11710 = vsel %vm391, %v10974, 0
      %v11713 = vsel %vm391, %v10975, 0
      %v11716 = vsel %vm391, %v10976, 0
      %v11719 = vsel %vm391, %v10977, 0
      %v11722 = vsel %vm391, %v10978, 0
      %v11725 = vsel %vm391, %v10979, 0
      %v11728 = vsel %vm391, %v10980, 0
      %v11731 = vsel %vm853, %v10981, 0
      %11733 = vmatprep.subr.bf16.mxu0 0
      %11734 = vmatpush1.bf16.msra.mxu0 %v11731
      %11735 = vmatprep.subr.bf16.mxu0 0
      %11736 = vmatpush1.bf16.msra.mxu0 0
      %11737 = vmatprep.subr.bf16.mxu0 0
      %11738 = vmatpush1.bf16.msra.mxu0 0
      %11739 = vmatprep.subr.bf16.mxu0 0
      %11740 = vmatpush1.bf16.msra.mxu0 0
      %11741 = vmatprep.subr.bf16.mxu0 0
      %11742 = vmatpush1.bf16.msra.mxu0 0
      %11743 = vmatprep.subr.bf16.mxu0 0
      %11744 = vmatpush1.bf16.msra.mxu0 0
      %11745 = vmatprep.subr.bf16.mxu0 0
      %11746 = vmatpush1.bf16.msra.mxu0 0
      %11747 = vmatprep.subr.bf16.mxu0 0
      %11748 = vmatpush1.bf16.msra.mxu0 0
      %11749 = vmatprep.subr.bf16.mxu0 0
      %11750 = vmatpush1.bf16.msra.mxu0 0
      %11751 = vmatprep.subr.bf16.mxu0 0
      %11752 = vmatpush1.bf16.msra.mxu0 0
      %11753 = vmatprep.subr.bf16.mxu0 0
      %11754 = vmatpush1.bf16.msra.mxu0 0
      %11755 = vmatprep.subr.bf16.mxu0 0
      %11756 = vmatpush1.bf16.msra.mxu0 0
      %11757 = vmatprep.subr.bf16.mxu0 0
      %11758 = vmatpush1.bf16.msra.mxu0 0
      %11759 = vmatprep.subr.bf16.mxu0 0
      %11760 = vmatpush1.bf16.msra.mxu0 0
      %11761 = vmatprep.subr.bf16.mxu0 0
      %11762 = vmatpush1.bf16.msra.mxu0 0
      %11763 = vmatprep.subr.bf16.mxu0 0
      %11764 = vmatpush1.bf16.msra.mxu0 0
      %11765 = vmatprep.mubr.bf16.mxu0 0
      %11766 = vmatmul.mubr.bf16.gmra.mrb[0].mxu0 %v11659
      %v11767 = vpop.f32.mrb[0].mxu0
      %v11768 = vadd.f32 %v11656, %v11767
      %v11769 = vpop.f32.mrb[0].mxu0
      %v11770 = vpop.f32.mrb[0].mxu0
      %v11771 = vadd.f32 %v11656, %v11770
      %v11772 = vpop.f32.mrb[0].mxu0
      %11773 = vmatprep.mubr.bf16.mxu0 0
      %11774 = vmatmul.mubr.bf16.gmra.mrb[0].mxu0 %v11662
      %v11775 = vpop.f32.mrb[0].mxu0
      %v11776 = vadd.f32 %v11656, %v11775
      %v11777 = vpop.f32.mrb[0].mxu0
      %v11778 = vpop.f32.mrb[0].mxu0
      %v11779 = vadd.f32 %v11656, %v11778
      %v11780 = vpop.f32.mrb[0].mxu0
      %11781 = vmatprep.mubr.bf16.mxu0 0
      %11782 = vmatmul.mubr.bf16.gmra.mrb[0].mxu0 %v11665
      %v11783 = vpop.f32.mrb[0].mxu0
      %v11784 = vadd.f32 %v11656, %v11783
      %v11785 = vpop.f32.mrb[0].mxu0
      %v11786 = vpop.f32.mrb[0].mxu0
      %v11787 = vadd.f32 %v11656, %v11786
      %v11788 = vpop.f32.mrb[0].mxu0
      %11789 = vmatprep.mubr.bf16.mxu0 0
      %11790 = vmatmul.mubr.bf16.gmra.mrb[0].mxu0 %v11668
      %v11791 = vpop.f32.mrb[0].mxu0
      %v11792 = vadd.f32 %v11656, %v11791
      %v11793 = vpop.f32.mrb[0].mxu0
      %v11794 = vpop.f32.mrb[0].mxu0
      %v11795 = vadd.f32 %v11656, %v11794
      %v11796 = vpop.f32.mrb[0].mxu0
      %11797 = vmatprep.mubr.bf16.mxu0 0
      %11798 = vmatmul.mubr.bf16.gmra.mrb[0].mxu0 %v11671
      %v11799 = vpop.f32.mrb[0].mxu0
      %v11800 = vadd.f32 %v11656, %v11799
      %v11801 = vpop.f32.mrb[0].mxu0
      %v11802 = vpop.f32.mrb[0].mxu0
      %v11803 = vadd.f32 %v11656, %v11802
      %v11804 = vpop.f32.mrb[0].mxu0
      %11805 = vmatprep.mubr.bf16.mxu0 0
      %11806 = vmatmul.mubr.bf16.gmra.mrb[0].mxu0 %v11674
      %v11807 = vpop.f32.mrb[0].mxu0
      %v11808 = vadd.f32 %v11656, %v11807
      %v11809 = vpop.f32.mrb[0].mxu0
      %v11810 = vpop.f32.mrb[0].mxu0
      %v11811 = vadd.f32 %v11656, %v11810
      %v11812 = vpop.f32.mrb[0].mxu0
      %11813 = vmatprep.mubr.bf16.mxu0 0
      %11814 = vmatmul.mubr.bf16.gmra.mrb[0].mxu0 %v11677
      %v11815 = vpop.f32.mrb[0].mxu0
      %v11816 = vadd.f32 %v11656, %v11815
      %v11817 = vpop.f32.mrb[0].mxu0
      %v11818 = vpop.f32.mrb[0].mxu0
      %v11819 = vadd.f32 %v11656, %v11818
      %v11820 = vpop.f32.mrb[0].mxu0
      %11821 = vmatprep.mubr.bf16.mxu0 0
      %11822 = vmatmul.mubr.bf16.gmra.mrb[0].mxu0 %v11680
      %v11823 = vpop.f32.mrb[0].mxu0
      %v11824 = vadd.f32 %v11656, %v11823
      %v11825 = vpop.f32.mrb[0].mxu0
      %v11826 = vpop.f32.mrb[0].mxu0
      %v11827 = vadd.f32 %v11656, %v11826
      %v11828 = vpop.f32.mrb[0].mxu0
      %11829 = vmatprep.mubr.bf16.mxu0 0
      %11830 = vmatmul.mubr.bf16.gmra.mrb[0].mxu0 %v11683
      %v11831 = vpop.f32.mrb[0].mxu0
      %v11832 = vadd.f32 %v11656, %v11831
      %v11833 = vpop.f32.mrb[0].mxu0
      %v11834 = vpop.f32.mrb[0].mxu0
      %v11835 = vadd.f32 %v11656, %v11834
      %v11836 = vpop.f32.mrb[0].mxu0
      %11837 = vmatprep.mubr.bf16.mxu0 0
      %11838 = vmatmul.mubr.bf16.gmra.mrb[0].mxu0 %v11686
      %v11839 = vpop.f32.mrb[0].mxu0
      %v11840 = vadd.f32 %v11656, %v11839
      %v11841 = vpop.f32.mrb[0].mxu0
      %v11842 = vpop.f32.mrb[0].mxu0
      %v11843 = vadd.f32 %v11656, %v11842
      %v11844 = vpop.f32.mrb[0].mxu0
      %11845 = vmatprep.mubr.bf16.mxu0 0
      %11846 = vmatmul.mubr.bf16.gmra.mrb[0].mxu0 %v11689
      %v11847 = vpop.f32.mrb[0].mxu0
      %v11848 = vadd.f32 %v11656, %v11847
      %v11849 = vpop.f32.mrb[0].mxu0
      %v11850 = vpop.f32.mrb[0].mxu0
      %v11851 = vadd.f32 %v11656, %v11850
      %v11852 = vpop.f32.mrb[0].mxu0
      %11853 = vmatprep.mubr.bf16.mxu0 0
      %11854 = vmatmul.mubr.bf16.gmra.mrb[0].mxu0 %v11692
      %v11855 = vpop.f32.mrb[0].mxu0
      %v11856 = vadd.f32 %v11656, %v11855
      %v11857 = vpop.f32.mrb[0].mxu0
      %v11858 = vpop.f32.mrb[0].mxu0
      %v11859 = vadd.f32 %v11656, %v11858
      %v11860 = vpop.f32.mrb[0].mxu0
      %11861 = vmatprep.mubr.bf16.mxu0 0
      %11862 = vmatmul.mubr.bf16.gmra.mrb[0].mxu0 %v11695
      %v11863 = vpop.f32.mrb[0].mxu0
      %v11864 = vadd.f32 %v11656, %v11863
      %v11865 = vpop.f32.mrb[0].mxu0
      %v11866 = vpop.f32.mrb[0].mxu0
      %v11867 = vadd.f32 %v11656, %v11866
      %v11868 = vpop.f32.mrb[0].mxu0
      %11869 = vmatprep.mubr.bf16.mxu0 0
      %11870 = vmatmul.mubr.bf16.gmra.mrb[0].mxu0 %v11698
      %v11871 = vpop.f32.mrb[0].mxu0
      %v11872 = vadd.f32 %v11656, %v11871
      %v11873 = vpop.f32.mrb[0].mxu0
      %v11874 = vpop.f32.mrb[0].mxu0
      %v11875 = vadd.f32 %v11656, %v11874
      %v11876 = vpop.f32.mrb[0].mxu0
      %11877 = vmatprep.mubr.bf16.mxu0 0
      %11878 = vmatmul.mubr.bf16.gmra.mrb[0].mxu0 %v11701
      %v11879 = vpop.f32.mrb[0].mxu0
      %v11880 = vadd.f32 %v11656, %v11879
      %v11881 = vpop.f32.mrb[0].mxu0
      %v11882 = vpop.f32.mrb[0].mxu0
      %v11883 = vadd.f32 %v11656, %v11882
      %v11884 = vpop.f32.mrb[0].mxu0
      %11885 = vmatprep.mubr.bf16.mxu0 0
      %11886 = vmatmul.mubr.bf16.gmra.mrb[0].mxu0 %v11704
      %v11887 = vpop.f32.mrb[0].mxu0
      %v11888 = vadd.f32 %v11656, %v11887
      %v11889 = vpop.f32.mrb[0].mxu0
      %v11890 = vpop.f32.mrb[0].mxu0
      %v11891 = vadd.f32 %v11656, %v11890
      %v11892 = vpop.f32.mrb[0].mxu0
      %11893 = vmatprep.mubr.bf16.mxu0 0
      %11894 = vmatmul.mubr.bf16.gmra.mrb[0].mxu0 %v11707
      %v11895 = vpop.f32.mrb[0].mxu0
      %v11896 = vadd.f32 %v11656, %v11895
      %v11897 = vpop.f32.mrb[0].mxu0
      %v11898 = vpop.f32.mrb[0].mxu0
      %v11899 = vadd.f32 %v11656, %v11898
      %v11900 = vpop.f32.mrb[0].mxu0
      %11901 = vmatprep.mubr.bf16.mxu0 0
      %11902 = vmatmul.mubr.bf16.gmra.mrb[0].mxu0 %v11710
      %v11903 = vpop.f32.mrb[0].mxu0
      %v11904 = vadd.f32 %v11656, %v11903
      %v11905 = vpop.f32.mrb[0].mxu0
      %v11906 = vpop.f32.mrb[0].mxu0
      %v11907 = vadd.f32 %v11656, %v11906
      %v11908 = vpop.f32.mrb[0].mxu0
      %11909 = vmatprep.mubr.bf16.mxu0 0
      %11910 = vmatmul.mubr.bf16.gmra.mrb[0].mxu0 %v11713
      %v11911 = vpop.f32.mrb[0].mxu0
      %v11912 = vadd.f32 %v11656, %v11911
      %v11913 = vpop.f32.mrb[0].mxu0
      %v11914 = vpop.f32.mrb[0].mxu0
      %v11915 = vadd.f32 %v11656, %v11914
      %v11916 = vpop.f32.mrb[0].mxu0
      %11917 = vmatprep.mubr.bf16.mxu0 0
      %11918 = vmatmul.mubr.bf16.gmra.mrb[0].mxu0 %v11716
      %v11919 = vpop.f32.mrb[0].mxu0
      %v11920 = vadd.f32 %v11656, %v11919
      %v11921 = vpop.f32.mrb[0].mxu0
      %v11922 = vpop.f32.mrb[0].mxu0
      %v11923 = vadd.f32 %v11656, %v11922
      %v11924 = vpop.f32.mrb[0].mxu0
      %11925 = vmatprep.mubr.bf16.mxu0 0
      %11926 = vmatmul.mubr.bf16.gmra.mrb[0].mxu0 %v11719
      %v11927 = vpop.f32.mrb[0].mxu0
      %v11928 = vadd.f32 %v11656, %v11927
      %v11929 = vpop.f32.mrb[0].mxu0
      %v11930 = vpop.f32.mrb[0].mxu0
      %v11931 = vadd.f32 %v11656, %v11930
      %v11932 = vpop.f32.mrb[0].mxu0
      %11933 = vmatprep.mubr.bf16.mxu0 0
      %11934 = vmatmul.mubr.bf16.gmra.mrb[0].mxu0 %v11722
      %v11935 = vpop.f32.mrb[0].mxu0
      %v11936 = vadd.f32 %v11656, %v11935
      %v11937 = vpop.f32.mrb[0].mxu0
      %v11938 = vpop.f32.mrb[0].mxu0
      %v11939 = vadd.f32 %v11656, %v11938
      %v11940 = vpop.f32.mrb[0].mxu0
      %11941 = vmatprep.mubr.bf16.mxu0 0
      %11942 = vmatmul.mubr.bf16.gmra.mrb[0].mxu0 %v11725
      %v11943 = vpop.f32.mrb[0].mxu0
      %v11944 = vadd.f32 %v11656, %v11943
      %v11945 = vpop.f32.mrb[0].mxu0
      %v11946 = vpop.f32.mrb[0].mxu0
      %v11947 = vadd.f32 %v11656, %v11946
      %v11948 = vpop.f32.mrb[0].mxu0
      %11949 = vmatprep.mubr.bf16.mxu0 0
      %11950 = vmatmul.mubr.bf16.gmra.mrb[0].mxu0 %v11728
      %v11951 = vpop.f32.mrb[0].mxu0
      %v11952 = vadd.f32 %v11656, %v11951
      %v11953 = vpop.f32.mrb[0].mxu0
      %v11954 = vpop.f32.mrb[0].mxu0
      %v11955 = vadd.f32 %v11656, %v11954
      %v11956 = vpop.f32.mrb[0].mxu0
      %11957 = vdwg.mxu0
      %v11958 = vadd.f32 %v11768, %v11461
      %v11959 = vadd.f32 %v11771, %v11464
      %v11960 = vadd.f32 %v11776, %v11469
      %v11961 = vadd.f32 %v11779, %v11472
      %v11962 = vadd.f32 %v11784, %v11477
      %v11963 = vadd.f32 %v11787, %v11480
      %v11964 = vadd.f32 %v11792, %v11485
      %v11965 = vadd.f32 %v11795, %v11488
      %v11966 = vadd.f32 %v11800, %v11493
      %v11967 = vadd.f32 %v11803, %v11496
      %v11968 = vadd.f32 %v11808, %v11501
      %v11969 = vadd.f32 %v11811, %v11504
      %v11970 = vadd.f32 %v11816, %v11509
      %v11971 = vadd.f32 %v11819, %v11512
      %v11972 = vadd.f32 %v11824, %v11517
      %v11973 = vadd.f32 %v11827, %v11520
      %v11974 = vadd.f32 %v11832, %v11525
      %v11975 = vadd.f32 %v11835, %v11528
      %v11976 = vadd.f32 %v11840, %v11533
      %v11977 = vadd.f32 %v11843, %v11536
      %v11978 = vadd.f32 %v11848, %v11541
      %v11979 = vadd.f32 %v11851, %v11544
      %v11980 = vadd.f32 %v11856, %v11549
      %v11981 = vadd.f32 %v11859, %v11552
      %v11982 = vadd.f32 %v11864, %v11557
      %v11983 = vadd.f32 %v11867, %v11560
      %v11984 = vadd.f32 %v11872, %v11565
      %v11985 = vadd.f32 %v11875, %v11568
      %v11986 = vadd.f32 %v11880, %v11573
      %v11987 = vadd.f32 %v11883, %v11576
      %v11988 = vadd.f32 %v11888, %v11581
      %v11989 = vadd.f32 %v11891, %v11584
      %v11990 = vadd.f32 %v11896, %v11589
      %v11991 = vadd.f32 %v11899, %v11592
      %v11992 = vadd.f32 %v11904, %v11597
      %v11993 = vadd.f32 %v11907, %v11600
      %v11994 = vadd.f32 %v11912, %v11605
      %v11995 = vadd.f32 %v11915, %v11608
      %v11996 = vadd.f32 %v11920, %v11613
      %v11997 = vadd.f32 %v11923, %v11616
      %v11998 = vadd.f32 %v11928, %v11621
      %v11999 = vadd.f32 %v11931, %v11624
      %v12000 = vadd.f32 %v11936, %v11629
      %v12001 = vadd.f32 %v11939, %v11632
      %v12002 = vadd.f32 %v11944, %v11637
      %v12003 = vadd.f32 %v11947, %v11640
      %v12004 = vadd.f32 %v11952, %v11645
      %v12005 = vadd.f32 %v11955, %v11648
      %v12006 = vld [vmem:[%s10] sm:$0x1]
      %v12008 = vlaneseq
      %v12009 = vshrl.u32 %v12008, 7
      %v12010 = vsub.s32 0, %v12009
      %v12011 = vrot.slane %v12006, %v12010
      %v12013 = vadd.f32 %v11958, %v12011
      %v12014 = vadd.f32 %v11959, %v12011
      %v12015 = vadd.f32 %v11960, %v12011
      %v12016 = vadd.f32 %v11961, %v12011
      %v12017 = vadd.f32 %v11962, %v12011
      %v12018 = vadd.f32 %v11963, %v12011
      %v12019 = vadd.f32 %v11964, %v12011
      %v12020 = vadd.f32 %v11965, %v12011
      %v12021 = vadd.f32 %v11966, %v12011
      %v12022 = vadd.f32 %v11967, %v12011
      %v12023 = vadd.f32 %v11968, %v12011
      %v12024 = vadd.f32 %v11969, %v12011
      %v12025 = vadd.f32 %v11970, %v12011
      %v12026 = vadd.f32 %v11971, %v12011
      %v12027 = vadd.f32 %v11972, %v12011
      %v12028 = vadd.f32 %v11973, %v12011
      %v12029 = vadd.f32 %v11974, %v12011
      %v12030 = vadd.f32 %v11975, %v12011
      %v12031 = vadd.f32 %v11976, %v12011
      %v12032 = vadd.f32 %v11977, %v12011
      %v12033 = vadd.f32 %v11978, %v12011
      %v12034 = vadd.f32 %v11979, %v12011
      %v12035 = vadd.f32 %v11980, %v12011
      %v12036 = vadd.f32 %v11981, %v12011
      %v12037 = vadd.f32 %v11982, %v12011
      %v12038 = vadd.f32 %v11983, %v12011
      %v12039 = vadd.f32 %v11984, %v12011
      %v12040 = vadd.f32 %v11985, %v12011
      %v12041 = vadd.f32 %v11986, %v12011
      %v12042 = vadd.f32 %v11987, %v12011
      %v12043 = vadd.f32 %v11988, %v12011
      %v12044 = vadd.f32 %v11989, %v12011
      %v12045 = vadd.f32 %v11990, %v12011
      %v12046 = vadd.f32 %v11991, %v12011
      %v12047 = vadd.f32 %v11992, %v12011
      %v12048 = vadd.f32 %v11993, %v12011
      %v12049 = vadd.f32 %v11994, %v12011
      %v12050 = vadd.f32 %v11995, %v12011
      %v12051 = vadd.f32 %v11996, %v12011
      %v12052 = vadd.f32 %v11997, %v12011
      %v12053 = vadd.f32 %v11998, %v12011
      %v12054 = vadd.f32 %v11999, %v12011
      %v12055 = vadd.f32 %v12000, %v12011
      %v12056 = vadd.f32 %v12001, %v12011
      %v12057 = vadd.f32 %v12002, %v12011
      %v12058 = vadd.f32 %v12003, %v12011
      %v12059 = vadd.f32 %v12004, %v12011
      %v12060 = vadd.f32 %v12005, %v12011
      %v12061 = vmax.f32 %v12013, 0.0
      %v12062 = vmax.f32 %v12014, 0.0
      %v12063 = vmax.f32 %v12015, 0.0
      %v12064 = vmax.f32 %v12016, 0.0
      %v12065 = vmax.f32 %v12017, 0.0
      %v12066 = vmax.f32 %v12018, 0.0
      %v12067 = vmax.f32 %v12019, 0.0
      %v12068 = vmax.f32 %v12020, 0.0
      %v12069 = vmax.f32 %v12021, 0.0
      %v12070 = vmax.f32 %v12022, 0.0
      %v12071 = vmax.f32 %v12023, 0.0
      %v12072 = vmax.f32 %v12024, 0.0
      %v12073 = vmax.f32 %v12025, 0.0
      %v12074 = vmax.f32 %v12026, 0.0
      %v12075 = vmax.f32 %v12027, 0.0
      %v12076 = vmax.f32 %v12028, 0.0
      %v12077 = vmax.f32 %v12029, 0.0
      %v12078 = vmax.f32 %v12030, 0.0
      %v12079 = vmax.f32 %v12031, 0.0
      %v12080 = vmax.f32 %v12032, 0.0
      %v12081 = vmax.f32 %v12033, 0.0
      %v12082 = vmax.f32 %v12034, 0.0
      %v12083 = vmax.f32 %v12035, 0.0
      %v12084 = vmax.f32 %v12036, 0.0
      %v12085 = vmax.f32 %v12037, 0.0
      %v12086 = vmax.f32 %v12038, 0.0
      %v12087 = vmax.f32 %v12039, 0.0
      %v12088 = vmax.f32 %v12040, 0.0
      %v12089 = vmax.f32 %v12041, 0.0
      %v12090 = vmax.f32 %v12042, 0.0
      %v12091 = vmax.f32 %v12043, 0.0
      %v12092 = vmax.f32 %v12044, 0.0
      %v12093 = vmax.f32 %v12045, 0.0
      %v12094 = vmax.f32 %v12046, 0.0
      %v12095 = vmax.f32 %v12047, 0.0
      %v12096 = vmax.f32 %v12048, 0.0
      %v12097 = vmax.f32 %v12049, 0.0
      %v12098 = vmax.f32 %v12050, 0.0
      %v12099 = vmax.f32 %v12051, 0.0
      %v12100 = vmax.f32 %v12052, 0.0
      %v12101 = vmax.f32 %v12053, 0.0
      %v12102 = vmax.f32 %v12054, 0.0
      %v12103 = vmax.f32 %v12055, 0.0
      %v12104 = vmax.f32 %v12056, 0.0
      %v12105 = vmax.f32 %v12057, 0.0
      %v12106 = vmax.f32 %v12058, 0.0
      %v12107 = vmax.f32 %v12059, 0.0
      %v12108 = vmax.f32 %v12060, 0.0
      %12109 = vst.msk [vmem:[%s388] sm:$0xff] %vm5182, %v12061
      %12110 = vst.msk [vmem:[%s388 + $0x8] sm:$0xff] %vm5182, %v12062
      %12111 = vst.msk [vmem:[%s388 + $0x10] sm:$0xff] %vm5182, %v12063
      %12112 = vst.msk [vmem:[%s388 + $0x18] sm:$0xff] %vm5182, %v12064
      %12113 = vst.msk [vmem:[%s388 + $0x20] sm:$0xff] %vm5182, %v12065
      %12114 = vst.msk [vmem:[%s388 + $0x28] sm:$0xff] %vm5182, %v12066
      %12115 = vst.msk [vmem:[%s388 + $0x30] sm:$0xff] %vm5182, %v12067
      %12116 = vst.msk [vmem:[%s388 + $0x38] sm:$0xff] %vm5182, %v12068
      %12117 = vst.msk [vmem:[%s388 + $0x40] sm:$0xff] %vm5182, %v12069
      %12118 = vst.msk [vmem:[%s388 + $0x48] sm:$0xff] %vm5182, %v12070
      %12119 = vst.msk [vmem:[%s388 + $0x50] sm:$0xff] %vm5182, %v12071
      %12120 = vst.msk [vmem:[%s388 + $0x58] sm:$0xff] %vm5182, %v12072
      %12121 = vst.msk [vmem:[%s388 + $0x60] sm:$0xff] %vm5182, %v12073
      %12122 = vst.msk [vmem:[%s388 + $0x68] sm:$0xff] %vm5182, %v12074
      %12123 = vst.msk [vmem:[%s388 + $0x70] sm:$0xff] %vm5182, %v12075
      %12124 = vst.msk [vmem:[%s388 + $0x78] sm:$0xff] %vm5182, %v12076
      %12125 = vst.msk [vmem:[%s388 + $0x80] sm:$0xff] %vm5182, %v12077
      %12126 = vst.msk [vmem:[%s388 + $0x88] sm:$0xff] %vm5182, %v12078
      %12127 = vst.msk [vmem:[%s388 + $0x90] sm:$0xff] %vm5182, %v12079
      %12128 = vst.msk [vmem:[%s388 + $0x98] sm:$0xff] %vm5182, %v12080
      %12129 = vst.msk [vmem:[%s388 + $0xa0] sm:$0xff] %vm5182, %v12081
      %12130 = vst.msk [vmem:[%s388 + $0xa8] sm:$0xff] %vm5182, %v12082
      %12131 = vst.msk [vmem:[%s388 + $0xb0] sm:$0xff] %vm5182, %v12083
      %12132 = vst.msk [vmem:[%s388 + $0xb8] sm:$0xff] %vm5182, %v12084
      %12133 = vst.msk [vmem:[%s388 + $0xc0] sm:$0xff] %vm5182, %v12085
      %12134 = vst.msk [vmem:[%s388 + $0xc8] sm:$0xff] %vm5182, %v12086
      %12135 = vst.msk [vmem:[%s388 + $0xd0] sm:$0xff] %vm5182, %v12087
      %12136 = vst.msk [vmem:[%s388 + $0xd8] sm:$0xff] %vm5182, %v12088
      %12137 = vst.msk [vmem:[%s388 + $0xe0] sm:$0xff] %vm5182, %v12089
      %12138 = vst.msk [vmem:[%s388 + $0xe8] sm:$0xff] %vm5182, %v12090
      %12139 = vst.msk [vmem:[%s388 + $0xf0] sm:$0xff] %vm5182, %v12091
      %12140 = vst.msk [vmem:[%s388 + $0xf8] sm:$0xff] %vm5182, %v12092
      %12141 = vst.msk [vmem:[%s388 + $0x100] sm:$0xff] %vm5182, %v12093
      %12142 = vst.msk [vmem:[%s388 + $0x108] sm:$0xff] %vm5182, %v12094
      %12143 = vst.msk [vmem:[%s388 + $0x110] sm:$0xff] %vm5182, %v12095
      %12144 = vst.msk [vmem:[%s388 + $0x118] sm:$0xff] %vm5182, %v12096
      %12145 = vst.msk [vmem:[%s388 + $0x120] sm:$0xff] %vm5182, %v12097
      %12146 = vst.msk [vmem:[%s388 + $0x128] sm:$0xff] %vm5182, %v12098
      %12147 = vst.msk [vmem:[%s388 + $0x130] sm:$0xff] %vm5182, %v12099
      %12148 = vst.msk [vmem:[%s388 + $0x138] sm:$0xff] %vm5182, %v12100
      %12149 = vst.msk [vmem:[%s388 + $0x140] sm:$0xff] %vm5182, %v12101
      %12150 = vst.msk [vmem:[%s388 + $0x148] sm:$0xff] %vm5182, %v12102
      %12151 = vst.msk [vmem:[%s388 + $0x150] sm:$0xff] %vm5182, %v12103
      %12152 = vst.msk [vmem:[%s388 + $0x158] sm:$0xff] %vm5182, %v12104
      %12153 = vst.msk [vmem:[%s388 + $0x160] sm:$0xff] %vm5182, %v12105
      %12154 = vst.msk [vmem:[%s388 + $0x168] sm:$0xff] %vm5182, %v12106
      %12155 = vst.msk [vmem:[%s388 + $0x170] sm:$0xff] %vm5182, %v12107
      %12156 = vst.msk [vmem:[%s388 + $0x178] sm:$0xff] %vm5182, %v12108
      %s12157 = smul.u32 48, %s22
      %p12158 = scmp.lt.s32.totalorder %s12157, 95
      %s12159 = scalar_select %p12158, %s12157, 95
      %s12160 = smul.addr %s12159, 8
      %s12161 = scalar_lea.vmem %s11, %s12160
      // Predicated region
      $region65: #{tpu_custom_call.1} parent=63 // pred_check
        %p12162 = pneg %p276
      $region66: #{tpu_custom_call.1} parent=63 // pred_check_branch
        %12164 = sbr.rel (%p12162) target = $region68
      $region67: #{tpu_custom_call.1} parent=63 // pred_region
        %s12165 = smul.u32 48, %s22
      $region68: #{tpu_custom_call.1} parent=63 // pred_fallthru
        _
    $region64: #{tpu_custom_call.1} parent=5 // pred_fallthru
      _
    %p12166 = scmp.le.s32.totalorder 2, %s17
    // Predicated region
    $region69: #{tpu_custom_call.1} parent=5 // pred_check
      %p12167 = pneg %p12166
    $region70: #{tpu_custom_call.1} parent=5 // pred_check_branch
      %12169 = sbr.rel (%p12167) target = $region72
    $region71: #{tpu_custom_call.1} parent=5 // pred_region
      %s12170 = ssub.s32 %s17, 2
      // Predicated region
      $region73: #{tpu_custom_call.1} parent=71 // pred_check
        %p12171 = pneg %p282
      $region74: #{tpu_custom_call.1} parent=71 // pred_check_branch
        %12173 = sbr.rel (%p12171) target = $region76
      $region75: #{tpu_custom_call.1} parent=71 // pred_region
        %s12174 = smul.u32 48, %s23
        %p12175 = scmp.lt.s32.totalorder %s12174, 95
        %s12176 = scalar_select %p12175, %s12174, 95
        %s12177 = smul.addr %s12176, 8
        %s12178 = scalar_lea.vmem %s11, %s12177
      $region76: #{tpu_custom_call.1} parent=71 // pred_fallthru
        _
    $region72: #{tpu_custom_call.1} parent=5 // pred_fallthru
      _
  $region6: #{tpu_custom_call.1} parent=0 // loop_footer
    %s21 = sadd.s32 1, %s17
  $region7: #{tpu_custom_call.1} parent=0 // loop_footer_branch
    %16 = sbr.rel target = $region3
  $region8: #{tpu_custom_call.1} parent=0 // loop_exit
    _

</llo_original>
